<compile_context>
chip_gen: v7x
topology: tpu7x:2x2x1
jax: 0.10.0
libtpu: 0.0.40
codegen_flags: <defaults>
</compile_context>

<pallas_src>
import jax
import jax.numpy as jnp
from jax.experimental import pallas as pl
from jax.experimental.pallas import tpu as pltpu

INPUT_SIZE = 784
HIDDEN = 1000
NUM_CLASSES = 10

# lane/MXU-friendly padded sizes (multiples of 128); K=784 is left un-padded.
HID_PAD = 1024
CLS_PAD = 128

NEG_BIG = -1e30  # masks padded class lanes before log_softmax (exp -> 0)


def _round_up(x, m):
    return (x + m - 1) // m * m


# ---------------------------------------------------------------------------
# Kernel: one batch tile per grid step. Weights/scales/biases use constant
# index_maps (and single-buffered pipelining) so they are fetched into VMEM
# once and stay resident across batch tiles.
# ---------------------------------------------------------------------------
def nnwn_kernel(x_ref,
                w1_ref, s1_ref, b1_ref,
                w2_ref, s2_ref, b2_ref,
                w3_ref, s3_ref, b3_ref,
                out_ref):

    def wn_linear(h_bf16, w_ref, s_ref, b_ref):
        # bf16 x bf16 matmul with f32 accumulation on the MXU; the precomputed
        # weight-norm scale and bias are applied in f32 on the VPU.
        y = jnp.dot(h_bf16, w_ref[...], preferred_element_type=jnp.float32)
        return y * s_ref[...] + b_ref[...]

    x = x_ref[...]                                            # (tb, 784) bf16
    h1 = jnp.maximum(wn_linear(x, w1_ref, s1_ref, b1_ref), 0.0)
    h2 = jnp.maximum(
        wn_linear(h1.astype(jnp.bfloat16), w2_ref, s2_ref, b2_ref), 0.0)
    logits = wn_linear(h2.astype(jnp.bfloat16), w3_ref, s3_ref, b3_ref)

    # log_softmax along the (lane-dense, 128-wide) class dim; padded lanes
    # carry a -1e30 bias so they contribute exp(...) == 0.
    m = jnp.max(logits, axis=1, keepdims=True)
    shifted = logits - m
    lse = jnp.log(jnp.sum(jnp.exp(shifted), axis=1, keepdims=True))
    out_ref[...] = (shifted - lse).astype(out_ref.dtype)


# ---------------------------------------------------------------------------
# Parameter construction (torch Linear + weight_norm style init)
# ---------------------------------------------------------------------------
def make_params(key):
    def layer(k, fan_in, fan_out):
        k1, k2 = jax.random.split(k)
        bound = 1.0 / jnp.sqrt(jnp.float32(fan_in))
        v = jax.random.uniform(k1, (fan_out, fan_in), jnp.float32, -bound, bound)
        g = jnp.sqrt(jnp.sum(v * v, axis=1))           # weight_norm init: g = ||v||_row
        b = jax.random.uniform(k2, (fan_out,), jnp.float32, -bound, bound)
        # store transposed (in, out) / as row vectors
        return v.T, g.reshape(1, -1), b.reshape(1, -1)

    k1, k2, k3 = jax.random.split(key, 3)
    return (layer(k1, INPUT_SIZE, HIDDEN),
            layer(k2, HIDDEN, HIDDEN),
            layer(k3, HIDDEN, NUM_CLASSES))


def prepare_params(params):
    """Hoist the weight-norm scale out of the kernel, pad the *output* dims to
    lane-friendly shapes, and cast weights to bf16. Done once, not per forward."""
    (v1, g1, b1), (v2, g2, b2), (v3, g3, b3) = params

    def prep(v, g, b, in_pad, out_pad, pad_bias):
        n_in, n_out = v.shape
        col_norm = jnp.sqrt(jnp.sum(v * v, axis=0, keepdims=True))   # (1, out)
        scale = g / col_norm                                          # (1, out)
        w = jnp.pad(v.astype(jnp.bfloat16),
                    ((0, in_pad - n_in), (0, out_pad - n_out)))
        s = jnp.pad(scale.astype(jnp.float32), ((0, 0), (0, out_pad - n_out)))
        bb = jnp.pad(b.astype(jnp.float32), ((0, 0), (0, out_pad - n_out)),
                     constant_values=pad_bias)
        return w, s, bb

    p1 = prep(v1, g1, b1, INPUT_SIZE, HID_PAD, 0.0)    # K=784 not padded
    p2 = prep(v2, g2, b2, HID_PAD, HID_PAD, 0.0)
    p3 = prep(v3, g3, b3, HID_PAD, CLS_PAD, NEG_BIG)   # mask padded class lanes
    return p1 + p2 + p3                                # flat tuple of 9 arrays


# ---------------------------------------------------------------------------
# Forward wrapper
# ---------------------------------------------------------------------------
def nnwn_forward(x, prepared):
    # x.view(-1, 784); single cast to bf16 (no f32 intermediate copy).
    xb = x.reshape(-1, INPUT_SIZE).astype(jnp.bfloat16)
    B = xb.shape[0]

    # Batch tile: multiple of 16 (bf16 sublane packing). For B >= 32 split into
    # at least two tiles so the "parallel" batch axis shards across the two
    # v7x TensorCores; cap at 256 rows per tile.
    if B >= 32:
        tb = min(256, _round_up(-(-B // 2), 16))
    else:
        tb = _round_up(max(B, 16), 16)
    Bp = _round_up(B, tb)
    num_tiles = Bp // tb

    if Bp != B:
        xb = jnp.pad(xb, ((0, Bp - B), (0, 0)))        # row-only pad

    def const_spec(a):
        # Constant index_map: fetched once, stays VMEM-resident; Buffered(1)
        # avoids allocating a second (never used) pipeline buffer.
        return pl.BlockSpec(a.shape, lambda i, n=a.ndim: (0,) * n,
                            pipeline_mode=pl.Buffered(1))

    weight_bytes = sum(int(a.size) * a.dtype.itemsize for a in prepared)
    cost = pl.CostEstimate(
        flops=2 * Bp * (INPUT_SIZE * HID_PAD + HID_PAD * HID_PAD
                        + HID_PAD * CLS_PAD),
        transcendentals=Bp * CLS_PAD,
        bytes_accessed=weight_bytes + Bp * INPUT_SIZE * 2 + Bp * CLS_PAD * 4,
    )

    out = pl.pallas_call(
        nnwn_kernel,
        out_shape=jax.ShapeDtypeStruct((Bp, CLS_PAD), jnp.float32),
        grid=(num_tiles,),
        in_specs=[pl.BlockSpec((tb, INPUT_SIZE), lambda i: (i, 0))]
                 + [const_spec(a) for a in prepared],
        out_specs=pl.BlockSpec((tb, CLS_PAD), lambda i: (i, 0)),
        compiler_params=pltpu.CompilerParams(
            dimension_semantics=("parallel",),
            vmem_limit_bytes=32 << 20),
        cost_estimate=cost,
    )(xb, *prepared)

    return out[:B, :NUM_CLASSES]


# ---------------------------------------------------------------------------
# Pure-JAX reference with matching (bf16 matmul, f32 accumulate) precision
# ---------------------------------------------------------------------------
def nnwn_reference(x, params):
    (v1, g1, b1), (v2, g2, b2), (v3, g3, b3) = params
    h = x.reshape(-1, INPUT_SIZE).astype(jnp.float32)

    def wn_linear(h, v, g, b):
        scale = g / jnp.sqrt(jnp.sum(v * v, axis=0, keepdims=True))
        y = jnp.dot(h.astype(jnp.bfloat16), v.astype(jnp.bfloat16),
                    preferred_element_type=jnp.float32)
        return y * scale + b

    h = jax.nn.relu(wn_linear(h, v1, g1, b1))
    h = jax.nn.relu(wn_linear(h, v2, g2, b2))
    return jax.nn.log_softmax(wn_linear(h, v3, g3, b3), axis=1)


if __name__ == "__main__":
    key = jax.random.PRNGKey(0)
    kp, kx = jax.random.split(key)
    params = make_params(kp)
    prepared = prepare_params(params)

    # MNIST-like small batch, NCHW; forward flattens to (-1, 784).
    x = jax.random.normal(kx, (8, 1, 28, 28), jnp.float32)

    out = nnwn_forward(x, prepared)
    out = jax.block_until_ready(out)

    ref = nnwn_reference(x, params)
    assert out.shape == (8, NUM_CLASSES)
    assert bool(jnp.all(jnp.isfinite(out)))
    assert bool(jnp.allclose(out, ref, rtol=2e-3, atol=2e-3))

    print("KERNEL_OK")
</pallas_src>

<mosaic_0001>
module attributes {stable_mosaic.version = 11 : i64} {
  func.func @nnwn_kernel(%arg0: i32, %arg1: memref<16x784xbf16, #tpu.memory_space<vmem>>, %arg2: memref<784x1024xbf16, #tpu.memory_space<vmem>>, %arg3: memref<1x1024xf32, #tpu.memory_space<vmem>>, %arg4: memref<1x1024xf32, #tpu.memory_space<vmem>>, %arg5: memref<1024x1024xbf16, #tpu.memory_space<vmem>>, %arg6: memref<1x1024xf32, #tpu.memory_space<vmem>>, %arg7: memref<1x1024xf32, #tpu.memory_space<vmem>>, %arg8: memref<1024x128xbf16, #tpu.memory_space<vmem>>, %arg9: memref<1x128xf32, #tpu.memory_space<vmem>>, %arg10: memref<1x128xf32, #tpu.memory_space<vmem>>, %arg11: memref<16x128xf32, #tpu.memory_space<vmem>>) attributes {dimension_semantics = [#tpu.dimension_semantics<parallel>], iteration_bounds = array<i64: 1>, scalar_prefetch = 0 : i64, scratch_operands = 0 : i64, tpu.core_type = #tpu.core_type<tc>, window_params = [{transform_indices = @transform_0, window_bounds = array<i64: 16, 784>}, {pipeline_mode = #tpu.pipeline_mode<synchronous>, transform_indices = @transform_1, window_bounds = array<i64: 784, 1024>}, {pipeline_mode = #tpu.pipeline_mode<synchronous>, transform_indices = @transform_2, window_bounds = array<i64: 1, 1024>}, {pipeline_mode = #tpu.pipeline_mode<synchronous>, transform_indices = @transform_3, window_bounds = array<i64: 1, 1024>}, {pipeline_mode = #tpu.pipeline_mode<synchronous>, transform_indices = @transform_4, window_bounds = array<i64: 1024, 1024>}, {pipeline_mode = #tpu.pipeline_mode<synchronous>, transform_indices = @transform_5, window_bounds = array<i64: 1, 1024>}, {pipeline_mode = #tpu.pipeline_mode<synchronous>, transform_indices = @transform_6, window_bounds = array<i64: 1, 1024>}, {pipeline_mode = #tpu.pipeline_mode<synchronous>, transform_indices = @transform_7, window_bounds = array<i64: 1024, 128>}, {pipeline_mode = #tpu.pipeline_mode<synchronous>, transform_indices = @transform_8, window_bounds = array<i64: 1, 128>}, {pipeline_mode = #tpu.pipeline_mode<synchronous>, transform_indices = @transform_9, window_bounds = array<i64: 1, 128>}, {transform_indices = @transform_10, window_bounds = array<i64: 16, 128>}]} {
    %c0 = arith.constant 0 : index
    %c0_0 = arith.constant 0 : index
    %0 = vector.load %arg1[%c0, %c0_0] : memref<16x784xbf16, #tpu.memory_space<vmem>>, vector<16x784xbf16>
    %c0_1 = arith.constant 0 : index
    %c0_2 = arith.constant 0 : index
    %1 = vector.load %arg2[%c0_1, %c0_2] : memref<784x1024xbf16, #tpu.memory_space<vmem>>, vector<784x1024xbf16>
    %cst = arith.constant dense<0.000000e+00> : vector<16x1024xf32>
    %2 = tpu.matmul %0, %1, %cst {dimension_numbers = #tpu.dot_dimension_numbers<[1], [0], [0], [1], [0, 0, 1, 1], [], []>} : vector<16x784xbf16>, vector<784x1024xbf16>, vector<16x1024xf32> -> vector<16x1024xf32>
    %c0_3 = arith.constant 0 : index
    %c0_4 = arith.constant 0 : index
    %3 = vector.load %arg3[%c0_3, %c0_4] : memref<1x1024xf32, #tpu.memory_space<vmem>>, vector<1x1024xf32>
    %4 = vector.broadcast %3 : vector<1x1024xf32> to vector<16x1024xf32>
    %5 = arith.mulf %2, %4 : vector<16x1024xf32>
    %c0_5 = arith.constant 0 : index
    %c0_6 = arith.constant 0 : index
    %6 = vector.load %arg4[%c0_5, %c0_6] : memref<1x1024xf32, #tpu.memory_space<vmem>>, vector<1x1024xf32>
    %7 = vector.broadcast %6 : vector<1x1024xf32> to vector<16x1024xf32>
    %8 = arith.addf %5, %7 : vector<16x1024xf32>
    %cst_7 = arith.constant 0.000000e+00 : f32
    %9 = vector.broadcast %cst_7 : f32 to vector<16x1024xf32>
    %10 = arith.maximumf %8, %9 : vector<16x1024xf32>
    %11 = arith.truncf %10 : vector<16x1024xf32> to vector<16x1024xbf16>
    %c0_8 = arith.constant 0 : index
    %c0_9 = arith.constant 0 : index
    %12 = vector.load %arg5[%c0_8, %c0_9] : memref<1024x1024xbf16, #tpu.memory_space<vmem>>, vector<1024x1024xbf16>
    %cst_10 = arith.constant dense<0.000000e+00> : vector<16x1024xf32>
    %13 = tpu.matmul %11, %12, %cst_10 {dimension_numbers = #tpu.dot_dimension_numbers<[1], [0], [0], [1], [0, 0, 1, 1], [], []>} : vector<16x1024xbf16>, vector<1024x1024xbf16>, vector<16x1024xf32> -> vector<16x1024xf32>
    %c0_11 = arith.constant 0 : index
    %c0_12 = arith.constant 0 : index
    %14 = vector.load %arg6[%c0_11, %c0_12] : memref<1x1024xf32, #tpu.memory_space<vmem>>, vector<1x1024xf32>
    %15 = vector.broadcast %14 : vector<1x1024xf32> to vector<16x1024xf32>
    %16 = arith.mulf %13, %15 : vector<16x1024xf32>
    %c0_13 = arith.constant 0 : index
    %c0_14 = arith.constant 0 : index
    %17 = vector.load %arg7[%c0_13, %c0_14] : memref<1x1024xf32, #tpu.memory_space<vmem>>, vector<1x1024xf32>
    %18 = vector.broadcast %17 : vector<1x1024xf32> to vector<16x1024xf32>
    %19 = arith.addf %16, %18 : vector<16x1024xf32>
    %cst_15 = arith.constant 0.000000e+00 : f32
    %20 = vector.broadcast %cst_15 : f32 to vector<16x1024xf32>
    %21 = arith.maximumf %19, %20 : vector<16x1024xf32>
    %22 = arith.truncf %21 : vector<16x1024xf32> to vector<16x1024xbf16>
    %c0_16 = arith.constant 0 : index
    %c0_17 = arith.constant 0 : index
    %23 = vector.load %arg8[%c0_16, %c0_17] : memref<1024x128xbf16, #tpu.memory_space<vmem>>, vector<1024x128xbf16>
    %cst_18 = arith.constant dense<0.000000e+00> : vector<16x128xf32>
    %24 = tpu.matmul %22, %23, %cst_18 {dimension_numbers = #tpu.dot_dimension_numbers<[1], [0], [0], [1], [0, 0, 1, 1], [], []>} : vector<16x1024xbf16>, vector<1024x128xbf16>, vector<16x128xf32> -> vector<16x128xf32>
    %c0_19 = arith.constant 0 : index
    %c0_20 = arith.constant 0 : index
    %25 = vector.load %arg9[%c0_19, %c0_20] : memref<1x128xf32, #tpu.memory_space<vmem>>, vector<1x128xf32>
    %26 = vector.broadcast %25 : vector<1x128xf32> to vector<16x128xf32>
    %27 = arith.mulf %24, %26 : vector<16x128xf32>
    %c0_21 = arith.constant 0 : index
    %c0_22 = arith.constant 0 : index
    %28 = vector.load %arg10[%c0_21, %c0_22] : memref<1x128xf32, #tpu.memory_space<vmem>>, vector<1x128xf32>
    %29 = vector.broadcast %28 : vector<1x128xf32> to vector<16x128xf32>
    %30 = arith.addf %27, %29 : vector<16x128xf32>
    %cst_23 = arith.constant dense<0xFF800000> : vector<16xf32>
    %31 = vector.multi_reduction <maximumf>, %30, %cst_23 [1] : vector<16x128xf32> to vector<16xf32>
    %32 = vector.shape_cast %31 : vector<16xf32> to vector<16x1xf32>
    %33 = vector.broadcast %32 : vector<16x1xf32> to vector<16x128xf32>
    %34 = arith.subf %30, %33 : vector<16x128xf32>
    %35 = math.exp %34 : vector<16x128xf32>
    %cst_24 = arith.constant dense<0.000000e+00> : vector<16xf32>
    %36 = vector.multi_reduction <add>, %35, %cst_24 [1] : vector<16x128xf32> to vector<16xf32>
    %37 = vector.shape_cast %36 : vector<16xf32> to vector<16x1xf32>
    %38 = math.log %37 : vector<16x1xf32>
    %39 = vector.broadcast %38 : vector<16x1xf32> to vector<16x128xf32>
    %40 = arith.subf %34, %39 : vector<16x128xf32>
    %c0_25 = arith.constant 0 : index
    %c0_26 = arith.constant 0 : index
    %41 = vector.load %arg11[%c0_25, %c0_26] : memref<16x128xf32, #tpu.memory_space<vmem>>, vector<16x128xf32>
    tpu.vector_store %arg11[%c0_25, %c0_26], %40 {strides = array<i32>} : memref<16x128xf32, #tpu.memory_space<vmem>>, vector<16x128xf32>,
    return
  }
  func.func @transform_0(%arg0: i32) -> (i32, i32) {
    %c0_i32 = arith.constant 0 : i32
    %c0_i32_0 = arith.constant 0 : i32
    return %arg0, %c0_i32 : i32, i32
  }
  func.func @transform_1(%arg0: i32) -> (i32, i32) {
    %c0_i32 = arith.constant 0 : i32
    %c0_i32_0 = arith.constant 0 : i32
    %c0_i32_1 = arith.constant 0 : i32
    return %c0_i32, %c0_i32_0 : i32, i32
  }
  func.func @transform_2(%arg0: i32) -> (i32, i32) {
    %c0_i32 = arith.constant 0 : i32
    %c0_i32_0 = arith.constant 0 : i32
    %c0_i32_1 = arith.constant 0 : i32
    return %c0_i32, %c0_i32_0 : i32, i32
  }
  func.func @transform_3(%arg0: i32) -> (i32, i32) {
    %c0_i32 = arith.constant 0 : i32
    %c0_i32_0 = arith.constant 0 : i32
    %c0_i32_1 = arith.constant 0 : i32
    return %c0_i32, %c0_i32_0 : i32, i32
  }
  func.func @transform_4(%arg0: i32) -> (i32, i32) {
    %c0_i32 = arith.constant 0 : i32
    %c0_i32_0 = arith.constant 0 : i32
    %c0_i32_1 = arith.constant 0 : i32
    return %c0_i32, %c0_i32_0 : i32, i32
  }
  func.func @transform_5(%arg0: i32) -> (i32, i32) {
    %c0_i32 = arith.constant 0 : i32
    %c0_i32_0 = arith.constant 0 : i32
    %c0_i32_1 = arith.constant 0 : i32
    return %c0_i32, %c0_i32_0 : i32, i32
  }
  func.func @transform_6(%arg0: i32) -> (i32, i32) {
    %c0_i32 = arith.constant 0 : i32
    %c0_i32_0 = arith.constant 0 : i32
    %c0_i32_1 = arith.constant 0 : i32
    return %c0_i32, %c0_i32_0 : i32, i32
  }
  func.func @transform_7(%arg0: i32) -> (i32, i32) {
    %c0_i32 = arith.constant 0 : i32
    %c0_i32_0 = arith.constant 0 : i32
    %c0_i32_1 = arith.constant 0 : i32
    return %c0_i32, %c0_i32_0 : i32, i32
  }
  func.func @transform_8(%arg0: i32) -> (i32, i32) {
    %c0_i32 = arith.constant 0 : i32
    %c0_i32_0 = arith.constant 0 : i32
    %c0_i32_1 = arith.constant 0 : i32
    return %c0_i32, %c0_i32_0 : i32, i32
  }
  func.func @transform_9(%arg0: i32) -> (i32, i32) {
    %c0_i32 = arith.constant 0 : i32
    %c0_i32_0 = arith.constant 0 : i32
    %c0_i32_1 = arith.constant 0 : i32
    return %c0_i32, %c0_i32_0 : i32, i32
  }
  func.func @transform_10(%arg0: i32) -> (i32, i32) {
    %c0_i32 = arith.constant 0 : i32
    %c0_i32_0 = arith.constant 0 : i32
    return %arg0, %c0_i32 : i32, i32
  }
}

</mosaic_0001>

<llo_original>
// kernel: tpu_custom_call.1
$region0: #{tpu_custom_call.1}
  #allocation0 [shape = 'u32[]', space=smem, size = 0x4, offset = 0x4, fixed_abs, tag = 'smem constant byte address 0x4 - core index']
  #allocation1 [shape = 'u32[144,128]{1,0:T(1,128)}', space=vmem, size = 0x12000, scoped, tag = 'internal scratch']
  %s0 = inlined_call_operand.hbm [shape: bf16[16,784], index: 0, kind: input, shape index: {}]
  %s1 = inlined_call_operand.hbm [shape: bf16[784,1024], index: 1, kind: input, shape index: {}]
  %s2 = inlined_call_operand.hbm [shape: f32[1,1024], index: 2, kind: input, shape index: {}]
  %s3 = inlined_call_operand.hbm [shape: f32[1,1024], index: 3, kind: input, shape index: {}]
  %s4 = inlined_call_operand.hbm [shape: bf16[1024,1024], index: 4, kind: input, shape index: {}]
  %s5 = inlined_call_operand.hbm [shape: f32[1,1024], index: 5, kind: input, shape index: {}]
  %s6 = inlined_call_operand.hbm [shape: f32[1,1024], index: 6, kind: input, shape index: {}]
  %s7 = inlined_call_operand.hbm [shape: bf16[1024,128], index: 7, kind: input, shape index: {}]
  %s8 = inlined_call_operand.hbm [shape: f32[1,128], index: 8, kind: input, shape index: {}]
  %s9 = inlined_call_operand.hbm [shape: f32[1,128], index: 9, kind: input, shape index: {}]
  %s10 = inlined_call_operand.hbm [shape: f32[16,128], index: 10, kind: output, shape index: {}]
  %s11 = sld [smem:[#allocation0]]
  $region90: #{tpu_custom_call.1} parent=0
    _
  %s13 = ssub.s32 1, %s11
  %s14 = scalar_select 0, %s13, %s11
  $region1: #{tpu_custom_call.1} parent=0
    #allocation2 [shape = 'u8[28672]{0}', space=vmem, size = 0x7000, scoped, tag = 'input window, operand 0, single buffered']
    #allocation3 [shape = 's32[1]{0}', space=sflag, size = 0x4, scoped, tag = 'scoped memory for tpu_custom_call.1']
    #allocation4 [shape = 's32[1]{0}', space=sflag, size = 0x4, scoped, tag = 'scoped memory for tpu_custom_call.1']
    #allocation5 [shape = 'u8[1605632]{0}', space=vmem, size = 0x188000, scoped, tag = 'input window, operand 1, single buffered']
    #allocation6 [shape = 's32[1]{0}', space=sflag, size = 0x4, scoped, tag = 'scoped memory for tpu_custom_call.1']
    #allocation7 [shape = 'u8[4096]{0}', space=vmem, size = 0x1000, scoped, tag = 'input window, operand 2, single buffered']
    #allocation8 [shape = 'u8[4096]{0}', space=vmem, size = 0x1000, scoped, tag = 'input window, operand 3, single buffered']
    #allocation9 [shape = 's32[1]{0}', space=sflag, size = 0x4, scoped, tag = 'scoped memory for tpu_custom_call.1']
    #allocation10 [shape = 'u8[2097152]{0}', space=vmem, size = 0x200000, scoped, tag = 'input window, operand 4, single buffered']
    #allocation11 [shape = 'u8[4096]{0}', space=vmem, size = 0x1000, scoped, tag = 'input window, operand 5, single buffered']
    #allocation12 [shape = 's32[1]{0}', space=sflag, size = 0x4, scoped, tag = 'scoped memory for tpu_custom_call.1']
    #allocation13 [shape = 'u8[4096]{0}', space=vmem, size = 0x1000, scoped, tag = 'input window, operand 6, single buffered']
    #allocation14 [shape = 'u8[262144]{0}', space=vmem, size = 0x40000, scoped, tag = 'input window, operand 7, single buffered']
    #allocation15 [shape = 's32[1]{0}', space=sflag, size = 0x4, scoped, tag = 'scoped memory for tpu_custom_call.1']
    #allocation16 [shape = 'u8[512]{0}', space=vmem, size = 0x400, scoped, tag = 'input window, operand 8, single buffered']
    #allocation17 [shape = 'u8[512]{0}', space=vmem, size = 0x400, scoped, tag = 'input window, operand 9, single buffered']
    #allocation18 [shape = 's32[1]{0}', space=sflag, size = 0x4, scoped, tag = 'scoped memory for tpu_custom_call.1']
    #allocation19 [shape = 'u8[8192]{0}', space=vmem, size = 0x2000, scoped, tag = 'output window, operand 0, single buffered']
    %15 = vsyncpa [#allocation3], 0
    %16 = vsyncpa [#allocation6], 0
    %17 = vsyncpa [#allocation9], 0
    %18 = vsyncpa [#allocation12], 0
    %19 = vsyncpa [#allocation15], 0
    %20 = vsyncpa [#allocation18], 0
    %21 = vsyncpa [#allocation4], 0
    // Predicated region
    $region2: #{tpu_custom_call.1} parent=1 // pred_check
      _
    $region3: #{tpu_custom_call.1} parent=1 // pred_check_branch
      %23 = sbr.rel (0) target = $region5
    $region4: #{tpu_custom_call.1} parent=1 // pred_region
      %s25 = ssub.s32 896, 896
      %26 = vsyncadd [#allocation3], %s25
      %s27 = sshll.u32 [#allocation2], 4
      %s28 = int_to_ptr.vmem [resolvable:$true] %s27
      %33 = dma.hbm_to_vmem [thread:$0]  %s0, 896, %s28, [#allocation3], 448, 448, 28
    $region5: #{tpu_custom_call.1} parent=1 // pred_fallthru
      _
    // Predicated region
    $region6: #{tpu_custom_call.1} parent=1 // pred_check
      _
    $region7: #{tpu_custom_call.1} parent=1 // pred_check_branch
      %35 = sbr.rel (0) target = $region9
    $region8: #{tpu_custom_call.1} parent=1 // pred_region
      %s37 = ssub.s32 50176, 50176
      %38 = vsyncadd [#allocation6], %s37
      %s39 = sshll.u32 [#allocation5], 4
      %s40 = int_to_ptr.vmem [resolvable:$true] %s39
      %45 = dma.hbm_to_vmem [thread:$0]  %s1, 50176, %s40, [#allocation6], 512, 512, 32
    $region9: #{tpu_custom_call.1} parent=1 // pred_fallthru
      _
    // Predicated region
    $region10: #{tpu_custom_call.1} parent=1 // pred_check
      _
    $region11: #{tpu_custom_call.1} parent=1 // pred_check_branch
      %47 = sbr.rel (0) target = $region13
    $region12: #{tpu_custom_call.1} parent=1 // pred_region
      %s49 = ssub.s32 128, 128
      %50 = vsyncadd [#allocation6], %s49
      %s52 = sshll.u32 [#allocation7], 4
      %s53 = int_to_ptr.vmem [resolvable:$true] %s52
      %55 = dma.hbm_to_vmem [thread:$0]  %s2, 128, %s53, [#allocation6]
    $region13: #{tpu_custom_call.1} parent=1 // pred_fallthru
      _
    // Predicated region
    $region14: #{tpu_custom_call.1} parent=1 // pred_check
      _
    $region15: #{tpu_custom_call.1} parent=1 // pred_check_branch
      %57 = sbr.rel (0) target = $region17
    $region16: #{tpu_custom_call.1} parent=1 // pred_region
      %s59 = ssub.s32 128, 128
      %60 = vsyncadd [#allocation9], %s59
      %s62 = sshll.u32 [#allocation8], 4
      %s63 = int_to_ptr.vmem [resolvable:$true] %s62
      %65 = dma.hbm_to_vmem [thread:$0]  %s3, 128, %s63, [#allocation9]
    $region17: #{tpu_custom_call.1} parent=1 // pred_fallthru
      _
    // Predicated region
    $region18: #{tpu_custom_call.1} parent=1 // pred_check
      _
    $region19: #{tpu_custom_call.1} parent=1 // pred_check_branch
      %67 = sbr.rel (0) target = $region21
    $region20: #{tpu_custom_call.1} parent=1 // pred_region
      %s69 = ssub.s32 65536, 65536
      %70 = vsyncadd [#allocation9], %s69
      %s71 = sshll.u32 [#allocation10], 4
      %s72 = int_to_ptr.vmem [resolvable:$true] %s71
      %77 = dma.hbm_to_vmem [thread:$0]  %s4, 65536, %s72, [#allocation9], 512, 512, 32
    $region21: #{tpu_custom_call.1} parent=1 // pred_fallthru
      _
    // Predicated region
    $region22: #{tpu_custom_call.1} parent=1 // pred_check
      _
    $region23: #{tpu_custom_call.1} parent=1 // pred_check_branch
      %79 = sbr.rel (0) target = $region25
    $region24: #{tpu_custom_call.1} parent=1 // pred_region
      %s81 = ssub.s32 128, 128
      %82 = vsyncadd [#allocation12], %s81
      %s84 = sshll.u32 [#allocation11], 4
      %s85 = int_to_ptr.vmem [resolvable:$true] %s84
      %87 = dma.hbm_to_vmem [thread:$0]  %s5, 128, %s85, [#allocation12]
    $region25: #{tpu_custom_call.1} parent=1 // pred_fallthru
      _
    // Predicated region
    $region26: #{tpu_custom_call.1} parent=1 // pred_check
      _
    $region27: #{tpu_custom_call.1} parent=1 // pred_check_branch
      %89 = sbr.rel (0) target = $region29
    $region28: #{tpu_custom_call.1} parent=1 // pred_region
      %s91 = ssub.s32 128, 128
      %92 = vsyncadd [#allocation12], %s91
      %s94 = sshll.u32 [#allocation13], 4
      %s95 = int_to_ptr.vmem [resolvable:$true] %s94
      %97 = dma.hbm_to_vmem [thread:$0]  %s6, 128, %s95, [#allocation12]
    $region29: #{tpu_custom_call.1} parent=1 // pred_fallthru
      _
    // Predicated region
    $region30: #{tpu_custom_call.1} parent=1 // pred_check
      _
    $region31: #{tpu_custom_call.1} parent=1 // pred_check_branch
      %99 = sbr.rel (0) target = $region33
    $region32: #{tpu_custom_call.1} parent=1 // pred_region
      %s101 = ssub.s32 8192, 8192
      %102 = vsyncadd [#allocation15], %s101
      %s103 = sshll.u32 [#allocation14], 4
      %s104 = int_to_ptr.vmem [resolvable:$true] %s103
      %109 = dma.hbm_to_vmem [thread:$0]  %s7, 8192, %s104, [#allocation15], 64, 64, 4
    $region33: #{tpu_custom_call.1} parent=1 // pred_fallthru
      _
    // Predicated region
    $region34: #{tpu_custom_call.1} parent=1 // pred_check
      _
    $region35: #{tpu_custom_call.1} parent=1 // pred_check_branch
      %111 = sbr.rel (0) target = $region37
    $region36: #{tpu_custom_call.1} parent=1 // pred_region
      %s113 = ssub.s32 16, 16
      %114 = vsyncadd [#allocation15], %s113
      %s116 = sshll.u32 [#allocation16], 4
      %s117 = int_to_ptr.vmem [resolvable:$true] %s116
      %119 = dma.hbm_to_vmem [thread:$0]  %s8, 16, %s117, [#allocation15]
    $region37: #{tpu_custom_call.1} parent=1 // pred_fallthru
      _
    // Predicated region
    $region38: #{tpu_custom_call.1} parent=1 // pred_check
      _
    $region39: #{tpu_custom_call.1} parent=1 // pred_check_branch
      %121 = sbr.rel (0) target = $region41
    $region40: #{tpu_custom_call.1} parent=1 // pred_region
      %s123 = ssub.s32 16, 16
      %124 = vsyncadd [#allocation18], %s123
      %s126 = sshll.u32 [#allocation17], 4
      %s127 = int_to_ptr.vmem [resolvable:$true] %s126
      %129 = dma.hbm_to_vmem [thread:$0]  %s9, 16, %s127, [#allocation18]
    $region41: #{tpu_custom_call.1} parent=1 // pred_fallthru
      _
    // Predicated region
    $region42: #{tpu_custom_call.1} parent=1 // pred_check
      _
    $region43: #{tpu_custom_call.1} parent=1 // pred_check_branch
      %131 = sbr.rel (0) target = $region45
    $region44: #{tpu_custom_call.1} parent=1 // pred_region
      %132 = dma.done [#allocation3], 896
    $region45: #{tpu_custom_call.1} parent=1 // pred_fallthru
      _
    // Predicated region
    $region46: #{tpu_custom_call.1} parent=1 // pred_check
      _
    $region47: #{tpu_custom_call.1} parent=1 // pred_check_branch
      %134 = sbr.rel (0) target = $region49
    $region48: #{tpu_custom_call.1} parent=1 // pred_region
      %135 = dma.done [#allocation6], 50176
    $region49: #{tpu_custom_call.1} parent=1 // pred_fallthru
      _
    // Predicated region
    $region50: #{tpu_custom_call.1} parent=1 // pred_check
      _
    $region51: #{tpu_custom_call.1} parent=1 // pred_check_branch
      %137 = sbr.rel (0) target = $region53
    $region52: #{tpu_custom_call.1} parent=1 // pred_region
      %138 = dma.done [#allocation6], 128
    $region53: #{tpu_custom_call.1} parent=1 // pred_fallthru
      _
    // Predicated region
    $region54: #{tpu_custom_call.1} parent=1 // pred_check
      _
    $region55: #{tpu_custom_call.1} parent=1 // pred_check_branch
      %140 = sbr.rel (0) target = $region57
    $region56: #{tpu_custom_call.1} parent=1 // pred_region
      %141 = dma.done [#allocation9], 128
    $region57: #{tpu_custom_call.1} parent=1 // pred_fallthru
      _
    // Predicated region
    $region58: #{tpu_custom_call.1} parent=1 // pred_check
      _
    $region59: #{tpu_custom_call.1} parent=1 // pred_check_branch
      %143 = sbr.rel (0) target = $region61
    $region60: #{tpu_custom_call.1} parent=1 // pred_region
      %144 = dma.done [#allocation9], 65536
    $region61: #{tpu_custom_call.1} parent=1 // pred_fallthru
      _
    // Predicated region
    $region62: #{tpu_custom_call.1} parent=1 // pred_check
      _
    $region63: #{tpu_custom_call.1} parent=1 // pred_check_branch
      %146 = sbr.rel (0) target = $region65
    $region64: #{tpu_custom_call.1} parent=1 // pred_region
      %147 = dma.done [#allocation12], 128
    $region65: #{tpu_custom_call.1} parent=1 // pred_fallthru
      _
    // Predicated region
    $region66: #{tpu_custom_call.1} parent=1 // pred_check
      _
    $region67: #{tpu_custom_call.1} parent=1 // pred_check_branch
      %149 = sbr.rel (0) target = $region69
    $region68: #{tpu_custom_call.1} parent=1 // pred_region
      %150 = dma.done [#allocation12], 128
    $region69: #{tpu_custom_call.1} parent=1 // pred_fallthru
      _
    // Predicated region
    $region70: #{tpu_custom_call.1} parent=1 // pred_check
      _
    $region71: #{tpu_custom_call.1} parent=1 // pred_check_branch
      %152 = sbr.rel (0) target = $region73
    $region72: #{tpu_custom_call.1} parent=1 // pred_region
      %153 = dma.done [#allocation15], 8192
    $region73: #{tpu_custom_call.1} parent=1 // pred_fallthru
      _
    // Predicated region
    $region74: #{tpu_custom_call.1} parent=1 // pred_check
      _
    $region75: #{tpu_custom_call.1} parent=1 // pred_check_branch
      %155 = sbr.rel (0) target = $region77
    $region76: #{tpu_custom_call.1} parent=1 // pred_region
      %156 = dma.done [#allocation15], 16
    $region77: #{tpu_custom_call.1} parent=1 // pred_fallthru
      _
    // Predicated region
    $region78: #{tpu_custom_call.1} parent=1 // pred_check
      _
    $region79: #{tpu_custom_call.1} parent=1 // pred_check_branch
      %158 = sbr.rel (0) target = $region81
    $region80: #{tpu_custom_call.1} parent=1 // pred_region
      %159 = dma.done [#allocation18], 16
    $region81: #{tpu_custom_call.1} parent=1 // pred_fallthru
      _
    %v161 = vld [vmem:[#allocation2] sm:$0xff]
    %v162 = vld [vmem:[#allocation2 + $0x8] sm:$0xff]
    %v163 = vld [vmem:[#allocation2 + $0x10] sm:$0xff]
    %v164 = vld [vmem:[#allocation2 + $0x18] sm:$0xf]
    %v165 = vld [vmem:[#allocation2 + $0x1c] sm:$0xff]
    %v166 = vld [vmem:[#allocation2 + $0x24] sm:$0xff]
    %v167 = vld [vmem:[#allocation2 + $0x2c] sm:$0xff]
    %v168 = vld [vmem:[#allocation2 + $0x34] sm:$0xf]
    %v169 = vld [vmem:[#allocation5] sm:$0xff]
    %v170 = vld [vmem:[#allocation5 + $0x8] sm:$0xff]
    %v171 = vld [vmem:[#allocation5 + $0x10] sm:$0xff]
    %v172 = vld [vmem:[#allocation5 + $0x18] sm:$0xff]
    %v173 = vld [vmem:[#allocation5 + $0x20] sm:$0xff]
    %v174 = vld [vmem:[#allocation5 + $0x28] sm:$0xff]
    %v175 = vld [vmem:[#allocation5 + $0x30] sm:$0xff]
    %v176 = vld [vmem:[#allocation5 + $0x38] sm:$0xff]
    %v177 = vld [vmem:[#allocation5 + $0x40] sm:$0xff]
    %v178 = vld [vmem:[#allocation5 + $0x48] sm:$0xff]
    %v179 = vld [vmem:[#allocation5 + $0x50] sm:$0xff]
    %v180 = vld [vmem:[#allocation5 + $0x58] sm:$0xff]
    %v181 = vld [vmem:[#allocation5 + $0x60] sm:$0xff]
    %v182 = vld [vmem:[#allocation5 + $0x68] sm:$0xff]
    %v183 = vld [vmem:[#allocation5 + $0x70] sm:$0xff]
    %v184 = vld [vmem:[#allocation5 + $0x78] sm:$0xff]
    %v185 = vld [vmem:[#allocation5 + $0x80] sm:$0xff]
    %v186 = vld [vmem:[#allocation5 + $0x88] sm:$0xff]
    %v187 = vld [vmem:[#allocation5 + $0x90] sm:$0xff]
    %v188 = vld [vmem:[#allocation5 + $0x98] sm:$0xff]
    %v189 = vld [vmem:[#allocation5 + $0xa0] sm:$0xff]
    %v190 = vld [vmem:[#allocation5 + $0xa8] sm:$0xff]
    %v191 = vld [vmem:[#allocation5 + $0xb0] sm:$0xff]
    %v192 = vld [vmem:[#allocation5 + $0xb8] sm:$0xff]
    %v193 = vld [vmem:[#allocation5 + $0xc0] sm:$0xff]
    %v194 = vld [vmem:[#allocation5 + $0xc8] sm:$0xff]
    %v195 = vld [vmem:[#allocation5 + $0xd0] sm:$0xff]
    %v196 = vld [vmem:[#allocation5 + $0xd8] sm:$0xff]
    %v197 = vld [vmem:[#allocation5 + $0xe0] sm:$0xff]
    %v198 = vld [vmem:[#allocation5 + $0xe8] sm:$0xff]
    %v199 = vld [vmem:[#allocation5 + $0xf0] sm:$0xff]
    %v200 = vld [vmem:[#allocation5 + $0xf8] sm:$0xff]
    %v201 = vld [vmem:[#allocation5 + $0x100] sm:$0xff]
    %v202 = vld [vmem:[#allocation5 + $0x108] sm:$0xff]
    %v203 = vld [vmem:[#allocation5 + $0x110] sm:$0xff]
    %v204 = vld [vmem:[#allocation5 + $0x118] sm:$0xff]
    %v205 = vld [vmem:[#allocation5 + $0x120] sm:$0xff]
    %v206 = vld [vmem:[#allocation5 + $0x128] sm:$0xff]
    %v207 = vld [vmem:[#allocation5 + $0x130] sm:$0xff]
    %v208 = vld [vmem:[#allocation5 + $0x138] sm:$0xff]
    %v209 = vld [vmem:[#allocation5 + $0x140] sm:$0xff]
    %v210 = vld [vmem:[#allocation5 + $0x148] sm:$0xff]
    %v211 = vld [vmem:[#allocation5 + $0x150] sm:$0xff]
    %v212 = vld [vmem:[#allocation5 + $0x158] sm:$0xff]
    %v213 = vld [vmem:[#allocation5 + $0x160] sm:$0xff]
    %v214 = vld [vmem:[#allocation5 + $0x168] sm:$0xff]
    %v215 = vld [vmem:[#allocation5 + $0x170] sm:$0xff]
    %v216 = vld [vmem:[#allocation5 + $0x178] sm:$0xff]
    %v217 = vld [vmem:[#allocation5 + $0x180] sm:$0xff]
    %v218 = vld [vmem:[#allocation5 + $0x188] sm:$0xff]
    %v219 = vld [vmem:[#allocation5 + $0x190] sm:$0xff]
    %v220 = vld [vmem:[#allocation5 + $0x198] sm:$0xff]
    %v221 = vld [vmem:[#allocation5 + $0x1a0] sm:$0xff]
    %v222 = vld [vmem:[#allocation5 + $0x1a8] sm:$0xff]
    %v223 = vld [vmem:[#allocation5 + $0x1b0] sm:$0xff]
    %v224 = vld [vmem:[#allocation5 + $0x1b8] sm:$0xff]
    %v225 = vld [vmem:[#allocation5 + $0x1c0] sm:$0xff]
    %v226 = vld [vmem:[#allocation5 + $0x1c8] sm:$0xff]
    %v227 = vld [vmem:[#allocation5 + $0x1d0] sm:$0xff]
    %v228 = vld [vmem:[#allocation5 + $0x1d8] sm:$0xff]
    %v229 = vld [vmem:[#allocation5 + $0x1e0] sm:$0xff]
    %v230 = vld [vmem:[#allocation5 + $0x1e8] sm:$0xff]
    %v231 = vld [vmem:[#allocation5 + $0x1f0] sm:$0xff]
    %v232 = vld [vmem:[#allocation5 + $0x1f8] sm:$0xff]
    %v233 = vld [vmem:[#allocation5 + $0x200] sm:$0xff]
    %v234 = vld [vmem:[#allocation5 + $0x208] sm:$0xff]
    %v235 = vld [vmem:[#allocation5 + $0x210] sm:$0xff]
    %v236 = vld [vmem:[#allocation5 + $0x218] sm:$0xff]
    %v237 = vld [vmem:[#allocation5 + $0x220] sm:$0xff]
    %v238 = vld [vmem:[#allocation5 + $0x228] sm:$0xff]
    %v239 = vld [vmem:[#allocation5 + $0x230] sm:$0xff]
    %v240 = vld [vmem:[#allocation5 + $0x238] sm:$0xff]
    %v241 = vld [vmem:[#allocation5 + $0x240] sm:$0xff]
    %v242 = vld [vmem:[#allocation5 + $0x248] sm:$0xff]
    %v243 = vld [vmem:[#allocation5 + $0x250] sm:$0xff]
    %v244 = vld [vmem:[#allocation5 + $0x258] sm:$0xff]
    %v245 = vld [vmem:[#allocation5 + $0x260] sm:$0xff]
    %v246 = vld [vmem:[#allocation5 + $0x268] sm:$0xff]
    %v247 = vld [vmem:[#allocation5 + $0x270] sm:$0xff]
    %v248 = vld [vmem:[#allocation5 + $0x278] sm:$0xff]
    %v249 = vld [vmem:[#allocation5 + $0x280] sm:$0xff]
    %v250 = vld [vmem:[#allocation5 + $0x288] sm:$0xff]
    %v251 = vld [vmem:[#allocation5 + $0x290] sm:$0xff]
    %v252 = vld [vmem:[#allocation5 + $0x298] sm:$0xff]
    %v253 = vld [vmem:[#allocation5 + $0x2a0] sm:$0xff]
    %v254 = vld [vmem:[#allocation5 + $0x2a8] sm:$0xff]
    %v255 = vld [vmem:[#allocation5 + $0x2b0] sm:$0xff]
    %v256 = vld [vmem:[#allocation5 + $0x2b8] sm:$0xff]
    %v257 = vld [vmem:[#allocation5 + $0x2c0] sm:$0xff]
    %v258 = vld [vmem:[#allocation5 + $0x2c8] sm:$0xff]
    %v259 = vld [vmem:[#allocation5 + $0x2d0] sm:$0xff]
    %v260 = vld [vmem:[#allocation5 + $0x2d8] sm:$0xff]
    %v261 = vld [vmem:[#allocation5 + $0x2e0] sm:$0xff]
    %v262 = vld [vmem:[#allocation5 + $0x2e8] sm:$0xff]
    %v263 = vld [vmem:[#allocation5 + $0x2f0] sm:$0xff]
    %v264 = vld [vmem:[#allocation5 + $0x2f8] sm:$0xff]
    %v265 = vld [vmem:[#allocation5 + $0x300] sm:$0xff]
    %v266 = vld [vmem:[#allocation5 + $0x308] sm:$0xff]
    %v267 = vld [vmem:[#allocation5 + $0x310] sm:$0xff]
    %v268 = vld [vmem:[#allocation5 + $0x318] sm:$0xff]
    %v269 = vld [vmem:[#allocation5 + $0x320] sm:$0xff]
    %v270 = vld [vmem:[#allocation5 + $0x328] sm:$0xff]
    %v271 = vld [vmem:[#allocation5 + $0x330] sm:$0xff]
    %v272 = vld [vmem:[#allocation5 + $0x338] sm:$0xff]
    %v273 = vld [vmem:[#allocation5 + $0x340] sm:$0xff]
    %v274 = vld [vmem:[#allocation5 + $0x348] sm:$0xff]
    %v275 = vld [vmem:[#allocation5 + $0x350] sm:$0xff]
    %v276 = vld [vmem:[#allocation5 + $0x358] sm:$0xff]
    %v277 = vld [vmem:[#allocation5 + $0x360] sm:$0xff]
    %v278 = vld [vmem:[#allocation5 + $0x368] sm:$0xff]
    %v279 = vld [vmem:[#allocation5 + $0x370] sm:$0xff]
    %v280 = vld [vmem:[#allocation5 + $0x378] sm:$0xff]
    %v281 = vld [vmem:[#allocation5 + $0x380] sm:$0xff]
    %v282 = vld [vmem:[#allocation5 + $0x388] sm:$0xff]
    %v283 = vld [vmem:[#allocation5 + $0x390] sm:$0xff]
    %v284 = vld [vmem:[#allocation5 + $0x398] sm:$0xff]
    %v285 = vld [vmem:[#allocation5 + $0x3a0] sm:$0xff]
    %v286 = vld [vmem:[#allocation5 + $0x3a8] sm:$0xff]
    %v287 = vld [vmem:[#allocation5 + $0x3b0] sm:$0xff]
    %v288 = vld [vmem:[#allocation5 + $0x3b8] sm:$0xff]
    %v289 = vld [vmem:[#allocation5 + $0x3c0] sm:$0xff]
    %v290 = vld [vmem:[#allocation5 + $0x3c8] sm:$0xff]
    %v291 = vld [vmem:[#allocation5 + $0x3d0] sm:$0xff]
    %v292 = vld [vmem:[#allocation5 + $0x3d8] sm:$0xff]
    %v293 = vld [vmem:[#allocation5 + $0x3e0] sm:$0xff]
    %v294 = vld [vmem:[#allocation5 + $0x3e8] sm:$0xff]
    %v295 = vld [vmem:[#allocation5 + $0x3f0] sm:$0xff]
    %v296 = vld [vmem:[#allocation5 + $0x3f8] sm:$0xff]
    %v297 = vld [vmem:[#allocation5 + $0x400] sm:$0xff]
    %v298 = vld [vmem:[#allocation5 + $0x408] sm:$0xff]
    %v299 = vld [vmem:[#allocation5 + $0x410] sm:$0xff]
    %v300 = vld [vmem:[#allocation5 + $0x418] sm:$0xff]
    %v301 = vld [vmem:[#allocation5 + $0x420] sm:$0xff]
    %v302 = vld [vmem:[#allocation5 + $0x428] sm:$0xff]
    %v303 = vld [vmem:[#allocation5 + $0x430] sm:$0xff]
    %v304 = vld [vmem:[#allocation5 + $0x438] sm:$0xff]
    %v305 = vld [vmem:[#allocation5 + $0x440] sm:$0xff]
    %v306 = vld [vmem:[#allocation5 + $0x448] sm:$0xff]
    %v307 = vld [vmem:[#allocation5 + $0x450] sm:$0xff]
    %v308 = vld [vmem:[#allocation5 + $0x458] sm:$0xff]
    %v309 = vld [vmem:[#allocation5 + $0x460] sm:$0xff]
    %v310 = vld [vmem:[#allocation5 + $0x468] sm:$0xff]
    %v311 = vld [vmem:[#allocation5 + $0x470] sm:$0xff]
    %v312 = vld [vmem:[#allocation5 + $0x478] sm:$0xff]
    %v313 = vld [vmem:[#allocation5 + $0x480] sm:$0xff]
    %v314 = vld [vmem:[#allocation5 + $0x488] sm:$0xff]
    %v315 = vld [vmem:[#allocation5 + $0x490] sm:$0xff]
    %v316 = vld [vmem:[#allocation5 + $0x498] sm:$0xff]
    %v317 = vld [vmem:[#allocation5 + $0x4a0] sm:$0xff]
    %v318 = vld [vmem:[#allocation5 + $0x4a8] sm:$0xff]
    %v319 = vld [vmem:[#allocation5 + $0x4b0] sm:$0xff]
    %v320 = vld [vmem:[#allocation5 + $0x4b8] sm:$0xff]
    %v321 = vld [vmem:[#allocation5 + $0x4c0] sm:$0xff]
    %v322 = vld [vmem:[#allocation5 + $0x4c8] sm:$0xff]
    %v323 = vld [vmem:[#allocation5 + $0x4d0] sm:$0xff]
    %v324 = vld [vmem:[#allocation5 + $0x4d8] sm:$0xff]
    %v325 = vld [vmem:[#allocation5 + $0x4e0] sm:$0xff]
    %v326 = vld [vmem:[#allocation5 + $0x4e8] sm:$0xff]
    %v327 = vld [vmem:[#allocation5 + $0x4f0] sm:$0xff]
    %v328 = vld [vmem:[#allocation5 + $0x4f8] sm:$0xff]
    %v329 = vld [vmem:[#allocation5 + $0x500] sm:$0xff]
    %v330 = vld [vmem:[#allocation5 + $0x508] sm:$0xff]
    %v331 = vld [vmem:[#allocation5 + $0x510] sm:$0xff]
    %v332 = vld [vmem:[#allocation5 + $0x518] sm:$0xff]
    %v333 = vld [vmem:[#allocation5 + $0x520] sm:$0xff]
    %v334 = vld [vmem:[#allocation5 + $0x528] sm:$0xff]
    %v335 = vld [vmem:[#allocation5 + $0x530] sm:$0xff]
    %v336 = vld [vmem:[#allocation5 + $0x538] sm:$0xff]
    %v337 = vld [vmem:[#allocation5 + $0x540] sm:$0xff]
    %v338 = vld [vmem:[#allocation5 + $0x548] sm:$0xff]
    %v339 = vld [vmem:[#allocation5 + $0x550] sm:$0xff]
    %v340 = vld [vmem:[#allocation5 + $0x558] sm:$0xff]
    %v341 = vld [vmem:[#allocation5 + $0x560] sm:$0xff]
    %v342 = vld [vmem:[#allocation5 + $0x568] sm:$0xff]
    %v343 = vld [vmem:[#allocation5 + $0x570] sm:$0xff]
    %v344 = vld [vmem:[#allocation5 + $0x578] sm:$0xff]
    %v345 = vld [vmem:[#allocation5 + $0x580] sm:$0xff]
    %v346 = vld [vmem:[#allocation5 + $0x588] sm:$0xff]
    %v347 = vld [vmem:[#allocation5 + $0x590] sm:$0xff]
    %v348 = vld [vmem:[#allocation5 + $0x598] sm:$0xff]
    %v349 = vld [vmem:[#allocation5 + $0x5a0] sm:$0xff]
    %v350 = vld [vmem:[#allocation5 + $0x5a8] sm:$0xff]
    %v351 = vld [vmem:[#allocation5 + $0x5b0] sm:$0xff]
    %v352 = vld [vmem:[#allocation5 + $0x5b8] sm:$0xff]
    %v353 = vld [vmem:[#allocation5 + $0x5c0] sm:$0xff]
    %v354 = vld [vmem:[#allocation5 + $0x5c8] sm:$0xff]
    %v355 = vld [vmem:[#allocation5 + $0x5d0] sm:$0xff]
    %v356 = vld [vmem:[#allocation5 + $0x5d8] sm:$0xff]
    %v357 = vld [vmem:[#allocation5 + $0x5e0] sm:$0xff]
    %v358 = vld [vmem:[#allocation5 + $0x5e8] sm:$0xff]
    %v359 = vld [vmem:[#allocation5 + $0x5f0] sm:$0xff]
    %v360 = vld [vmem:[#allocation5 + $0x5f8] sm:$0xff]
    %v361 = vld [vmem:[#allocation5 + $0x600] sm:$0xff]
    %v362 = vld [vmem:[#allocation5 + $0x608] sm:$0xff]
    %v363 = vld [vmem:[#allocation5 + $0x610] sm:$0xff]
    %v364 = vld [vmem:[#allocation5 + $0x618] sm:$0xff]
    %v365 = vld [vmem:[#allocation5 + $0x620] sm:$0xff]
    %v366 = vld [vmem:[#allocation5 + $0x628] sm:$0xff]
    %v367 = vld [vmem:[#allocation5 + $0x630] sm:$0xff]
    %v368 = vld [vmem:[#allocation5 + $0x638] sm:$0xff]
    %v369 = vld [vmem:[#allocation5 + $0x640] sm:$0xff]
    %v370 = vld [vmem:[#allocation5 + $0x648] sm:$0xff]
    %v371 = vld [vmem:[#allocation5 + $0x650] sm:$0xff]
    %v372 = vld [vmem:[#allocation5 + $0x658] sm:$0xff]
    %v373 = vld [vmem:[#allocation5 + $0x660] sm:$0xff]
    %v374 = vld [vmem:[#allocation5 + $0x668] sm:$0xff]
    %v375 = vld [vmem:[#allocation5 + $0x670] sm:$0xff]
    %v376 = vld [vmem:[#allocation5 + $0x678] sm:$0xff]
    %v377 = vld [vmem:[#allocation5 + $0x680] sm:$0xff]
    %v378 = vld [vmem:[#allocation5 + $0x688] sm:$0xff]
    %v379 = vld [vmem:[#allocation5 + $0x690] sm:$0xff]
    %v380 = vld [vmem:[#allocation5 + $0x698] sm:$0xff]
    %v381 = vld [vmem:[#allocation5 + $0x6a0] sm:$0xff]
    %v382 = vld [vmem:[#allocation5 + $0x6a8] sm:$0xff]
    %v383 = vld [vmem:[#allocation5 + $0x6b0] sm:$0xff]
    %v384 = vld [vmem:[#allocation5 + $0x6b8] sm:$0xff]
    %v385 = vld [vmem:[#allocation5 + $0x6c0] sm:$0xff]
    %v386 = vld [vmem:[#allocation5 + $0x6c8] sm:$0xff]
    %v387 = vld [vmem:[#allocation5 + $0x6d0] sm:$0xff]
    %v388 = vld [vmem:[#allocation5 + $0x6d8] sm:$0xff]
    %v389 = vld [vmem:[#allocation5 + $0x6e0] sm:$0xff]
    %v390 = vld [vmem:[#allocation5 + $0x6e8] sm:$0xff]
    %v391 = vld [vmem:[#allocation5 + $0x6f0] sm:$0xff]
    %v392 = vld [vmem:[#allocation5 + $0x6f8] sm:$0xff]
    %v393 = vld [vmem:[#allocation5 + $0x700] sm:$0xff]
    %v394 = vld [vmem:[#allocation5 + $0x708] sm:$0xff]
    %v395 = vld [vmem:[#allocation5 + $0x710] sm:$0xff]
    %v396 = vld [vmem:[#allocation5 + $0x718] sm:$0xff]
    %v397 = vld [vmem:[#allocation5 + $0x720] sm:$0xff]
    %v398 = vld [vmem:[#allocation5 + $0x728] sm:$0xff]
    %v399 = vld [vmem:[#allocation5 + $0x730] sm:$0xff]
    %v400 = vld [vmem:[#allocation5 + $0x738] sm:$0xff]
    %v401 = vld [vmem:[#allocation5 + $0x740] sm:$0xff]
    %v402 = vld [vmem:[#allocation5 + $0x748] sm:$0xff]
    %v403 = vld [vmem:[#allocation5 + $0x750] sm:$0xff]
    %v404 = vld [vmem:[#allocation5 + $0x758] sm:$0xff]
    %v405 = vld [vmem:[#allocation5 + $0x760] sm:$0xff]
    %v406 = vld [vmem:[#allocation5 + $0x768] sm:$0xff]
    %v407 = vld [vmem:[#allocation5 + $0x770] sm:$0xff]
    %v408 = vld [vmem:[#allocation5 + $0x778] sm:$0xff]
    %v409 = vld [vmem:[#allocation5 + $0x780] sm:$0xff]
    %v410 = vld [vmem:[#allocation5 + $0x788] sm:$0xff]
    %v411 = vld [vmem:[#allocation5 + $0x790] sm:$0xff]
    %v412 = vld [vmem:[#allocation5 + $0x798] sm:$0xff]
    %v413 = vld [vmem:[#allocation5 + $0x7a0] sm:$0xff]
    %v414 = vld [vmem:[#allocation5 + $0x7a8] sm:$0xff]
    %v415 = vld [vmem:[#allocation5 + $0x7b0] sm:$0xff]
    %v416 = vld [vmem:[#allocation5 + $0x7b8] sm:$0xff]
    %v417 = vld [vmem:[#allocation5 + $0x7c0] sm:$0xff]
    %v418 = vld [vmem:[#allocation5 + $0x7c8] sm:$0xff]
    %v419 = vld [vmem:[#allocation5 + $0x7d0] sm:$0xff]
    %v420 = vld [vmem:[#allocation5 + $0x7d8] sm:$0xff]
    %v421 = vld [vmem:[#allocation5 + $0x7e0] sm:$0xff]
    %v422 = vld [vmem:[#allocation5 + $0x7e8] sm:$0xff]
    %v423 = vld [vmem:[#allocation5 + $0x7f0] sm:$0xff]
    %v424 = vld [vmem:[#allocation5 + $0x7f8] sm:$0xff]
    %v425 = vld [vmem:[#allocation5 + $0x800] sm:$0xff]
    %v426 = vld [vmem:[#allocation5 + $0x808] sm:$0xff]
    %v427 = vld [vmem:[#allocation5 + $0x810] sm:$0xff]
    %v428 = vld [vmem:[#allocation5 + $0x818] sm:$0xff]
    %v429 = vld [vmem:[#allocation5 + $0x820] sm:$0xff]
    %v430 = vld [vmem:[#allocation5 + $0x828] sm:$0xff]
    %v431 = vld [vmem:[#allocation5 + $0x830] sm:$0xff]
    %v432 = vld [vmem:[#allocation5 + $0x838] sm:$0xff]
    %v433 = vld [vmem:[#allocation5 + $0x840] sm:$0xff]
    %v434 = vld [vmem:[#allocation5 + $0x848] sm:$0xff]
    %v435 = vld [vmem:[#allocation5 + $0x850] sm:$0xff]
    %v436 = vld [vmem:[#allocation5 + $0x858] sm:$0xff]
    %v437 = vld [vmem:[#allocation5 + $0x860] sm:$0xff]
    %v438 = vld [vmem:[#allocation5 + $0x868] sm:$0xff]
    %v439 = vld [vmem:[#allocation5 + $0x870] sm:$0xff]
    %v440 = vld [vmem:[#allocation5 + $0x878] sm:$0xff]
    %v441 = vld [vmem:[#allocation5 + $0x880] sm:$0xff]
    %v442 = vld [vmem:[#allocation5 + $0x888] sm:$0xff]
    %v443 = vld [vmem:[#allocation5 + $0x890] sm:$0xff]
    %v444 = vld [vmem:[#allocation5 + $0x898] sm:$0xff]
    %v445 = vld [vmem:[#allocation5 + $0x8a0] sm:$0xff]
    %v446 = vld [vmem:[#allocation5 + $0x8a8] sm:$0xff]
    %v447 = vld [vmem:[#allocation5 + $0x8b0] sm:$0xff]
    %v448 = vld [vmem:[#allocation5 + $0x8b8] sm:$0xff]
    %v449 = vld [vmem:[#allocation5 + $0x8c0] sm:$0xff]
    %v450 = vld [vmem:[#allocation5 + $0x8c8] sm:$0xff]
    %v451 = vld [vmem:[#allocation5 + $0x8d0] sm:$0xff]
    %v452 = vld [vmem:[#allocation5 + $0x8d8] sm:$0xff]
    %v453 = vld [vmem:[#allocation5 + $0x8e0] sm:$0xff]
    %v454 = vld [vmem:[#allocation5 + $0x8e8] sm:$0xff]
    %v455 = vld [vmem:[#allocation5 + $0x8f0] sm:$0xff]
    %v456 = vld [vmem:[#allocation5 + $0x8f8] sm:$0xff]
    %v457 = vld [vmem:[#allocation5 + $0x900] sm:$0xff]
    %v458 = vld [vmem:[#allocation5 + $0x908] sm:$0xff]
    %v459 = vld [vmem:[#allocation5 + $0x910] sm:$0xff]
    %v460 = vld [vmem:[#allocation5 + $0x918] sm:$0xff]
    %v461 = vld [vmem:[#allocation5 + $0x920] sm:$0xff]
    %v462 = vld [vmem:[#allocation5 + $0x928] sm:$0xff]
    %v463 = vld [vmem:[#allocation5 + $0x930] sm:$0xff]
    %v464 = vld [vmem:[#allocation5 + $0x938] sm:$0xff]
    %v465 = vld [vmem:[#allocation5 + $0x940] sm:$0xff]
    %v466 = vld [vmem:[#allocation5 + $0x948] sm:$0xff]
    %v467 = vld [vmem:[#allocation5 + $0x950] sm:$0xff]
    %v468 = vld [vmem:[#allocation5 + $0x958] sm:$0xff]
    %v469 = vld [vmem:[#allocation5 + $0x960] sm:$0xff]
    %v470 = vld [vmem:[#allocation5 + $0x968] sm:$0xff]
    %v471 = vld [vmem:[#allocation5 + $0x970] sm:$0xff]
    %v472 = vld [vmem:[#allocation5 + $0x978] sm:$0xff]
    %v473 = vld [vmem:[#allocation5 + $0x980] sm:$0xff]
    %v474 = vld [vmem:[#allocation5 + $0x988] sm:$0xff]
    %v475 = vld [vmem:[#allocation5 + $0x990] sm:$0xff]
    %v476 = vld [vmem:[#allocation5 + $0x998] sm:$0xff]
    %v477 = vld [vmem:[#allocation5 + $0x9a0] sm:$0xff]
    %v478 = vld [vmem:[#allocation5 + $0x9a8] sm:$0xff]
    %v479 = vld [vmem:[#allocation5 + $0x9b0] sm:$0xff]
    %v480 = vld [vmem:[#allocation5 + $0x9b8] sm:$0xff]
    %v481 = vld [vmem:[#allocation5 + $0x9c0] sm:$0xff]
    %v482 = vld [vmem:[#allocation5 + $0x9c8] sm:$0xff]
    %v483 = vld [vmem:[#allocation5 + $0x9d0] sm:$0xff]
    %v484 = vld [vmem:[#allocation5 + $0x9d8] sm:$0xff]
    %v485 = vld [vmem:[#allocation5 + $0x9e0] sm:$0xff]
    %v486 = vld [vmem:[#allocation5 + $0x9e8] sm:$0xff]
    %v487 = vld [vmem:[#allocation5 + $0x9f0] sm:$0xff]
    %v488 = vld [vmem:[#allocation5 + $0x9f8] sm:$0xff]
    %v489 = vld [vmem:[#allocation5 + $0xa00] sm:$0xff]
    %v490 = vld [vmem:[#allocation5 + $0xa08] sm:$0xff]
    %v491 = vld [vmem:[#allocation5 + $0xa10] sm:$0xff]
    %v492 = vld [vmem:[#allocation5 + $0xa18] sm:$0xff]
    %v493 = vld [vmem:[#allocation5 + $0xa20] sm:$0xff]
    %v494 = vld [vmem:[#allocation5 + $0xa28] sm:$0xff]
    %v495 = vld [vmem:[#allocation5 + $0xa30] sm:$0xff]
    %v496 = vld [vmem:[#allocation5 + $0xa38] sm:$0xff]
    %v497 = vld [vmem:[#allocation5 + $0xa40] sm:$0xff]
    %v498 = vld [vmem:[#allocation5 + $0xa48] sm:$0xff]
    %v499 = vld [vmem:[#allocation5 + $0xa50] sm:$0xff]
    %v500 = vld [vmem:[#allocation5 + $0xa58] sm:$0xff]
    %v501 = vld [vmem:[#allocation5 + $0xa60] sm:$0xff]
    %v502 = vld [vmem:[#allocation5 + $0xa68] sm:$0xff]
    %v503 = vld [vmem:[#allocation5 + $0xa70] sm:$0xff]
    %v504 = vld [vmem:[#allocation5 + $0xa78] sm:$0xff]
    %v505 = vld [vmem:[#allocation5 + $0xa80] sm:$0xff]
    %v506 = vld [vmem:[#allocation5 + $0xa88] sm:$0xff]
    %v507 = vld [vmem:[#allocation5 + $0xa90] sm:$0xff]
    %v508 = vld [vmem:[#allocation5 + $0xa98] sm:$0xff]
    %v509 = vld [vmem:[#allocation5 + $0xaa0] sm:$0xff]
    %v510 = vld [vmem:[#allocation5 + $0xaa8] sm:$0xff]
    %v511 = vld [vmem:[#allocation5 + $0xab0] sm:$0xff]
    %v512 = vld [vmem:[#allocation5 + $0xab8] sm:$0xff]
    %v513 = vld [vmem:[#allocation5 + $0xac0] sm:$0xff]
    %v514 = vld [vmem:[#allocation5 + $0xac8] sm:$0xff]
    %v515 = vld [vmem:[#allocation5 + $0xad0] sm:$0xff]
    %v516 = vld [vmem:[#allocation5 + $0xad8] sm:$0xff]
    %v517 = vld [vmem:[#allocation5 + $0xae0] sm:$0xff]
    %v518 = vld [vmem:[#allocation5 + $0xae8] sm:$0xff]
    %v519 = vld [vmem:[#allocation5 + $0xaf0] sm:$0xff]
    %v520 = vld [vmem:[#allocation5 + $0xaf8] sm:$0xff]
    %v521 = vld [vmem:[#allocation5 + $0xb00] sm:$0xff]
    %v522 = vld [vmem:[#allocation5 + $0xb08] sm:$0xff]
    %v523 = vld [vmem:[#allocation5 + $0xb10] sm:$0xff]
    %v524 = vld [vmem:[#allocation5 + $0xb18] sm:$0xff]
    %v525 = vld [vmem:[#allocation5 + $0xb20] sm:$0xff]
    %v526 = vld [vmem:[#allocation5 + $0xb28] sm:$0xff]
    %v527 = vld [vmem:[#allocation5 + $0xb30] sm:$0xff]
    %v528 = vld [vmem:[#allocation5 + $0xb38] sm:$0xff]
    %v529 = vld [vmem:[#allocation5 + $0xb40] sm:$0xff]
    %v530 = vld [vmem:[#allocation5 + $0xb48] sm:$0xff]
    %v531 = vld [vmem:[#allocation5 + $0xb50] sm:$0xff]
    %v532 = vld [vmem:[#allocation5 + $0xb58] sm:$0xff]
    %v533 = vld [vmem:[#allocation5 + $0xb60] sm:$0xff]
    %v534 = vld [vmem:[#allocation5 + $0xb68] sm:$0xff]
    %v535 = vld [vmem:[#allocation5 + $0xb70] sm:$0xff]
    %v536 = vld [vmem:[#allocation5 + $0xb78] sm:$0xff]
    %v537 = vld [vmem:[#allocation5 + $0xb80] sm:$0xff]
    %v538 = vld [vmem:[#allocation5 + $0xb88] sm:$0xff]
    %v539 = vld [vmem:[#allocation5 + $0xb90] sm:$0xff]
    %v540 = vld [vmem:[#allocation5 + $0xb98] sm:$0xff]
    %v541 = vld [vmem:[#allocation5 + $0xba0] sm:$0xff]
    %v542 = vld [vmem:[#allocation5 + $0xba8] sm:$0xff]
    %v543 = vld [vmem:[#allocation5 + $0xbb0] sm:$0xff]
    %v544 = vld [vmem:[#allocation5 + $0xbb8] sm:$0xff]
    %v545 = vld [vmem:[#allocation5 + $0xbc0] sm:$0xff]
    %v546 = vld [vmem:[#allocation5 + $0xbc8] sm:$0xff]
    %v547 = vld [vmem:[#allocation5 + $0xbd0] sm:$0xff]
    %v548 = vld [vmem:[#allocation5 + $0xbd8] sm:$0xff]
    %v549 = vld [vmem:[#allocation5 + $0xbe0] sm:$0xff]
    %v550 = vld [vmem:[#allocation5 + $0xbe8] sm:$0xff]
    %v551 = vld [vmem:[#allocation5 + $0xbf0] sm:$0xff]
    %v552 = vld [vmem:[#allocation5 + $0xbf8] sm:$0xff]
    %v553 = vld [vmem:[#allocation5 + $0xc00] sm:$0xff]
    %v554 = vld [vmem:[#allocation5 + $0xc08] sm:$0xff]
    %v555 = vld [vmem:[#allocation5 + $0xc10] sm:$0xff]
    %v556 = vld [vmem:[#allocation5 + $0xc18] sm:$0xff]
    %v557 = vld [vmem:[#allocation5 + $0xc20] sm:$0xff]
    %v558 = vld [vmem:[#allocation5 + $0xc28] sm:$0xff]
    %v559 = vld [vmem:[#allocation5 + $0xc30] sm:$0xff]
    %v560 = vld [vmem:[#allocation5 + $0xc38] sm:$0xff]
    %v569 = vunpack.c.l.b16 %v161
    %v570 = vunpack.c.h.b16 %v161
    %v571 = vunpack.c.l.b16 %v162
    %v572 = vunpack.c.h.b16 %v162
    %v573 = vunpack.c.l.b16 %v163
    %v574 = vunpack.c.h.b16 %v163
    %v575 = vunpack.c.l.b16 %v164
    %v576 = vunpack.c.l.b16 %v165
    %v577 = vunpack.c.h.b16 %v165
    %v578 = vunpack.c.l.b16 %v166
    %v579 = vunpack.c.h.b16 %v166
    %v580 = vunpack.c.l.b16 %v167
    %v581 = vunpack.c.h.b16 %v167
    %v582 = vunpack.c.l.b16 %v168
    %v583 = vpack.c.b16 %v576, %v569
    %v584 = vpack.c.b16 %v577, %v570
    %v585 = vpack.c.b16 %v578, %v571
    %v586 = vpack.c.b16 %v579, %v572
    %v587 = vpack.c.b16 %v580, %v573
    %v588 = vpack.c.b16 %v581, %v574
    %v589 = vpack.c.b16 %v582, %v575
    %v988 = vunpack.c.l.b16 %v169
    %v989 = vunpack.c.h.b16 %v169
    %v990 = vunpack.c.l.b16 %v170
    %v991 = vunpack.c.h.b16 %v170
    %v992 = vunpack.c.l.b16 %v171
    %v993 = vunpack.c.h.b16 %v171
    %v994 = vunpack.c.l.b16 %v172
    %v995 = vunpack.c.h.b16 %v172
    %v996 = vunpack.c.l.b16 %v173
    %v997 = vunpack.c.h.b16 %v173
    %v998 = vunpack.c.l.b16 %v174
    %v999 = vunpack.c.h.b16 %v174
    %v1000 = vunpack.c.l.b16 %v175
    %v1001 = vunpack.c.h.b16 %v175
    %v1002 = vunpack.c.l.b16 %v176
    %v1003 = vunpack.c.h.b16 %v176
    %v1004 = vunpack.c.l.b16 %v177
    %v1005 = vunpack.c.h.b16 %v177
    %v1006 = vunpack.c.l.b16 %v178
    %v1007 = vunpack.c.h.b16 %v178
    %v1008 = vunpack.c.l.b16 %v179
    %v1009 = vunpack.c.h.b16 %v179
    %v1010 = vunpack.c.l.b16 %v180
    %v1011 = vunpack.c.h.b16 %v180
    %v1012 = vunpack.c.l.b16 %v181
    %v1013 = vunpack.c.h.b16 %v181
    %v1014 = vunpack.c.l.b16 %v182
    %v1015 = vunpack.c.h.b16 %v182
    %v1016 = vunpack.c.l.b16 %v183
    %v1017 = vunpack.c.h.b16 %v183
    %v1018 = vunpack.c.l.b16 %v184
    %v1019 = vunpack.c.h.b16 %v184
    %v1020 = vunpack.c.l.b16 %v185
    %v1021 = vunpack.c.h.b16 %v185
    %v1022 = vunpack.c.l.b16 %v186
    %v1023 = vunpack.c.h.b16 %v186
    %v1024 = vunpack.c.l.b16 %v187
    %v1025 = vunpack.c.h.b16 %v187
    %v1026 = vunpack.c.l.b16 %v188
    %v1027 = vunpack.c.h.b16 %v188
    %v1028 = vunpack.c.l.b16 %v189
    %v1029 = vunpack.c.h.b16 %v189
    %v1030 = vunpack.c.l.b16 %v190
    %v1031 = vunpack.c.h.b16 %v190
    %v1032 = vunpack.c.l.b16 %v191
    %v1033 = vunpack.c.h.b16 %v191
    %v1034 = vunpack.c.l.b16 %v192
    %v1035 = vunpack.c.h.b16 %v192
    %v1036 = vunpack.c.l.b16 %v193
    %v1037 = vunpack.c.h.b16 %v193
    %v1038 = vunpack.c.l.b16 %v194
    %v1039 = vunpack.c.h.b16 %v194
    %v1040 = vunpack.c.l.b16 %v195
    %v1041 = vunpack.c.h.b16 %v195
    %v1042 = vunpack.c.l.b16 %v196
    %v1043 = vunpack.c.h.b16 %v196
    %v1044 = vunpack.c.l.b16 %v197
    %v1045 = vunpack.c.h.b16 %v197
    %v1046 = vunpack.c.l.b16 %v198
    %v1047 = vunpack.c.h.b16 %v198
    %v1048 = vunpack.c.l.b16 %v199
    %v1049 = vunpack.c.h.b16 %v199
    %v1050 = vunpack.c.l.b16 %v200
    %v1051 = vunpack.c.h.b16 %v200
    %v1052 = vunpack.c.l.b16 %v201
    %v1053 = vunpack.c.h.b16 %v201
    %v1054 = vunpack.c.l.b16 %v202
    %v1055 = vunpack.c.h.b16 %v202
    %v1056 = vunpack.c.l.b16 %v203
    %v1057 = vunpack.c.h.b16 %v203
    %v1058 = vunpack.c.l.b16 %v204
    %v1059 = vunpack.c.h.b16 %v204
    %v1060 = vunpack.c.l.b16 %v205
    %v1061 = vunpack.c.h.b16 %v205
    %v1062 = vunpack.c.l.b16 %v206
    %v1063 = vunpack.c.h.b16 %v206
    %v1064 = vunpack.c.l.b16 %v207
    %v1065 = vunpack.c.h.b16 %v207
    %v1066 = vunpack.c.l.b16 %v208
    %v1067 = vunpack.c.h.b16 %v208
    %v1068 = vunpack.c.l.b16 %v209
    %v1069 = vunpack.c.h.b16 %v209
    %v1070 = vunpack.c.l.b16 %v210
    %v1071 = vunpack.c.h.b16 %v210
    %v1072 = vunpack.c.l.b16 %v211
    %v1073 = vunpack.c.h.b16 %v211
    %v1074 = vunpack.c.l.b16 %v212
    %v1075 = vunpack.c.h.b16 %v212
    %v1076 = vunpack.c.l.b16 %v213
    %v1077 = vunpack.c.h.b16 %v213
    %v1078 = vunpack.c.l.b16 %v214
    %v1079 = vunpack.c.h.b16 %v214
    %v1080 = vunpack.c.l.b16 %v215
    %v1081 = vunpack.c.h.b16 %v215
    %v1082 = vunpack.c.l.b16 %v216
    %v1083 = vunpack.c.h.b16 %v216
    %v1084 = vunpack.c.l.b16 %v217
    %v1085 = vunpack.c.h.b16 %v217
    %v1086 = vunpack.c.l.b16 %v218
    %v1087 = vunpack.c.h.b16 %v218
    %v1088 = vunpack.c.l.b16 %v219
    %v1089 = vunpack.c.h.b16 %v219
    %v1090 = vunpack.c.l.b16 %v220
    %v1091 = vunpack.c.h.b16 %v220
    %v1092 = vunpack.c.l.b16 %v221
    %v1093 = vunpack.c.h.b16 %v221
    %v1094 = vunpack.c.l.b16 %v222
    %v1095 = vunpack.c.h.b16 %v222
    %v1096 = vunpack.c.l.b16 %v223
    %v1097 = vunpack.c.h.b16 %v223
    %v1098 = vunpack.c.l.b16 %v224
    %v1099 = vunpack.c.h.b16 %v224
    %v1100 = vunpack.c.l.b16 %v225
    %v1101 = vunpack.c.h.b16 %v225
    %v1102 = vunpack.c.l.b16 %v226
    %v1103 = vunpack.c.h.b16 %v226
    %v1104 = vunpack.c.l.b16 %v227
    %v1105 = vunpack.c.h.b16 %v227
    %v1106 = vunpack.c.l.b16 %v228
    %v1107 = vunpack.c.h.b16 %v228
    %v1108 = vunpack.c.l.b16 %v229
    %v1109 = vunpack.c.h.b16 %v229
    %v1110 = vunpack.c.l.b16 %v230
    %v1111 = vunpack.c.h.b16 %v230
    %v1112 = vunpack.c.l.b16 %v231
    %v1113 = vunpack.c.h.b16 %v231
    %v1114 = vunpack.c.l.b16 %v232
    %v1115 = vunpack.c.h.b16 %v232
    %v1116 = vunpack.c.l.b16 %v233
    %v1117 = vunpack.c.h.b16 %v233
    %v1118 = vunpack.c.l.b16 %v234
    %v1119 = vunpack.c.h.b16 %v234
    %v1120 = vunpack.c.l.b16 %v235
    %v1121 = vunpack.c.h.b16 %v235
    %v1122 = vunpack.c.l.b16 %v236
    %v1123 = vunpack.c.h.b16 %v236
    %v1124 = vunpack.c.l.b16 %v237
    %v1125 = vunpack.c.h.b16 %v237
    %v1126 = vunpack.c.l.b16 %v238
    %v1127 = vunpack.c.h.b16 %v238
    %v1128 = vunpack.c.l.b16 %v239
    %v1129 = vunpack.c.h.b16 %v239
    %v1130 = vunpack.c.l.b16 %v240
    %v1131 = vunpack.c.h.b16 %v240
    %v1132 = vunpack.c.l.b16 %v241
    %v1133 = vunpack.c.h.b16 %v241
    %v1134 = vunpack.c.l.b16 %v242
    %v1135 = vunpack.c.h.b16 %v242
    %v1136 = vunpack.c.l.b16 %v243
    %v1137 = vunpack.c.h.b16 %v243
    %v1138 = vunpack.c.l.b16 %v244
    %v1139 = vunpack.c.h.b16 %v244
    %v1140 = vunpack.c.l.b16 %v245
    %v1141 = vunpack.c.h.b16 %v245
    %v1142 = vunpack.c.l.b16 %v246
    %v1143 = vunpack.c.h.b16 %v246
    %v1144 = vunpack.c.l.b16 %v247
    %v1145 = vunpack.c.h.b16 %v247
    %v1146 = vunpack.c.l.b16 %v248
    %v1147 = vunpack.c.h.b16 %v248
    %v1148 = vunpack.c.l.b16 %v249
    %v1149 = vunpack.c.h.b16 %v249
    %v1150 = vunpack.c.l.b16 %v250
    %v1151 = vunpack.c.h.b16 %v250
    %v1152 = vunpack.c.l.b16 %v251
    %v1153 = vunpack.c.h.b16 %v251
    %v1154 = vunpack.c.l.b16 %v252
    %v1155 = vunpack.c.h.b16 %v252
    %v1156 = vunpack.c.l.b16 %v253
    %v1157 = vunpack.c.h.b16 %v253
    %v1158 = vunpack.c.l.b16 %v254
    %v1159 = vunpack.c.h.b16 %v254
    %v1160 = vunpack.c.l.b16 %v255
    %v1161 = vunpack.c.h.b16 %v255
    %v1162 = vunpack.c.l.b16 %v256
    %v1163 = vunpack.c.h.b16 %v256
    %v1164 = vunpack.c.l.b16 %v257
    %v1165 = vunpack.c.h.b16 %v257
    %v1166 = vunpack.c.l.b16 %v258
    %v1167 = vunpack.c.h.b16 %v258
    %v1168 = vunpack.c.l.b16 %v259
    %v1169 = vunpack.c.h.b16 %v259
    %v1170 = vunpack.c.l.b16 %v260
    %v1171 = vunpack.c.h.b16 %v260
    %v1172 = vunpack.c.l.b16 %v261
    %v1173 = vunpack.c.h.b16 %v261
    %v1174 = vunpack.c.l.b16 %v262
    %v1175 = vunpack.c.h.b16 %v262
    %v1176 = vunpack.c.l.b16 %v263
    %v1177 = vunpack.c.h.b16 %v263
    %v1178 = vunpack.c.l.b16 %v264
    %v1179 = vunpack.c.h.b16 %v264
    %v1180 = vunpack.c.l.b16 %v265
    %v1181 = vunpack.c.h.b16 %v265
    %v1182 = vunpack.c.l.b16 %v266
    %v1183 = vunpack.c.h.b16 %v266
    %v1184 = vunpack.c.l.b16 %v267
    %v1185 = vunpack.c.h.b16 %v267
    %v1186 = vunpack.c.l.b16 %v268
    %v1187 = vunpack.c.h.b16 %v268
    %v1188 = vunpack.c.l.b16 %v269
    %v1189 = vunpack.c.h.b16 %v269
    %v1190 = vunpack.c.l.b16 %v270
    %v1191 = vunpack.c.h.b16 %v270
    %v1192 = vunpack.c.l.b16 %v271
    %v1193 = vunpack.c.h.b16 %v271
    %v1194 = vunpack.c.l.b16 %v272
    %v1195 = vunpack.c.h.b16 %v272
    %v1196 = vunpack.c.l.b16 %v273
    %v1197 = vunpack.c.h.b16 %v273
    %v1198 = vunpack.c.l.b16 %v274
    %v1199 = vunpack.c.h.b16 %v274
    %v1200 = vunpack.c.l.b16 %v275
    %v1201 = vunpack.c.h.b16 %v275
    %v1202 = vunpack.c.l.b16 %v276
    %v1203 = vunpack.c.h.b16 %v276
    %v1204 = vunpack.c.l.b16 %v277
    %v1205 = vunpack.c.h.b16 %v277
    %v1206 = vunpack.c.l.b16 %v278
    %v1207 = vunpack.c.h.b16 %v278
    %v1208 = vunpack.c.l.b16 %v279
    %v1209 = vunpack.c.h.b16 %v279
    %v1210 = vunpack.c.l.b16 %v280
    %v1211 = vunpack.c.h.b16 %v280
    %v1212 = vunpack.c.l.b16 %v281
    %v1213 = vunpack.c.h.b16 %v281
    %v1214 = vunpack.c.l.b16 %v282
    %v1215 = vunpack.c.h.b16 %v282
    %v1216 = vunpack.c.l.b16 %v283
    %v1217 = vunpack.c.h.b16 %v283
    %v1218 = vunpack.c.l.b16 %v284
    %v1219 = vunpack.c.h.b16 %v284
    %v1220 = vunpack.c.l.b16 %v285
    %v1221 = vunpack.c.h.b16 %v285
    %v1222 = vunpack.c.l.b16 %v286
    %v1223 = vunpack.c.h.b16 %v286
    %v1224 = vunpack.c.l.b16 %v287
    %v1225 = vunpack.c.h.b16 %v287
    %v1226 = vunpack.c.l.b16 %v288
    %v1227 = vunpack.c.h.b16 %v288
    %v1228 = vunpack.c.l.b16 %v289
    %v1229 = vunpack.c.h.b16 %v289
    %v1230 = vunpack.c.l.b16 %v290
    %v1231 = vunpack.c.h.b16 %v290
    %v1232 = vunpack.c.l.b16 %v291
    %v1233 = vunpack.c.h.b16 %v291
    %v1234 = vunpack.c.l.b16 %v292
    %v1235 = vunpack.c.h.b16 %v292
    %v1236 = vunpack.c.l.b16 %v293
    %v1237 = vunpack.c.h.b16 %v293
    %v1238 = vunpack.c.l.b16 %v294
    %v1239 = vunpack.c.h.b16 %v294
    %v1240 = vunpack.c.l.b16 %v295
    %v1241 = vunpack.c.h.b16 %v295
    %v1242 = vunpack.c.l.b16 %v296
    %v1243 = vunpack.c.h.b16 %v296
    %v1244 = vunpack.c.l.b16 %v297
    %v1245 = vunpack.c.h.b16 %v297
    %v1246 = vunpack.c.l.b16 %v298
    %v1247 = vunpack.c.h.b16 %v298
    %v1248 = vunpack.c.l.b16 %v299
    %v1249 = vunpack.c.h.b16 %v299
    %v1250 = vunpack.c.l.b16 %v300
    %v1251 = vunpack.c.h.b16 %v300
    %v1252 = vunpack.c.l.b16 %v301
    %v1253 = vunpack.c.h.b16 %v301
    %v1254 = vunpack.c.l.b16 %v302
    %v1255 = vunpack.c.h.b16 %v302
    %v1256 = vunpack.c.l.b16 %v303
    %v1257 = vunpack.c.h.b16 %v303
    %v1258 = vunpack.c.l.b16 %v304
    %v1259 = vunpack.c.h.b16 %v304
    %v1260 = vunpack.c.l.b16 %v305
    %v1261 = vunpack.c.h.b16 %v305
    %v1262 = vunpack.c.l.b16 %v306
    %v1263 = vunpack.c.h.b16 %v306
    %v1264 = vunpack.c.l.b16 %v307
    %v1265 = vunpack.c.h.b16 %v307
    %v1266 = vunpack.c.l.b16 %v308
    %v1267 = vunpack.c.h.b16 %v308
    %v1268 = vunpack.c.l.b16 %v309
    %v1269 = vunpack.c.h.b16 %v309
    %v1270 = vunpack.c.l.b16 %v310
    %v1271 = vunpack.c.h.b16 %v310
    %v1272 = vunpack.c.l.b16 %v311
    %v1273 = vunpack.c.h.b16 %v311
    %v1274 = vunpack.c.l.b16 %v312
    %v1275 = vunpack.c.h.b16 %v312
    %v1276 = vunpack.c.l.b16 %v313
    %v1277 = vunpack.c.h.b16 %v313
    %v1278 = vunpack.c.l.b16 %v314
    %v1279 = vunpack.c.h.b16 %v314
    %v1280 = vunpack.c.l.b16 %v315
    %v1281 = vunpack.c.h.b16 %v315
    %v1282 = vunpack.c.l.b16 %v316
    %v1283 = vunpack.c.h.b16 %v316
    %v1284 = vunpack.c.l.b16 %v317
    %v1285 = vunpack.c.h.b16 %v317
    %v1286 = vunpack.c.l.b16 %v318
    %v1287 = vunpack.c.h.b16 %v318
    %v1288 = vunpack.c.l.b16 %v319
    %v1289 = vunpack.c.h.b16 %v319
    %v1290 = vunpack.c.l.b16 %v320
    %v1291 = vunpack.c.h.b16 %v320
    %v1292 = vunpack.c.l.b16 %v321
    %v1293 = vunpack.c.h.b16 %v321
    %v1294 = vunpack.c.l.b16 %v322
    %v1295 = vunpack.c.h.b16 %v322
    %v1296 = vunpack.c.l.b16 %v323
    %v1297 = vunpack.c.h.b16 %v323
    %v1298 = vunpack.c.l.b16 %v324
    %v1299 = vunpack.c.h.b16 %v324
    %v1300 = vunpack.c.l.b16 %v325
    %v1301 = vunpack.c.h.b16 %v325
    %v1302 = vunpack.c.l.b16 %v326
    %v1303 = vunpack.c.h.b16 %v326
    %v1304 = vunpack.c.l.b16 %v327
    %v1305 = vunpack.c.h.b16 %v327
    %v1306 = vunpack.c.l.b16 %v328
    %v1307 = vunpack.c.h.b16 %v328
    %v1308 = vunpack.c.l.b16 %v329
    %v1309 = vunpack.c.h.b16 %v329
    %v1310 = vunpack.c.l.b16 %v330
    %v1311 = vunpack.c.h.b16 %v330
    %v1312 = vunpack.c.l.b16 %v331
    %v1313 = vunpack.c.h.b16 %v331
    %v1314 = vunpack.c.l.b16 %v332
    %v1315 = vunpack.c.h.b16 %v332
    %v1316 = vunpack.c.l.b16 %v333
    %v1317 = vunpack.c.h.b16 %v333
    %v1318 = vunpack.c.l.b16 %v334
    %v1319 = vunpack.c.h.b16 %v334
    %v1320 = vunpack.c.l.b16 %v335
    %v1321 = vunpack.c.h.b16 %v335
    %v1322 = vunpack.c.l.b16 %v336
    %v1323 = vunpack.c.h.b16 %v336
    %v1324 = vunpack.c.l.b16 %v337
    %v1325 = vunpack.c.h.b16 %v337
    %v1326 = vunpack.c.l.b16 %v338
    %v1327 = vunpack.c.h.b16 %v338
    %v1328 = vunpack.c.l.b16 %v339
    %v1329 = vunpack.c.h.b16 %v339
    %v1330 = vunpack.c.l.b16 %v340
    %v1331 = vunpack.c.h.b16 %v340
    %v1332 = vunpack.c.l.b16 %v341
    %v1333 = vunpack.c.h.b16 %v341
    %v1334 = vunpack.c.l.b16 %v342
    %v1335 = vunpack.c.h.b16 %v342
    %v1336 = vunpack.c.l.b16 %v343
    %v1337 = vunpack.c.h.b16 %v343
    %v1338 = vunpack.c.l.b16 %v344
    %v1339 = vunpack.c.h.b16 %v344
    %v1340 = vunpack.c.l.b16 %v345
    %v1341 = vunpack.c.h.b16 %v345
    %v1342 = vunpack.c.l.b16 %v346
    %v1343 = vunpack.c.h.b16 %v346
    %v1344 = vunpack.c.l.b16 %v347
    %v1345 = vunpack.c.h.b16 %v347
    %v1346 = vunpack.c.l.b16 %v348
    %v1347 = vunpack.c.h.b16 %v348
    %v1348 = vunpack.c.l.b16 %v349
    %v1349 = vunpack.c.h.b16 %v349
    %v1350 = vunpack.c.l.b16 %v350
    %v1351 = vunpack.c.h.b16 %v350
    %v1352 = vunpack.c.l.b16 %v351
    %v1353 = vunpack.c.h.b16 %v351
    %v1354 = vunpack.c.l.b16 %v352
    %v1355 = vunpack.c.h.b16 %v352
    %v1356 = vunpack.c.l.b16 %v353
    %v1357 = vunpack.c.h.b16 %v353
    %v1358 = vunpack.c.l.b16 %v354
    %v1359 = vunpack.c.h.b16 %v354
    %v1360 = vunpack.c.l.b16 %v355
    %v1361 = vunpack.c.h.b16 %v355
    %v1362 = vunpack.c.l.b16 %v356
    %v1363 = vunpack.c.h.b16 %v356
    %v1364 = vunpack.c.l.b16 %v357
    %v1365 = vunpack.c.h.b16 %v357
    %v1366 = vunpack.c.l.b16 %v358
    %v1367 = vunpack.c.h.b16 %v358
    %v1368 = vunpack.c.l.b16 %v359
    %v1369 = vunpack.c.h.b16 %v359
    %v1370 = vunpack.c.l.b16 %v360
    %v1371 = vunpack.c.h.b16 %v360
    %v1372 = vunpack.c.l.b16 %v361
    %v1373 = vunpack.c.h.b16 %v361
    %v1374 = vunpack.c.l.b16 %v362
    %v1375 = vunpack.c.h.b16 %v362
    %v1376 = vunpack.c.l.b16 %v363
    %v1377 = vunpack.c.h.b16 %v363
    %v1378 = vunpack.c.l.b16 %v364
    %v1379 = vunpack.c.h.b16 %v364
    %v1380 = vunpack.c.l.b16 %v365
    %v1381 = vunpack.c.h.b16 %v365
    %v1382 = vunpack.c.l.b16 %v366
    %v1383 = vunpack.c.h.b16 %v366
    %v1384 = vunpack.c.l.b16 %v367
    %v1385 = vunpack.c.h.b16 %v367
    %v1386 = vunpack.c.l.b16 %v368
    %v1387 = vunpack.c.h.b16 %v368
    %v1388 = vunpack.c.l.b16 %v369
    %v1389 = vunpack.c.h.b16 %v369
    %v1390 = vunpack.c.l.b16 %v370
    %v1391 = vunpack.c.h.b16 %v370
    %v1392 = vunpack.c.l.b16 %v371
    %v1393 = vunpack.c.h.b16 %v371
    %v1394 = vunpack.c.l.b16 %v372
    %v1395 = vunpack.c.h.b16 %v372
    %v1396 = vunpack.c.l.b16 %v373
    %v1397 = vunpack.c.h.b16 %v373
    %v1398 = vunpack.c.l.b16 %v374
    %v1399 = vunpack.c.h.b16 %v374
    %v1400 = vunpack.c.l.b16 %v375
    %v1401 = vunpack.c.h.b16 %v375
    %v1402 = vunpack.c.l.b16 %v376
    %v1403 = vunpack.c.h.b16 %v376
    %v1404 = vunpack.c.l.b16 %v377
    %v1405 = vunpack.c.h.b16 %v377
    %v1406 = vunpack.c.l.b16 %v378
    %v1407 = vunpack.c.h.b16 %v378
    %v1408 = vunpack.c.l.b16 %v379
    %v1409 = vunpack.c.h.b16 %v379
    %v1410 = vunpack.c.l.b16 %v380
    %v1411 = vunpack.c.h.b16 %v380
    %v1412 = vunpack.c.l.b16 %v381
    %v1413 = vunpack.c.h.b16 %v381
    %v1414 = vunpack.c.l.b16 %v382
    %v1415 = vunpack.c.h.b16 %v382
    %v1416 = vunpack.c.l.b16 %v383
    %v1417 = vunpack.c.h.b16 %v383
    %v1418 = vunpack.c.l.b16 %v384
    %v1419 = vunpack.c.h.b16 %v384
    %v1420 = vunpack.c.l.b16 %v385
    %v1421 = vunpack.c.h.b16 %v385
    %v1422 = vunpack.c.l.b16 %v386
    %v1423 = vunpack.c.h.b16 %v386
    %v1424 = vunpack.c.l.b16 %v387
    %v1425 = vunpack.c.h.b16 %v387
    %v1426 = vunpack.c.l.b16 %v388
    %v1427 = vunpack.c.h.b16 %v388
    %v1428 = vunpack.c.l.b16 %v389
    %v1429 = vunpack.c.h.b16 %v389
    %v1430 = vunpack.c.l.b16 %v390
    %v1431 = vunpack.c.h.b16 %v390
    %v1432 = vunpack.c.l.b16 %v391
    %v1433 = vunpack.c.h.b16 %v391
    %v1434 = vunpack.c.l.b16 %v392
    %v1435 = vunpack.c.h.b16 %v392
    %v1436 = vunpack.c.l.b16 %v393
    %v1437 = vunpack.c.h.b16 %v393
    %v1438 = vunpack.c.l.b16 %v394
    %v1439 = vunpack.c.h.b16 %v394
    %v1440 = vunpack.c.l.b16 %v395
    %v1441 = vunpack.c.h.b16 %v395
    %v1442 = vunpack.c.l.b16 %v396
    %v1443 = vunpack.c.h.b16 %v396
    %v1444 = vunpack.c.l.b16 %v397
    %v1445 = vunpack.c.h.b16 %v397
    %v1446 = vunpack.c.l.b16 %v398
    %v1447 = vunpack.c.h.b16 %v398
    %v1448 = vunpack.c.l.b16 %v399
    %v1449 = vunpack.c.h.b16 %v399
    %v1450 = vunpack.c.l.b16 %v400
    %v1451 = vunpack.c.h.b16 %v400
    %v1452 = vunpack.c.l.b16 %v401
    %v1453 = vunpack.c.h.b16 %v401
    %v1454 = vunpack.c.l.b16 %v402
    %v1455 = vunpack.c.h.b16 %v402
    %v1456 = vunpack.c.l.b16 %v403
    %v1457 = vunpack.c.h.b16 %v403
    %v1458 = vunpack.c.l.b16 %v404
    %v1459 = vunpack.c.h.b16 %v404
    %v1460 = vunpack.c.l.b16 %v405
    %v1461 = vunpack.c.h.b16 %v405
    %v1462 = vunpack.c.l.b16 %v406
    %v1463 = vunpack.c.h.b16 %v406
    %v1464 = vunpack.c.l.b16 %v407
    %v1465 = vunpack.c.h.b16 %v407
    %v1466 = vunpack.c.l.b16 %v408
    %v1467 = vunpack.c.h.b16 %v408
    %v1468 = vunpack.c.l.b16 %v409
    %v1469 = vunpack.c.h.b16 %v409
    %v1470 = vunpack.c.l.b16 %v410
    %v1471 = vunpack.c.h.b16 %v410
    %v1472 = vunpack.c.l.b16 %v411
    %v1473 = vunpack.c.h.b16 %v411
    %v1474 = vunpack.c.l.b16 %v412
    %v1475 = vunpack.c.h.b16 %v412
    %v1476 = vunpack.c.l.b16 %v413
    %v1477 = vunpack.c.h.b16 %v413
    %v1478 = vunpack.c.l.b16 %v414
    %v1479 = vunpack.c.h.b16 %v414
    %v1480 = vunpack.c.l.b16 %v415
    %v1481 = vunpack.c.h.b16 %v415
    %v1482 = vunpack.c.l.b16 %v416
    %v1483 = vunpack.c.h.b16 %v416
    %v1484 = vunpack.c.l.b16 %v417
    %v1485 = vunpack.c.h.b16 %v417
    %v1486 = vunpack.c.l.b16 %v418
    %v1487 = vunpack.c.h.b16 %v418
    %v1488 = vunpack.c.l.b16 %v419
    %v1489 = vunpack.c.h.b16 %v419
    %v1490 = vunpack.c.l.b16 %v420
    %v1491 = vunpack.c.h.b16 %v420
    %v1492 = vunpack.c.l.b16 %v421
    %v1493 = vunpack.c.h.b16 %v421
    %v1494 = vunpack.c.l.b16 %v422
    %v1495 = vunpack.c.h.b16 %v422
    %v1496 = vunpack.c.l.b16 %v423
    %v1497 = vunpack.c.h.b16 %v423
    %v1498 = vunpack.c.l.b16 %v424
    %v1499 = vunpack.c.h.b16 %v424
    %v1500 = vunpack.c.l.b16 %v425
    %v1501 = vunpack.c.h.b16 %v425
    %v1502 = vunpack.c.l.b16 %v426
    %v1503 = vunpack.c.h.b16 %v426
    %v1504 = vunpack.c.l.b16 %v427
    %v1505 = vunpack.c.h.b16 %v427
    %v1506 = vunpack.c.l.b16 %v428
    %v1507 = vunpack.c.h.b16 %v428
    %v1508 = vunpack.c.l.b16 %v429
    %v1509 = vunpack.c.h.b16 %v429
    %v1510 = vunpack.c.l.b16 %v430
    %v1511 = vunpack.c.h.b16 %v430
    %v1512 = vunpack.c.l.b16 %v431
    %v1513 = vunpack.c.h.b16 %v431
    %v1514 = vunpack.c.l.b16 %v432
    %v1515 = vunpack.c.h.b16 %v432
    %v1516 = vunpack.c.l.b16 %v433
    %v1517 = vunpack.c.h.b16 %v433
    %v1518 = vunpack.c.l.b16 %v434
    %v1519 = vunpack.c.h.b16 %v434
    %v1520 = vunpack.c.l.b16 %v435
    %v1521 = vunpack.c.h.b16 %v435
    %v1522 = vunpack.c.l.b16 %v436
    %v1523 = vunpack.c.h.b16 %v436
    %v1524 = vunpack.c.l.b16 %v437
    %v1525 = vunpack.c.h.b16 %v437
    %v1526 = vunpack.c.l.b16 %v438
    %v1527 = vunpack.c.h.b16 %v438
    %v1528 = vunpack.c.l.b16 %v439
    %v1529 = vunpack.c.h.b16 %v439
    %v1530 = vunpack.c.l.b16 %v440
    %v1531 = vunpack.c.h.b16 %v440
    %v1532 = vunpack.c.l.b16 %v441
    %v1533 = vunpack.c.h.b16 %v441
    %v1534 = vunpack.c.l.b16 %v442
    %v1535 = vunpack.c.h.b16 %v442
    %v1536 = vunpack.c.l.b16 %v443
    %v1537 = vunpack.c.h.b16 %v443
    %v1538 = vunpack.c.l.b16 %v444
    %v1539 = vunpack.c.h.b16 %v444
    %v1540 = vunpack.c.l.b16 %v445
    %v1541 = vunpack.c.h.b16 %v445
    %v1542 = vunpack.c.l.b16 %v446
    %v1543 = vunpack.c.h.b16 %v446
    %v1544 = vunpack.c.l.b16 %v447
    %v1545 = vunpack.c.h.b16 %v447
    %v1546 = vunpack.c.l.b16 %v448
    %v1547 = vunpack.c.h.b16 %v448
    %v1548 = vunpack.c.l.b16 %v449
    %v1549 = vunpack.c.h.b16 %v449
    %v1550 = vunpack.c.l.b16 %v450
    %v1551 = vunpack.c.h.b16 %v450
    %v1552 = vunpack.c.l.b16 %v451
    %v1553 = vunpack.c.h.b16 %v451
    %v1554 = vunpack.c.l.b16 %v452
    %v1555 = vunpack.c.h.b16 %v452
    %v1556 = vunpack.c.l.b16 %v453
    %v1557 = vunpack.c.h.b16 %v453
    %v1558 = vunpack.c.l.b16 %v454
    %v1559 = vunpack.c.h.b16 %v454
    %v1560 = vunpack.c.l.b16 %v455
    %v1561 = vunpack.c.h.b16 %v455
    %v1562 = vunpack.c.l.b16 %v456
    %v1563 = vunpack.c.h.b16 %v456
    %v1564 = vunpack.c.l.b16 %v457
    %v1565 = vunpack.c.h.b16 %v457
    %v1566 = vunpack.c.l.b16 %v458
    %v1567 = vunpack.c.h.b16 %v458
    %v1568 = vunpack.c.l.b16 %v459
    %v1569 = vunpack.c.h.b16 %v459
    %v1570 = vunpack.c.l.b16 %v460
    %v1571 = vunpack.c.h.b16 %v460
    %v1572 = vunpack.c.l.b16 %v461
    %v1573 = vunpack.c.h.b16 %v461
    %v1574 = vunpack.c.l.b16 %v462
    %v1575 = vunpack.c.h.b16 %v462
    %v1576 = vunpack.c.l.b16 %v463
    %v1577 = vunpack.c.h.b16 %v463
    %v1578 = vunpack.c.l.b16 %v464
    %v1579 = vunpack.c.h.b16 %v464
    %v1580 = vunpack.c.l.b16 %v465
    %v1581 = vunpack.c.h.b16 %v465
    %v1582 = vunpack.c.l.b16 %v466
    %v1583 = vunpack.c.h.b16 %v466
    %v1584 = vunpack.c.l.b16 %v467
    %v1585 = vunpack.c.h.b16 %v467
    %v1586 = vunpack.c.l.b16 %v468
    %v1587 = vunpack.c.h.b16 %v468
    %v1588 = vunpack.c.l.b16 %v469
    %v1589 = vunpack.c.h.b16 %v469
    %v1590 = vunpack.c.l.b16 %v470
    %v1591 = vunpack.c.h.b16 %v470
    %v1592 = vunpack.c.l.b16 %v471
    %v1593 = vunpack.c.h.b16 %v471
    %v1594 = vunpack.c.l.b16 %v472
    %v1595 = vunpack.c.h.b16 %v472
    %v1596 = vunpack.c.l.b16 %v473
    %v1597 = vunpack.c.h.b16 %v473
    %v1598 = vunpack.c.l.b16 %v474
    %v1599 = vunpack.c.h.b16 %v474
    %v1600 = vunpack.c.l.b16 %v475
    %v1601 = vunpack.c.h.b16 %v475
    %v1602 = vunpack.c.l.b16 %v476
    %v1603 = vunpack.c.h.b16 %v476
    %v1604 = vunpack.c.l.b16 %v477
    %v1605 = vunpack.c.h.b16 %v477
    %v1606 = vunpack.c.l.b16 %v478
    %v1607 = vunpack.c.h.b16 %v478
    %v1608 = vunpack.c.l.b16 %v479
    %v1609 = vunpack.c.h.b16 %v479
    %v1610 = vunpack.c.l.b16 %v480
    %v1611 = vunpack.c.h.b16 %v480
    %v1612 = vunpack.c.l.b16 %v481
    %v1613 = vunpack.c.h.b16 %v481
    %v1614 = vunpack.c.l.b16 %v482
    %v1615 = vunpack.c.h.b16 %v482
    %v1616 = vunpack.c.l.b16 %v483
    %v1617 = vunpack.c.h.b16 %v483
    %v1618 = vunpack.c.l.b16 %v484
    %v1619 = vunpack.c.h.b16 %v484
    %v1620 = vunpack.c.l.b16 %v485
    %v1621 = vunpack.c.h.b16 %v485
    %v1622 = vunpack.c.l.b16 %v486
    %v1623 = vunpack.c.h.b16 %v486
    %v1624 = vunpack.c.l.b16 %v487
    %v1625 = vunpack.c.h.b16 %v487
    %v1626 = vunpack.c.l.b16 %v488
    %v1627 = vunpack.c.h.b16 %v488
    %v1628 = vunpack.c.l.b16 %v489
    %v1629 = vunpack.c.h.b16 %v489
    %v1630 = vunpack.c.l.b16 %v490
    %v1631 = vunpack.c.h.b16 %v490
    %v1632 = vunpack.c.l.b16 %v491
    %v1633 = vunpack.c.h.b16 %v491
    %v1634 = vunpack.c.l.b16 %v492
    %v1635 = vunpack.c.h.b16 %v492
    %v1636 = vunpack.c.l.b16 %v493
    %v1637 = vunpack.c.h.b16 %v493
    %v1638 = vunpack.c.l.b16 %v494
    %v1639 = vunpack.c.h.b16 %v494
    %v1640 = vunpack.c.l.b16 %v495
    %v1641 = vunpack.c.h.b16 %v495
    %v1642 = vunpack.c.l.b16 %v496
    %v1643 = vunpack.c.h.b16 %v496
    %v1644 = vunpack.c.l.b16 %v497
    %v1645 = vunpack.c.h.b16 %v497
    %v1646 = vunpack.c.l.b16 %v498
    %v1647 = vunpack.c.h.b16 %v498
    %v1648 = vunpack.c.l.b16 %v499
    %v1649 = vunpack.c.h.b16 %v499
    %v1650 = vunpack.c.l.b16 %v500
    %v1651 = vunpack.c.h.b16 %v500
    %v1652 = vunpack.c.l.b16 %v501
    %v1653 = vunpack.c.h.b16 %v501
    %v1654 = vunpack.c.l.b16 %v502
    %v1655 = vunpack.c.h.b16 %v502
    %v1656 = vunpack.c.l.b16 %v503
    %v1657 = vunpack.c.h.b16 %v503
    %v1658 = vunpack.c.l.b16 %v504
    %v1659 = vunpack.c.h.b16 %v504
    %v1660 = vunpack.c.l.b16 %v505
    %v1661 = vunpack.c.h.b16 %v505
    %v1662 = vunpack.c.l.b16 %v506
    %v1663 = vunpack.c.h.b16 %v506
    %v1664 = vunpack.c.l.b16 %v507
    %v1665 = vunpack.c.h.b16 %v507
    %v1666 = vunpack.c.l.b16 %v508
    %v1667 = vunpack.c.h.b16 %v508
    %v1668 = vunpack.c.l.b16 %v509
    %v1669 = vunpack.c.h.b16 %v509
    %v1670 = vunpack.c.l.b16 %v510
    %v1671 = vunpack.c.h.b16 %v510
    %v1672 = vunpack.c.l.b16 %v511
    %v1673 = vunpack.c.h.b16 %v511
    %v1674 = vunpack.c.l.b16 %v512
    %v1675 = vunpack.c.h.b16 %v512
    %v1676 = vunpack.c.l.b16 %v513
    %v1677 = vunpack.c.h.b16 %v513
    %v1678 = vunpack.c.l.b16 %v514
    %v1679 = vunpack.c.h.b16 %v514
    %v1680 = vunpack.c.l.b16 %v515
    %v1681 = vunpack.c.h.b16 %v515
    %v1682 = vunpack.c.l.b16 %v516
    %v1683 = vunpack.c.h.b16 %v516
    %v1684 = vunpack.c.l.b16 %v517
    %v1685 = vunpack.c.h.b16 %v517
    %v1686 = vunpack.c.l.b16 %v518
    %v1687 = vunpack.c.h.b16 %v518
    %v1688 = vunpack.c.l.b16 %v519
    %v1689 = vunpack.c.h.b16 %v519
    %v1690 = vunpack.c.l.b16 %v520
    %v1691 = vunpack.c.h.b16 %v520
    %v1692 = vunpack.c.l.b16 %v521
    %v1693 = vunpack.c.h.b16 %v521
    %v1694 = vunpack.c.l.b16 %v522
    %v1695 = vunpack.c.h.b16 %v522
    %v1696 = vunpack.c.l.b16 %v523
    %v1697 = vunpack.c.h.b16 %v523
    %v1698 = vunpack.c.l.b16 %v524
    %v1699 = vunpack.c.h.b16 %v524
    %v1700 = vunpack.c.l.b16 %v525
    %v1701 = vunpack.c.h.b16 %v525
    %v1702 = vunpack.c.l.b16 %v526
    %v1703 = vunpack.c.h.b16 %v526
    %v1704 = vunpack.c.l.b16 %v527
    %v1705 = vunpack.c.h.b16 %v527
    %v1706 = vunpack.c.l.b16 %v528
    %v1707 = vunpack.c.h.b16 %v528
    %v1708 = vunpack.c.l.b16 %v529
    %v1709 = vunpack.c.h.b16 %v529
    %v1710 = vunpack.c.l.b16 %v530
    %v1711 = vunpack.c.h.b16 %v530
    %v1712 = vunpack.c.l.b16 %v531
    %v1713 = vunpack.c.h.b16 %v531
    %v1714 = vunpack.c.l.b16 %v532
    %v1715 = vunpack.c.h.b16 %v532
    %v1716 = vunpack.c.l.b16 %v533
    %v1717 = vunpack.c.h.b16 %v533
    %v1718 = vunpack.c.l.b16 %v534
    %v1719 = vunpack.c.h.b16 %v534
    %v1720 = vunpack.c.l.b16 %v535
    %v1721 = vunpack.c.h.b16 %v535
    %v1722 = vunpack.c.l.b16 %v536
    %v1723 = vunpack.c.h.b16 %v536
    %v1724 = vunpack.c.l.b16 %v537
    %v1725 = vunpack.c.h.b16 %v537
    %v1726 = vunpack.c.l.b16 %v538
    %v1727 = vunpack.c.h.b16 %v538
    %v1728 = vunpack.c.l.b16 %v539
    %v1729 = vunpack.c.h.b16 %v539
    %v1730 = vunpack.c.l.b16 %v540
    %v1731 = vunpack.c.h.b16 %v540
    %v1732 = vunpack.c.l.b16 %v541
    %v1733 = vunpack.c.h.b16 %v541
    %v1734 = vunpack.c.l.b16 %v542
    %v1735 = vunpack.c.h.b16 %v542
    %v1736 = vunpack.c.l.b16 %v543
    %v1737 = vunpack.c.h.b16 %v543
    %v1738 = vunpack.c.l.b16 %v544
    %v1739 = vunpack.c.h.b16 %v544
    %v1740 = vunpack.c.l.b16 %v545
    %v1741 = vunpack.c.h.b16 %v545
    %v1742 = vunpack.c.l.b16 %v546
    %v1743 = vunpack.c.h.b16 %v546
    %v1744 = vunpack.c.l.b16 %v547
    %v1745 = vunpack.c.h.b16 %v547
    %v1746 = vunpack.c.l.b16 %v548
    %v1747 = vunpack.c.h.b16 %v548
    %v1748 = vunpack.c.l.b16 %v549
    %v1749 = vunpack.c.h.b16 %v549
    %v1750 = vunpack.c.l.b16 %v550
    %v1751 = vunpack.c.h.b16 %v550
    %v1752 = vunpack.c.l.b16 %v551
    %v1753 = vunpack.c.h.b16 %v551
    %v1754 = vunpack.c.l.b16 %v552
    %v1755 = vunpack.c.h.b16 %v552
    %v1756 = vunpack.c.l.b16 %v553
    %v1757 = vunpack.c.h.b16 %v553
    %v1758 = vunpack.c.l.b16 %v554
    %v1759 = vunpack.c.h.b16 %v554
    %v1760 = vunpack.c.l.b16 %v555
    %v1761 = vunpack.c.h.b16 %v555
    %v1762 = vunpack.c.l.b16 %v556
    %v1763 = vunpack.c.h.b16 %v556
    %v1764 = vunpack.c.l.b16 %v557
    %v1765 = vunpack.c.h.b16 %v557
    %v1766 = vunpack.c.l.b16 %v558
    %v1767 = vunpack.c.h.b16 %v558
    %v1768 = vunpack.c.l.b16 %v559
    %v1769 = vunpack.c.h.b16 %v559
    %v1770 = vunpack.c.l.b16 %v560
    %v1771 = vunpack.c.h.b16 %v560
    %v1772 = vpack.c.b16 %v996, %v988
    %v1773 = vpack.c.b16 %v997, %v989
    %v1774 = vpack.c.b16 %v998, %v990
    %v1775 = vpack.c.b16 %v999, %v991
    %v1776 = vpack.c.b16 %v1000, %v992
    %v1777 = vpack.c.b16 %v1001, %v993
    %v1778 = vpack.c.b16 %v1002, %v994
    %v1779 = vpack.c.b16 %v1003, %v995
    %v1780 = vpack.c.b16 %v1012, %v1004
    %v1781 = vpack.c.b16 %v1013, %v1005
    %v1782 = vpack.c.b16 %v1014, %v1006
    %v1783 = vpack.c.b16 %v1015, %v1007
    %v1784 = vpack.c.b16 %v1016, %v1008
    %v1785 = vpack.c.b16 %v1017, %v1009
    %v1786 = vpack.c.b16 %v1018, %v1010
    %v1787 = vpack.c.b16 %v1019, %v1011
    %v1788 = vpack.c.b16 %v1028, %v1020
    %v1789 = vpack.c.b16 %v1029, %v1021
    %v1790 = vpack.c.b16 %v1030, %v1022
    %v1791 = vpack.c.b16 %v1031, %v1023
    %v1792 = vpack.c.b16 %v1032, %v1024
    %v1793 = vpack.c.b16 %v1033, %v1025
    %v1794 = vpack.c.b16 %v1034, %v1026
    %v1795 = vpack.c.b16 %v1035, %v1027
    %v1796 = vpack.c.b16 %v1044, %v1036
    %v1797 = vpack.c.b16 %v1045, %v1037
    %v1798 = vpack.c.b16 %v1046, %v1038
    %v1799 = vpack.c.b16 %v1047, %v1039
    %v1800 = vpack.c.b16 %v1048, %v1040
    %v1801 = vpack.c.b16 %v1049, %v1041
    %v1802 = vpack.c.b16 %v1050, %v1042
    %v1803 = vpack.c.b16 %v1051, %v1043
    %v1804 = vpack.c.b16 %v1060, %v1052
    %v1805 = vpack.c.b16 %v1061, %v1053
    %v1806 = vpack.c.b16 %v1062, %v1054
    %v1807 = vpack.c.b16 %v1063, %v1055
    %v1808 = vpack.c.b16 %v1064, %v1056
    %v1809 = vpack.c.b16 %v1065, %v1057
    %v1810 = vpack.c.b16 %v1066, %v1058
    %v1811 = vpack.c.b16 %v1067, %v1059
    %v1812 = vpack.c.b16 %v1076, %v1068
    %v1813 = vpack.c.b16 %v1077, %v1069
    %v1814 = vpack.c.b16 %v1078, %v1070
    %v1815 = vpack.c.b16 %v1079, %v1071
    %v1816 = vpack.c.b16 %v1080, %v1072
    %v1817 = vpack.c.b16 %v1081, %v1073
    %v1818 = vpack.c.b16 %v1082, %v1074
    %v1819 = vpack.c.b16 %v1083, %v1075
    %v1820 = vpack.c.b16 %v1092, %v1084
    %v1821 = vpack.c.b16 %v1093, %v1085
    %v1822 = vpack.c.b16 %v1094, %v1086
    %v1823 = vpack.c.b16 %v1095, %v1087
    %v1824 = vpack.c.b16 %v1096, %v1088
    %v1825 = vpack.c.b16 %v1097, %v1089
    %v1826 = vpack.c.b16 %v1098, %v1090
    %v1827 = vpack.c.b16 %v1099, %v1091
    %v1828 = vpack.c.b16 %v1108, %v1100
    %v1829 = vpack.c.b16 %v1109, %v1101
    %v1830 = vpack.c.b16 %v1110, %v1102
    %v1831 = vpack.c.b16 %v1111, %v1103
    %v1832 = vpack.c.b16 %v1112, %v1104
    %v1833 = vpack.c.b16 %v1113, %v1105
    %v1834 = vpack.c.b16 %v1114, %v1106
    %v1835 = vpack.c.b16 %v1115, %v1107
    %v1836 = vpack.c.b16 %v1124, %v1116
    %v1837 = vpack.c.b16 %v1125, %v1117
    %v1838 = vpack.c.b16 %v1126, %v1118
    %v1839 = vpack.c.b16 %v1127, %v1119
    %v1840 = vpack.c.b16 %v1128, %v1120
    %v1841 = vpack.c.b16 %v1129, %v1121
    %v1842 = vpack.c.b16 %v1130, %v1122
    %v1843 = vpack.c.b16 %v1131, %v1123
    %v1844 = vpack.c.b16 %v1140, %v1132
    %v1845 = vpack.c.b16 %v1141, %v1133
    %v1846 = vpack.c.b16 %v1142, %v1134
    %v1847 = vpack.c.b16 %v1143, %v1135
    %v1848 = vpack.c.b16 %v1144, %v1136
    %v1849 = vpack.c.b16 %v1145, %v1137
    %v1850 = vpack.c.b16 %v1146, %v1138
    %v1851 = vpack.c.b16 %v1147, %v1139
    %v1852 = vpack.c.b16 %v1156, %v1148
    %v1853 = vpack.c.b16 %v1157, %v1149
    %v1854 = vpack.c.b16 %v1158, %v1150
    %v1855 = vpack.c.b16 %v1159, %v1151
    %v1856 = vpack.c.b16 %v1160, %v1152
    %v1857 = vpack.c.b16 %v1161, %v1153
    %v1858 = vpack.c.b16 %v1162, %v1154
    %v1859 = vpack.c.b16 %v1163, %v1155
    %v1860 = vpack.c.b16 %v1172, %v1164
    %v1861 = vpack.c.b16 %v1173, %v1165
    %v1862 = vpack.c.b16 %v1174, %v1166
    %v1863 = vpack.c.b16 %v1175, %v1167
    %v1864 = vpack.c.b16 %v1176, %v1168
    %v1865 = vpack.c.b16 %v1177, %v1169
    %v1866 = vpack.c.b16 %v1178, %v1170
    %v1867 = vpack.c.b16 %v1179, %v1171
    %v1868 = vpack.c.b16 %v1188, %v1180
    %v1869 = vpack.c.b16 %v1189, %v1181
    %v1870 = vpack.c.b16 %v1190, %v1182
    %v1871 = vpack.c.b16 %v1191, %v1183
    %v1872 = vpack.c.b16 %v1192, %v1184
    %v1873 = vpack.c.b16 %v1193, %v1185
    %v1874 = vpack.c.b16 %v1194, %v1186
    %v1875 = vpack.c.b16 %v1195, %v1187
    %v1876 = vpack.c.b16 %v1204, %v1196
    %v1877 = vpack.c.b16 %v1205, %v1197
    %v1878 = vpack.c.b16 %v1206, %v1198
    %v1879 = vpack.c.b16 %v1207, %v1199
    %v1880 = vpack.c.b16 %v1208, %v1200
    %v1881 = vpack.c.b16 %v1209, %v1201
    %v1882 = vpack.c.b16 %v1210, %v1202
    %v1883 = vpack.c.b16 %v1211, %v1203
    %v1884 = vpack.c.b16 %v1220, %v1212
    %v1885 = vpack.c.b16 %v1221, %v1213
    %v1886 = vpack.c.b16 %v1222, %v1214
    %v1887 = vpack.c.b16 %v1223, %v1215
    %v1888 = vpack.c.b16 %v1224, %v1216
    %v1889 = vpack.c.b16 %v1225, %v1217
    %v1890 = vpack.c.b16 %v1226, %v1218
    %v1891 = vpack.c.b16 %v1227, %v1219
    %v1892 = vpack.c.b16 %v1236, %v1228
    %v1893 = vpack.c.b16 %v1237, %v1229
    %v1894 = vpack.c.b16 %v1238, %v1230
    %v1895 = vpack.c.b16 %v1239, %v1231
    %v1896 = vpack.c.b16 %v1240, %v1232
    %v1897 = vpack.c.b16 %v1241, %v1233
    %v1898 = vpack.c.b16 %v1242, %v1234
    %v1899 = vpack.c.b16 %v1243, %v1235
    %v1900 = vpack.c.b16 %v1252, %v1244
    %v1901 = vpack.c.b16 %v1253, %v1245
    %v1902 = vpack.c.b16 %v1254, %v1246
    %v1903 = vpack.c.b16 %v1255, %v1247
    %v1904 = vpack.c.b16 %v1256, %v1248
    %v1905 = vpack.c.b16 %v1257, %v1249
    %v1906 = vpack.c.b16 %v1258, %v1250
    %v1907 = vpack.c.b16 %v1259, %v1251
    %v1908 = vpack.c.b16 %v1268, %v1260
    %v1909 = vpack.c.b16 %v1269, %v1261
    %v1910 = vpack.c.b16 %v1270, %v1262
    %v1911 = vpack.c.b16 %v1271, %v1263
    %v1912 = vpack.c.b16 %v1272, %v1264
    %v1913 = vpack.c.b16 %v1273, %v1265
    %v1914 = vpack.c.b16 %v1274, %v1266
    %v1915 = vpack.c.b16 %v1275, %v1267
    %v1916 = vpack.c.b16 %v1284, %v1276
    %v1917 = vpack.c.b16 %v1285, %v1277
    %v1918 = vpack.c.b16 %v1286, %v1278
    %v1919 = vpack.c.b16 %v1287, %v1279
    %v1920 = vpack.c.b16 %v1288, %v1280
    %v1921 = vpack.c.b16 %v1289, %v1281
    %v1922 = vpack.c.b16 %v1290, %v1282
    %v1923 = vpack.c.b16 %v1291, %v1283
    %v1924 = vpack.c.b16 %v1300, %v1292
    %v1925 = vpack.c.b16 %v1301, %v1293
    %v1926 = vpack.c.b16 %v1302, %v1294
    %v1927 = vpack.c.b16 %v1303, %v1295
    %v1928 = vpack.c.b16 %v1304, %v1296
    %v1929 = vpack.c.b16 %v1305, %v1297
    %v1930 = vpack.c.b16 %v1306, %v1298
    %v1931 = vpack.c.b16 %v1307, %v1299
    %v1932 = vpack.c.b16 %v1316, %v1308
    %v1933 = vpack.c.b16 %v1317, %v1309
    %v1934 = vpack.c.b16 %v1318, %v1310
    %v1935 = vpack.c.b16 %v1319, %v1311
    %v1936 = vpack.c.b16 %v1320, %v1312
    %v1937 = vpack.c.b16 %v1321, %v1313
    %v1938 = vpack.c.b16 %v1322, %v1314
    %v1939 = vpack.c.b16 %v1323, %v1315
    %v1940 = vpack.c.b16 %v1332, %v1324
    %v1941 = vpack.c.b16 %v1333, %v1325
    %v1942 = vpack.c.b16 %v1334, %v1326
    %v1943 = vpack.c.b16 %v1335, %v1327
    %v1944 = vpack.c.b16 %v1336, %v1328
    %v1945 = vpack.c.b16 %v1337, %v1329
    %v1946 = vpack.c.b16 %v1338, %v1330
    %v1947 = vpack.c.b16 %v1339, %v1331
    %v1948 = vpack.c.b16 %v1348, %v1340
    %v1949 = vpack.c.b16 %v1349, %v1341
    %v1950 = vpack.c.b16 %v1350, %v1342
    %v1951 = vpack.c.b16 %v1351, %v1343
    %v1952 = vpack.c.b16 %v1352, %v1344
    %v1953 = vpack.c.b16 %v1353, %v1345
    %v1954 = vpack.c.b16 %v1354, %v1346
    %v1955 = vpack.c.b16 %v1355, %v1347
    %v1956 = vpack.c.b16 %v1364, %v1356
    %v1957 = vpack.c.b16 %v1365, %v1357
    %v1958 = vpack.c.b16 %v1366, %v1358
    %v1959 = vpack.c.b16 %v1367, %v1359
    %v1960 = vpack.c.b16 %v1368, %v1360
    %v1961 = vpack.c.b16 %v1369, %v1361
    %v1962 = vpack.c.b16 %v1370, %v1362
    %v1963 = vpack.c.b16 %v1371, %v1363
    %v1964 = vpack.c.b16 %v1380, %v1372
    %v1965 = vpack.c.b16 %v1381, %v1373
    %v1966 = vpack.c.b16 %v1382, %v1374
    %v1967 = vpack.c.b16 %v1383, %v1375
    %v1968 = vpack.c.b16 %v1384, %v1376
    %v1969 = vpack.c.b16 %v1385, %v1377
    %v1970 = vpack.c.b16 %v1386, %v1378
    %v1971 = vpack.c.b16 %v1387, %v1379
    %v1972 = vpack.c.b16 %v1396, %v1388
    %v1973 = vpack.c.b16 %v1397, %v1389
    %v1974 = vpack.c.b16 %v1398, %v1390
    %v1975 = vpack.c.b16 %v1399, %v1391
    %v1976 = vpack.c.b16 %v1400, %v1392
    %v1977 = vpack.c.b16 %v1401, %v1393
    %v1978 = vpack.c.b16 %v1402, %v1394
    %v1979 = vpack.c.b16 %v1403, %v1395
    %v1980 = vpack.c.b16 %v1412, %v1404
    %v1981 = vpack.c.b16 %v1413, %v1405
    %v1982 = vpack.c.b16 %v1414, %v1406
    %v1983 = vpack.c.b16 %v1415, %v1407
    %v1984 = vpack.c.b16 %v1416, %v1408
    %v1985 = vpack.c.b16 %v1417, %v1409
    %v1986 = vpack.c.b16 %v1418, %v1410
    %v1987 = vpack.c.b16 %v1419, %v1411
    %v1988 = vpack.c.b16 %v1428, %v1420
    %v1989 = vpack.c.b16 %v1429, %v1421
    %v1990 = vpack.c.b16 %v1430, %v1422
    %v1991 = vpack.c.b16 %v1431, %v1423
    %v1992 = vpack.c.b16 %v1432, %v1424
    %v1993 = vpack.c.b16 %v1433, %v1425
    %v1994 = vpack.c.b16 %v1434, %v1426
    %v1995 = vpack.c.b16 %v1435, %v1427
    %v1996 = vpack.c.b16 %v1444, %v1436
    %v1997 = vpack.c.b16 %v1445, %v1437
    %v1998 = vpack.c.b16 %v1446, %v1438
    %v1999 = vpack.c.b16 %v1447, %v1439
    %v2000 = vpack.c.b16 %v1448, %v1440
    %v2001 = vpack.c.b16 %v1449, %v1441
    %v2002 = vpack.c.b16 %v1450, %v1442
    %v2003 = vpack.c.b16 %v1451, %v1443
    %v2004 = vpack.c.b16 %v1460, %v1452
    %v2005 = vpack.c.b16 %v1461, %v1453
    %v2006 = vpack.c.b16 %v1462, %v1454
    %v2007 = vpack.c.b16 %v1463, %v1455
    %v2008 = vpack.c.b16 %v1464, %v1456
    %v2009 = vpack.c.b16 %v1465, %v1457
    %v2010 = vpack.c.b16 %v1466, %v1458
    %v2011 = vpack.c.b16 %v1467, %v1459
    %v2012 = vpack.c.b16 %v1476, %v1468
    %v2013 = vpack.c.b16 %v1477, %v1469
    %v2014 = vpack.c.b16 %v1478, %v1470
    %v2015 = vpack.c.b16 %v1479, %v1471
    %v2016 = vpack.c.b16 %v1480, %v1472
    %v2017 = vpack.c.b16 %v1481, %v1473
    %v2018 = vpack.c.b16 %v1482, %v1474
    %v2019 = vpack.c.b16 %v1483, %v1475
    %v2020 = vpack.c.b16 %v1492, %v1484
    %v2021 = vpack.c.b16 %v1493, %v1485
    %v2022 = vpack.c.b16 %v1494, %v1486
    %v2023 = vpack.c.b16 %v1495, %v1487
    %v2024 = vpack.c.b16 %v1496, %v1488
    %v2025 = vpack.c.b16 %v1497, %v1489
    %v2026 = vpack.c.b16 %v1498, %v1490
    %v2027 = vpack.c.b16 %v1499, %v1491
    %v2028 = vpack.c.b16 %v1508, %v1500
    %v2029 = vpack.c.b16 %v1509, %v1501
    %v2030 = vpack.c.b16 %v1510, %v1502
    %v2031 = vpack.c.b16 %v1511, %v1503
    %v2032 = vpack.c.b16 %v1512, %v1504
    %v2033 = vpack.c.b16 %v1513, %v1505
    %v2034 = vpack.c.b16 %v1514, %v1506
    %v2035 = vpack.c.b16 %v1515, %v1507
    %v2036 = vpack.c.b16 %v1524, %v1516
    %v2037 = vpack.c.b16 %v1525, %v1517
    %v2038 = vpack.c.b16 %v1526, %v1518
    %v2039 = vpack.c.b16 %v1527, %v1519
    %v2040 = vpack.c.b16 %v1528, %v1520
    %v2041 = vpack.c.b16 %v1529, %v1521
    %v2042 = vpack.c.b16 %v1530, %v1522
    %v2043 = vpack.c.b16 %v1531, %v1523
    %v2044 = vpack.c.b16 %v1540, %v1532
    %v2045 = vpack.c.b16 %v1541, %v1533
    %v2046 = vpack.c.b16 %v1542, %v1534
    %v2047 = vpack.c.b16 %v1543, %v1535
    %v2048 = vpack.c.b16 %v1544, %v1536
    %v2049 = vpack.c.b16 %v1545, %v1537
    %v2050 = vpack.c.b16 %v1546, %v1538
    %v2051 = vpack.c.b16 %v1547, %v1539
    %v2052 = vpack.c.b16 %v1556, %v1548
    %v2053 = vpack.c.b16 %v1557, %v1549
    %v2054 = vpack.c.b16 %v1558, %v1550
    %v2055 = vpack.c.b16 %v1559, %v1551
    %v2056 = vpack.c.b16 %v1560, %v1552
    %v2057 = vpack.c.b16 %v1561, %v1553
    %v2058 = vpack.c.b16 %v1562, %v1554
    %v2059 = vpack.c.b16 %v1563, %v1555
    %v2060 = vpack.c.b16 %v1572, %v1564
    %v2061 = vpack.c.b16 %v1573, %v1565
    %v2062 = vpack.c.b16 %v1574, %v1566
    %v2063 = vpack.c.b16 %v1575, %v1567
    %v2064 = vpack.c.b16 %v1576, %v1568
    %v2065 = vpack.c.b16 %v1577, %v1569
    %v2066 = vpack.c.b16 %v1578, %v1570
    %v2067 = vpack.c.b16 %v1579, %v1571
    %v2068 = vpack.c.b16 %v1588, %v1580
    %v2069 = vpack.c.b16 %v1589, %v1581
    %v2070 = vpack.c.b16 %v1590, %v1582
    %v2071 = vpack.c.b16 %v1591, %v1583
    %v2072 = vpack.c.b16 %v1592, %v1584
    %v2073 = vpack.c.b16 %v1593, %v1585
    %v2074 = vpack.c.b16 %v1594, %v1586
    %v2075 = vpack.c.b16 %v1595, %v1587
    %v2076 = vpack.c.b16 %v1604, %v1596
    %v2077 = vpack.c.b16 %v1605, %v1597
    %v2078 = vpack.c.b16 %v1606, %v1598
    %v2079 = vpack.c.b16 %v1607, %v1599
    %v2080 = vpack.c.b16 %v1608, %v1600
    %v2081 = vpack.c.b16 %v1609, %v1601
    %v2082 = vpack.c.b16 %v1610, %v1602
    %v2083 = vpack.c.b16 %v1611, %v1603
    %v2084 = vpack.c.b16 %v1620, %v1612
    %v2085 = vpack.c.b16 %v1621, %v1613
    %v2086 = vpack.c.b16 %v1622, %v1614
    %v2087 = vpack.c.b16 %v1623, %v1615
    %v2088 = vpack.c.b16 %v1624, %v1616
    %v2089 = vpack.c.b16 %v1625, %v1617
    %v2090 = vpack.c.b16 %v1626, %v1618
    %v2091 = vpack.c.b16 %v1627, %v1619
    %v2092 = vpack.c.b16 %v1636, %v1628
    %v2093 = vpack.c.b16 %v1637, %v1629
    %v2094 = vpack.c.b16 %v1638, %v1630
    %v2095 = vpack.c.b16 %v1639, %v1631
    %v2096 = vpack.c.b16 %v1640, %v1632
    %v2097 = vpack.c.b16 %v1641, %v1633
    %v2098 = vpack.c.b16 %v1642, %v1634
    %v2099 = vpack.c.b16 %v1643, %v1635
    %v2100 = vpack.c.b16 %v1652, %v1644
    %v2101 = vpack.c.b16 %v1653, %v1645
    %v2102 = vpack.c.b16 %v1654, %v1646
    %v2103 = vpack.c.b16 %v1655, %v1647
    %v2104 = vpack.c.b16 %v1656, %v1648
    %v2105 = vpack.c.b16 %v1657, %v1649
    %v2106 = vpack.c.b16 %v1658, %v1650
    %v2107 = vpack.c.b16 %v1659, %v1651
    %v2108 = vpack.c.b16 %v1668, %v1660
    %v2109 = vpack.c.b16 %v1669, %v1661
    %v2110 = vpack.c.b16 %v1670, %v1662
    %v2111 = vpack.c.b16 %v1671, %v1663
    %v2112 = vpack.c.b16 %v1672, %v1664
    %v2113 = vpack.c.b16 %v1673, %v1665
    %v2114 = vpack.c.b16 %v1674, %v1666
    %v2115 = vpack.c.b16 %v1675, %v1667
    %v2116 = vpack.c.b16 %v1684, %v1676
    %v2117 = vpack.c.b16 %v1685, %v1677
    %v2118 = vpack.c.b16 %v1686, %v1678
    %v2119 = vpack.c.b16 %v1687, %v1679
    %v2120 = vpack.c.b16 %v1688, %v1680
    %v2121 = vpack.c.b16 %v1689, %v1681
    %v2122 = vpack.c.b16 %v1690, %v1682
    %v2123 = vpack.c.b16 %v1691, %v1683
    %v2124 = vpack.c.b16 %v1700, %v1692
    %v2125 = vpack.c.b16 %v1701, %v1693
    %v2126 = vpack.c.b16 %v1702, %v1694
    %v2127 = vpack.c.b16 %v1703, %v1695
    %v2128 = vpack.c.b16 %v1704, %v1696
    %v2129 = vpack.c.b16 %v1705, %v1697
    %v2130 = vpack.c.b16 %v1706, %v1698
    %v2131 = vpack.c.b16 %v1707, %v1699
    %v2132 = vpack.c.b16 %v1716, %v1708
    %v2133 = vpack.c.b16 %v1717, %v1709
    %v2134 = vpack.c.b16 %v1718, %v1710
    %v2135 = vpack.c.b16 %v1719, %v1711
    %v2136 = vpack.c.b16 %v1720, %v1712
    %v2137 = vpack.c.b16 %v1721, %v1713
    %v2138 = vpack.c.b16 %v1722, %v1714
    %v2139 = vpack.c.b16 %v1723, %v1715
    %v2140 = vpack.c.b16 %v1732, %v1724
    %v2141 = vpack.c.b16 %v1733, %v1725
    %v2142 = vpack.c.b16 %v1734, %v1726
    %v2143 = vpack.c.b16 %v1735, %v1727
    %v2144 = vpack.c.b16 %v1736, %v1728
    %v2145 = vpack.c.b16 %v1737, %v1729
    %v2146 = vpack.c.b16 %v1738, %v1730
    %v2147 = vpack.c.b16 %v1739, %v1731
    %v2148 = vpack.c.b16 %v1748, %v1740
    %v2149 = vpack.c.b16 %v1749, %v1741
    %v2150 = vpack.c.b16 %v1750, %v1742
    %v2151 = vpack.c.b16 %v1751, %v1743
    %v2152 = vpack.c.b16 %v1752, %v1744
    %v2153 = vpack.c.b16 %v1753, %v1745
    %v2154 = vpack.c.b16 %v1754, %v1746
    %v2155 = vpack.c.b16 %v1755, %v1747
    %v2156 = vpack.c.b16 %v1764, %v1756
    %v2157 = vpack.c.b16 %v1765, %v1757
    %v2158 = vpack.c.b16 %v1766, %v1758
    %v2159 = vpack.c.b16 %v1767, %v1759
    %v2160 = vpack.c.b16 %v1768, %v1760
    %v2161 = vpack.c.b16 %v1769, %v1761
    %v2162 = vpack.c.b16 %v1770, %v1762
    %v2163 = vpack.c.b16 %v1771, %v1763
    %vm2556 = vcmask 130048
    %v2558 = vsel %vm2556, %v589, 0
    %2560 = vmatprep.subr.bf16.mxu0 %v1773
    %2561 = vmatpush1.bf16.msra.mxu0 %v1772
    %2562 = vmatprep.subr.bf16.mxu0 %v1781
    %2563 = vmatpush1.bf16.msra.mxu0 %v1780
    %2564 = vmatprep.subr.bf16.mxu0 %v1789
    %2565 = vmatpush1.bf16.msra.mxu0 %v1788
    %2566 = vmatprep.subr.bf16.mxu0 %v1797
    %2567 = vmatpush1.bf16.msra.mxu0 %v1796
    %2568 = vmatprep.subr.bf16.mxu0 %v1805
    %2569 = vmatpush1.bf16.msra.mxu0 %v1804
    %2570 = vmatprep.subr.bf16.mxu0 %v1813
    %2571 = vmatpush1.bf16.msra.mxu0 %v1812
    %2572 = vmatprep.subr.bf16.mxu0 %v1821
    %2573 = vmatpush1.bf16.msra.mxu0 %v1820
    %2574 = vmatprep.subr.bf16.mxu0 %v1829
    %2575 = vmatpush1.bf16.msra.mxu0 %v1828
    %2576 = vmatprep.subr.bf16.mxu0 %v1837
    %2577 = vmatpush1.bf16.msra.mxu0 %v1836
    %2578 = vmatprep.subr.bf16.mxu0 %v1845
    %2579 = vmatpush1.bf16.msra.mxu0 %v1844
    %2580 = vmatprep.subr.bf16.mxu0 %v1853
    %2581 = vmatpush1.bf16.msra.mxu0 %v1852
    %2582 = vmatprep.subr.bf16.mxu0 %v1861
    %2583 = vmatpush1.bf16.msra.mxu0 %v1860
    %2584 = vmatprep.subr.bf16.mxu0 %v1869
    %2585 = vmatpush1.bf16.msra.mxu0 %v1868
    %2586 = vmatprep.subr.bf16.mxu0 %v1877
    %2587 = vmatpush1.bf16.msra.mxu0 %v1876
    %2588 = vmatprep.subr.bf16.mxu0 %v1885
    %2589 = vmatpush1.bf16.msra.mxu0 %v1884
    %2590 = vmatprep.subr.bf16.mxu0 %v1893
    %2591 = vmatpush1.bf16.msra.mxu0 %v1892
    %2592 = vmatprep.mubr.bf16.mxu0 %v584
    %2593 = vmatmul.mubr.bf16.gmra.mrb[0].mxu0 %v583
    %v2594 = vpop.f32.mrb[0].mxu0
    %v2595 = vadd.f32 0.0, %v2594
    %v2596 = vpop.f32.mrb[0].mxu0
    %v2597 = vadd.f32 0.0, %v2596
    %v2598 = vpop.f32.mrb[0].mxu0
    %v2599 = vadd.f32 0.0, %v2598
    %v2600 = vpop.f32.mrb[0].mxu0
    %v2601 = vadd.f32 0.0, %v2600
    %2602 = vdwg.mxu0
    %2603 = vmatprep.subr.bf16.mxu0 %v1901
    %2604 = vmatpush1.bf16.msra.mxu0 %v1900
    %2605 = vmatprep.subr.bf16.mxu0 %v1909
    %2606 = vmatpush1.bf16.msra.mxu0 %v1908
    %2607 = vmatprep.subr.bf16.mxu0 %v1917
    %2608 = vmatpush1.bf16.msra.mxu0 %v1916
    %2609 = vmatprep.subr.bf16.mxu0 %v1925
    %2610 = vmatpush1.bf16.msra.mxu0 %v1924
    %2611 = vmatprep.subr.bf16.mxu0 %v1933
    %2612 = vmatpush1.bf16.msra.mxu0 %v1932
    %2613 = vmatprep.subr.bf16.mxu0 %v1941
    %2614 = vmatpush1.bf16.msra.mxu0 %v1940
    %2615 = vmatprep.subr.bf16.mxu0 %v1949
    %2616 = vmatpush1.bf16.msra.mxu0 %v1948
    %2617 = vmatprep.subr.bf16.mxu0 %v1957
    %2618 = vmatpush1.bf16.msra.mxu0 %v1956
    %2619 = vmatprep.subr.bf16.mxu0 %v1965
    %2620 = vmatpush1.bf16.msra.mxu0 %v1964
    %2621 = vmatprep.subr.bf16.mxu0 %v1973
    %2622 = vmatpush1.bf16.msra.mxu0 %v1972
    %2623 = vmatprep.subr.bf16.mxu0 %v1981
    %2624 = vmatpush1.bf16.msra.mxu0 %v1980
    %2625 = vmatprep.subr.bf16.mxu0 %v1989
    %2626 = vmatpush1.bf16.msra.mxu0 %v1988
    %2627 = vmatprep.subr.bf16.mxu0 %v1997
    %2628 = vmatpush1.bf16.msra.mxu0 %v1996
    %2629 = vmatprep.subr.bf16.mxu0 %v2005
    %2630 = vmatpush1.bf16.msra.mxu0 %v2004
    %2631 = vmatprep.subr.bf16.mxu0 %v2013
    %2632 = vmatpush1.bf16.msra.mxu0 %v2012
    %2633 = vmatprep.subr.bf16.mxu0 %v2021
    %2634 = vmatpush1.bf16.msra.mxu0 %v2020
    %2635 = vmatprep.mubr.bf16.mxu0 %v586
    %2636 = vmatmul.mubr.bf16.gmra.mrb[0].mxu0 %v585
    %v2637 = vpop.f32.mrb[0].mxu0
    %v2638 = vadd.f32 %v2595, %v2637
    %v2639 = vpop.f32.mrb[0].mxu0
    %v2640 = vadd.f32 %v2597, %v2639
    %v2641 = vpop.f32.mrb[0].mxu0
    %v2642 = vadd.f32 %v2599, %v2641
    %v2643 = vpop.f32.mrb[0].mxu0
    %v2644 = vadd.f32 %v2601, %v2643
    %2645 = vdwg.mxu0
    %2646 = vmatprep.subr.bf16.mxu0 %v2029
    %2647 = vmatpush1.bf16.msra.mxu0 %v2028
    %2648 = vmatprep.subr.bf16.mxu0 %v2037
    %2649 = vmatpush1.bf16.msra.mxu0 %v2036
    %2650 = vmatprep.subr.bf16.mxu0 %v2045
    %2651 = vmatpush1.bf16.msra.mxu0 %v2044
    %2652 = vmatprep.subr.bf16.mxu0 %v2053
    %2653 = vmatpush1.bf16.msra.mxu0 %v2052
    %2654 = vmatprep.subr.bf16.mxu0 %v2061
    %2655 = vmatpush1.bf16.msra.mxu0 %v2060
    %2656 = vmatprep.subr.bf16.mxu0 %v2069
    %2657 = vmatpush1.bf16.msra.mxu0 %v2068
    %2658 = vmatprep.subr.bf16.mxu0 %v2077
    %2659 = vmatpush1.bf16.msra.mxu0 %v2076
    %2660 = vmatprep.subr.bf16.mxu0 %v2085
    %2661 = vmatpush1.bf16.msra.mxu0 %v2084
    %2662 = vmatprep.subr.bf16.mxu0 %v2093
    %2663 = vmatpush1.bf16.msra.mxu0 %v2092
    %2664 = vmatprep.subr.bf16.mxu0 %v2101
    %2665 = vmatpush1.bf16.msra.mxu0 %v2100
    %2666 = vmatprep.subr.bf16.mxu0 %v2109
    %2667 = vmatpush1.bf16.msra.mxu0 %v2108
    %2668 = vmatprep.subr.bf16.mxu0 %v2117
    %2669 = vmatpush1.bf16.msra.mxu0 %v2116
    %2670 = vmatprep.subr.bf16.mxu0 %v2125
    %2671 = vmatpush1.bf16.msra.mxu0 %v2124
    %2672 = vmatprep.subr.bf16.mxu0 %v2133
    %2673 = vmatpush1.bf16.msra.mxu0 %v2132
    %2674 = vmatprep.subr.bf16.mxu0 %v2141
    %2675 = vmatpush1.bf16.msra.mxu0 %v2140
    %2676 = vmatprep.subr.bf16.mxu0 %v2149
    %2677 = vmatpush1.bf16.msra.mxu0 %v2148
    %2678 = vmatprep.mubr.bf16.mxu0 %v588
    %2679 = vmatmul.mubr.bf16.gmra.mrb[0].mxu0 %v587
    %v2680 = vpop.f32.mrb[0].mxu0
    %v2681 = vadd.f32 %v2638, %v2680
    %v2682 = vpop.f32.mrb[0].mxu0
    %v2683 = vadd.f32 %v2640, %v2682
    %v2684 = vpop.f32.mrb[0].mxu0
    %v2685 = vadd.f32 %v2642, %v2684
    %v2686 = vpop.f32.mrb[0].mxu0
    %v2687 = vadd.f32 %v2644, %v2686
    %2688 = vdwg.mxu0
    %2689 = vmatprep.subr.bf16.mxu0 %v2157
    %2690 = vmatpush1.bf16.msra.mxu0 %v2156
    %2691 = vmatprep.subr.bf16.mxu0 0
    %2692 = vmatpush1.bf16.msra.mxu0 0
    %2693 = vmatprep.subr.bf16.mxu0 0
    %2694 = vmatpush1.bf16.msra.mxu0 0
    %2695 = vmatprep.subr.bf16.mxu0 0
    %2696 = vmatpush1.bf16.msra.mxu0 0
    %2697 = vmatprep.subr.bf16.mxu0 0
    %2698 = vmatpush1.bf16.msra.mxu0 0
    %2699 = vmatprep.subr.bf16.mxu0 0
    %2700 = vmatpush1.bf16.msra.mxu0 0
    %2701 = vmatprep.subr.bf16.mxu0 0
    %2702 = vmatpush1.bf16.msra.mxu0 0
    %2703 = vmatprep.subr.bf16.mxu0 0
    %2704 = vmatpush1.bf16.msra.mxu0 0
    %2705 = vmatprep.subr.bf16.mxu0 0
    %2706 = vmatpush1.bf16.msra.mxu0 0
    %2707 = vmatprep.subr.bf16.mxu0 0
    %2708 = vmatpush1.bf16.msra.mxu0 0
    %2709 = vmatprep.subr.bf16.mxu0 0
    %2710 = vmatpush1.bf16.msra.mxu0 0
    %2711 = vmatprep.subr.bf16.mxu0 0
    %2712 = vmatpush1.bf16.msra.mxu0 0
    %2713 = vmatprep.subr.bf16.mxu0 0
    %2714 = vmatpush1.bf16.msra.mxu0 0
    %2715 = vmatprep.subr.bf16.mxu0 0
    %2716 = vmatpush1.bf16.msra.mxu0 0
    %2717 = vmatprep.subr.bf16.mxu0 0
    %2718 = vmatpush1.bf16.msra.mxu0 0
    %2719 = vmatprep.subr.bf16.mxu0 0
    %2720 = vmatpush1.bf16.msra.mxu0 0
    %2721 = vmatprep.mubr.bf16.mxu0 0
    %2722 = vmatmul.mubr.bf16.gmra.mrb[0].mxu0 %v2558
    %v2723 = vpop.f32.mrb[0].mxu0
    %v2724 = vadd.f32 %v2681, %v2723
    %v2725 = vpop.f32.mrb[0].mxu0
    %v2726 = vadd.f32 %v2683, %v2725
    %v2727 = vpop.f32.mrb[0].mxu0
    %v2728 = vadd.f32 %v2685, %v2727
    %v2729 = vpop.f32.mrb[0].mxu0
    %v2730 = vadd.f32 %v2687, %v2729
    %2731 = vdwg.mxu0
    %2732 = vmatprep.subr.bf16.mxu0 %v1775
    %2733 = vmatpush1.bf16.msra.mxu0 %v1774
    %2734 = vmatprep.subr.bf16.mxu0 %v1783
    %2735 = vmatpush1.bf16.msra.mxu0 %v1782
    %2736 = vmatprep.subr.bf16.mxu0 %v1791
    %2737 = vmatpush1.bf16.msra.mxu0 %v1790
    %2738 = vmatprep.subr.bf16.mxu0 %v1799
    %2739 = vmatpush1.bf16.msra.mxu0 %v1798
    %2740 = vmatprep.subr.bf16.mxu0 %v1807
    %2741 = vmatpush1.bf16.msra.mxu0 %v1806
    %2742 = vmatprep.subr.bf16.mxu0 %v1815
    %2743 = vmatpush1.bf16.msra.mxu0 %v1814
    %2744 = vmatprep.subr.bf16.mxu0 %v1823
    %2745 = vmatpush1.bf16.msra.mxu0 %v1822
    %2746 = vmatprep.subr.bf16.mxu0 %v1831
    %2747 = vmatpush1.bf16.msra.mxu0 %v1830
    %2748 = vmatprep.subr.bf16.mxu0 %v1839
    %2749 = vmatpush1.bf16.msra.mxu0 %v1838
    %2750 = vmatprep.subr.bf16.mxu0 %v1847
    %2751 = vmatpush1.bf16.msra.mxu0 %v1846
    %2752 = vmatprep.subr.bf16.mxu0 %v1855
    %2753 = vmatpush1.bf16.msra.mxu0 %v1854
    %2754 = vmatprep.subr.bf16.mxu0 %v1863
    %2755 = vmatpush1.bf16.msra.mxu0 %v1862
    %2756 = vmatprep.subr.bf16.mxu0 %v1871
    %2757 = vmatpush1.bf16.msra.mxu0 %v1870
    %2758 = vmatprep.subr.bf16.mxu0 %v1879
    %2759 = vmatpush1.bf16.msra.mxu0 %v1878
    %2760 = vmatprep.subr.bf16.mxu0 %v1887
    %2761 = vmatpush1.bf16.msra.mxu0 %v1886
    %2762 = vmatprep.subr.bf16.mxu0 %v1895
    %2763 = vmatpush1.bf16.msra.mxu0 %v1894
    %2764 = vmatprep.mubr.bf16.mxu0 %v584
    %2765 = vmatmul.mubr.bf16.gmra.mrb[0].mxu0 %v583
    %v2766 = vpop.f32.mrb[0].mxu0
    %v2767 = vadd.f32 0.0, %v2766
    %v2768 = vpop.f32.mrb[0].mxu0
    %v2769 = vadd.f32 0.0, %v2768
    %v2770 = vpop.f32.mrb[0].mxu0
    %v2771 = vadd.f32 0.0, %v2770
    %v2772 = vpop.f32.mrb[0].mxu0
    %v2773 = vadd.f32 0.0, %v2772
    %2774 = vdwg.mxu0
    %2775 = vmatprep.subr.bf16.mxu0 %v1903
    %2776 = vmatpush1.bf16.msra.mxu0 %v1902
    %2777 = vmatprep.subr.bf16.mxu0 %v1911
    %2778 = vmatpush1.bf16.msra.mxu0 %v1910
    %2779 = vmatprep.subr.bf16.mxu0 %v1919
    %2780 = vmatpush1.bf16.msra.mxu0 %v1918
    %2781 = vmatprep.subr.bf16.mxu0 %v1927
    %2782 = vmatpush1.bf16.msra.mxu0 %v1926
    %2783 = vmatprep.subr.bf16.mxu0 %v1935
    %2784 = vmatpush1.bf16.msra.mxu0 %v1934
    %2785 = vmatprep.subr.bf16.mxu0 %v1943
    %2786 = vmatpush1.bf16.msra.mxu0 %v1942
    %2787 = vmatprep.subr.bf16.mxu0 %v1951
    %2788 = vmatpush1.bf16.msra.mxu0 %v1950
    %2789 = vmatprep.subr.bf16.mxu0 %v1959
    %2790 = vmatpush1.bf16.msra.mxu0 %v1958
    %2791 = vmatprep.subr.bf16.mxu0 %v1967
    %2792 = vmatpush1.bf16.msra.mxu0 %v1966
    %2793 = vmatprep.subr.bf16.mxu0 %v1975
    %2794 = vmatpush1.bf16.msra.mxu0 %v1974
    %2795 = vmatprep.subr.bf16.mxu0 %v1983
    %2796 = vmatpush1.bf16.msra.mxu0 %v1982
    %2797 = vmatprep.subr.bf16.mxu0 %v1991
    %2798 = vmatpush1.bf16.msra.mxu0 %v1990
    %2799 = vmatprep.subr.bf16.mxu0 %v1999
    %2800 = vmatpush1.bf16.msra.mxu0 %v1998
    %2801 = vmatprep.subr.bf16.mxu0 %v2007
    %2802 = vmatpush1.bf16.msra.mxu0 %v2006
    %2803 = vmatprep.subr.bf16.mxu0 %v2015
    %2804 = vmatpush1.bf16.msra.mxu0 %v2014
    %2805 = vmatprep.subr.bf16.mxu0 %v2023
    %2806 = vmatpush1.bf16.msra.mxu0 %v2022
    %2807 = vmatprep.mubr.bf16.mxu0 %v586
    %2808 = vmatmul.mubr.bf16.gmra.mrb[0].mxu0 %v585
    %v2809 = vpop.f32.mrb[0].mxu0
    %v2810 = vadd.f32 %v2767, %v2809
    %v2811 = vpop.f32.mrb[0].mxu0
    %v2812 = vadd.f32 %v2769, %v2811
    %v2813 = vpop.f32.mrb[0].mxu0
    %v2814 = vadd.f32 %v2771, %v2813
    %v2815 = vpop.f32.mrb[0].mxu0
    %v2816 = vadd.f32 %v2773, %v2815
    %2817 = vdwg.mxu0
    %2818 = vmatprep.subr.bf16.mxu0 %v2031
    %2819 = vmatpush1.bf16.msra.mxu0 %v2030
    %2820 = vmatprep.subr.bf16.mxu0 %v2039
    %2821 = vmatpush1.bf16.msra.mxu0 %v2038
    %2822 = vmatprep.subr.bf16.mxu0 %v2047
    %2823 = vmatpush1.bf16.msra.mxu0 %v2046
    %2824 = vmatprep.subr.bf16.mxu0 %v2055
    %2825 = vmatpush1.bf16.msra.mxu0 %v2054
    %2826 = vmatprep.subr.bf16.mxu0 %v2063
    %2827 = vmatpush1.bf16.msra.mxu0 %v2062
    %2828 = vmatprep.subr.bf16.mxu0 %v2071
    %2829 = vmatpush1.bf16.msra.mxu0 %v2070
    %2830 = vmatprep.subr.bf16.mxu0 %v2079
    %2831 = vmatpush1.bf16.msra.mxu0 %v2078
    %2832 = vmatprep.subr.bf16.mxu0 %v2087
    %2833 = vmatpush1.bf16.msra.mxu0 %v2086
    %2834 = vmatprep.subr.bf16.mxu0 %v2095
    %2835 = vmatpush1.bf16.msra.mxu0 %v2094
    %2836 = vmatprep.subr.bf16.mxu0 %v2103
    %2837 = vmatpush1.bf16.msra.mxu0 %v2102
    %2838 = vmatprep.subr.bf16.mxu0 %v2111
    %2839 = vmatpush1.bf16.msra.mxu0 %v2110
    %2840 = vmatprep.subr.bf16.mxu0 %v2119
    %2841 = vmatpush1.bf16.msra.mxu0 %v2118
    %2842 = vmatprep.subr.bf16.mxu0 %v2127
    %2843 = vmatpush1.bf16.msra.mxu0 %v2126
    %2844 = vmatprep.subr.bf16.mxu0 %v2135
    %2845 = vmatpush1.bf16.msra.mxu0 %v2134
    %2846 = vmatprep.subr.bf16.mxu0 %v2143
    %2847 = vmatpush1.bf16.msra.mxu0 %v2142
    %2848 = vmatprep.subr.bf16.mxu0 %v2151
    %2849 = vmatpush1.bf16.msra.mxu0 %v2150
    %2850 = vmatprep.mubr.bf16.mxu0 %v588
    %2851 = vmatmul.mubr.bf16.gmra.mrb[0].mxu0 %v587
    %v2852 = vpop.f32.mrb[0].mxu0
    %v2853 = vadd.f32 %v2810, %v2852
    %v2854 = vpop.f32.mrb[0].mxu0
    %v2855 = vadd.f32 %v2812, %v2854
    %v2856 = vpop.f32.mrb[0].mxu0
    %v2857 = vadd.f32 %v2814, %v2856
    %v2858 = vpop.f32.mrb[0].mxu0
    %v2859 = vadd.f32 %v2816, %v2858
    %2860 = vdwg.mxu0
    %2861 = vmatprep.subr.bf16.mxu0 %v2159
    %2862 = vmatpush1.bf16.msra.mxu0 %v2158
    %2863 = vmatprep.subr.bf16.mxu0 0
    %2864 = vmatpush1.bf16.msra.mxu0 0
    %2865 = vmatprep.subr.bf16.mxu0 0
    %2866 = vmatpush1.bf16.msra.mxu0 0
    %2867 = vmatprep.subr.bf16.mxu0 0
    %2868 = vmatpush1.bf16.msra.mxu0 0
    %2869 = vmatprep.subr.bf16.mxu0 0
    %2870 = vmatpush1.bf16.msra.mxu0 0
    %2871 = vmatprep.subr.bf16.mxu0 0
    %2872 = vmatpush1.bf16.msra.mxu0 0
    %2873 = vmatprep.subr.bf16.mxu0 0
    %2874 = vmatpush1.bf16.msra.mxu0 0
    %2875 = vmatprep.subr.bf16.mxu0 0
    %2876 = vmatpush1.bf16.msra.mxu0 0
    %2877 = vmatprep.subr.bf16.mxu0 0
    %2878 = vmatpush1.bf16.msra.mxu0 0
    %2879 = vmatprep.subr.bf16.mxu0 0
    %2880 = vmatpush1.bf16.msra.mxu0 0
    %2881 = vmatprep.subr.bf16.mxu0 0
    %2882 = vmatpush1.bf16.msra.mxu0 0
    %2883 = vmatprep.subr.bf16.mxu0 0
    %2884 = vmatpush1.bf16.msra.mxu0 0
    %2885 = vmatprep.subr.bf16.mxu0 0
    %2886 = vmatpush1.bf16.msra.mxu0 0
    %2887 = vmatprep.subr.bf16.mxu0 0
    %2888 = vmatpush1.bf16.msra.mxu0 0
    %2889 = vmatprep.subr.bf16.mxu0 0
    %2890 = vmatpush1.bf16.msra.mxu0 0
    %2891 = vmatprep.subr.bf16.mxu0 0
    %2892 = vmatpush1.bf16.msra.mxu0 0
    %2893 = vmatprep.mubr.bf16.mxu0 0
    %2894 = vmatmul.mubr.bf16.gmra.mrb[0].mxu0 %v2558
    %v2895 = vpop.f32.mrb[0].mxu0
    %v2896 = vadd.f32 %v2853, %v2895
    %v2897 = vpop.f32.mrb[0].mxu0
    %v2898 = vadd.f32 %v2855, %v2897
    %v2899 = vpop.f32.mrb[0].mxu0
    %v2900 = vadd.f32 %v2857, %v2899
    %v2901 = vpop.f32.mrb[0].mxu0
    %v2902 = vadd.f32 %v2859, %v2901
    %2903 = vdwg.mxu0
    %2904 = vmatprep.subr.bf16.mxu0 %v1777
    %2905 = vmatpush1.bf16.msra.mxu0 %v1776
    %2906 = vmatprep.subr.bf16.mxu0 %v1785
    %2907 = vmatpush1.bf16.msra.mxu0 %v1784
    %2908 = vmatprep.subr.bf16.mxu0 %v1793
    %2909 = vmatpush1.bf16.msra.mxu0 %v1792
    %2910 = vmatprep.subr.bf16.mxu0 %v1801
    %2911 = vmatpush1.bf16.msra.mxu0 %v1800
    %2912 = vmatprep.subr.bf16.mxu0 %v1809
    %2913 = vmatpush1.bf16.msra.mxu0 %v1808
    %2914 = vmatprep.subr.bf16.mxu0 %v1817
    %2915 = vmatpush1.bf16.msra.mxu0 %v1816
    %2916 = vmatprep.subr.bf16.mxu0 %v1825
    %2917 = vmatpush1.bf16.msra.mxu0 %v1824
    %2918 = vmatprep.subr.bf16.mxu0 %v1833
    %2919 = vmatpush1.bf16.msra.mxu0 %v1832
    %2920 = vmatprep.subr.bf16.mxu0 %v1841
    %2921 = vmatpush1.bf16.msra.mxu0 %v1840
    %2922 = vmatprep.subr.bf16.mxu0 %v1849
    %2923 = vmatpush1.bf16.msra.mxu0 %v1848
    %2924 = vmatprep.subr.bf16.mxu0 %v1857
    %2925 = vmatpush1.bf16.msra.mxu0 %v1856
    %2926 = vmatprep.subr.bf16.mxu0 %v1865
    %2927 = vmatpush1.bf16.msra.mxu0 %v1864
    %2928 = vmatprep.subr.bf16.mxu0 %v1873
    %2929 = vmatpush1.bf16.msra.mxu0 %v1872
    %2930 = vmatprep.subr.bf16.mxu0 %v1881
    %2931 = vmatpush1.bf16.msra.mxu0 %v1880
    %2932 = vmatprep.subr.bf16.mxu0 %v1889
    %2933 = vmatpush1.bf16.msra.mxu0 %v1888
    %2934 = vmatprep.subr.bf16.mxu0 %v1897
    %2935 = vmatpush1.bf16.msra.mxu0 %v1896
    %2936 = vmatprep.mubr.bf16.mxu0 %v584
    %2937 = vmatmul.mubr.bf16.gmra.mrb[0].mxu0 %v583
    %v2938 = vpop.f32.mrb[0].mxu0
    %v2939 = vadd.f32 0.0, %v2938
    %v2940 = vpop.f32.mrb[0].mxu0
    %v2941 = vadd.f32 0.0, %v2940
    %v2942 = vpop.f32.mrb[0].mxu0
    %v2943 = vadd.f32 0.0, %v2942
    %v2944 = vpop.f32.mrb[0].mxu0
    %v2945 = vadd.f32 0.0, %v2944
    %2946 = vdwg.mxu0
    %2947 = vmatprep.subr.bf16.mxu0 %v1905
    %2948 = vmatpush1.bf16.msra.mxu0 %v1904
    %2949 = vmatprep.subr.bf16.mxu0 %v1913
    %2950 = vmatpush1.bf16.msra.mxu0 %v1912
    %2951 = vmatprep.subr.bf16.mxu0 %v1921
    %2952 = vmatpush1.bf16.msra.mxu0 %v1920
    %2953 = vmatprep.subr.bf16.mxu0 %v1929
    %2954 = vmatpush1.bf16.msra.mxu0 %v1928
    %2955 = vmatprep.subr.bf16.mxu0 %v1937
    %2956 = vmatpush1.bf16.msra.mxu0 %v1936
    %2957 = vmatprep.subr.bf16.mxu0 %v1945
    %2958 = vmatpush1.bf16.msra.mxu0 %v1944
    %2959 = vmatprep.subr.bf16.mxu0 %v1953
    %2960 = vmatpush1.bf16.msra.mxu0 %v1952
    %2961 = vmatprep.subr.bf16.mxu0 %v1961
    %2962 = vmatpush1.bf16.msra.mxu0 %v1960
    %2963 = vmatprep.subr.bf16.mxu0 %v1969
    %2964 = vmatpush1.bf16.msra.mxu0 %v1968
    %2965 = vmatprep.subr.bf16.mxu0 %v1977
    %2966 = vmatpush1.bf16.msra.mxu0 %v1976
    %2967 = vmatprep.subr.bf16.mxu0 %v1985
    %2968 = vmatpush1.bf16.msra.mxu0 %v1984
    %2969 = vmatprep.subr.bf16.mxu0 %v1993
    %2970 = vmatpush1.bf16.msra.mxu0 %v1992
    %2971 = vmatprep.subr.bf16.mxu0 %v2001
    %2972 = vmatpush1.bf16.msra.mxu0 %v2000
    %2973 = vmatprep.subr.bf16.mxu0 %v2009
    %2974 = vmatpush1.bf16.msra.mxu0 %v2008
    %2975 = vmatprep.subr.bf16.mxu0 %v2017
    %2976 = vmatpush1.bf16.msra.mxu0 %v2016
    %2977 = vmatprep.subr.bf16.mxu0 %v2025
    %2978 = vmatpush1.bf16.msra.mxu0 %v2024
    %2979 = vmatprep.mubr.bf16.mxu0 %v586
    %2980 = vmatmul.mubr.bf16.gmra.mrb[0].mxu0 %v585
    %v2981 = vpop.f32.mrb[0].mxu0
    %v2982 = vadd.f32 %v2939, %v2981
    %v2983 = vpop.f32.mrb[0].mxu0
    %v2984 = vadd.f32 %v2941, %v2983
    %v2985 = vpop.f32.mrb[0].mxu0
    %v2986 = vadd.f32 %v2943, %v2985
    %v2987 = vpop.f32.mrb[0].mxu0
    %v2988 = vadd.f32 %v2945, %v2987
    %2989 = vdwg.mxu0
    %2990 = vmatprep.subr.bf16.mxu0 %v2033
    %2991 = vmatpush1.bf16.msra.mxu0 %v2032
    %2992 = vmatprep.subr.bf16.mxu0 %v2041
    %2993 = vmatpush1.bf16.msra.mxu0 %v2040
    %2994 = vmatprep.subr.bf16.mxu0 %v2049
    %2995 = vmatpush1.bf16.msra.mxu0 %v2048
    %2996 = vmatprep.subr.bf16.mxu0 %v2057
    %2997 = vmatpush1.bf16.msra.mxu0 %v2056
    %2998 = vmatprep.subr.bf16.mxu0 %v2065
    %2999 = vmatpush1.bf16.msra.mxu0 %v2064
    %3000 = vmatprep.subr.bf16.mxu0 %v2073
    %3001 = vmatpush1.bf16.msra.mxu0 %v2072
    %3002 = vmatprep.subr.bf16.mxu0 %v2081
    %3003 = vmatpush1.bf16.msra.mxu0 %v2080
    %3004 = vmatprep.subr.bf16.mxu0 %v2089
    %3005 = vmatpush1.bf16.msra.mxu0 %v2088
    %3006 = vmatprep.subr.bf16.mxu0 %v2097
    %3007 = vmatpush1.bf16.msra.mxu0 %v2096
    %3008 = vmatprep.subr.bf16.mxu0 %v2105
    %3009 = vmatpush1.bf16.msra.mxu0 %v2104
    %3010 = vmatprep.subr.bf16.mxu0 %v2113
    %3011 = vmatpush1.bf16.msra.mxu0 %v2112
    %3012 = vmatprep.subr.bf16.mxu0 %v2121
    %3013 = vmatpush1.bf16.msra.mxu0 %v2120
    %3014 = vmatprep.subr.bf16.mxu0 %v2129
    %3015 = vmatpush1.bf16.msra.mxu0 %v2128
    %3016 = vmatprep.subr.bf16.mxu0 %v2137
    %3017 = vmatpush1.bf16.msra.mxu0 %v2136
    %3018 = vmatprep.subr.bf16.mxu0 %v2145
    %3019 = vmatpush1.bf16.msra.mxu0 %v2144
    %3020 = vmatprep.subr.bf16.mxu0 %v2153
    %3021 = vmatpush1.bf16.msra.mxu0 %v2152
    %3022 = vmatprep.mubr.bf16.mxu0 %v588
    %3023 = vmatmul.mubr.bf16.gmra.mrb[0].mxu0 %v587
    %v3024 = vpop.f32.mrb[0].mxu0
    %v3025 = vadd.f32 %v2982, %v3024
    %v3026 = vpop.f32.mrb[0].mxu0
    %v3027 = vadd.f32 %v2984, %v3026
    %v3028 = vpop.f32.mrb[0].mxu0
    %v3029 = vadd.f32 %v2986, %v3028
    %v3030 = vpop.f32.mrb[0].mxu0
    %v3031 = vadd.f32 %v2988, %v3030
    %3032 = vdwg.mxu0
    %3033 = vmatprep.subr.bf16.mxu0 %v2161
    %3034 = vmatpush1.bf16.msra.mxu0 %v2160
    %3035 = vmatprep.subr.bf16.mxu0 0
    %3036 = vmatpush1.bf16.msra.mxu0 0
    %3037 = vmatprep.subr.bf16.mxu0 0
    %3038 = vmatpush1.bf16.msra.mxu0 0
    %3039 = vmatprep.subr.bf16.mxu0 0
    %3040 = vmatpush1.bf16.msra.mxu0 0
    %3041 = vmatprep.subr.bf16.mxu0 0
    %3042 = vmatpush1.bf16.msra.mxu0 0
    %3043 = vmatprep.subr.bf16.mxu0 0
    %3044 = vmatpush1.bf16.msra.mxu0 0
    %3045 = vmatprep.subr.bf16.mxu0 0
    %3046 = vmatpush1.bf16.msra.mxu0 0
    %3047 = vmatprep.subr.bf16.mxu0 0
    %3048 = vmatpush1.bf16.msra.mxu0 0
    %3049 = vmatprep.subr.bf16.mxu0 0
    %3050 = vmatpush1.bf16.msra.mxu0 0
    %3051 = vmatprep.subr.bf16.mxu0 0
    %3052 = vmatpush1.bf16.msra.mxu0 0
    %3053 = vmatprep.subr.bf16.mxu0 0
    %3054 = vmatpush1.bf16.msra.mxu0 0
    %3055 = vmatprep.subr.bf16.mxu0 0
    %3056 = vmatpush1.bf16.msra.mxu0 0
    %3057 = vmatprep.subr.bf16.mxu0 0
    %3058 = vmatpush1.bf16.msra.mxu0 0
    %3059 = vmatprep.subr.bf16.mxu0 0
    %3060 = vmatpush1.bf16.msra.mxu0 0
    %3061 = vmatprep.subr.bf16.mxu0 0
    %3062 = vmatpush1.bf16.msra.mxu0 0
    %3063 = vmatprep.subr.bf16.mxu0 0
    %3064 = vmatpush1.bf16.msra.mxu0 0
    %3065 = vmatprep.mubr.bf16.mxu0 0
    %3066 = vmatmul.mubr.bf16.gmra.mrb[0].mxu0 %v2558
    %v3067 = vpop.f32.mrb[0].mxu0
    %v3068 = vadd.f32 %v3025, %v3067
    %v3069 = vpop.f32.mrb[0].mxu0
    %v3070 = vadd.f32 %v3027, %v3069
    %v3071 = vpop.f32.mrb[0].mxu0
    %v3072 = vadd.f32 %v3029, %v3071
    %v3073 = vpop.f32.mrb[0].mxu0
    %v3074 = vadd.f32 %v3031, %v3073
    %3075 = vdwg.mxu0
    %3076 = vmatprep.subr.bf16.mxu0 %v1779
    %3077 = vmatpush1.bf16.msra.mxu0 %v1778
    %3078 = vmatprep.subr.bf16.mxu0 %v1787
    %3079 = vmatpush1.bf16.msra.mxu0 %v1786
    %3080 = vmatprep.subr.bf16.mxu0 %v1795
    %3081 = vmatpush1.bf16.msra.mxu0 %v1794
    %3082 = vmatprep.subr.bf16.mxu0 %v1803
    %3083 = vmatpush1.bf16.msra.mxu0 %v1802
    %3084 = vmatprep.subr.bf16.mxu0 %v1811
    %3085 = vmatpush1.bf16.msra.mxu0 %v1810
    %3086 = vmatprep.subr.bf16.mxu0 %v1819
    %3087 = vmatpush1.bf16.msra.mxu0 %v1818
    %3088 = vmatprep.subr.bf16.mxu0 %v1827
    %3089 = vmatpush1.bf16.msra.mxu0 %v1826
    %3090 = vmatprep.subr.bf16.mxu0 %v1835
    %3091 = vmatpush1.bf16.msra.mxu0 %v1834
    %3092 = vmatprep.subr.bf16.mxu0 %v1843
    %3093 = vmatpush1.bf16.msra.mxu0 %v1842
    %3094 = vmatprep.subr.bf16.mxu0 %v1851
    %3095 = vmatpush1.bf16.msra.mxu0 %v1850
    %3096 = vmatprep.subr.bf16.mxu0 %v1859
    %3097 = vmatpush1.bf16.msra.mxu0 %v1858
    %3098 = vmatprep.subr.bf16.mxu0 %v1867
    %3099 = vmatpush1.bf16.msra.mxu0 %v1866
    %3100 = vmatprep.subr.bf16.mxu0 %v1875
    %3101 = vmatpush1.bf16.msra.mxu0 %v1874
    %3102 = vmatprep.subr.bf16.mxu0 %v1883
    %3103 = vmatpush1.bf16.msra.mxu0 %v1882
    %3104 = vmatprep.subr.bf16.mxu0 %v1891
    %3105 = vmatpush1.bf16.msra.mxu0 %v1890
    %3106 = vmatprep.subr.bf16.mxu0 %v1899
    %3107 = vmatpush1.bf16.msra.mxu0 %v1898
    %3108 = vmatprep.mubr.bf16.mxu0 %v584
    %3109 = vmatmul.mubr.bf16.gmra.mrb[0].mxu0 %v583
    %v3110 = vpop.f32.mrb[0].mxu0
    %v3111 = vadd.f32 0.0, %v3110
    %v3112 = vpop.f32.mrb[0].mxu0
    %v3113 = vadd.f32 0.0, %v3112
    %v3114 = vpop.f32.mrb[0].mxu0
    %v3115 = vadd.f32 0.0, %v3114
    %v3116 = vpop.f32.mrb[0].mxu0
    %v3117 = vadd.f32 0.0, %v3116
    %3118 = vdwg.mxu0
    %3119 = vmatprep.subr.bf16.mxu0 %v1907
    %3120 = vmatpush1.bf16.msra.mxu0 %v1906
    %3121 = vmatprep.subr.bf16.mxu0 %v1915
    %3122 = vmatpush1.bf16.msra.mxu0 %v1914
    %3123 = vmatprep.subr.bf16.mxu0 %v1923
    %3124 = vmatpush1.bf16.msra.mxu0 %v1922
    %3125 = vmatprep.subr.bf16.mxu0 %v1931
    %3126 = vmatpush1.bf16.msra.mxu0 %v1930
    %3127 = vmatprep.subr.bf16.mxu0 %v1939
    %3128 = vmatpush1.bf16.msra.mxu0 %v1938
    %3129 = vmatprep.subr.bf16.mxu0 %v1947
    %3130 = vmatpush1.bf16.msra.mxu0 %v1946
    %3131 = vmatprep.subr.bf16.mxu0 %v1955
    %3132 = vmatpush1.bf16.msra.mxu0 %v1954
    %3133 = vmatprep.subr.bf16.mxu0 %v1963
    %3134 = vmatpush1.bf16.msra.mxu0 %v1962
    %3135 = vmatprep.subr.bf16.mxu0 %v1971
    %3136 = vmatpush1.bf16.msra.mxu0 %v1970
    %3137 = vmatprep.subr.bf16.mxu0 %v1979
    %3138 = vmatpush1.bf16.msra.mxu0 %v1978
    %3139 = vmatprep.subr.bf16.mxu0 %v1987
    %3140 = vmatpush1.bf16.msra.mxu0 %v1986
    %3141 = vmatprep.subr.bf16.mxu0 %v1995
    %3142 = vmatpush1.bf16.msra.mxu0 %v1994
    %3143 = vmatprep.subr.bf16.mxu0 %v2003
    %3144 = vmatpush1.bf16.msra.mxu0 %v2002
    %3145 = vmatprep.subr.bf16.mxu0 %v2011
    %3146 = vmatpush1.bf16.msra.mxu0 %v2010
    %3147 = vmatprep.subr.bf16.mxu0 %v2019
    %3148 = vmatpush1.bf16.msra.mxu0 %v2018
    %3149 = vmatprep.subr.bf16.mxu0 %v2027
    %3150 = vmatpush1.bf16.msra.mxu0 %v2026
    %3151 = vmatprep.mubr.bf16.mxu0 %v586
    %3152 = vmatmul.mubr.bf16.gmra.mrb[0].mxu0 %v585
    %v3153 = vpop.f32.mrb[0].mxu0
    %v3154 = vadd.f32 %v3111, %v3153
    %v3155 = vpop.f32.mrb[0].mxu0
    %v3156 = vadd.f32 %v3113, %v3155
    %v3157 = vpop.f32.mrb[0].mxu0
    %v3158 = vadd.f32 %v3115, %v3157
    %v3159 = vpop.f32.mrb[0].mxu0
    %v3160 = vadd.f32 %v3117, %v3159
    %3161 = vdwg.mxu0
    %3162 = vmatprep.subr.bf16.mxu0 %v2035
    %3163 = vmatpush1.bf16.msra.mxu0 %v2034
    %3164 = vmatprep.subr.bf16.mxu0 %v2043
    %3165 = vmatpush1.bf16.msra.mxu0 %v2042
    %3166 = vmatprep.subr.bf16.mxu0 %v2051
    %3167 = vmatpush1.bf16.msra.mxu0 %v2050
    %3168 = vmatprep.subr.bf16.mxu0 %v2059
    %3169 = vmatpush1.bf16.msra.mxu0 %v2058
    %3170 = vmatprep.subr.bf16.mxu0 %v2067
    %3171 = vmatpush1.bf16.msra.mxu0 %v2066
    %3172 = vmatprep.subr.bf16.mxu0 %v2075
    %3173 = vmatpush1.bf16.msra.mxu0 %v2074
    %3174 = vmatprep.subr.bf16.mxu0 %v2083
    %3175 = vmatpush1.bf16.msra.mxu0 %v2082
    %3176 = vmatprep.subr.bf16.mxu0 %v2091
    %3177 = vmatpush1.bf16.msra.mxu0 %v2090
    %3178 = vmatprep.subr.bf16.mxu0 %v2099
    %3179 = vmatpush1.bf16.msra.mxu0 %v2098
    %3180 = vmatprep.subr.bf16.mxu0 %v2107
    %3181 = vmatpush1.bf16.msra.mxu0 %v2106
    %3182 = vmatprep.subr.bf16.mxu0 %v2115
    %3183 = vmatpush1.bf16.msra.mxu0 %v2114
    %3184 = vmatprep.subr.bf16.mxu0 %v2123
    %3185 = vmatpush1.bf16.msra.mxu0 %v2122
    %3186 = vmatprep.subr.bf16.mxu0 %v2131
    %3187 = vmatpush1.bf16.msra.mxu0 %v2130
    %3188 = vmatprep.subr.bf16.mxu0 %v2139
    %3189 = vmatpush1.bf16.msra.mxu0 %v2138
    %3190 = vmatprep.subr.bf16.mxu0 %v2147
    %3191 = vmatpush1.bf16.msra.mxu0 %v2146
    %3192 = vmatprep.subr.bf16.mxu0 %v2155
    %3193 = vmatpush1.bf16.msra.mxu0 %v2154
    %3194 = vmatprep.mubr.bf16.mxu0 %v588
    %3195 = vmatmul.mubr.bf16.gmra.mrb[0].mxu0 %v587
    %v3196 = vpop.f32.mrb[0].mxu0
    %v3197 = vadd.f32 %v3154, %v3196
    %v3198 = vpop.f32.mrb[0].mxu0
    %v3199 = vadd.f32 %v3156, %v3198
    %v3200 = vpop.f32.mrb[0].mxu0
    %v3201 = vadd.f32 %v3158, %v3200
    %v3202 = vpop.f32.mrb[0].mxu0
    %v3203 = vadd.f32 %v3160, %v3202
    %3204 = vdwg.mxu0
    %3205 = vmatprep.subr.bf16.mxu0 %v2163
    %3206 = vmatpush1.bf16.msra.mxu0 %v2162
    %3207 = vmatprep.subr.bf16.mxu0 0
    %3208 = vmatpush1.bf16.msra.mxu0 0
    %3209 = vmatprep.subr.bf16.mxu0 0
    %3210 = vmatpush1.bf16.msra.mxu0 0
    %3211 = vmatprep.subr.bf16.mxu0 0
    %3212 = vmatpush1.bf16.msra.mxu0 0
    %3213 = vmatprep.subr.bf16.mxu0 0
    %3214 = vmatpush1.bf16.msra.mxu0 0
    %3215 = vmatprep.subr.bf16.mxu0 0
    %3216 = vmatpush1.bf16.msra.mxu0 0
    %3217 = vmatprep.subr.bf16.mxu0 0
    %3218 = vmatpush1.bf16.msra.mxu0 0
    %3219 = vmatprep.subr.bf16.mxu0 0
    %3220 = vmatpush1.bf16.msra.mxu0 0
    %3221 = vmatprep.subr.bf16.mxu0 0
    %3222 = vmatpush1.bf16.msra.mxu0 0
    %3223 = vmatprep.subr.bf16.mxu0 0
    %3224 = vmatpush1.bf16.msra.mxu0 0
    %3225 = vmatprep.subr.bf16.mxu0 0
    %3226 = vmatpush1.bf16.msra.mxu0 0
    %3227 = vmatprep.subr.bf16.mxu0 0
    %3228 = vmatpush1.bf16.msra.mxu0 0
    %3229 = vmatprep.subr.bf16.mxu0 0
    %3230 = vmatpush1.bf16.msra.mxu0 0
    %3231 = vmatprep.subr.bf16.mxu0 0
    %3232 = vmatpush1.bf16.msra.mxu0 0
    %3233 = vmatprep.subr.bf16.mxu0 0
    %3234 = vmatpush1.bf16.msra.mxu0 0
    %3235 = vmatprep.subr.bf16.mxu0 0
    %3236 = vmatpush1.bf16.msra.mxu0 0
    %3237 = vmatprep.mubr.bf16.mxu0 0
    %3238 = vmatmul.mubr.bf16.gmra.mrb[0].mxu0 %v2558
    %v3239 = vpop.f32.mrb[0].mxu0
    %v3240 = vadd.f32 %v3197, %v3239
    %v3241 = vpop.f32.mrb[0].mxu0
    %v3242 = vadd.f32 %v3199, %v3241
    %v3243 = vpop.f32.mrb[0].mxu0
    %v3244 = vadd.f32 %v3201, %v3243
    %v3245 = vpop.f32.mrb[0].mxu0
    %v3246 = vadd.f32 %v3203, %v3245
    %3247 = vdwg.mxu0
    %v3248 = vld [vmem:[#allocation7] sm:$0xff]
    %v3250 = vlaneseq
    %v3251 = vshrl.u32 %v3250, 7
    %v3252 = vsub.s32 0, %v3251
    %v3253 = vrot.slane %v3248, %v3252
    %v3254 = vlaneseq
    %v3255 = vshrl.u32 %v3254, 7
    %v3256 = vsub.s32 1, %v3255
    %v3257 = vrot.slane %v3248, %v3256
    %v3258 = vlaneseq
    %v3259 = vshrl.u32 %v3258, 7
    %v3260 = vsub.s32 2, %v3259
    %v3261 = vrot.slane %v3248, %v3260
    %v3262 = vlaneseq
    %v3263 = vshrl.u32 %v3262, 7
    %v3264 = vsub.s32 3, %v3263
    %v3265 = vrot.slane %v3248, %v3264
    %v3266 = vlaneseq
    %v3267 = vshrl.u32 %v3266, 7
    %v3268 = vsub.s32 4, %v3267
    %v3269 = vrot.slane %v3248, %v3268
    %v3270 = vlaneseq
    %v3271 = vshrl.u32 %v3270, 7
    %v3272 = vsub.s32 5, %v3271
    %v3273 = vrot.slane %v3248, %v3272
    %v3274 = vlaneseq
    %v3275 = vshrl.u32 %v3274, 7
    %v3276 = vsub.s32 6, %v3275
    %v3277 = vrot.slane %v3248, %v3276
    %v3278 = vlaneseq
    %v3279 = vshrl.u32 %v3278, 7
    %v3280 = vsub.s32 7, %v3279
    %v3281 = vrot.slane %v3248, %v3280
    %v3290 = vmul.f32 %v2724, %v3253
    %v3291 = vmul.f32 %v2726, %v3257
    %v3292 = vmul.f32 %v2896, %v3261
    %v3293 = vmul.f32 %v2898, %v3265
    %v3294 = vmul.f32 %v3068, %v3269
    %v3295 = vmul.f32 %v3070, %v3273
    %v3296 = vmul.f32 %v3240, %v3277
    %v3297 = vmul.f32 %v3242, %v3281
    %v3298 = vmul.f32 %v2728, %v3253
    %v3299 = vmul.f32 %v2730, %v3257
    %v3300 = vmul.f32 %v2900, %v3261
    %v3301 = vmul.f32 %v2902, %v3265
    %v3302 = vmul.f32 %v3072, %v3269
    %v3303 = vmul.f32 %v3074, %v3273
    %v3304 = vmul.f32 %v3244, %v3277
    %v3305 = vmul.f32 %v3246, %v3281
    %v3306 = vld [vmem:[#allocation8] sm:$0xff]
    %v3308 = vlaneseq
    %v3309 = vshrl.u32 %v3308, 7
    %v3310 = vsub.s32 0, %v3309
    %v3311 = vrot.slane %v3306, %v3310
    %v3312 = vlaneseq
    %v3313 = vshrl.u32 %v3312, 7
    %v3314 = vsub.s32 1, %v3313
    %v3315 = vrot.slane %v3306, %v3314
    %v3316 = vlaneseq
    %v3317 = vshrl.u32 %v3316, 7
    %v3318 = vsub.s32 2, %v3317
    %v3319 = vrot.slane %v3306, %v3318
    %v3320 = vlaneseq
    %v3321 = vshrl.u32 %v3320, 7
    %v3322 = vsub.s32 3, %v3321
    %v3323 = vrot.slane %v3306, %v3322
    %v3324 = vlaneseq
    %v3325 = vshrl.u32 %v3324, 7
    %v3326 = vsub.s32 4, %v3325
    %v3327 = vrot.slane %v3306, %v3326
    %v3328 = vlaneseq
    %v3329 = vshrl.u32 %v3328, 7
    %v3330 = vsub.s32 5, %v3329
    %v3331 = vrot.slane %v3306, %v3330
    %v3332 = vlaneseq
    %v3333 = vshrl.u32 %v3332, 7
    %v3334 = vsub.s32 6, %v3333
    %v3335 = vrot.slane %v3306, %v3334
    %v3336 = vlaneseq
    %v3337 = vshrl.u32 %v3336, 7
    %v3338 = vsub.s32 7, %v3337
    %v3339 = vrot.slane %v3306, %v3338
    %v3348 = vadd.f32 %v3290, %v3311
    %v3349 = vadd.f32 %v3291, %v3315
    %v3350 = vadd.f32 %v3292, %v3319
    %v3351 = vadd.f32 %v3293, %v3323
    %v3352 = vadd.f32 %v3294, %v3327
    %v3353 = vadd.f32 %v3295, %v3331
    %v3354 = vadd.f32 %v3296, %v3335
    %v3355 = vadd.f32 %v3297, %v3339
    %v3356 = vadd.f32 %v3298, %v3311
    %v3357 = vadd.f32 %v3299, %v3315
    %v3358 = vadd.f32 %v3300, %v3319
    %v3359 = vadd.f32 %v3301, %v3323
    %v3360 = vadd.f32 %v3302, %v3327
    %v3361 = vadd.f32 %v3303, %v3331
    %v3362 = vadd.f32 %v3304, %v3335
    %v3363 = vadd.f32 %v3305, %v3339
    %v3364 = vmax.f32 %v3348, 0.0
    %v3365 = vmax.f32 %v3349, 0.0
    %v3366 = vmax.f32 %v3350, 0.0
    %v3367 = vmax.f32 %v3351, 0.0
    %v3368 = vmax.f32 %v3352, 0.0
    %v3369 = vmax.f32 %v3353, 0.0
    %v3370 = vmax.f32 %v3354, 0.0
    %v3371 = vmax.f32 %v3355, 0.0
    %v3372 = vmax.f32 %v3356, 0.0
    %v3373 = vmax.f32 %v3357, 0.0
    %v3374 = vmax.f32 %v3358, 0.0
    %v3375 = vmax.f32 %v3359, 0.0
    %v3376 = vmax.f32 %v3360, 0.0
    %v3377 = vmax.f32 %v3361, 0.0
    %v3378 = vmax.f32 %v3362, 0.0
    %v3379 = vmax.f32 %v3363, 0.0
    %v3380 = vpack.c.bf16 %v3372, %v3364
    %v3381 = vpack.c.bf16 %v3373, %v3365
    %v3382 = vpack.c.bf16 %v3374, %v3366
    %v3383 = vpack.c.bf16 %v3375, %v3367
    %v3384 = vpack.c.bf16 %v3376, %v3368
    %v3385 = vpack.c.bf16 %v3377, %v3369
    %v3386 = vpack.c.bf16 %v3378, %v3370
    %v3387 = vpack.c.bf16 %v3379, %v3371
    %v3388 = vld [vmem:[#allocation10] sm:$0xff]
    %v3389 = vld [vmem:[#allocation10 + $0x8] sm:$0xff]
    %v3390 = vld [vmem:[#allocation10 + $0x10] sm:$0xff]
    %v3391 = vld [vmem:[#allocation10 + $0x18] sm:$0xff]
    %v3392 = vld [vmem:[#allocation10 + $0x20] sm:$0xff]
    %v3393 = vld [vmem:[#allocation10 + $0x28] sm:$0xff]
    %v3394 = vld [vmem:[#allocation10 + $0x30] sm:$0xff]
    %v3395 = vld [vmem:[#allocation10 + $0x38] sm:$0xff]
    %v3396 = vld [vmem:[#allocation10 + $0x40] sm:$0xff]
    %v3397 = vld [vmem:[#allocation10 + $0x48] sm:$0xff]
    %v3398 = vld [vmem:[#allocation10 + $0x50] sm:$0xff]
    %v3399 = vld [vmem:[#allocation10 + $0x58] sm:$0xff]
    %v3400 = vld [vmem:[#allocation10 + $0x60] sm:$0xff]
    %v3401 = vld [vmem:[#allocation10 + $0x68] sm:$0xff]
    %v3402 = vld [vmem:[#allocation10 + $0x70] sm:$0xff]
    %v3403 = vld [vmem:[#allocation10 + $0x78] sm:$0xff]
    %v3404 = vld [vmem:[#allocation10 + $0x80] sm:$0xff]
    %v3405 = vld [vmem:[#allocation10 + $0x88] sm:$0xff]
    %v3406 = vld [vmem:[#allocation10 + $0x90] sm:$0xff]
    %v3407 = vld [vmem:[#allocation10 + $0x98] sm:$0xff]
    %v3408 = vld [vmem:[#allocation10 + $0xa0] sm:$0xff]
    %v3409 = vld [vmem:[#allocation10 + $0xa8] sm:$0xff]
    %v3410 = vld [vmem:[#allocation10 + $0xb0] sm:$0xff]
    %v3411 = vld [vmem:[#allocation10 + $0xb8] sm:$0xff]
    %v3412 = vld [vmem:[#allocation10 + $0xc0] sm:$0xff]
    %v3413 = vld [vmem:[#allocation10 + $0xc8] sm:$0xff]
    %v3414 = vld [vmem:[#allocation10 + $0xd0] sm:$0xff]
    %v3415 = vld [vmem:[#allocation10 + $0xd8] sm:$0xff]
    %v3416 = vld [vmem:[#allocation10 + $0xe0] sm:$0xff]
    %v3417 = vld [vmem:[#allocation10 + $0xe8] sm:$0xff]
    %v3418 = vld [vmem:[#allocation10 + $0xf0] sm:$0xff]
    %v3419 = vld [vmem:[#allocation10 + $0xf8] sm:$0xff]
    %v3420 = vld [vmem:[#allocation10 + $0x100] sm:$0xff]
    %v3421 = vld [vmem:[#allocation10 + $0x108] sm:$0xff]
    %v3422 = vld [vmem:[#allocation10 + $0x110] sm:$0xff]
    %v3423 = vld [vmem:[#allocation10 + $0x118] sm:$0xff]
    %v3424 = vld [vmem:[#allocation10 + $0x120] sm:$0xff]
    %v3425 = vld [vmem:[#allocation10 + $0x128] sm:$0xff]
    %v3426 = vld [vmem:[#allocation10 + $0x130] sm:$0xff]
    %v3427 = vld [vmem:[#allocation10 + $0x138] sm:$0xff]
    %v3428 = vld [vmem:[#allocation10 + $0x140] sm:$0xff]
    %v3429 = vld [vmem:[#allocation10 + $0x148] sm:$0xff]
    %v3430 = vld [vmem:[#allocation10 + $0x150] sm:$0xff]
    %v3431 = vld [vmem:[#allocation10 + $0x158] sm:$0xff]
    %v3432 = vld [vmem:[#allocation10 + $0x160] sm:$0xff]
    %v3433 = vld [vmem:[#allocation10 + $0x168] sm:$0xff]
    %v3434 = vld [vmem:[#allocation10 + $0x170] sm:$0xff]
    %v3435 = vld [vmem:[#allocation10 + $0x178] sm:$0xff]
    %v3436 = vld [vmem:[#allocation10 + $0x180] sm:$0xff]
    %v3437 = vld [vmem:[#allocation10 + $0x188] sm:$0xff]
    %v3438 = vld [vmem:[#allocation10 + $0x190] sm:$0xff]
    %v3439 = vld [vmem:[#allocation10 + $0x198] sm:$0xff]
    %v3440 = vld [vmem:[#allocation10 + $0x1a0] sm:$0xff]
    %v3441 = vld [vmem:[#allocation10 + $0x1a8] sm:$0xff]
    %v3442 = vld [vmem:[#allocation10 + $0x1b0] sm:$0xff]
    %v3443 = vld [vmem:[#allocation10 + $0x1b8] sm:$0xff]
    %v3444 = vld [vmem:[#allocation10 + $0x1c0] sm:$0xff]
    %v3445 = vld [vmem:[#allocation10 + $0x1c8] sm:$0xff]
    %v3446 = vld [vmem:[#allocation10 + $0x1d0] sm:$0xff]
    %v3447 = vld [vmem:[#allocation10 + $0x1d8] sm:$0xff]
    %v3448 = vld [vmem:[#allocation10 + $0x1e0] sm:$0xff]
    %v3449 = vld [vmem:[#allocation10 + $0x1e8] sm:$0xff]
    %v3450 = vld [vmem:[#allocation10 + $0x1f0] sm:$0xff]
    %v3451 = vld [vmem:[#allocation10 + $0x1f8] sm:$0xff]
    %v3452 = vld [vmem:[#allocation10 + $0x200] sm:$0xff]
    %v3453 = vld [vmem:[#allocation10 + $0x208] sm:$0xff]
    %v3454 = vld [vmem:[#allocation10 + $0x210] sm:$0xff]
    %v3455 = vld [vmem:[#allocation10 + $0x218] sm:$0xff]
    %v3456 = vld [vmem:[#allocation10 + $0x220] sm:$0xff]
    %v3457 = vld [vmem:[#allocation10 + $0x228] sm:$0xff]
    %v3458 = vld [vmem:[#allocation10 + $0x230] sm:$0xff]
    %v3459 = vld [vmem:[#allocation10 + $0x238] sm:$0xff]
    %v3460 = vld [vmem:[#allocation10 + $0x240] sm:$0xff]
    %v3461 = vld [vmem:[#allocation10 + $0x248] sm:$0xff]
    %v3462 = vld [vmem:[#allocation10 + $0x250] sm:$0xff]
    %v3463 = vld [vmem:[#allocation10 + $0x258] sm:$0xff]
    %v3464 = vld [vmem:[#allocation10 + $0x260] sm:$0xff]
    %v3465 = vld [vmem:[#allocation10 + $0x268] sm:$0xff]
    %v3466 = vld [vmem:[#allocation10 + $0x270] sm:$0xff]
    %v3467 = vld [vmem:[#allocation10 + $0x278] sm:$0xff]
    %v3468 = vld [vmem:[#allocation10 + $0x280] sm:$0xff]
    %v3469 = vld [vmem:[#allocation10 + $0x288] sm:$0xff]
    %v3470 = vld [vmem:[#allocation10 + $0x290] sm:$0xff]
    %v3471 = vld [vmem:[#allocation10 + $0x298] sm:$0xff]
    %v3472 = vld [vmem:[#allocation10 + $0x2a0] sm:$0xff]
    %v3473 = vld [vmem:[#allocation10 + $0x2a8] sm:$0xff]
    %v3474 = vld [vmem:[#allocation10 + $0x2b0] sm:$0xff]
    %v3475 = vld [vmem:[#allocation10 + $0x2b8] sm:$0xff]
    %v3476 = vld [vmem:[#allocation10 + $0x2c0] sm:$0xff]
    %v3477 = vld [vmem:[#allocation10 + $0x2c8] sm:$0xff]
    %v3478 = vld [vmem:[#allocation10 + $0x2d0] sm:$0xff]
    %v3479 = vld [vmem:[#allocation10 + $0x2d8] sm:$0xff]
    %v3480 = vld [vmem:[#allocation10 + $0x2e0] sm:$0xff]
    %v3481 = vld [vmem:[#allocation10 + $0x2e8] sm:$0xff]
    %v3482 = vld [vmem:[#allocation10 + $0x2f0] sm:$0xff]
    %v3483 = vld [vmem:[#allocation10 + $0x2f8] sm:$0xff]
    %v3484 = vld [vmem:[#allocation10 + $0x300] sm:$0xff]
    %v3485 = vld [vmem:[#allocation10 + $0x308] sm:$0xff]
    %v3486 = vld [vmem:[#allocation10 + $0x310] sm:$0xff]
    %v3487 = vld [vmem:[#allocation10 + $0x318] sm:$0xff]
    %v3488 = vld [vmem:[#allocation10 + $0x320] sm:$0xff]
    %v3489 = vld [vmem:[#allocation10 + $0x328] sm:$0xff]
    %v3490 = vld [vmem:[#allocation10 + $0x330] sm:$0xff]
    %v3491 = vld [vmem:[#allocation10 + $0x338] sm:$0xff]
    %v3492 = vld [vmem:[#allocation10 + $0x340] sm:$0xff]
    %v3493 = vld [vmem:[#allocation10 + $0x348] sm:$0xff]
    %v3494 = vld [vmem:[#allocation10 + $0x350] sm:$0xff]
    %v3495 = vld [vmem:[#allocation10 + $0x358] sm:$0xff]
    %v3496 = vld [vmem:[#allocation10 + $0x360] sm:$0xff]
    %v3497 = vld [vmem:[#allocation10 + $0x368] sm:$0xff]
    %v3498 = vld [vmem:[#allocation10 + $0x370] sm:$0xff]
    %v3499 = vld [vmem:[#allocation10 + $0x378] sm:$0xff]
    %v3500 = vld [vmem:[#allocation10 + $0x380] sm:$0xff]
    %v3501 = vld [vmem:[#allocation10 + $0x388] sm:$0xff]
    %v3502 = vld [vmem:[#allocation10 + $0x390] sm:$0xff]
    %v3503 = vld [vmem:[#allocation10 + $0x398] sm:$0xff]
    %v3504 = vld [vmem:[#allocation10 + $0x3a0] sm:$0xff]
    %v3505 = vld [vmem:[#allocation10 + $0x3a8] sm:$0xff]
    %v3506 = vld [vmem:[#allocation10 + $0x3b0] sm:$0xff]
    %v3507 = vld [vmem:[#allocation10 + $0x3b8] sm:$0xff]
    %v3508 = vld [vmem:[#allocation10 + $0x3c0] sm:$0xff]
    %v3509 = vld [vmem:[#allocation10 + $0x3c8] sm:$0xff]
    %v3510 = vld [vmem:[#allocation10 + $0x3d0] sm:$0xff]
    %v3511 = vld [vmem:[#allocation10 + $0x3d8] sm:$0xff]
    %v3512 = vld [vmem:[#allocation10 + $0x3e0] sm:$0xff]
    %v3513 = vld [vmem:[#allocation10 + $0x3e8] sm:$0xff]
    %v3514 = vld [vmem:[#allocation10 + $0x3f0] sm:$0xff]
    %v3515 = vld [vmem:[#allocation10 + $0x3f8] sm:$0xff]
    %v3516 = vld [vmem:[#allocation10 + $0x400] sm:$0xff]
    %v3517 = vld [vmem:[#allocation10 + $0x408] sm:$0xff]
    %v3518 = vld [vmem:[#allocation10 + $0x410] sm:$0xff]
    %v3519 = vld [vmem:[#allocation10 + $0x418] sm:$0xff]
    %v3520 = vld [vmem:[#allocation10 + $0x420] sm:$0xff]
    %v3521 = vld [vmem:[#allocation10 + $0x428] sm:$0xff]
    %v3522 = vld [vmem:[#allocation10 + $0x430] sm:$0xff]
    %v3523 = vld [vmem:[#allocation10 + $0x438] sm:$0xff]
    %v3524 = vld [vmem:[#allocation10 + $0x440] sm:$0xff]
    %v3525 = vld [vmem:[#allocation10 + $0x448] sm:$0xff]
    %v3526 = vld [vmem:[#allocation10 + $0x450] sm:$0xff]
    %v3527 = vld [vmem:[#allocation10 + $0x458] sm:$0xff]
    %v3528 = vld [vmem:[#allocation10 + $0x460] sm:$0xff]
    %v3529 = vld [vmem:[#allocation10 + $0x468] sm:$0xff]
    %v3530 = vld [vmem:[#allocation10 + $0x470] sm:$0xff]
    %v3531 = vld [vmem:[#allocation10 + $0x478] sm:$0xff]
    %v3532 = vld [vmem:[#allocation10 + $0x480] sm:$0xff]
    %v3533 = vld [vmem:[#allocation10 + $0x488] sm:$0xff]
    %v3534 = vld [vmem:[#allocation10 + $0x490] sm:$0xff]
    %v3535 = vld [vmem:[#allocation10 + $0x498] sm:$0xff]
    %v3536 = vld [vmem:[#allocation10 + $0x4a0] sm:$0xff]
    %v3537 = vld [vmem:[#allocation10 + $0x4a8] sm:$0xff]
    %v3538 = vld [vmem:[#allocation10 + $0x4b0] sm:$0xff]
    %v3539 = vld [vmem:[#allocation10 + $0x4b8] sm:$0xff]
    %v3540 = vld [vmem:[#allocation10 + $0x4c0] sm:$0xff]
    %v3541 = vld [vmem:[#allocation10 + $0x4c8] sm:$0xff]
    %v3542 = vld [vmem:[#allocation10 + $0x4d0] sm:$0xff]
    %v3543 = vld [vmem:[#allocation10 + $0x4d8] sm:$0xff]
    %v3544 = vld [vmem:[#allocation10 + $0x4e0] sm:$0xff]
    %v3545 = vld [vmem:[#allocation10 + $0x4e8] sm:$0xff]
    %v3546 = vld [vmem:[#allocation10 + $0x4f0] sm:$0xff]
    %v3547 = vld [vmem:[#allocation10 + $0x4f8] sm:$0xff]
    %v3548 = vld [vmem:[#allocation10 + $0x500] sm:$0xff]
    %v3549 = vld [vmem:[#allocation10 + $0x508] sm:$0xff]
    %v3550 = vld [vmem:[#allocation10 + $0x510] sm:$0xff]
    %v3551 = vld [vmem:[#allocation10 + $0x518] sm:$0xff]
    %v3552 = vld [vmem:[#allocation10 + $0x520] sm:$0xff]
    %v3553 = vld [vmem:[#allocation10 + $0x528] sm:$0xff]
    %v3554 = vld [vmem:[#allocation10 + $0x530] sm:$0xff]
    %v3555 = vld [vmem:[#allocation10 + $0x538] sm:$0xff]
    %v3556 = vld [vmem:[#allocation10 + $0x540] sm:$0xff]
    %v3557 = vld [vmem:[#allocation10 + $0x548] sm:$0xff]
    %v3558 = vld [vmem:[#allocation10 + $0x550] sm:$0xff]
    %v3559 = vld [vmem:[#allocation10 + $0x558] sm:$0xff]
    %v3560 = vld [vmem:[#allocation10 + $0x560] sm:$0xff]
    %v3561 = vld [vmem:[#allocation10 + $0x568] sm:$0xff]
    %v3562 = vld [vmem:[#allocation10 + $0x570] sm:$0xff]
    %v3563 = vld [vmem:[#allocation10 + $0x578] sm:$0xff]
    %v3564 = vld [vmem:[#allocation10 + $0x580] sm:$0xff]
    %v3565 = vld [vmem:[#allocation10 + $0x588] sm:$0xff]
    %v3566 = vld [vmem:[#allocation10 + $0x590] sm:$0xff]
    %v3567 = vld [vmem:[#allocation10 + $0x598] sm:$0xff]
    %v3568 = vld [vmem:[#allocation10 + $0x5a0] sm:$0xff]
    %v3569 = vld [vmem:[#allocation10 + $0x5a8] sm:$0xff]
    %v3570 = vld [vmem:[#allocation10 + $0x5b0] sm:$0xff]
    %v3571 = vld [vmem:[#allocation10 + $0x5b8] sm:$0xff]
    %v3572 = vld [vmem:[#allocation10 + $0x5c0] sm:$0xff]
    %v3573 = vld [vmem:[#allocation10 + $0x5c8] sm:$0xff]
    %v3574 = vld [vmem:[#allocation10 + $0x5d0] sm:$0xff]
    %v3575 = vld [vmem:[#allocation10 + $0x5d8] sm:$0xff]
    %v3576 = vld [vmem:[#allocation10 + $0x5e0] sm:$0xff]
    %v3577 = vld [vmem:[#allocation10 + $0x5e8] sm:$0xff]
    %v3578 = vld [vmem:[#allocation10 + $0x5f0] sm:$0xff]
    %v3579 = vld [vmem:[#allocation10 + $0x5f8] sm:$0xff]
    %v3580 = vld [vmem:[#allocation10 + $0x600] sm:$0xff]
    %v3581 = vld [vmem:[#allocation10 + $0x608] sm:$0xff]
    %v3582 = vld [vmem:[#allocation10 + $0x610] sm:$0xff]
    %v3583 = vld [vmem:[#allocation10 + $0x618] sm:$0xff]
    %v3584 = vld [vmem:[#allocation10 + $0x620] sm:$0xff]
    %v3585 = vld [vmem:[#allocation10 + $0x628] sm:$0xff]
    %v3586 = vld [vmem:[#allocation10 + $0x630] sm:$0xff]
    %v3587 = vld [vmem:[#allocation10 + $0x638] sm:$0xff]
    %v3588 = vld [vmem:[#allocation10 + $0x640] sm:$0xff]
    %v3589 = vld [vmem:[#allocation10 + $0x648] sm:$0xff]
    %v3590 = vld [vmem:[#allocation10 + $0x650] sm:$0xff]
    %v3591 = vld [vmem:[#allocation10 + $0x658] sm:$0xff]
    %v3592 = vld [vmem:[#allocation10 + $0x660] sm:$0xff]
    %v3593 = vld [vmem:[#allocation10 + $0x668] sm:$0xff]
    %v3594 = vld [vmem:[#allocation10 + $0x670] sm:$0xff]
    %v3595 = vld [vmem:[#allocation10 + $0x678] sm:$0xff]
    %v3596 = vld [vmem:[#allocation10 + $0x680] sm:$0xff]
    %v3597 = vld [vmem:[#allocation10 + $0x688] sm:$0xff]
    %v3598 = vld [vmem:[#allocation10 + $0x690] sm:$0xff]
    %v3599 = vld [vmem:[#allocation10 + $0x698] sm:$0xff]
    %v3600 = vld [vmem:[#allocation10 + $0x6a0] sm:$0xff]
    %v3601 = vld [vmem:[#allocation10 + $0x6a8] sm:$0xff]
    %v3602 = vld [vmem:[#allocation10 + $0x6b0] sm:$0xff]
    %v3603 = vld [vmem:[#allocation10 + $0x6b8] sm:$0xff]
    %v3604 = vld [vmem:[#allocation10 + $0x6c0] sm:$0xff]
    %v3605 = vld [vmem:[#allocation10 + $0x6c8] sm:$0xff]
    %v3606 = vld [vmem:[#allocation10 + $0x6d0] sm:$0xff]
    %v3607 = vld [vmem:[#allocation10 + $0x6d8] sm:$0xff]
    %v3608 = vld [vmem:[#allocation10 + $0x6e0] sm:$0xff]
    %v3609 = vld [vmem:[#allocation10 + $0x6e8] sm:$0xff]
    %v3610 = vld [vmem:[#allocation10 + $0x6f0] sm:$0xff]
    %v3611 = vld [vmem:[#allocation10 + $0x6f8] sm:$0xff]
    %v3612 = vld [vmem:[#allocation10 + $0x700] sm:$0xff]
    %v3613 = vld [vmem:[#allocation10 + $0x708] sm:$0xff]
    %v3614 = vld [vmem:[#allocation10 + $0x710] sm:$0xff]
    %v3615 = vld [vmem:[#allocation10 + $0x718] sm:$0xff]
    %v3616 = vld [vmem:[#allocation10 + $0x720] sm:$0xff]
    %v3617 = vld [vmem:[#allocation10 + $0x728] sm:$0xff]
    %v3618 = vld [vmem:[#allocation10 + $0x730] sm:$0xff]
    %v3619 = vld [vmem:[#allocation10 + $0x738] sm:$0xff]
    %v3620 = vld [vmem:[#allocation10 + $0x740] sm:$0xff]
    %v3621 = vld [vmem:[#allocation10 + $0x748] sm:$0xff]
    %v3622 = vld [vmem:[#allocation10 + $0x750] sm:$0xff]
    %v3623 = vld [vmem:[#allocation10 + $0x758] sm:$0xff]
    %v3624 = vld [vmem:[#allocation10 + $0x760] sm:$0xff]
    %v3625 = vld [vmem:[#allocation10 + $0x768] sm:$0xff]
    %v3626 = vld [vmem:[#allocation10 + $0x770] sm:$0xff]
    %v3627 = vld [vmem:[#allocation10 + $0x778] sm:$0xff]
    %v3628 = vld [vmem:[#allocation10 + $0x780] sm:$0xff]
    %v3629 = vld [vmem:[#allocation10 + $0x788] sm:$0xff]
    %v3630 = vld [vmem:[#allocation10 + $0x790] sm:$0xff]
    %v3631 = vld [vmem:[#allocation10 + $0x798] sm:$0xff]
    %v3632 = vld [vmem:[#allocation10 + $0x7a0] sm:$0xff]
    %v3633 = vld [vmem:[#allocation10 + $0x7a8] sm:$0xff]
    %v3634 = vld [vmem:[#allocation10 + $0x7b0] sm:$0xff]
    %v3635 = vld [vmem:[#allocation10 + $0x7b8] sm:$0xff]
    %v3636 = vld [vmem:[#allocation10 + $0x7c0] sm:$0xff]
    %v3637 = vld [vmem:[#allocation10 + $0x7c8] sm:$0xff]
    %v3638 = vld [vmem:[#allocation10 + $0x7d0] sm:$0xff]
    %v3639 = vld [vmem:[#allocation10 + $0x7d8] sm:$0xff]
    %v3640 = vld [vmem:[#allocation10 + $0x7e0] sm:$0xff]
    %v3641 = vld [vmem:[#allocation10 + $0x7e8] sm:$0xff]
    %v3642 = vld [vmem:[#allocation10 + $0x7f0] sm:$0xff]
    %v3643 = vld [vmem:[#allocation10 + $0x7f8] sm:$0xff]
    %v3644 = vld [vmem:[#allocation10 + $0x800] sm:$0xff]
    %v3645 = vld [vmem:[#allocation10 + $0x808] sm:$0xff]
    %v3646 = vld [vmem:[#allocation10 + $0x810] sm:$0xff]
    %v3647 = vld [vmem:[#allocation10 + $0x818] sm:$0xff]
    %v3648 = vld [vmem:[#allocation10 + $0x820] sm:$0xff]
    %v3649 = vld [vmem:[#allocation10 + $0x828] sm:$0xff]
    %v3650 = vld [vmem:[#allocation10 + $0x830] sm:$0xff]
    %v3651 = vld [vmem:[#allocation10 + $0x838] sm:$0xff]
    %v3652 = vld [vmem:[#allocation10 + $0x840] sm:$0xff]
    %v3653 = vld [vmem:[#allocation10 + $0x848] sm:$0xff]
    %v3654 = vld [vmem:[#allocation10 + $0x850] sm:$0xff]
    %v3655 = vld [vmem:[#allocation10 + $0x858] sm:$0xff]
    %v3656 = vld [vmem:[#allocation10 + $0x860] sm:$0xff]
    %v3657 = vld [vmem:[#allocation10 + $0x868] sm:$0xff]
    %v3658 = vld [vmem:[#allocation10 + $0x870] sm:$0xff]
    %v3659 = vld [vmem:[#allocation10 + $0x878] sm:$0xff]
    %v3660 = vld [vmem:[#allocation10 + $0x880] sm:$0xff]
    %v3661 = vld [vmem:[#allocation10 + $0x888] sm:$0xff]
    %v3662 = vld [vmem:[#allocation10 + $0x890] sm:$0xff]
    %v3663 = vld [vmem:[#allocation10 + $0x898] sm:$0xff]
    %v3664 = vld [vmem:[#allocation10 + $0x8a0] sm:$0xff]
    %v3665 = vld [vmem:[#allocation10 + $0x8a8] sm:$0xff]
    %v3666 = vld [vmem:[#allocation10 + $0x8b0] sm:$0xff]
    %v3667 = vld [vmem:[#allocation10 + $0x8b8] sm:$0xff]
    %v3668 = vld [vmem:[#allocation10 + $0x8c0] sm:$0xff]
    %v3669 = vld [vmem:[#allocation10 + $0x8c8] sm:$0xff]
    %v3670 = vld [vmem:[#allocation10 + $0x8d0] sm:$0xff]
    %v3671 = vld [vmem:[#allocation10 + $0x8d8] sm:$0xff]
    %v3672 = vld [vmem:[#allocation10 + $0x8e0] sm:$0xff]
    %v3673 = vld [vmem:[#allocation10 + $0x8e8] sm:$0xff]
    %v3674 = vld [vmem:[#allocation10 + $0x8f0] sm:$0xff]
    %v3675 = vld [vmem:[#allocation10 + $0x8f8] sm:$0xff]
    %v3676 = vld [vmem:[#allocation10 + $0x900] sm:$0xff]
    %v3677 = vld [vmem:[#allocation10 + $0x908] sm:$0xff]
    %v3678 = vld [vmem:[#allocation10 + $0x910] sm:$0xff]
    %v3679 = vld [vmem:[#allocation10 + $0x918] sm:$0xff]
    %v3680 = vld [vmem:[#allocation10 + $0x920] sm:$0xff]
    %v3681 = vld [vmem:[#allocation10 + $0x928] sm:$0xff]
    %v3682 = vld [vmem:[#allocation10 + $0x930] sm:$0xff]
    %v3683 = vld [vmem:[#allocation10 + $0x938] sm:$0xff]
    %v3684 = vld [vmem:[#allocation10 + $0x940] sm:$0xff]
    %v3685 = vld [vmem:[#allocation10 + $0x948] sm:$0xff]
    %v3686 = vld [vmem:[#allocation10 + $0x950] sm:$0xff]
    %v3687 = vld [vmem:[#allocation10 + $0x958] sm:$0xff]
    %v3688 = vld [vmem:[#allocation10 + $0x960] sm:$0xff]
    %v3689 = vld [vmem:[#allocation10 + $0x968] sm:$0xff]
    %v3690 = vld [vmem:[#allocation10 + $0x970] sm:$0xff]
    %v3691 = vld [vmem:[#allocation10 + $0x978] sm:$0xff]
    %v3692 = vld [vmem:[#allocation10 + $0x980] sm:$0xff]
    %v3693 = vld [vmem:[#allocation10 + $0x988] sm:$0xff]
    %v3694 = vld [vmem:[#allocation10 + $0x990] sm:$0xff]
    %v3695 = vld [vmem:[#allocation10 + $0x998] sm:$0xff]
    %v3696 = vld [vmem:[#allocation10 + $0x9a0] sm:$0xff]
    %v3697 = vld [vmem:[#allocation10 + $0x9a8] sm:$0xff]
    %v3698 = vld [vmem:[#allocation10 + $0x9b0] sm:$0xff]
    %v3699 = vld [vmem:[#allocation10 + $0x9b8] sm:$0xff]
    %v3700 = vld [vmem:[#allocation10 + $0x9c0] sm:$0xff]
    %v3701 = vld [vmem:[#allocation10 + $0x9c8] sm:$0xff]
    %v3702 = vld [vmem:[#allocation10 + $0x9d0] sm:$0xff]
    %v3703 = vld [vmem:[#allocation10 + $0x9d8] sm:$0xff]
    %v3704 = vld [vmem:[#allocation10 + $0x9e0] sm:$0xff]
    %v3705 = vld [vmem:[#allocation10 + $0x9e8] sm:$0xff]
    %v3706 = vld [vmem:[#allocation10 + $0x9f0] sm:$0xff]
    %v3707 = vld [vmem:[#allocation10 + $0x9f8] sm:$0xff]
    %v3708 = vld [vmem:[#allocation10 + $0xa00] sm:$0xff]
    %v3709 = vld [vmem:[#allocation10 + $0xa08] sm:$0xff]
    %v3710 = vld [vmem:[#allocation10 + $0xa10] sm:$0xff]
    %v3711 = vld [vmem:[#allocation10 + $0xa18] sm:$0xff]
    %v3712 = vld [vmem:[#allocation10 + $0xa20] sm:$0xff]
    %v3713 = vld [vmem:[#allocation10 + $0xa28] sm:$0xff]
    %v3714 = vld [vmem:[#allocation10 + $0xa30] sm:$0xff]
    %v3715 = vld [vmem:[#allocation10 + $0xa38] sm:$0xff]
    %v3716 = vld [vmem:[#allocation10 + $0xa40] sm:$0xff]
    %v3717 = vld [vmem:[#allocation10 + $0xa48] sm:$0xff]
    %v3718 = vld [vmem:[#allocation10 + $0xa50] sm:$0xff]
    %v3719 = vld [vmem:[#allocation10 + $0xa58] sm:$0xff]
    %v3720 = vld [vmem:[#allocation10 + $0xa60] sm:$0xff]
    %v3721 = vld [vmem:[#allocation10 + $0xa68] sm:$0xff]
    %v3722 = vld [vmem:[#allocation10 + $0xa70] sm:$0xff]
    %v3723 = vld [vmem:[#allocation10 + $0xa78] sm:$0xff]
    %v3724 = vld [vmem:[#allocation10 + $0xa80] sm:$0xff]
    %v3725 = vld [vmem:[#allocation10 + $0xa88] sm:$0xff]
    %v3726 = vld [vmem:[#allocation10 + $0xa90] sm:$0xff]
    %v3727 = vld [vmem:[#allocation10 + $0xa98] sm:$0xff]
    %v3728 = vld [vmem:[#allocation10 + $0xaa0] sm:$0xff]
    %v3729 = vld [vmem:[#allocation10 + $0xaa8] sm:$0xff]
    %v3730 = vld [vmem:[#allocation10 + $0xab0] sm:$0xff]
    %v3731 = vld [vmem:[#allocation10 + $0xab8] sm:$0xff]
    %v3732 = vld [vmem:[#allocation10 + $0xac0] sm:$0xff]
    %v3733 = vld [vmem:[#allocation10 + $0xac8] sm:$0xff]
    %v3734 = vld [vmem:[#allocation10 + $0xad0] sm:$0xff]
    %v3735 = vld [vmem:[#allocation10 + $0xad8] sm:$0xff]
    %v3736 = vld [vmem:[#allocation10 + $0xae0] sm:$0xff]
    %v3737 = vld [vmem:[#allocation10 + $0xae8] sm:$0xff]
    %v3738 = vld [vmem:[#allocation10 + $0xaf0] sm:$0xff]
    %v3739 = vld [vmem:[#allocation10 + $0xaf8] sm:$0xff]
    %v3740 = vld [vmem:[#allocation10 + $0xb00] sm:$0xff]
    %v3741 = vld [vmem:[#allocation10 + $0xb08] sm:$0xff]
    %v3742 = vld [vmem:[#allocation10 + $0xb10] sm:$0xff]
    %v3743 = vld [vmem:[#allocation10 + $0xb18] sm:$0xff]
    %v3744 = vld [vmem:[#allocation10 + $0xb20] sm:$0xff]
    %v3745 = vld [vmem:[#allocation10 + $0xb28] sm:$0xff]
    %v3746 = vld [vmem:[#allocation10 + $0xb30] sm:$0xff]
    %v3747 = vld [vmem:[#allocation10 + $0xb38] sm:$0xff]
    %v3748 = vld [vmem:[#allocation10 + $0xb40] sm:$0xff]
    %v3749 = vld [vmem:[#allocation10 + $0xb48] sm:$0xff]
    %v3750 = vld [vmem:[#allocation10 + $0xb50] sm:$0xff]
    %v3751 = vld [vmem:[#allocation10 + $0xb58] sm:$0xff]
    %v3752 = vld [vmem:[#allocation10 + $0xb60] sm:$0xff]
    %v3753 = vld [vmem:[#allocation10 + $0xb68] sm:$0xff]
    %v3754 = vld [vmem:[#allocation10 + $0xb70] sm:$0xff]
    %v3755 = vld [vmem:[#allocation10 + $0xb78] sm:$0xff]
    %v3756 = vld [vmem:[#allocation10 + $0xb80] sm:$0xff]
    %v3757 = vld [vmem:[#allocation10 + $0xb88] sm:$0xff]
    %v3758 = vld [vmem:[#allocation10 + $0xb90] sm:$0xff]
    %v3759 = vld [vmem:[#allocation10 + $0xb98] sm:$0xff]
    %v3760 = vld [vmem:[#allocation10 + $0xba0] sm:$0xff]
    %v3761 = vld [vmem:[#allocation10 + $0xba8] sm:$0xff]
    %v3762 = vld [vmem:[#allocation10 + $0xbb0] sm:$0xff]
    %v3763 = vld [vmem:[#allocation10 + $0xbb8] sm:$0xff]
    %v3764 = vld [vmem:[#allocation10 + $0xbc0] sm:$0xff]
    %v3765 = vld [vmem:[#allocation10 + $0xbc8] sm:$0xff]
    %v3766 = vld [vmem:[#allocation10 + $0xbd0] sm:$0xff]
    %v3767 = vld [vmem:[#allocation10 + $0xbd8] sm:$0xff]
    %v3768 = vld [vmem:[#allocation10 + $0xbe0] sm:$0xff]
    %v3769 = vld [vmem:[#allocation10 + $0xbe8] sm:$0xff]
    %v3770 = vld [vmem:[#allocation10 + $0xbf0] sm:$0xff]
    %v3771 = vld [vmem:[#allocation10 + $0xbf8] sm:$0xff]
    %v3772 = vld [vmem:[#allocation10 + $0xc00] sm:$0xff]
    %v3773 = vld [vmem:[#allocation10 + $0xc08] sm:$0xff]
    %v3774 = vld [vmem:[#allocation10 + $0xc10] sm:$0xff]
    %v3775 = vld [vmem:[#allocation10 + $0xc18] sm:$0xff]
    %v3776 = vld [vmem:[#allocation10 + $0xc20] sm:$0xff]
    %v3777 = vld [vmem:[#allocation10 + $0xc28] sm:$0xff]
    %v3778 = vld [vmem:[#allocation10 + $0xc30] sm:$0xff]
    %v3779 = vld [vmem:[#allocation10 + $0xc38] sm:$0xff]
    %v3780 = vld [vmem:[#allocation10 + $0xc40] sm:$0xff]
    %v3781 = vld [vmem:[#allocation10 + $0xc48] sm:$0xff]
    %v3782 = vld [vmem:[#allocation10 + $0xc50] sm:$0xff]
    %v3783 = vld [vmem:[#allocation10 + $0xc58] sm:$0xff]
    %v3784 = vld [vmem:[#allocation10 + $0xc60] sm:$0xff]
    %v3785 = vld [vmem:[#allocation10 + $0xc68] sm:$0xff]
    %v3786 = vld [vmem:[#allocation10 + $0xc70] sm:$0xff]
    %v3787 = vld [vmem:[#allocation10 + $0xc78] sm:$0xff]
    %v3788 = vld [vmem:[#allocation10 + $0xc80] sm:$0xff]
    %v3789 = vld [vmem:[#allocation10 + $0xc88] sm:$0xff]
    %v3790 = vld [vmem:[#allocation10 + $0xc90] sm:$0xff]
    %v3791 = vld [vmem:[#allocation10 + $0xc98] sm:$0xff]
    %v3792 = vld [vmem:[#allocation10 + $0xca0] sm:$0xff]
    %v3793 = vld [vmem:[#allocation10 + $0xca8] sm:$0xff]
    %v3794 = vld [vmem:[#allocation10 + $0xcb0] sm:$0xff]
    %v3795 = vld [vmem:[#allocation10 + $0xcb8] sm:$0xff]
    %v3796 = vld [vmem:[#allocation10 + $0xcc0] sm:$0xff]
    %v3797 = vld [vmem:[#allocation10 + $0xcc8] sm:$0xff]
    %v3798 = vld [vmem:[#allocation10 + $0xcd0] sm:$0xff]
    %v3799 = vld [vmem:[#allocation10 + $0xcd8] sm:$0xff]
    %v3800 = vld [vmem:[#allocation10 + $0xce0] sm:$0xff]
    %v3801 = vld [vmem:[#allocation10 + $0xce8] sm:$0xff]
    %v3802 = vld [vmem:[#allocation10 + $0xcf0] sm:$0xff]
    %v3803 = vld [vmem:[#allocation10 + $0xcf8] sm:$0xff]
    %v3804 = vld [vmem:[#allocation10 + $0xd00] sm:$0xff]
    %v3805 = vld [vmem:[#allocation10 + $0xd08] sm:$0xff]
    %v3806 = vld [vmem:[#allocation10 + $0xd10] sm:$0xff]
    %v3807 = vld [vmem:[#allocation10 + $0xd18] sm:$0xff]
    %v3808 = vld [vmem:[#allocation10 + $0xd20] sm:$0xff]
    %v3809 = vld [vmem:[#allocation10 + $0xd28] sm:$0xff]
    %v3810 = vld [vmem:[#allocation10 + $0xd30] sm:$0xff]
    %v3811 = vld [vmem:[#allocation10 + $0xd38] sm:$0xff]
    %v3812 = vld [vmem:[#allocation10 + $0xd40] sm:$0xff]
    %v3813 = vld [vmem:[#allocation10 + $0xd48] sm:$0xff]
    %v3814 = vld [vmem:[#allocation10 + $0xd50] sm:$0xff]
    %v3815 = vld [vmem:[#allocation10 + $0xd58] sm:$0xff]
    %v3816 = vld [vmem:[#allocation10 + $0xd60] sm:$0xff]
    %v3817 = vld [vmem:[#allocation10 + $0xd68] sm:$0xff]
    %v3818 = vld [vmem:[#allocation10 + $0xd70] sm:$0xff]
    %v3819 = vld [vmem:[#allocation10 + $0xd78] sm:$0xff]
    %v3820 = vld [vmem:[#allocation10 + $0xd80] sm:$0xff]
    %v3821 = vld [vmem:[#allocation10 + $0xd88] sm:$0xff]
    %v3822 = vld [vmem:[#allocation10 + $0xd90] sm:$0xff]
    %v3823 = vld [vmem:[#allocation10 + $0xd98] sm:$0xff]
    %v3824 = vld [vmem:[#allocation10 + $0xda0] sm:$0xff]
    %v3825 = vld [vmem:[#allocation10 + $0xda8] sm:$0xff]
    %v3826 = vld [vmem:[#allocation10 + $0xdb0] sm:$0xff]
    %v3827 = vld [vmem:[#allocation10 + $0xdb8] sm:$0xff]
    %v3828 = vld [vmem:[#allocation10 + $0xdc0] sm:$0xff]
    %v3829 = vld [vmem:[#allocation10 + $0xdc8] sm:$0xff]
    %v3830 = vld [vmem:[#allocation10 + $0xdd0] sm:$0xff]
    %v3831 = vld [vmem:[#allocation10 + $0xdd8] sm:$0xff]
    %v3832 = vld [vmem:[#allocation10 + $0xde0] sm:$0xff]
    %v3833 = vld [vmem:[#allocation10 + $0xde8] sm:$0xff]
    %v3834 = vld [vmem:[#allocation10 + $0xdf0] sm:$0xff]
    %v3835 = vld [vmem:[#allocation10 + $0xdf8] sm:$0xff]
    %v3836 = vld [vmem:[#allocation10 + $0xe00] sm:$0xff]
    %v3837 = vld [vmem:[#allocation10 + $0xe08] sm:$0xff]
    %v3838 = vld [vmem:[#allocation10 + $0xe10] sm:$0xff]
    %v3839 = vld [vmem:[#allocation10 + $0xe18] sm:$0xff]
    %v3840 = vld [vmem:[#allocation10 + $0xe20] sm:$0xff]
    %v3841 = vld [vmem:[#allocation10 + $0xe28] sm:$0xff]
    %v3842 = vld [vmem:[#allocation10 + $0xe30] sm:$0xff]
    %v3843 = vld [vmem:[#allocation10 + $0xe38] sm:$0xff]
    %v3844 = vld [vmem:[#allocation10 + $0xe40] sm:$0xff]
    %v3845 = vld [vmem:[#allocation10 + $0xe48] sm:$0xff]
    %v3846 = vld [vmem:[#allocation10 + $0xe50] sm:$0xff]
    %v3847 = vld [vmem:[#allocation10 + $0xe58] sm:$0xff]
    %v3848 = vld [vmem:[#allocation10 + $0xe60] sm:$0xff]
    %v3849 = vld [vmem:[#allocation10 + $0xe68] sm:$0xff]
    %v3850 = vld [vmem:[#allocation10 + $0xe70] sm:$0xff]
    %v3851 = vld [vmem:[#allocation10 + $0xe78] sm:$0xff]
    %v3852 = vld [vmem:[#allocation10 + $0xe80] sm:$0xff]
    %v3853 = vld [vmem:[#allocation10 + $0xe88] sm:$0xff]
    %v3854 = vld [vmem:[#allocation10 + $0xe90] sm:$0xff]
    %v3855 = vld [vmem:[#allocation10 + $0xe98] sm:$0xff]
    %v3856 = vld [vmem:[#allocation10 + $0xea0] sm:$0xff]
    %v3857 = vld [vmem:[#allocation10 + $0xea8] sm:$0xff]
    %v3858 = vld [vmem:[#allocation10 + $0xeb0] sm:$0xff]
    %v3859 = vld [vmem:[#allocation10 + $0xeb8] sm:$0xff]
    %v3860 = vld [vmem:[#allocation10 + $0xec0] sm:$0xff]
    %v3861 = vld [vmem:[#allocation10 + $0xec8] sm:$0xff]
    %v3862 = vld [vmem:[#allocation10 + $0xed0] sm:$0xff]
    %v3863 = vld [vmem:[#allocation10 + $0xed8] sm:$0xff]
    %v3864 = vld [vmem:[#allocation10 + $0xee0] sm:$0xff]
    %v3865 = vld [vmem:[#allocation10 + $0xee8] sm:$0xff]
    %v3866 = vld [vmem:[#allocation10 + $0xef0] sm:$0xff]
    %v3867 = vld [vmem:[#allocation10 + $0xef8] sm:$0xff]
    %v3868 = vld [vmem:[#allocation10 + $0xf00] sm:$0xff]
    %v3869 = vld [vmem:[#allocation10 + $0xf08] sm:$0xff]
    %v3870 = vld [vmem:[#allocation10 + $0xf10] sm:$0xff]
    %v3871 = vld [vmem:[#allocation10 + $0xf18] sm:$0xff]
    %v3872 = vld [vmem:[#allocation10 + $0xf20] sm:$0xff]
    %v3873 = vld [vmem:[#allocation10 + $0xf28] sm:$0xff]
    %v3874 = vld [vmem:[#allocation10 + $0xf30] sm:$0xff]
    %v3875 = vld [vmem:[#allocation10 + $0xf38] sm:$0xff]
    %v3876 = vld [vmem:[#allocation10 + $0xf40] sm:$0xff]
    %v3877 = vld [vmem:[#allocation10 + $0xf48] sm:$0xff]
    %v3878 = vld [vmem:[#allocation10 + $0xf50] sm:$0xff]
    %v3879 = vld [vmem:[#allocation10 + $0xf58] sm:$0xff]
    %v3880 = vld [vmem:[#allocation10 + $0xf60] sm:$0xff]
    %v3881 = vld [vmem:[#allocation10 + $0xf68] sm:$0xff]
    %v3882 = vld [vmem:[#allocation10 + $0xf70] sm:$0xff]
    %v3883 = vld [vmem:[#allocation10 + $0xf78] sm:$0xff]
    %v3884 = vld [vmem:[#allocation10 + $0xf80] sm:$0xff]
    %v3885 = vld [vmem:[#allocation10 + $0xf88] sm:$0xff]
    %v3886 = vld [vmem:[#allocation10 + $0xf90] sm:$0xff]
    %v3887 = vld [vmem:[#allocation10 + $0xf98] sm:$0xff]
    %v3888 = vld [vmem:[#allocation10 + $0xfa0] sm:$0xff]
    %v3889 = vld [vmem:[#allocation10 + $0xfa8] sm:$0xff]
    %v3890 = vld [vmem:[#allocation10 + $0xfb0] sm:$0xff]
    %v3891 = vld [vmem:[#allocation10 + $0xfb8] sm:$0xff]
    %v3892 = vld [vmem:[#allocation10 + $0xfc0] sm:$0xff]
    %v3893 = vld [vmem:[#allocation10 + $0xfc8] sm:$0xff]
    %v3894 = vld [vmem:[#allocation10 + $0xfd0] sm:$0xff]
    %v3895 = vld [vmem:[#allocation10 + $0xfd8] sm:$0xff]
    %v3896 = vld [vmem:[#allocation10 + $0xfe0] sm:$0xff]
    %v3897 = vld [vmem:[#allocation10 + $0xfe8] sm:$0xff]
    %v3898 = vld [vmem:[#allocation10 + $0xff0] sm:$0xff]
    %v3899 = vld [vmem:[#allocation10 + $0xff8] sm:$0xff]
    %v4412 = vunpack.c.l.b16 %v3388
    %v4413 = vunpack.c.h.b16 %v3388
    %v4414 = vunpack.c.l.b16 %v3389
    %v4415 = vunpack.c.h.b16 %v3389
    %v4416 = vunpack.c.l.b16 %v3390
    %v4417 = vunpack.c.h.b16 %v3390
    %v4418 = vunpack.c.l.b16 %v3391
    %v4419 = vunpack.c.h.b16 %v3391
    %v4420 = vunpack.c.l.b16 %v3392
    %v4421 = vunpack.c.h.b16 %v3392
    %v4422 = vunpack.c.l.b16 %v3393
    %v4423 = vunpack.c.h.b16 %v3393
    %v4424 = vunpack.c.l.b16 %v3394
    %v4425 = vunpack.c.h.b16 %v3394
    %v4426 = vunpack.c.l.b16 %v3395
    %v4427 = vunpack.c.h.b16 %v3395
    %v4428 = vunpack.c.l.b16 %v3396
    %v4429 = vunpack.c.h.b16 %v3396
    %v4430 = vunpack.c.l.b16 %v3397
    %v4431 = vunpack.c.h.b16 %v3397
    %v4432 = vunpack.c.l.b16 %v3398
    %v4433 = vunpack.c.h.b16 %v3398
    %v4434 = vunpack.c.l.b16 %v3399
    %v4435 = vunpack.c.h.b16 %v3399
    %v4436 = vunpack.c.l.b16 %v3400
    %v4437 = vunpack.c.h.b16 %v3400
    %v4438 = vunpack.c.l.b16 %v3401
    %v4439 = vunpack.c.h.b16 %v3401
    %v4440 = vunpack.c.l.b16 %v3402
    %v4441 = vunpack.c.h.b16 %v3402
    %v4442 = vunpack.c.l.b16 %v3403
    %v4443 = vunpack.c.h.b16 %v3403
    %v4444 = vunpack.c.l.b16 %v3404
    %v4445 = vunpack.c.h.b16 %v3404
    %v4446 = vunpack.c.l.b16 %v3405
    %v4447 = vunpack.c.h.b16 %v3405
    %v4448 = vunpack.c.l.b16 %v3406
    %v4449 = vunpack.c.h.b16 %v3406
    %v4450 = vunpack.c.l.b16 %v3407
    %v4451 = vunpack.c.h.b16 %v3407
    %v4452 = vunpack.c.l.b16 %v3408
    %v4453 = vunpack.c.h.b16 %v3408
    %v4454 = vunpack.c.l.b16 %v3409
    %v4455 = vunpack.c.h.b16 %v3409
    %v4456 = vunpack.c.l.b16 %v3410
    %v4457 = vunpack.c.h.b16 %v3410
    %v4458 = vunpack.c.l.b16 %v3411
    %v4459 = vunpack.c.h.b16 %v3411
    %v4460 = vunpack.c.l.b16 %v3412
    %v4461 = vunpack.c.h.b16 %v3412
    %v4462 = vunpack.c.l.b16 %v3413
    %v4463 = vunpack.c.h.b16 %v3413
    %v4464 = vunpack.c.l.b16 %v3414
    %v4465 = vunpack.c.h.b16 %v3414
    %v4466 = vunpack.c.l.b16 %v3415
    %v4467 = vunpack.c.h.b16 %v3415
    %v4468 = vunpack.c.l.b16 %v3416
    %v4469 = vunpack.c.h.b16 %v3416
    %v4470 = vunpack.c.l.b16 %v3417
    %v4471 = vunpack.c.h.b16 %v3417
    %v4472 = vunpack.c.l.b16 %v3418
    %v4473 = vunpack.c.h.b16 %v3418
    %v4474 = vunpack.c.l.b16 %v3419
    %v4475 = vunpack.c.h.b16 %v3419
    %v4476 = vunpack.c.l.b16 %v3420
    %v4477 = vunpack.c.h.b16 %v3420
    %v4478 = vunpack.c.l.b16 %v3421
    %v4479 = vunpack.c.h.b16 %v3421
    %v4480 = vunpack.c.l.b16 %v3422
    %v4481 = vunpack.c.h.b16 %v3422
    %v4482 = vunpack.c.l.b16 %v3423
    %v4483 = vunpack.c.h.b16 %v3423
    %v4484 = vunpack.c.l.b16 %v3424
    %v4485 = vunpack.c.h.b16 %v3424
    %v4486 = vunpack.c.l.b16 %v3425
    %v4487 = vunpack.c.h.b16 %v3425
    %v4488 = vunpack.c.l.b16 %v3426
    %v4489 = vunpack.c.h.b16 %v3426
    %v4490 = vunpack.c.l.b16 %v3427
    %v4491 = vunpack.c.h.b16 %v3427
    %v4492 = vunpack.c.l.b16 %v3428
    %v4493 = vunpack.c.h.b16 %v3428
    %v4494 = vunpack.c.l.b16 %v3429
    %v4495 = vunpack.c.h.b16 %v3429
    %v4496 = vunpack.c.l.b16 %v3430
    %v4497 = vunpack.c.h.b16 %v3430
    %v4498 = vunpack.c.l.b16 %v3431
    %v4499 = vunpack.c.h.b16 %v3431
    %v4500 = vunpack.c.l.b16 %v3432
    %v4501 = vunpack.c.h.b16 %v3432
    %v4502 = vunpack.c.l.b16 %v3433
    %v4503 = vunpack.c.h.b16 %v3433
    %v4504 = vunpack.c.l.b16 %v3434
    %v4505 = vunpack.c.h.b16 %v3434
    %v4506 = vunpack.c.l.b16 %v3435
    %v4507 = vunpack.c.h.b16 %v3435
    %v4508 = vunpack.c.l.b16 %v3436
    %v4509 = vunpack.c.h.b16 %v3436
    %v4510 = vunpack.c.l.b16 %v3437
    %v4511 = vunpack.c.h.b16 %v3437
    %v4512 = vunpack.c.l.b16 %v3438
    %v4513 = vunpack.c.h.b16 %v3438
    %v4514 = vunpack.c.l.b16 %v3439
    %v4515 = vunpack.c.h.b16 %v3439
    %v4516 = vunpack.c.l.b16 %v3440
    %v4517 = vunpack.c.h.b16 %v3440
    %v4518 = vunpack.c.l.b16 %v3441
    %v4519 = vunpack.c.h.b16 %v3441
    %v4520 = vunpack.c.l.b16 %v3442
    %v4521 = vunpack.c.h.b16 %v3442
    %v4522 = vunpack.c.l.b16 %v3443
    %v4523 = vunpack.c.h.b16 %v3443
    %v4524 = vunpack.c.l.b16 %v3444
    %v4525 = vunpack.c.h.b16 %v3444
    %v4526 = vunpack.c.l.b16 %v3445
    %v4527 = vunpack.c.h.b16 %v3445
    %v4528 = vunpack.c.l.b16 %v3446
    %v4529 = vunpack.c.h.b16 %v3446
    %v4530 = vunpack.c.l.b16 %v3447
    %v4531 = vunpack.c.h.b16 %v3447
    %v4532 = vunpack.c.l.b16 %v3448
    %v4533 = vunpack.c.h.b16 %v3448
    %v4534 = vunpack.c.l.b16 %v3449
    %v4535 = vunpack.c.h.b16 %v3449
    %v4536 = vunpack.c.l.b16 %v3450
    %v4537 = vunpack.c.h.b16 %v3450
    %v4538 = vunpack.c.l.b16 %v3451
    %v4539 = vunpack.c.h.b16 %v3451
    %v4540 = vunpack.c.l.b16 %v3452
    %v4541 = vunpack.c.h.b16 %v3452
    %v4542 = vunpack.c.l.b16 %v3453
    %v4543 = vunpack.c.h.b16 %v3453
    %v4544 = vunpack.c.l.b16 %v3454
    %v4545 = vunpack.c.h.b16 %v3454
    %v4546 = vunpack.c.l.b16 %v3455
    %v4547 = vunpack.c.h.b16 %v3455
    %v4548 = vunpack.c.l.b16 %v3456
    %v4549 = vunpack.c.h.b16 %v3456
    %v4550 = vunpack.c.l.b16 %v3457
    %v4551 = vunpack.c.h.b16 %v3457
    %v4552 = vunpack.c.l.b16 %v3458
    %v4553 = vunpack.c.h.b16 %v3458
    %v4554 = vunpack.c.l.b16 %v3459
    %v4555 = vunpack.c.h.b16 %v3459
    %v4556 = vunpack.c.l.b16 %v3460
    %v4557 = vunpack.c.h.b16 %v3460
    %v4558 = vunpack.c.l.b16 %v3461
    %v4559 = vunpack.c.h.b16 %v3461
    %v4560 = vunpack.c.l.b16 %v3462
    %v4561 = vunpack.c.h.b16 %v3462
    %v4562 = vunpack.c.l.b16 %v3463
    %v4563 = vunpack.c.h.b16 %v3463
    %v4564 = vunpack.c.l.b16 %v3464
    %v4565 = vunpack.c.h.b16 %v3464
    %v4566 = vunpack.c.l.b16 %v3465
    %v4567 = vunpack.c.h.b16 %v3465
    %v4568 = vunpack.c.l.b16 %v3466
    %v4569 = vunpack.c.h.b16 %v3466
    %v4570 = vunpack.c.l.b16 %v3467
    %v4571 = vunpack.c.h.b16 %v3467
    %v4572 = vunpack.c.l.b16 %v3468
    %v4573 = vunpack.c.h.b16 %v3468
    %v4574 = vunpack.c.l.b16 %v3469
    %v4575 = vunpack.c.h.b16 %v3469
    %v4576 = vunpack.c.l.b16 %v3470
    %v4577 = vunpack.c.h.b16 %v3470
    %v4578 = vunpack.c.l.b16 %v3471
    %v4579 = vunpack.c.h.b16 %v3471
    %v4580 = vunpack.c.l.b16 %v3472
    %v4581 = vunpack.c.h.b16 %v3472
    %v4582 = vunpack.c.l.b16 %v3473
    %v4583 = vunpack.c.h.b16 %v3473
    %v4584 = vunpack.c.l.b16 %v3474
    %v4585 = vunpack.c.h.b16 %v3474
    %v4586 = vunpack.c.l.b16 %v3475
    %v4587 = vunpack.c.h.b16 %v3475
    %v4588 = vunpack.c.l.b16 %v3476
    %v4589 = vunpack.c.h.b16 %v3476
    %v4590 = vunpack.c.l.b16 %v3477
    %v4591 = vunpack.c.h.b16 %v3477
    %v4592 = vunpack.c.l.b16 %v3478
    %v4593 = vunpack.c.h.b16 %v3478
    %v4594 = vunpack.c.l.b16 %v3479
    %v4595 = vunpack.c.h.b16 %v3479
    %v4596 = vunpack.c.l.b16 %v3480
    %v4597 = vunpack.c.h.b16 %v3480
    %v4598 = vunpack.c.l.b16 %v3481
    %v4599 = vunpack.c.h.b16 %v3481
    %v4600 = vunpack.c.l.b16 %v3482
    %v4601 = vunpack.c.h.b16 %v3482
    %v4602 = vunpack.c.l.b16 %v3483
    %v4603 = vunpack.c.h.b16 %v3483
    %v4604 = vunpack.c.l.b16 %v3484
    %v4605 = vunpack.c.h.b16 %v3484
    %v4606 = vunpack.c.l.b16 %v3485
    %v4607 = vunpack.c.h.b16 %v3485
    %v4608 = vunpack.c.l.b16 %v3486
    %v4609 = vunpack.c.h.b16 %v3486
    %v4610 = vunpack.c.l.b16 %v3487
    %v4611 = vunpack.c.h.b16 %v3487
    %v4612 = vunpack.c.l.b16 %v3488
    %v4613 = vunpack.c.h.b16 %v3488
    %v4614 = vunpack.c.l.b16 %v3489
    %v4615 = vunpack.c.h.b16 %v3489
    %v4616 = vunpack.c.l.b16 %v3490
    %v4617 = vunpack.c.h.b16 %v3490
    %v4618 = vunpack.c.l.b16 %v3491
    %v4619 = vunpack.c.h.b16 %v3491
    %v4620 = vunpack.c.l.b16 %v3492
    %v4621 = vunpack.c.h.b16 %v3492
    %v4622 = vunpack.c.l.b16 %v3493
    %v4623 = vunpack.c.h.b16 %v3493
    %v4624 = vunpack.c.l.b16 %v3494
    %v4625 = vunpack.c.h.b16 %v3494
    %v4626 = vunpack.c.l.b16 %v3495
    %v4627 = vunpack.c.h.b16 %v3495
    %v4628 = vunpack.c.l.b16 %v3496
    %v4629 = vunpack.c.h.b16 %v3496
    %v4630 = vunpack.c.l.b16 %v3497
    %v4631 = vunpack.c.h.b16 %v3497
    %v4632 = vunpack.c.l.b16 %v3498
    %v4633 = vunpack.c.h.b16 %v3498
    %v4634 = vunpack.c.l.b16 %v3499
    %v4635 = vunpack.c.h.b16 %v3499
    %v4636 = vunpack.c.l.b16 %v3500
    %v4637 = vunpack.c.h.b16 %v3500
    %v4638 = vunpack.c.l.b16 %v3501
    %v4639 = vunpack.c.h.b16 %v3501
    %v4640 = vunpack.c.l.b16 %v3502
    %v4641 = vunpack.c.h.b16 %v3502
    %v4642 = vunpack.c.l.b16 %v3503
    %v4643 = vunpack.c.h.b16 %v3503
    %v4644 = vunpack.c.l.b16 %v3504
    %v4645 = vunpack.c.h.b16 %v3504
    %v4646 = vunpack.c.l.b16 %v3505
    %v4647 = vunpack.c.h.b16 %v3505
    %v4648 = vunpack.c.l.b16 %v3506
    %v4649 = vunpack.c.h.b16 %v3506
    %v4650 = vunpack.c.l.b16 %v3507
    %v4651 = vunpack.c.h.b16 %v3507
    %v4652 = vunpack.c.l.b16 %v3508
    %v4653 = vunpack.c.h.b16 %v3508
    %v4654 = vunpack.c.l.b16 %v3509
    %v4655 = vunpack.c.h.b16 %v3509
    %v4656 = vunpack.c.l.b16 %v3510
    %v4657 = vunpack.c.h.b16 %v3510
    %v4658 = vunpack.c.l.b16 %v3511
    %v4659 = vunpack.c.h.b16 %v3511
    %v4660 = vunpack.c.l.b16 %v3512
    %v4661 = vunpack.c.h.b16 %v3512
    %v4662 = vunpack.c.l.b16 %v3513
    %v4663 = vunpack.c.h.b16 %v3513
    %v4664 = vunpack.c.l.b16 %v3514
    %v4665 = vunpack.c.h.b16 %v3514
    %v4666 = vunpack.c.l.b16 %v3515
    %v4667 = vunpack.c.h.b16 %v3515
    %v4668 = vunpack.c.l.b16 %v3516
    %v4669 = vunpack.c.h.b16 %v3516
    %v4670 = vunpack.c.l.b16 %v3517
    %v4671 = vunpack.c.h.b16 %v3517
    %v4672 = vunpack.c.l.b16 %v3518
    %v4673 = vunpack.c.h.b16 %v3518
    %v4674 = vunpack.c.l.b16 %v3519
    %v4675 = vunpack.c.h.b16 %v3519
    %v4676 = vunpack.c.l.b16 %v3520
    %v4677 = vunpack.c.h.b16 %v3520
    %v4678 = vunpack.c.l.b16 %v3521
    %v4679 = vunpack.c.h.b16 %v3521
    %v4680 = vunpack.c.l.b16 %v3522
    %v4681 = vunpack.c.h.b16 %v3522
    %v4682 = vunpack.c.l.b16 %v3523
    %v4683 = vunpack.c.h.b16 %v3523
    %v4684 = vunpack.c.l.b16 %v3524
    %v4685 = vunpack.c.h.b16 %v3524
    %v4686 = vunpack.c.l.b16 %v3525
    %v4687 = vunpack.c.h.b16 %v3525
    %v4688 = vunpack.c.l.b16 %v3526
    %v4689 = vunpack.c.h.b16 %v3526
    %v4690 = vunpack.c.l.b16 %v3527
    %v4691 = vunpack.c.h.b16 %v3527
    %v4692 = vunpack.c.l.b16 %v3528
    %v4693 = vunpack.c.h.b16 %v3528
    %v4694 = vunpack.c.l.b16 %v3529
    %v4695 = vunpack.c.h.b16 %v3529
    %v4696 = vunpack.c.l.b16 %v3530
    %v4697 = vunpack.c.h.b16 %v3530
    %v4698 = vunpack.c.l.b16 %v3531
    %v4699 = vunpack.c.h.b16 %v3531
    %v4700 = vunpack.c.l.b16 %v3532
    %v4701 = vunpack.c.h.b16 %v3532
    %v4702 = vunpack.c.l.b16 %v3533
    %v4703 = vunpack.c.h.b16 %v3533
    %v4704 = vunpack.c.l.b16 %v3534
    %v4705 = vunpack.c.h.b16 %v3534
    %v4706 = vunpack.c.l.b16 %v3535
    %v4707 = vunpack.c.h.b16 %v3535
    %v4708 = vunpack.c.l.b16 %v3536
    %v4709 = vunpack.c.h.b16 %v3536
    %v4710 = vunpack.c.l.b16 %v3537
    %v4711 = vunpack.c.h.b16 %v3537
    %v4712 = vunpack.c.l.b16 %v3538
    %v4713 = vunpack.c.h.b16 %v3538
    %v4714 = vunpack.c.l.b16 %v3539
    %v4715 = vunpack.c.h.b16 %v3539
    %v4716 = vunpack.c.l.b16 %v3540
    %v4717 = vunpack.c.h.b16 %v3540
    %v4718 = vunpack.c.l.b16 %v3541
    %v4719 = vunpack.c.h.b16 %v3541
    %v4720 = vunpack.c.l.b16 %v3542
    %v4721 = vunpack.c.h.b16 %v3542
    %v4722 = vunpack.c.l.b16 %v3543
    %v4723 = vunpack.c.h.b16 %v3543
    %v4724 = vunpack.c.l.b16 %v3544
    %v4725 = vunpack.c.h.b16 %v3544
    %v4726 = vunpack.c.l.b16 %v3545
    %v4727 = vunpack.c.h.b16 %v3545
    %v4728 = vunpack.c.l.b16 %v3546
    %v4729 = vunpack.c.h.b16 %v3546
    %v4730 = vunpack.c.l.b16 %v3547
    %v4731 = vunpack.c.h.b16 %v3547
    %v4732 = vunpack.c.l.b16 %v3548
    %v4733 = vunpack.c.h.b16 %v3548
    %v4734 = vunpack.c.l.b16 %v3549
    %v4735 = vunpack.c.h.b16 %v3549
    %v4736 = vunpack.c.l.b16 %v3550
    %v4737 = vunpack.c.h.b16 %v3550
    %v4738 = vunpack.c.l.b16 %v3551
    %v4739 = vunpack.c.h.b16 %v3551
    %v4740 = vunpack.c.l.b16 %v3552
    %v4741 = vunpack.c.h.b16 %v3552
    %v4742 = vunpack.c.l.b16 %v3553
    %v4743 = vunpack.c.h.b16 %v3553
    %v4744 = vunpack.c.l.b16 %v3554
    %v4745 = vunpack.c.h.b16 %v3554
    %v4746 = vunpack.c.l.b16 %v3555
    %v4747 = vunpack.c.h.b16 %v3555
    %v4748 = vunpack.c.l.b16 %v3556
    %v4749 = vunpack.c.h.b16 %v3556
    %v4750 = vunpack.c.l.b16 %v3557
    %v4751 = vunpack.c.h.b16 %v3557
    %v4752 = vunpack.c.l.b16 %v3558
    %v4753 = vunpack.c.h.b16 %v3558
    %v4754 = vunpack.c.l.b16 %v3559
    %v4755 = vunpack.c.h.b16 %v3559
    %v4756 = vunpack.c.l.b16 %v3560
    %v4757 = vunpack.c.h.b16 %v3560
    %v4758 = vunpack.c.l.b16 %v3561
    %v4759 = vunpack.c.h.b16 %v3561
    %v4760 = vunpack.c.l.b16 %v3562
    %v4761 = vunpack.c.h.b16 %v3562
    %v4762 = vunpack.c.l.b16 %v3563
    %v4763 = vunpack.c.h.b16 %v3563
    %v4764 = vunpack.c.l.b16 %v3564
    %v4765 = vunpack.c.h.b16 %v3564
    %v4766 = vunpack.c.l.b16 %v3565
    %v4767 = vunpack.c.h.b16 %v3565
    %v4768 = vunpack.c.l.b16 %v3566
    %v4769 = vunpack.c.h.b16 %v3566
    %v4770 = vunpack.c.l.b16 %v3567
    %v4771 = vunpack.c.h.b16 %v3567
    %v4772 = vunpack.c.l.b16 %v3568
    %v4773 = vunpack.c.h.b16 %v3568
    %v4774 = vunpack.c.l.b16 %v3569
    %v4775 = vunpack.c.h.b16 %v3569
    %v4776 = vunpack.c.l.b16 %v3570
    %v4777 = vunpack.c.h.b16 %v3570
    %v4778 = vunpack.c.l.b16 %v3571
    %v4779 = vunpack.c.h.b16 %v3571
    %v4780 = vunpack.c.l.b16 %v3572
    %v4781 = vunpack.c.h.b16 %v3572
    %v4782 = vunpack.c.l.b16 %v3573
    %v4783 = vunpack.c.h.b16 %v3573
    %v4784 = vunpack.c.l.b16 %v3574
    %v4785 = vunpack.c.h.b16 %v3574
    %v4786 = vunpack.c.l.b16 %v3575
    %v4787 = vunpack.c.h.b16 %v3575
    %v4788 = vunpack.c.l.b16 %v3576
    %v4789 = vunpack.c.h.b16 %v3576
    %v4790 = vunpack.c.l.b16 %v3577
    %v4791 = vunpack.c.h.b16 %v3577
    %v4792 = vunpack.c.l.b16 %v3578
    %v4793 = vunpack.c.h.b16 %v3578
    %v4794 = vunpack.c.l.b16 %v3579
    %v4795 = vunpack.c.h.b16 %v3579
    %v4796 = vunpack.c.l.b16 %v3580
    %v4797 = vunpack.c.h.b16 %v3580
    %v4798 = vunpack.c.l.b16 %v3581
    %v4799 = vunpack.c.h.b16 %v3581
    %v4800 = vunpack.c.l.b16 %v3582
    %v4801 = vunpack.c.h.b16 %v3582
    %v4802 = vunpack.c.l.b16 %v3583
    %v4803 = vunpack.c.h.b16 %v3583
    %v4804 = vunpack.c.l.b16 %v3584
    %v4805 = vunpack.c.h.b16 %v3584
    %v4806 = vunpack.c.l.b16 %v3585
    %v4807 = vunpack.c.h.b16 %v3585
    %v4808 = vunpack.c.l.b16 %v3586
    %v4809 = vunpack.c.h.b16 %v3586
    %v4810 = vunpack.c.l.b16 %v3587
    %v4811 = vunpack.c.h.b16 %v3587
    %v4812 = vunpack.c.l.b16 %v3588
    %v4813 = vunpack.c.h.b16 %v3588
    %v4814 = vunpack.c.l.b16 %v3589
    %v4815 = vunpack.c.h.b16 %v3589
    %v4816 = vunpack.c.l.b16 %v3590
    %v4817 = vunpack.c.h.b16 %v3590
    %v4818 = vunpack.c.l.b16 %v3591
    %v4819 = vunpack.c.h.b16 %v3591
    %v4820 = vunpack.c.l.b16 %v3592
    %v4821 = vunpack.c.h.b16 %v3592
    %v4822 = vunpack.c.l.b16 %v3593
    %v4823 = vunpack.c.h.b16 %v3593
    %v4824 = vunpack.c.l.b16 %v3594
    %v4825 = vunpack.c.h.b16 %v3594
    %v4826 = vunpack.c.l.b16 %v3595
    %v4827 = vunpack.c.h.b16 %v3595
    %v4828 = vunpack.c.l.b16 %v3596
    %v4829 = vunpack.c.h.b16 %v3596
    %v4830 = vunpack.c.l.b16 %v3597
    %v4831 = vunpack.c.h.b16 %v3597
    %v4832 = vunpack.c.l.b16 %v3598
    %v4833 = vunpack.c.h.b16 %v3598
    %v4834 = vunpack.c.l.b16 %v3599
    %v4835 = vunpack.c.h.b16 %v3599
    %v4836 = vunpack.c.l.b16 %v3600
    %v4837 = vunpack.c.h.b16 %v3600
    %v4838 = vunpack.c.l.b16 %v3601
    %v4839 = vunpack.c.h.b16 %v3601
    %v4840 = vunpack.c.l.b16 %v3602
    %v4841 = vunpack.c.h.b16 %v3602
    %v4842 = vunpack.c.l.b16 %v3603
    %v4843 = vunpack.c.h.b16 %v3603
    %v4844 = vunpack.c.l.b16 %v3604
    %v4845 = vunpack.c.h.b16 %v3604
    %v4846 = vunpack.c.l.b16 %v3605
    %v4847 = vunpack.c.h.b16 %v3605
    %v4848 = vunpack.c.l.b16 %v3606
    %v4849 = vunpack.c.h.b16 %v3606
    %v4850 = vunpack.c.l.b16 %v3607
    %v4851 = vunpack.c.h.b16 %v3607
    %v4852 = vunpack.c.l.b16 %v3608
    %v4853 = vunpack.c.h.b16 %v3608
    %v4854 = vunpack.c.l.b16 %v3609
    %v4855 = vunpack.c.h.b16 %v3609
    %v4856 = vunpack.c.l.b16 %v3610
    %v4857 = vunpack.c.h.b16 %v3610
    %v4858 = vunpack.c.l.b16 %v3611
    %v4859 = vunpack.c.h.b16 %v3611
    %v4860 = vunpack.c.l.b16 %v3612
    %v4861 = vunpack.c.h.b16 %v3612
    %v4862 = vunpack.c.l.b16 %v3613
    %v4863 = vunpack.c.h.b16 %v3613
    %v4864 = vunpack.c.l.b16 %v3614
    %v4865 = vunpack.c.h.b16 %v3614
    %v4866 = vunpack.c.l.b16 %v3615
    %v4867 = vunpack.c.h.b16 %v3615
    %v4868 = vunpack.c.l.b16 %v3616
    %v4869 = vunpack.c.h.b16 %v3616
    %v4870 = vunpack.c.l.b16 %v3617
    %v4871 = vunpack.c.h.b16 %v3617
    %v4872 = vunpack.c.l.b16 %v3618
    %v4873 = vunpack.c.h.b16 %v3618
    %v4874 = vunpack.c.l.b16 %v3619
    %v4875 = vunpack.c.h.b16 %v3619
    %v4876 = vunpack.c.l.b16 %v3620
    %v4877 = vunpack.c.h.b16 %v3620
    %v4878 = vunpack.c.l.b16 %v3621
    %v4879 = vunpack.c.h.b16 %v3621
    %v4880 = vunpack.c.l.b16 %v3622
    %v4881 = vunpack.c.h.b16 %v3622
    %v4882 = vunpack.c.l.b16 %v3623
    %v4883 = vunpack.c.h.b16 %v3623
    %v4884 = vunpack.c.l.b16 %v3624
    %v4885 = vunpack.c.h.b16 %v3624
    %v4886 = vunpack.c.l.b16 %v3625
    %v4887 = vunpack.c.h.b16 %v3625
    %v4888 = vunpack.c.l.b16 %v3626
    %v4889 = vunpack.c.h.b16 %v3626
    %v4890 = vunpack.c.l.b16 %v3627
    %v4891 = vunpack.c.h.b16 %v3627
    %v4892 = vunpack.c.l.b16 %v3628
    %v4893 = vunpack.c.h.b16 %v3628
    %v4894 = vunpack.c.l.b16 %v3629
    %v4895 = vunpack.c.h.b16 %v3629
    %v4896 = vunpack.c.l.b16 %v3630
    %v4897 = vunpack.c.h.b16 %v3630
    %v4898 = vunpack.c.l.b16 %v3631
    %v4899 = vunpack.c.h.b16 %v3631
    %v4900 = vunpack.c.l.b16 %v3632
    %v4901 = vunpack.c.h.b16 %v3632
    %v4902 = vunpack.c.l.b16 %v3633
    %v4903 = vunpack.c.h.b16 %v3633
    %v4904 = vunpack.c.l.b16 %v3634
    %v4905 = vunpack.c.h.b16 %v3634
    %v4906 = vunpack.c.l.b16 %v3635
    %v4907 = vunpack.c.h.b16 %v3635
    %v4908 = vunpack.c.l.b16 %v3636
    %v4909 = vunpack.c.h.b16 %v3636
    %v4910 = vunpack.c.l.b16 %v3637
    %v4911 = vunpack.c.h.b16 %v3637
    %v4912 = vunpack.c.l.b16 %v3638
    %v4913 = vunpack.c.h.b16 %v3638
    %v4914 = vunpack.c.l.b16 %v3639
    %v4915 = vunpack.c.h.b16 %v3639
    %v4916 = vunpack.c.l.b16 %v3640
    %v4917 = vunpack.c.h.b16 %v3640
    %v4918 = vunpack.c.l.b16 %v3641
    %v4919 = vunpack.c.h.b16 %v3641
    %v4920 = vunpack.c.l.b16 %v3642
    %v4921 = vunpack.c.h.b16 %v3642
    %v4922 = vunpack.c.l.b16 %v3643
    %v4923 = vunpack.c.h.b16 %v3643
    %v4924 = vunpack.c.l.b16 %v3644
    %v4925 = vunpack.c.h.b16 %v3644
    %v4926 = vunpack.c.l.b16 %v3645
    %v4927 = vunpack.c.h.b16 %v3645
    %v4928 = vunpack.c.l.b16 %v3646
    %v4929 = vunpack.c.h.b16 %v3646
    %v4930 = vunpack.c.l.b16 %v3647
    %v4931 = vunpack.c.h.b16 %v3647
    %v4932 = vunpack.c.l.b16 %v3648
    %v4933 = vunpack.c.h.b16 %v3648
    %v4934 = vunpack.c.l.b16 %v3649
    %v4935 = vunpack.c.h.b16 %v3649
    %v4936 = vunpack.c.l.b16 %v3650
    %v4937 = vunpack.c.h.b16 %v3650
    %v4938 = vunpack.c.l.b16 %v3651
    %v4939 = vunpack.c.h.b16 %v3651
    %v4940 = vunpack.c.l.b16 %v3652
    %v4941 = vunpack.c.h.b16 %v3652
    %v4942 = vunpack.c.l.b16 %v3653
    %v4943 = vunpack.c.h.b16 %v3653
    %v4944 = vunpack.c.l.b16 %v3654
    %v4945 = vunpack.c.h.b16 %v3654
    %v4946 = vunpack.c.l.b16 %v3655
    %v4947 = vunpack.c.h.b16 %v3655
    %v4948 = vunpack.c.l.b16 %v3656
    %v4949 = vunpack.c.h.b16 %v3656
    %v4950 = vunpack.c.l.b16 %v3657
    %v4951 = vunpack.c.h.b16 %v3657
    %v4952 = vunpack.c.l.b16 %v3658
    %v4953 = vunpack.c.h.b16 %v3658
    %v4954 = vunpack.c.l.b16 %v3659
    %v4955 = vunpack.c.h.b16 %v3659
    %v4956 = vunpack.c.l.b16 %v3660
    %v4957 = vunpack.c.h.b16 %v3660
    %v4958 = vunpack.c.l.b16 %v3661
    %v4959 = vunpack.c.h.b16 %v3661
    %v4960 = vunpack.c.l.b16 %v3662
    %v4961 = vunpack.c.h.b16 %v3662
    %v4962 = vunpack.c.l.b16 %v3663
    %v4963 = vunpack.c.h.b16 %v3663
    %v4964 = vunpack.c.l.b16 %v3664
    %v4965 = vunpack.c.h.b16 %v3664
    %v4966 = vunpack.c.l.b16 %v3665
    %v4967 = vunpack.c.h.b16 %v3665
    %v4968 = vunpack.c.l.b16 %v3666
    %v4969 = vunpack.c.h.b16 %v3666
    %v4970 = vunpack.c.l.b16 %v3667
    %v4971 = vunpack.c.h.b16 %v3667
    %v4972 = vunpack.c.l.b16 %v3668
    %v4973 = vunpack.c.h.b16 %v3668
    %v4974 = vunpack.c.l.b16 %v3669
    %v4975 = vunpack.c.h.b16 %v3669
    %v4976 = vunpack.c.l.b16 %v3670
    %v4977 = vunpack.c.h.b16 %v3670
    %v4978 = vunpack.c.l.b16 %v3671
    %v4979 = vunpack.c.h.b16 %v3671
    %v4980 = vunpack.c.l.b16 %v3672
    %v4981 = vunpack.c.h.b16 %v3672
    %v4982 = vunpack.c.l.b16 %v3673
    %v4983 = vunpack.c.h.b16 %v3673
    %v4984 = vunpack.c.l.b16 %v3674
    %v4985 = vunpack.c.h.b16 %v3674
    %v4986 = vunpack.c.l.b16 %v3675
    %v4987 = vunpack.c.h.b16 %v3675
    %v4988 = vunpack.c.l.b16 %v3676
    %v4989 = vunpack.c.h.b16 %v3676
    %v4990 = vunpack.c.l.b16 %v3677
    %v4991 = vunpack.c.h.b16 %v3677
    %v4992 = vunpack.c.l.b16 %v3678
    %v4993 = vunpack.c.h.b16 %v3678
    %v4994 = vunpack.c.l.b16 %v3679
    %v4995 = vunpack.c.h.b16 %v3679
    %v4996 = vunpack.c.l.b16 %v3680
    %v4997 = vunpack.c.h.b16 %v3680
    %v4998 = vunpack.c.l.b16 %v3681
    %v4999 = vunpack.c.h.b16 %v3681
    %v5000 = vunpack.c.l.b16 %v3682
    %v5001 = vunpack.c.h.b16 %v3682
    %v5002 = vunpack.c.l.b16 %v3683
    %v5003 = vunpack.c.h.b16 %v3683
    %v5004 = vunpack.c.l.b16 %v3684
    %v5005 = vunpack.c.h.b16 %v3684
    %v5006 = vunpack.c.l.b16 %v3685
    %v5007 = vunpack.c.h.b16 %v3685
    %v5008 = vunpack.c.l.b16 %v3686
    %v5009 = vunpack.c.h.b16 %v3686
    %v5010 = vunpack.c.l.b16 %v3687
    %v5011 = vunpack.c.h.b16 %v3687
    %v5012 = vunpack.c.l.b16 %v3688
    %v5013 = vunpack.c.h.b16 %v3688
    %v5014 = vunpack.c.l.b16 %v3689
    %v5015 = vunpack.c.h.b16 %v3689
    %v5016 = vunpack.c.l.b16 %v3690
    %v5017 = vunpack.c.h.b16 %v3690
    %v5018 = vunpack.c.l.b16 %v3691
    %v5019 = vunpack.c.h.b16 %v3691
    %v5020 = vunpack.c.l.b16 %v3692
    %v5021 = vunpack.c.h.b16 %v3692
    %v5022 = vunpack.c.l.b16 %v3693
    %v5023 = vunpack.c.h.b16 %v3693
    %v5024 = vunpack.c.l.b16 %v3694
    %v5025 = vunpack.c.h.b16 %v3694
    %v5026 = vunpack.c.l.b16 %v3695
    %v5027 = vunpack.c.h.b16 %v3695
    %v5028 = vunpack.c.l.b16 %v3696
    %v5029 = vunpack.c.h.b16 %v3696
    %v5030 = vunpack.c.l.b16 %v3697
    %v5031 = vunpack.c.h.b16 %v3697
    %v5032 = vunpack.c.l.b16 %v3698
    %v5033 = vunpack.c.h.b16 %v3698
    %v5034 = vunpack.c.l.b16 %v3699
    %v5035 = vunpack.c.h.b16 %v3699
    %v5036 = vunpack.c.l.b16 %v3700
    %v5037 = vunpack.c.h.b16 %v3700
    %v5038 = vunpack.c.l.b16 %v3701
    %v5039 = vunpack.c.h.b16 %v3701
    %v5040 = vunpack.c.l.b16 %v3702
    %v5041 = vunpack.c.h.b16 %v3702
    %v5042 = vunpack.c.l.b16 %v3703
    %v5043 = vunpack.c.h.b16 %v3703
    %v5044 = vunpack.c.l.b16 %v3704
    %v5045 = vunpack.c.h.b16 %v3704
    %v5046 = vunpack.c.l.b16 %v3705
    %v5047 = vunpack.c.h.b16 %v3705
    %v5048 = vunpack.c.l.b16 %v3706
    %v5049 = vunpack.c.h.b16 %v3706
    %v5050 = vunpack.c.l.b16 %v3707
    %v5051 = vunpack.c.h.b16 %v3707
    %v5052 = vunpack.c.l.b16 %v3708
    %v5053 = vunpack.c.h.b16 %v3708
    %v5054 = vunpack.c.l.b16 %v3709
    %v5055 = vunpack.c.h.b16 %v3709
    %v5056 = vunpack.c.l.b16 %v3710
    %v5057 = vunpack.c.h.b16 %v3710
    %v5058 = vunpack.c.l.b16 %v3711
    %v5059 = vunpack.c.h.b16 %v3711
    %v5060 = vunpack.c.l.b16 %v3712
    %v5061 = vunpack.c.h.b16 %v3712
    %v5062 = vunpack.c.l.b16 %v3713
    %v5063 = vunpack.c.h.b16 %v3713
    %v5064 = vunpack.c.l.b16 %v3714
    %v5065 = vunpack.c.h.b16 %v3714
    %v5066 = vunpack.c.l.b16 %v3715
    %v5067 = vunpack.c.h.b16 %v3715
    %v5068 = vunpack.c.l.b16 %v3716
    %v5069 = vunpack.c.h.b16 %v3716
    %v5070 = vunpack.c.l.b16 %v3717
    %v5071 = vunpack.c.h.b16 %v3717
    %v5072 = vunpack.c.l.b16 %v3718
    %v5073 = vunpack.c.h.b16 %v3718
    %v5074 = vunpack.c.l.b16 %v3719
    %v5075 = vunpack.c.h.b16 %v3719
    %v5076 = vunpack.c.l.b16 %v3720
    %v5077 = vunpack.c.h.b16 %v3720
    %v5078 = vunpack.c.l.b16 %v3721
    %v5079 = vunpack.c.h.b16 %v3721
    %v5080 = vunpack.c.l.b16 %v3722
    %v5081 = vunpack.c.h.b16 %v3722
    %v5082 = vunpack.c.l.b16 %v3723
    %v5083 = vunpack.c.h.b16 %v3723
    %v5084 = vunpack.c.l.b16 %v3724
    %v5085 = vunpack.c.h.b16 %v3724
    %v5086 = vunpack.c.l.b16 %v3725
    %v5087 = vunpack.c.h.b16 %v3725
    %v5088 = vunpack.c.l.b16 %v3726
    %v5089 = vunpack.c.h.b16 %v3726
    %v5090 = vunpack.c.l.b16 %v3727
    %v5091 = vunpack.c.h.b16 %v3727
    %v5092 = vunpack.c.l.b16 %v3728
    %v5093 = vunpack.c.h.b16 %v3728
    %v5094 = vunpack.c.l.b16 %v3729
    %v5095 = vunpack.c.h.b16 %v3729
    %v5096 = vunpack.c.l.b16 %v3730
    %v5097 = vunpack.c.h.b16 %v3730
    %v5098 = vunpack.c.l.b16 %v3731
    %v5099 = vunpack.c.h.b16 %v3731
    %v5100 = vunpack.c.l.b16 %v3732
    %v5101 = vunpack.c.h.b16 %v3732
    %v5102 = vunpack.c.l.b16 %v3733
    %v5103 = vunpack.c.h.b16 %v3733
    %v5104 = vunpack.c.l.b16 %v3734
    %v5105 = vunpack.c.h.b16 %v3734
    %v5106 = vunpack.c.l.b16 %v3735
    %v5107 = vunpack.c.h.b16 %v3735
    %v5108 = vunpack.c.l.b16 %v3736
    %v5109 = vunpack.c.h.b16 %v3736
    %v5110 = vunpack.c.l.b16 %v3737
    %v5111 = vunpack.c.h.b16 %v3737
    %v5112 = vunpack.c.l.b16 %v3738
    %v5113 = vunpack.c.h.b16 %v3738
    %v5114 = vunpack.c.l.b16 %v3739
    %v5115 = vunpack.c.h.b16 %v3739
    %v5116 = vunpack.c.l.b16 %v3740
    %v5117 = vunpack.c.h.b16 %v3740
    %v5118 = vunpack.c.l.b16 %v3741
    %v5119 = vunpack.c.h.b16 %v3741
    %v5120 = vunpack.c.l.b16 %v3742
    %v5121 = vunpack.c.h.b16 %v3742
    %v5122 = vunpack.c.l.b16 %v3743
    %v5123 = vunpack.c.h.b16 %v3743
    %v5124 = vunpack.c.l.b16 %v3744
    %v5125 = vunpack.c.h.b16 %v3744
    %v5126 = vunpack.c.l.b16 %v3745
    %v5127 = vunpack.c.h.b16 %v3745
    %v5128 = vunpack.c.l.b16 %v3746
    %v5129 = vunpack.c.h.b16 %v3746
    %v5130 = vunpack.c.l.b16 %v3747
    %v5131 = vunpack.c.h.b16 %v3747
    %v5132 = vunpack.c.l.b16 %v3748
    %v5133 = vunpack.c.h.b16 %v3748
    %v5134 = vunpack.c.l.b16 %v3749
    %v5135 = vunpack.c.h.b16 %v3749
    %v5136 = vunpack.c.l.b16 %v3750
    %v5137 = vunpack.c.h.b16 %v3750
    %v5138 = vunpack.c.l.b16 %v3751
    %v5139 = vunpack.c.h.b16 %v3751
    %v5140 = vunpack.c.l.b16 %v3752
    %v5141 = vunpack.c.h.b16 %v3752
    %v5142 = vunpack.c.l.b16 %v3753
    %v5143 = vunpack.c.h.b16 %v3753
    %v5144 = vunpack.c.l.b16 %v3754
    %v5145 = vunpack.c.h.b16 %v3754
    %v5146 = vunpack.c.l.b16 %v3755
    %v5147 = vunpack.c.h.b16 %v3755
    %v5148 = vunpack.c.l.b16 %v3756
    %v5149 = vunpack.c.h.b16 %v3756
    %v5150 = vunpack.c.l.b16 %v3757
    %v5151 = vunpack.c.h.b16 %v3757
    %v5152 = vunpack.c.l.b16 %v3758
    %v5153 = vunpack.c.h.b16 %v3758
    %v5154 = vunpack.c.l.b16 %v3759
    %v5155 = vunpack.c.h.b16 %v3759
    %v5156 = vunpack.c.l.b16 %v3760
    %v5157 = vunpack.c.h.b16 %v3760
    %v5158 = vunpack.c.l.b16 %v3761
    %v5159 = vunpack.c.h.b16 %v3761
    %v5160 = vunpack.c.l.b16 %v3762
    %v5161 = vunpack.c.h.b16 %v3762
    %v5162 = vunpack.c.l.b16 %v3763
    %v5163 = vunpack.c.h.b16 %v3763
    %v5164 = vunpack.c.l.b16 %v3764
    %v5165 = vunpack.c.h.b16 %v3764
    %v5166 = vunpack.c.l.b16 %v3765
    %v5167 = vunpack.c.h.b16 %v3765
    %v5168 = vunpack.c.l.b16 %v3766
    %v5169 = vunpack.c.h.b16 %v3766
    %v5170 = vunpack.c.l.b16 %v3767
    %v5171 = vunpack.c.h.b16 %v3767
    %v5172 = vunpack.c.l.b16 %v3768
    %v5173 = vunpack.c.h.b16 %v3768
    %v5174 = vunpack.c.l.b16 %v3769
    %v5175 = vunpack.c.h.b16 %v3769
    %v5176 = vunpack.c.l.b16 %v3770
    %v5177 = vunpack.c.h.b16 %v3770
    %v5178 = vunpack.c.l.b16 %v3771
    %v5179 = vunpack.c.h.b16 %v3771
    %v5180 = vunpack.c.l.b16 %v3772
    %v5181 = vunpack.c.h.b16 %v3772
    %v5182 = vunpack.c.l.b16 %v3773
    %v5183 = vunpack.c.h.b16 %v3773
    %v5184 = vunpack.c.l.b16 %v3774
    %v5185 = vunpack.c.h.b16 %v3774
    %v5186 = vunpack.c.l.b16 %v3775
    %v5187 = vunpack.c.h.b16 %v3775
    %v5188 = vunpack.c.l.b16 %v3776
    %v5189 = vunpack.c.h.b16 %v3776
    %v5190 = vunpack.c.l.b16 %v3777
    %v5191 = vunpack.c.h.b16 %v3777
    %v5192 = vunpack.c.l.b16 %v3778
    %v5193 = vunpack.c.h.b16 %v3778
    %v5194 = vunpack.c.l.b16 %v3779
    %v5195 = vunpack.c.h.b16 %v3779
    %v5196 = vunpack.c.l.b16 %v3780
    %v5197 = vunpack.c.h.b16 %v3780
    %v5198 = vunpack.c.l.b16 %v3781
    %v5199 = vunpack.c.h.b16 %v3781
    %v5200 = vunpack.c.l.b16 %v3782
    %v5201 = vunpack.c.h.b16 %v3782
    %v5202 = vunpack.c.l.b16 %v3783
    %v5203 = vunpack.c.h.b16 %v3783
    %v5204 = vunpack.c.l.b16 %v3784
    %v5205 = vunpack.c.h.b16 %v3784
    %v5206 = vunpack.c.l.b16 %v3785
    %v5207 = vunpack.c.h.b16 %v3785
    %v5208 = vunpack.c.l.b16 %v3786
    %v5209 = vunpack.c.h.b16 %v3786
    %v5210 = vunpack.c.l.b16 %v3787
    %v5211 = vunpack.c.h.b16 %v3787
    %v5212 = vunpack.c.l.b16 %v3788
    %v5213 = vunpack.c.h.b16 %v3788
    %v5214 = vunpack.c.l.b16 %v3789
    %v5215 = vunpack.c.h.b16 %v3789
    %v5216 = vunpack.c.l.b16 %v3790
    %v5217 = vunpack.c.h.b16 %v3790
    %v5218 = vunpack.c.l.b16 %v3791
    %v5219 = vunpack.c.h.b16 %v3791
    %v5220 = vunpack.c.l.b16 %v3792
    %v5221 = vunpack.c.h.b16 %v3792
    %v5222 = vunpack.c.l.b16 %v3793
    %v5223 = vunpack.c.h.b16 %v3793
    %v5224 = vunpack.c.l.b16 %v3794
    %v5225 = vunpack.c.h.b16 %v3794
    %v5226 = vunpack.c.l.b16 %v3795
    %v5227 = vunpack.c.h.b16 %v3795
    %v5228 = vunpack.c.l.b16 %v3796
    %v5229 = vunpack.c.h.b16 %v3796
    %v5230 = vunpack.c.l.b16 %v3797
    %v5231 = vunpack.c.h.b16 %v3797
    %v5232 = vunpack.c.l.b16 %v3798
    %v5233 = vunpack.c.h.b16 %v3798
    %v5234 = vunpack.c.l.b16 %v3799
    %v5235 = vunpack.c.h.b16 %v3799
    %v5236 = vunpack.c.l.b16 %v3800
    %v5237 = vunpack.c.h.b16 %v3800
    %v5238 = vunpack.c.l.b16 %v3801
    %v5239 = vunpack.c.h.b16 %v3801
    %v5240 = vunpack.c.l.b16 %v3802
    %v5241 = vunpack.c.h.b16 %v3802
    %v5242 = vunpack.c.l.b16 %v3803
    %v5243 = vunpack.c.h.b16 %v3803
    %v5244 = vunpack.c.l.b16 %v3804
    %v5245 = vunpack.c.h.b16 %v3804
    %v5246 = vunpack.c.l.b16 %v3805
    %v5247 = vunpack.c.h.b16 %v3805
    %v5248 = vunpack.c.l.b16 %v3806
    %v5249 = vunpack.c.h.b16 %v3806
    %v5250 = vunpack.c.l.b16 %v3807
    %v5251 = vunpack.c.h.b16 %v3807
    %v5252 = vunpack.c.l.b16 %v3808
    %v5253 = vunpack.c.h.b16 %v3808
    %v5254 = vunpack.c.l.b16 %v3809
    %v5255 = vunpack.c.h.b16 %v3809
    %v5256 = vunpack.c.l.b16 %v3810
    %v5257 = vunpack.c.h.b16 %v3810
    %v5258 = vunpack.c.l.b16 %v3811
    %v5259 = vunpack.c.h.b16 %v3811
    %v5260 = vunpack.c.l.b16 %v3812
    %v5261 = vunpack.c.h.b16 %v3812
    %v5262 = vunpack.c.l.b16 %v3813
    %v5263 = vunpack.c.h.b16 %v3813
    %v5264 = vunpack.c.l.b16 %v3814
    %v5265 = vunpack.c.h.b16 %v3814
    %v5266 = vunpack.c.l.b16 %v3815
    %v5267 = vunpack.c.h.b16 %v3815
    %v5268 = vunpack.c.l.b16 %v3816
    %v5269 = vunpack.c.h.b16 %v3816
    %v5270 = vunpack.c.l.b16 %v3817
    %v5271 = vunpack.c.h.b16 %v3817
    %v5272 = vunpack.c.l.b16 %v3818
    %v5273 = vunpack.c.h.b16 %v3818
    %v5274 = vunpack.c.l.b16 %v3819
    %v5275 = vunpack.c.h.b16 %v3819
    %v5276 = vunpack.c.l.b16 %v3820
    %v5277 = vunpack.c.h.b16 %v3820
    %v5278 = vunpack.c.l.b16 %v3821
    %v5279 = vunpack.c.h.b16 %v3821
    %v5280 = vunpack.c.l.b16 %v3822
    %v5281 = vunpack.c.h.b16 %v3822
    %v5282 = vunpack.c.l.b16 %v3823
    %v5283 = vunpack.c.h.b16 %v3823
    %v5284 = vunpack.c.l.b16 %v3824
    %v5285 = vunpack.c.h.b16 %v3824
    %v5286 = vunpack.c.l.b16 %v3825
    %v5287 = vunpack.c.h.b16 %v3825
    %v5288 = vunpack.c.l.b16 %v3826
    %v5289 = vunpack.c.h.b16 %v3826
    %v5290 = vunpack.c.l.b16 %v3827
    %v5291 = vunpack.c.h.b16 %v3827
    %v5292 = vunpack.c.l.b16 %v3828
    %v5293 = vunpack.c.h.b16 %v3828
    %v5294 = vunpack.c.l.b16 %v3829
    %v5295 = vunpack.c.h.b16 %v3829
    %v5296 = vunpack.c.l.b16 %v3830
    %v5297 = vunpack.c.h.b16 %v3830
    %v5298 = vunpack.c.l.b16 %v3831
    %v5299 = vunpack.c.h.b16 %v3831
    %v5300 = vunpack.c.l.b16 %v3832
    %v5301 = vunpack.c.h.b16 %v3832
    %v5302 = vunpack.c.l.b16 %v3833
    %v5303 = vunpack.c.h.b16 %v3833
    %v5304 = vunpack.c.l.b16 %v3834
    %v5305 = vunpack.c.h.b16 %v3834
    %v5306 = vunpack.c.l.b16 %v3835
    %v5307 = vunpack.c.h.b16 %v3835
    %v5308 = vunpack.c.l.b16 %v3836
    %v5309 = vunpack.c.h.b16 %v3836
    %v5310 = vunpack.c.l.b16 %v3837
    %v5311 = vunpack.c.h.b16 %v3837
    %v5312 = vunpack.c.l.b16 %v3838
    %v5313 = vunpack.c.h.b16 %v3838
    %v5314 = vunpack.c.l.b16 %v3839
    %v5315 = vunpack.c.h.b16 %v3839
    %v5316 = vunpack.c.l.b16 %v3840
    %v5317 = vunpack.c.h.b16 %v3840
    %v5318 = vunpack.c.l.b16 %v3841
    %v5319 = vunpack.c.h.b16 %v3841
    %v5320 = vunpack.c.l.b16 %v3842
    %v5321 = vunpack.c.h.b16 %v3842
    %v5322 = vunpack.c.l.b16 %v3843
    %v5323 = vunpack.c.h.b16 %v3843
    %v5324 = vunpack.c.l.b16 %v3844
    %v5325 = vunpack.c.h.b16 %v3844
    %v5326 = vunpack.c.l.b16 %v3845
    %v5327 = vunpack.c.h.b16 %v3845
    %v5328 = vunpack.c.l.b16 %v3846
    %v5329 = vunpack.c.h.b16 %v3846
    %v5330 = vunpack.c.l.b16 %v3847
    %v5331 = vunpack.c.h.b16 %v3847
    %v5332 = vunpack.c.l.b16 %v3848
    %v5333 = vunpack.c.h.b16 %v3848
    %v5334 = vunpack.c.l.b16 %v3849
    %v5335 = vunpack.c.h.b16 %v3849
    %v5336 = vunpack.c.l.b16 %v3850
    %v5337 = vunpack.c.h.b16 %v3850
    %v5338 = vunpack.c.l.b16 %v3851
    %v5339 = vunpack.c.h.b16 %v3851
    %v5340 = vunpack.c.l.b16 %v3852
    %v5341 = vunpack.c.h.b16 %v3852
    %v5342 = vunpack.c.l.b16 %v3853
    %v5343 = vunpack.c.h.b16 %v3853
    %v5344 = vunpack.c.l.b16 %v3854
    %v5345 = vunpack.c.h.b16 %v3854
    %v5346 = vunpack.c.l.b16 %v3855
    %v5347 = vunpack.c.h.b16 %v3855
    %v5348 = vunpack.c.l.b16 %v3856
    %v5349 = vunpack.c.h.b16 %v3856
    %v5350 = vunpack.c.l.b16 %v3857
    %v5351 = vunpack.c.h.b16 %v3857
    %v5352 = vunpack.c.l.b16 %v3858
    %v5353 = vunpack.c.h.b16 %v3858
    %v5354 = vunpack.c.l.b16 %v3859
    %v5355 = vunpack.c.h.b16 %v3859
    %v5356 = vunpack.c.l.b16 %v3860
    %v5357 = vunpack.c.h.b16 %v3860
    %v5358 = vunpack.c.l.b16 %v3861
    %v5359 = vunpack.c.h.b16 %v3861
    %v5360 = vunpack.c.l.b16 %v3862
    %v5361 = vunpack.c.h.b16 %v3862
    %v5362 = vunpack.c.l.b16 %v3863
    %v5363 = vunpack.c.h.b16 %v3863
    %v5364 = vunpack.c.l.b16 %v3864
    %v5365 = vunpack.c.h.b16 %v3864
    %v5366 = vunpack.c.l.b16 %v3865
    %v5367 = vunpack.c.h.b16 %v3865
    %v5368 = vunpack.c.l.b16 %v3866
    %v5369 = vunpack.c.h.b16 %v3866
    %v5370 = vunpack.c.l.b16 %v3867
    %v5371 = vunpack.c.h.b16 %v3867
    %v5372 = vunpack.c.l.b16 %v3868
    %v5373 = vunpack.c.h.b16 %v3868
    %v5374 = vunpack.c.l.b16 %v3869
    %v5375 = vunpack.c.h.b16 %v3869
    %v5376 = vunpack.c.l.b16 %v3870
    %v5377 = vunpack.c.h.b16 %v3870
    %v5378 = vunpack.c.l.b16 %v3871
    %v5379 = vunpack.c.h.b16 %v3871
    %v5380 = vunpack.c.l.b16 %v3872
    %v5381 = vunpack.c.h.b16 %v3872
    %v5382 = vunpack.c.l.b16 %v3873
    %v5383 = vunpack.c.h.b16 %v3873
    %v5384 = vunpack.c.l.b16 %v3874
    %v5385 = vunpack.c.h.b16 %v3874
    %v5386 = vunpack.c.l.b16 %v3875
    %v5387 = vunpack.c.h.b16 %v3875
    %v5388 = vunpack.c.l.b16 %v3876
    %v5389 = vunpack.c.h.b16 %v3876
    %v5390 = vunpack.c.l.b16 %v3877
    %v5391 = vunpack.c.h.b16 %v3877
    %v5392 = vunpack.c.l.b16 %v3878
    %v5393 = vunpack.c.h.b16 %v3878
    %v5394 = vunpack.c.l.b16 %v3879
    %v5395 = vunpack.c.h.b16 %v3879
    %v5396 = vunpack.c.l.b16 %v3880
    %v5397 = vunpack.c.h.b16 %v3880
    %v5398 = vunpack.c.l.b16 %v3881
    %v5399 = vunpack.c.h.b16 %v3881
    %v5400 = vunpack.c.l.b16 %v3882
    %v5401 = vunpack.c.h.b16 %v3882
    %v5402 = vunpack.c.l.b16 %v3883
    %v5403 = vunpack.c.h.b16 %v3883
    %v5404 = vunpack.c.l.b16 %v3884
    %v5405 = vunpack.c.h.b16 %v3884
    %v5406 = vunpack.c.l.b16 %v3885
    %v5407 = vunpack.c.h.b16 %v3885
    %v5408 = vunpack.c.l.b16 %v3886
    %v5409 = vunpack.c.h.b16 %v3886
    %v5410 = vunpack.c.l.b16 %v3887
    %v5411 = vunpack.c.h.b16 %v3887
    %v5412 = vunpack.c.l.b16 %v3888
    %v5413 = vunpack.c.h.b16 %v3888
    %v5414 = vunpack.c.l.b16 %v3889
    %v5415 = vunpack.c.h.b16 %v3889
    %v5416 = vunpack.c.l.b16 %v3890
    %v5417 = vunpack.c.h.b16 %v3890
    %v5418 = vunpack.c.l.b16 %v3891
    %v5419 = vunpack.c.h.b16 %v3891
    %v5420 = vunpack.c.l.b16 %v3892
    %v5421 = vunpack.c.h.b16 %v3892
    %v5422 = vunpack.c.l.b16 %v3893
    %v5423 = vunpack.c.h.b16 %v3893
    %v5424 = vunpack.c.l.b16 %v3894
    %v5425 = vunpack.c.h.b16 %v3894
    %v5426 = vunpack.c.l.b16 %v3895
    %v5427 = vunpack.c.h.b16 %v3895
    %v5428 = vunpack.c.l.b16 %v3896
    %v5429 = vunpack.c.h.b16 %v3896
    %v5430 = vunpack.c.l.b16 %v3897
    %v5431 = vunpack.c.h.b16 %v3897
    %v5432 = vunpack.c.l.b16 %v3898
    %v5433 = vunpack.c.h.b16 %v3898
    %v5434 = vunpack.c.l.b16 %v3899
    %v5435 = vunpack.c.h.b16 %v3899
    %v5436 = vpack.c.b16 %v4420, %v4412
    %v5437 = vpack.c.b16 %v4421, %v4413
    %v5438 = vpack.c.b16 %v4422, %v4414
    %v5439 = vpack.c.b16 %v4423, %v4415
    %v5440 = vpack.c.b16 %v4424, %v4416
    %v5441 = vpack.c.b16 %v4425, %v4417
    %v5442 = vpack.c.b16 %v4426, %v4418
    %v5443 = vpack.c.b16 %v4427, %v4419
    %v5444 = vpack.c.b16 %v4436, %v4428
    %v5445 = vpack.c.b16 %v4437, %v4429
    %v5446 = vpack.c.b16 %v4438, %v4430
    %v5447 = vpack.c.b16 %v4439, %v4431
    %v5448 = vpack.c.b16 %v4440, %v4432
    %v5449 = vpack.c.b16 %v4441, %v4433
    %v5450 = vpack.c.b16 %v4442, %v4434
    %v5451 = vpack.c.b16 %v4443, %v4435
    %v5452 = vpack.c.b16 %v4452, %v4444
    %v5453 = vpack.c.b16 %v4453, %v4445
    %v5454 = vpack.c.b16 %v4454, %v4446
    %v5455 = vpack.c.b16 %v4455, %v4447
    %v5456 = vpack.c.b16 %v4456, %v4448
    %v5457 = vpack.c.b16 %v4457, %v4449
    %v5458 = vpack.c.b16 %v4458, %v4450
    %v5459 = vpack.c.b16 %v4459, %v4451
    %v5460 = vpack.c.b16 %v4468, %v4460
    %v5461 = vpack.c.b16 %v4469, %v4461
    %v5462 = vpack.c.b16 %v4470, %v4462
    %v5463 = vpack.c.b16 %v4471, %v4463
    %v5464 = vpack.c.b16 %v4472, %v4464
    %v5465 = vpack.c.b16 %v4473, %v4465
    %v5466 = vpack.c.b16 %v4474, %v4466
    %v5467 = vpack.c.b16 %v4475, %v4467
    %v5468 = vpack.c.b16 %v4484, %v4476
    %v5469 = vpack.c.b16 %v4485, %v4477
    %v5470 = vpack.c.b16 %v4486, %v4478
    %v5471 = vpack.c.b16 %v4487, %v4479
    %v5472 = vpack.c.b16 %v4488, %v4480
    %v5473 = vpack.c.b16 %v4489, %v4481
    %v5474 = vpack.c.b16 %v4490, %v4482
    %v5475 = vpack.c.b16 %v4491, %v4483
    %v5476 = vpack.c.b16 %v4500, %v4492
    %v5477 = vpack.c.b16 %v4501, %v4493
    %v5478 = vpack.c.b16 %v4502, %v4494
    %v5479 = vpack.c.b16 %v4503, %v4495
    %v5480 = vpack.c.b16 %v4504, %v4496
    %v5481 = vpack.c.b16 %v4505, %v4497
    %v5482 = vpack.c.b16 %v4506, %v4498
    %v5483 = vpack.c.b16 %v4507, %v4499
    %v5484 = vpack.c.b16 %v4516, %v4508
    %v5485 = vpack.c.b16 %v4517, %v4509
    %v5486 = vpack.c.b16 %v4518, %v4510
    %v5487 = vpack.c.b16 %v4519, %v4511
    %v5488 = vpack.c.b16 %v4520, %v4512
    %v5489 = vpack.c.b16 %v4521, %v4513
    %v5490 = vpack.c.b16 %v4522, %v4514
    %v5491 = vpack.c.b16 %v4523, %v4515
    %v5492 = vpack.c.b16 %v4532, %v4524
    %v5493 = vpack.c.b16 %v4533, %v4525
    %v5494 = vpack.c.b16 %v4534, %v4526
    %v5495 = vpack.c.b16 %v4535, %v4527
    %v5496 = vpack.c.b16 %v4536, %v4528
    %v5497 = vpack.c.b16 %v4537, %v4529
    %v5498 = vpack.c.b16 %v4538, %v4530
    %v5499 = vpack.c.b16 %v4539, %v4531
    %v5500 = vpack.c.b16 %v4548, %v4540
    %v5501 = vpack.c.b16 %v4549, %v4541
    %v5502 = vpack.c.b16 %v4550, %v4542
    %v5503 = vpack.c.b16 %v4551, %v4543
    %v5504 = vpack.c.b16 %v4552, %v4544
    %v5505 = vpack.c.b16 %v4553, %v4545
    %v5506 = vpack.c.b16 %v4554, %v4546
    %v5507 = vpack.c.b16 %v4555, %v4547
    %v5508 = vpack.c.b16 %v4564, %v4556
    %v5509 = vpack.c.b16 %v4565, %v4557
    %v5510 = vpack.c.b16 %v4566, %v4558
    %v5511 = vpack.c.b16 %v4567, %v4559
    %v5512 = vpack.c.b16 %v4568, %v4560
    %v5513 = vpack.c.b16 %v4569, %v4561
    %v5514 = vpack.c.b16 %v4570, %v4562
    %v5515 = vpack.c.b16 %v4571, %v4563
    %v5516 = vpack.c.b16 %v4580, %v4572
    %v5517 = vpack.c.b16 %v4581, %v4573
    %v5518 = vpack.c.b16 %v4582, %v4574
    %v5519 = vpack.c.b16 %v4583, %v4575
    %v5520 = vpack.c.b16 %v4584, %v4576
    %v5521 = vpack.c.b16 %v4585, %v4577
    %v5522 = vpack.c.b16 %v4586, %v4578
    %v5523 = vpack.c.b16 %v4587, %v4579
    %v5524 = vpack.c.b16 %v4596, %v4588
    %v5525 = vpack.c.b16 %v4597, %v4589
    %v5526 = vpack.c.b16 %v4598, %v4590
    %v5527 = vpack.c.b16 %v4599, %v4591
    %v5528 = vpack.c.b16 %v4600, %v4592
    %v5529 = vpack.c.b16 %v4601, %v4593
    %v5530 = vpack.c.b16 %v4602, %v4594
    %v5531 = vpack.c.b16 %v4603, %v4595
    %v5532 = vpack.c.b16 %v4612, %v4604
    %v5533 = vpack.c.b16 %v4613, %v4605
    %v5534 = vpack.c.b16 %v4614, %v4606
    %v5535 = vpack.c.b16 %v4615, %v4607
    %v5536 = vpack.c.b16 %v4616, %v4608
    %v5537 = vpack.c.b16 %v4617, %v4609
    %v5538 = vpack.c.b16 %v4618, %v4610
    %v5539 = vpack.c.b16 %v4619, %v4611
    %v5540 = vpack.c.b16 %v4628, %v4620
    %v5541 = vpack.c.b16 %v4629, %v4621
    %v5542 = vpack.c.b16 %v4630, %v4622
    %v5543 = vpack.c.b16 %v4631, %v4623
    %v5544 = vpack.c.b16 %v4632, %v4624
    %v5545 = vpack.c.b16 %v4633, %v4625
    %v5546 = vpack.c.b16 %v4634, %v4626
    %v5547 = vpack.c.b16 %v4635, %v4627
    %v5548 = vpack.c.b16 %v4644, %v4636
    %v5549 = vpack.c.b16 %v4645, %v4637
    %v5550 = vpack.c.b16 %v4646, %v4638
    %v5551 = vpack.c.b16 %v4647, %v4639
    %v5552 = vpack.c.b16 %v4648, %v4640
    %v5553 = vpack.c.b16 %v4649, %v4641
    %v5554 = vpack.c.b16 %v4650, %v4642
    %v5555 = vpack.c.b16 %v4651, %v4643
    %v5556 = vpack.c.b16 %v4660, %v4652
    %v5557 = vpack.c.b16 %v4661, %v4653
    %v5558 = vpack.c.b16 %v4662, %v4654
    %v5559 = vpack.c.b16 %v4663, %v4655
    %v5560 = vpack.c.b16 %v4664, %v4656
    %v5561 = vpack.c.b16 %v4665, %v4657
    %v5562 = vpack.c.b16 %v4666, %v4658
    %v5563 = vpack.c.b16 %v4667, %v4659
    %v5564 = vpack.c.b16 %v4676, %v4668
    %v5565 = vpack.c.b16 %v4677, %v4669
    %v5566 = vpack.c.b16 %v4678, %v4670
    %v5567 = vpack.c.b16 %v4679, %v4671
    %v5568 = vpack.c.b16 %v4680, %v4672
    %v5569 = vpack.c.b16 %v4681, %v4673
    %v5570 = vpack.c.b16 %v4682, %v4674
    %v5571 = vpack.c.b16 %v4683, %v4675
    %v5572 = vpack.c.b16 %v4692, %v4684
    %v5573 = vpack.c.b16 %v4693, %v4685
    %v5574 = vpack.c.b16 %v4694, %v4686
    %v5575 = vpack.c.b16 %v4695, %v4687
    %v5576 = vpack.c.b16 %v4696, %v4688
    %v5577 = vpack.c.b16 %v4697, %v4689
    %v5578 = vpack.c.b16 %v4698, %v4690
    %v5579 = vpack.c.b16 %v4699, %v4691
    %v5580 = vpack.c.b16 %v4708, %v4700
    %v5581 = vpack.c.b16 %v4709, %v4701
    %v5582 = vpack.c.b16 %v4710, %v4702
    %v5583 = vpack.c.b16 %v4711, %v4703
    %v5584 = vpack.c.b16 %v4712, %v4704
    %v5585 = vpack.c.b16 %v4713, %v4705
    %v5586 = vpack.c.b16 %v4714, %v4706
    %v5587 = vpack.c.b16 %v4715, %v4707
    %v5588 = vpack.c.b16 %v4724, %v4716
    %v5589 = vpack.c.b16 %v4725, %v4717
    %v5590 = vpack.c.b16 %v4726, %v4718
    %v5591 = vpack.c.b16 %v4727, %v4719
    %v5592 = vpack.c.b16 %v4728, %v4720
    %v5593 = vpack.c.b16 %v4729, %v4721
    %v5594 = vpack.c.b16 %v4730, %v4722
    %v5595 = vpack.c.b16 %v4731, %v4723
    %v5596 = vpack.c.b16 %v4740, %v4732
    %v5597 = vpack.c.b16 %v4741, %v4733
    %v5598 = vpack.c.b16 %v4742, %v4734
    %v5599 = vpack.c.b16 %v4743, %v4735
    %v5600 = vpack.c.b16 %v4744, %v4736
    %v5601 = vpack.c.b16 %v4745, %v4737
    %v5602 = vpack.c.b16 %v4746, %v4738
    %v5603 = vpack.c.b16 %v4747, %v4739
    %v5604 = vpack.c.b16 %v4756, %v4748
    %v5605 = vpack.c.b16 %v4757, %v4749
    %v5606 = vpack.c.b16 %v4758, %v4750
    %v5607 = vpack.c.b16 %v4759, %v4751
    %v5608 = vpack.c.b16 %v4760, %v4752
    %v5609 = vpack.c.b16 %v4761, %v4753
    %v5610 = vpack.c.b16 %v4762, %v4754
    %v5611 = vpack.c.b16 %v4763, %v4755
    %v5612 = vpack.c.b16 %v4772, %v4764
    %v5613 = vpack.c.b16 %v4773, %v4765
    %v5614 = vpack.c.b16 %v4774, %v4766
    %v5615 = vpack.c.b16 %v4775, %v4767
    %v5616 = vpack.c.b16 %v4776, %v4768
    %v5617 = vpack.c.b16 %v4777, %v4769
    %v5618 = vpack.c.b16 %v4778, %v4770
    %v5619 = vpack.c.b16 %v4779, %v4771
    %v5620 = vpack.c.b16 %v4788, %v4780
    %v5621 = vpack.c.b16 %v4789, %v4781
    %v5622 = vpack.c.b16 %v4790, %v4782
    %v5623 = vpack.c.b16 %v4791, %v4783
    %v5624 = vpack.c.b16 %v4792, %v4784
    %v5625 = vpack.c.b16 %v4793, %v4785
    %v5626 = vpack.c.b16 %v4794, %v4786
    %v5627 = vpack.c.b16 %v4795, %v4787
    %v5628 = vpack.c.b16 %v4804, %v4796
    %v5629 = vpack.c.b16 %v4805, %v4797
    %v5630 = vpack.c.b16 %v4806, %v4798
    %v5631 = vpack.c.b16 %v4807, %v4799
    %v5632 = vpack.c.b16 %v4808, %v4800
    %v5633 = vpack.c.b16 %v4809, %v4801
    %v5634 = vpack.c.b16 %v4810, %v4802
    %v5635 = vpack.c.b16 %v4811, %v4803
    %v5636 = vpack.c.b16 %v4820, %v4812
    %v5637 = vpack.c.b16 %v4821, %v4813
    %v5638 = vpack.c.b16 %v4822, %v4814
    %v5639 = vpack.c.b16 %v4823, %v4815
    %v5640 = vpack.c.b16 %v4824, %v4816
    %v5641 = vpack.c.b16 %v4825, %v4817
    %v5642 = vpack.c.b16 %v4826, %v4818
    %v5643 = vpack.c.b16 %v4827, %v4819
    %v5644 = vpack.c.b16 %v4836, %v4828
    %v5645 = vpack.c.b16 %v4837, %v4829
    %v5646 = vpack.c.b16 %v4838, %v4830
    %v5647 = vpack.c.b16 %v4839, %v4831
    %v5648 = vpack.c.b16 %v4840, %v4832
    %v5649 = vpack.c.b16 %v4841, %v4833
    %v5650 = vpack.c.b16 %v4842, %v4834
    %v5651 = vpack.c.b16 %v4843, %v4835
    %v5652 = vpack.c.b16 %v4852, %v4844
    %v5653 = vpack.c.b16 %v4853, %v4845
    %v5654 = vpack.c.b16 %v4854, %v4846
    %v5655 = vpack.c.b16 %v4855, %v4847
    %v5656 = vpack.c.b16 %v4856, %v4848
    %v5657 = vpack.c.b16 %v4857, %v4849
    %v5658 = vpack.c.b16 %v4858, %v4850
    %v5659 = vpack.c.b16 %v4859, %v4851
    %v5660 = vpack.c.b16 %v4868, %v4860
    %v5661 = vpack.c.b16 %v4869, %v4861
    %v5662 = vpack.c.b16 %v4870, %v4862
    %v5663 = vpack.c.b16 %v4871, %v4863
    %v5664 = vpack.c.b16 %v4872, %v4864
    %v5665 = vpack.c.b16 %v4873, %v4865
    %v5666 = vpack.c.b16 %v4874, %v4866
    %v5667 = vpack.c.b16 %v4875, %v4867
    %v5668 = vpack.c.b16 %v4884, %v4876
    %v5669 = vpack.c.b16 %v4885, %v4877
    %v5670 = vpack.c.b16 %v4886, %v4878
    %v5671 = vpack.c.b16 %v4887, %v4879
    %v5672 = vpack.c.b16 %v4888, %v4880
    %v5673 = vpack.c.b16 %v4889, %v4881
    %v5674 = vpack.c.b16 %v4890, %v4882
    %v5675 = vpack.c.b16 %v4891, %v4883
    %v5676 = vpack.c.b16 %v4900, %v4892
    %v5677 = vpack.c.b16 %v4901, %v4893
    %v5678 = vpack.c.b16 %v4902, %v4894
    %v5679 = vpack.c.b16 %v4903, %v4895
    %v5680 = vpack.c.b16 %v4904, %v4896
    %v5681 = vpack.c.b16 %v4905, %v4897
    %v5682 = vpack.c.b16 %v4906, %v4898
    %v5683 = vpack.c.b16 %v4907, %v4899
    %v5684 = vpack.c.b16 %v4916, %v4908
    %v5685 = vpack.c.b16 %v4917, %v4909
    %v5686 = vpack.c.b16 %v4918, %v4910
    %v5687 = vpack.c.b16 %v4919, %v4911
    %v5688 = vpack.c.b16 %v4920, %v4912
    %v5689 = vpack.c.b16 %v4921, %v4913
    %v5690 = vpack.c.b16 %v4922, %v4914
    %v5691 = vpack.c.b16 %v4923, %v4915
    %v5692 = vpack.c.b16 %v4932, %v4924
    %v5693 = vpack.c.b16 %v4933, %v4925
    %v5694 = vpack.c.b16 %v4934, %v4926
    %v5695 = vpack.c.b16 %v4935, %v4927
    %v5696 = vpack.c.b16 %v4936, %v4928
    %v5697 = vpack.c.b16 %v4937, %v4929
    %v5698 = vpack.c.b16 %v4938, %v4930
    %v5699 = vpack.c.b16 %v4939, %v4931
    %v5700 = vpack.c.b16 %v4948, %v4940
    %v5701 = vpack.c.b16 %v4949, %v4941
    %v5702 = vpack.c.b16 %v4950, %v4942
    %v5703 = vpack.c.b16 %v4951, %v4943
    %v5704 = vpack.c.b16 %v4952, %v4944
    %v5705 = vpack.c.b16 %v4953, %v4945
    %v5706 = vpack.c.b16 %v4954, %v4946
    %v5707 = vpack.c.b16 %v4955, %v4947
    %v5708 = vpack.c.b16 %v4964, %v4956
    %v5709 = vpack.c.b16 %v4965, %v4957
    %v5710 = vpack.c.b16 %v4966, %v4958
    %v5711 = vpack.c.b16 %v4967, %v4959
    %v5712 = vpack.c.b16 %v4968, %v4960
    %v5713 = vpack.c.b16 %v4969, %v4961
    %v5714 = vpack.c.b16 %v4970, %v4962
    %v5715 = vpack.c.b16 %v4971, %v4963
    %v5716 = vpack.c.b16 %v4980, %v4972
    %v5717 = vpack.c.b16 %v4981, %v4973
    %v5718 = vpack.c.b16 %v4982, %v4974
    %v5719 = vpack.c.b16 %v4983, %v4975
    %v5720 = vpack.c.b16 %v4984, %v4976
    %v5721 = vpack.c.b16 %v4985, %v4977
    %v5722 = vpack.c.b16 %v4986, %v4978
    %v5723 = vpack.c.b16 %v4987, %v4979
    %v5724 = vpack.c.b16 %v4996, %v4988
    %v5725 = vpack.c.b16 %v4997, %v4989
    %v5726 = vpack.c.b16 %v4998, %v4990
    %v5727 = vpack.c.b16 %v4999, %v4991
    %v5728 = vpack.c.b16 %v5000, %v4992
    %v5729 = vpack.c.b16 %v5001, %v4993
    %v5730 = vpack.c.b16 %v5002, %v4994
    %v5731 = vpack.c.b16 %v5003, %v4995
    %v5732 = vpack.c.b16 %v5012, %v5004
    %v5733 = vpack.c.b16 %v5013, %v5005
    %v5734 = vpack.c.b16 %v5014, %v5006
    %v5735 = vpack.c.b16 %v5015, %v5007
    %v5736 = vpack.c.b16 %v5016, %v5008
    %v5737 = vpack.c.b16 %v5017, %v5009
    %v5738 = vpack.c.b16 %v5018, %v5010
    %v5739 = vpack.c.b16 %v5019, %v5011
    %v5740 = vpack.c.b16 %v5028, %v5020
    %v5741 = vpack.c.b16 %v5029, %v5021
    %v5742 = vpack.c.b16 %v5030, %v5022
    %v5743 = vpack.c.b16 %v5031, %v5023
    %v5744 = vpack.c.b16 %v5032, %v5024
    %v5745 = vpack.c.b16 %v5033, %v5025
    %v5746 = vpack.c.b16 %v5034, %v5026
    %v5747 = vpack.c.b16 %v5035, %v5027
    %v5748 = vpack.c.b16 %v5044, %v5036
    %v5749 = vpack.c.b16 %v5045, %v5037
    %v5750 = vpack.c.b16 %v5046, %v5038
    %v5751 = vpack.c.b16 %v5047, %v5039
    %v5752 = vpack.c.b16 %v5048, %v5040
    %v5753 = vpack.c.b16 %v5049, %v5041
    %v5754 = vpack.c.b16 %v5050, %v5042
    %v5755 = vpack.c.b16 %v5051, %v5043
    %v5756 = vpack.c.b16 %v5060, %v5052
    %v5757 = vpack.c.b16 %v5061, %v5053
    %v5758 = vpack.c.b16 %v5062, %v5054
    %v5759 = vpack.c.b16 %v5063, %v5055
    %v5760 = vpack.c.b16 %v5064, %v5056
    %v5761 = vpack.c.b16 %v5065, %v5057
    %v5762 = vpack.c.b16 %v5066, %v5058
    %v5763 = vpack.c.b16 %v5067, %v5059
    %v5764 = vpack.c.b16 %v5076, %v5068
    %v5765 = vpack.c.b16 %v5077, %v5069
    %v5766 = vpack.c.b16 %v5078, %v5070
    %v5767 = vpack.c.b16 %v5079, %v5071
    %v5768 = vpack.c.b16 %v5080, %v5072
    %v5769 = vpack.c.b16 %v5081, %v5073
    %v5770 = vpack.c.b16 %v5082, %v5074
    %v5771 = vpack.c.b16 %v5083, %v5075
    %v5772 = vpack.c.b16 %v5092, %v5084
    %v5773 = vpack.c.b16 %v5093, %v5085
    %v5774 = vpack.c.b16 %v5094, %v5086
    %v5775 = vpack.c.b16 %v5095, %v5087
    %v5776 = vpack.c.b16 %v5096, %v5088
    %v5777 = vpack.c.b16 %v5097, %v5089
    %v5778 = vpack.c.b16 %v5098, %v5090
    %v5779 = vpack.c.b16 %v5099, %v5091
    %v5780 = vpack.c.b16 %v5108, %v5100
    %v5781 = vpack.c.b16 %v5109, %v5101
    %v5782 = vpack.c.b16 %v5110, %v5102
    %v5783 = vpack.c.b16 %v5111, %v5103
    %v5784 = vpack.c.b16 %v5112, %v5104
    %v5785 = vpack.c.b16 %v5113, %v5105
    %v5786 = vpack.c.b16 %v5114, %v5106
    %v5787 = vpack.c.b16 %v5115, %v5107
    %v5788 = vpack.c.b16 %v5124, %v5116
    %v5789 = vpack.c.b16 %v5125, %v5117
    %v5790 = vpack.c.b16 %v5126, %v5118
    %v5791 = vpack.c.b16 %v5127, %v5119
    %v5792 = vpack.c.b16 %v5128, %v5120
    %v5793 = vpack.c.b16 %v5129, %v5121
    %v5794 = vpack.c.b16 %v5130, %v5122
    %v5795 = vpack.c.b16 %v5131, %v5123
    %v5796 = vpack.c.b16 %v5140, %v5132
    %v5797 = vpack.c.b16 %v5141, %v5133
    %v5798 = vpack.c.b16 %v5142, %v5134
    %v5799 = vpack.c.b16 %v5143, %v5135
    %v5800 = vpack.c.b16 %v5144, %v5136
    %v5801 = vpack.c.b16 %v5145, %v5137
    %v5802 = vpack.c.b16 %v5146, %v5138
    %v5803 = vpack.c.b16 %v5147, %v5139
    %v5804 = vpack.c.b16 %v5156, %v5148
    %v5805 = vpack.c.b16 %v5157, %v5149
    %v5806 = vpack.c.b16 %v5158, %v5150
    %v5807 = vpack.c.b16 %v5159, %v5151
    %v5808 = vpack.c.b16 %v5160, %v5152
    %v5809 = vpack.c.b16 %v5161, %v5153
    %v5810 = vpack.c.b16 %v5162, %v5154
    %v5811 = vpack.c.b16 %v5163, %v5155
    %v5812 = vpack.c.b16 %v5172, %v5164
    %v5813 = vpack.c.b16 %v5173, %v5165
    %v5814 = vpack.c.b16 %v5174, %v5166
    %v5815 = vpack.c.b16 %v5175, %v5167
    %v5816 = vpack.c.b16 %v5176, %v5168
    %v5817 = vpack.c.b16 %v5177, %v5169
    %v5818 = vpack.c.b16 %v5178, %v5170
    %v5819 = vpack.c.b16 %v5179, %v5171
    %v5820 = vpack.c.b16 %v5188, %v5180
    %v5821 = vpack.c.b16 %v5189, %v5181
    %v5822 = vpack.c.b16 %v5190, %v5182
    %v5823 = vpack.c.b16 %v5191, %v5183
    %v5824 = vpack.c.b16 %v5192, %v5184
    %v5825 = vpack.c.b16 %v5193, %v5185
    %v5826 = vpack.c.b16 %v5194, %v5186
    %v5827 = vpack.c.b16 %v5195, %v5187
    %v5828 = vpack.c.b16 %v5204, %v5196
    %v5829 = vpack.c.b16 %v5205, %v5197
    %v5830 = vpack.c.b16 %v5206, %v5198
    %v5831 = vpack.c.b16 %v5207, %v5199
    %v5832 = vpack.c.b16 %v5208, %v5200
    %v5833 = vpack.c.b16 %v5209, %v5201
    %v5834 = vpack.c.b16 %v5210, %v5202
    %v5835 = vpack.c.b16 %v5211, %v5203
    %v5836 = vpack.c.b16 %v5220, %v5212
    %v5837 = vpack.c.b16 %v5221, %v5213
    %v5838 = vpack.c.b16 %v5222, %v5214
    %v5839 = vpack.c.b16 %v5223, %v5215
    %v5840 = vpack.c.b16 %v5224, %v5216
    %v5841 = vpack.c.b16 %v5225, %v5217
    %v5842 = vpack.c.b16 %v5226, %v5218
    %v5843 = vpack.c.b16 %v5227, %v5219
    %v5844 = vpack.c.b16 %v5236, %v5228
    %v5845 = vpack.c.b16 %v5237, %v5229
    %v5846 = vpack.c.b16 %v5238, %v5230
    %v5847 = vpack.c.b16 %v5239, %v5231
    %v5848 = vpack.c.b16 %v5240, %v5232
    %v5849 = vpack.c.b16 %v5241, %v5233
    %v5850 = vpack.c.b16 %v5242, %v5234
    %v5851 = vpack.c.b16 %v5243, %v5235
    %v5852 = vpack.c.b16 %v5252, %v5244
    %v5853 = vpack.c.b16 %v5253, %v5245
    %v5854 = vpack.c.b16 %v5254, %v5246
    %v5855 = vpack.c.b16 %v5255, %v5247
    %v5856 = vpack.c.b16 %v5256, %v5248
    %v5857 = vpack.c.b16 %v5257, %v5249
    %v5858 = vpack.c.b16 %v5258, %v5250
    %v5859 = vpack.c.b16 %v5259, %v5251
    %v5860 = vpack.c.b16 %v5268, %v5260
    %v5861 = vpack.c.b16 %v5269, %v5261
    %v5862 = vpack.c.b16 %v5270, %v5262
    %v5863 = vpack.c.b16 %v5271, %v5263
    %v5864 = vpack.c.b16 %v5272, %v5264
    %v5865 = vpack.c.b16 %v5273, %v5265
    %v5866 = vpack.c.b16 %v5274, %v5266
    %v5867 = vpack.c.b16 %v5275, %v5267
    %v5868 = vpack.c.b16 %v5284, %v5276
    %v5869 = vpack.c.b16 %v5285, %v5277
    %v5870 = vpack.c.b16 %v5286, %v5278
    %v5871 = vpack.c.b16 %v5287, %v5279
    %v5872 = vpack.c.b16 %v5288, %v5280
    %v5873 = vpack.c.b16 %v5289, %v5281
    %v5874 = vpack.c.b16 %v5290, %v5282
    %v5875 = vpack.c.b16 %v5291, %v5283
    %v5876 = vpack.c.b16 %v5300, %v5292
    %v5877 = vpack.c.b16 %v5301, %v5293
    %v5878 = vpack.c.b16 %v5302, %v5294
    %v5879 = vpack.c.b16 %v5303, %v5295
    %v5880 = vpack.c.b16 %v5304, %v5296
    %v5881 = vpack.c.b16 %v5305, %v5297
    %v5882 = vpack.c.b16 %v5306, %v5298
    %v5883 = vpack.c.b16 %v5307, %v5299
    %v5884 = vpack.c.b16 %v5316, %v5308
    %v5885 = vpack.c.b16 %v5317, %v5309
    %v5886 = vpack.c.b16 %v5318, %v5310
    %v5887 = vpack.c.b16 %v5319, %v5311
    %v5888 = vpack.c.b16 %v5320, %v5312
    %v5889 = vpack.c.b16 %v5321, %v5313
    %v5890 = vpack.c.b16 %v5322, %v5314
    %v5891 = vpack.c.b16 %v5323, %v5315
    %v5892 = vpack.c.b16 %v5332, %v5324
    %v5893 = vpack.c.b16 %v5333, %v5325
    %v5894 = vpack.c.b16 %v5334, %v5326
    %v5895 = vpack.c.b16 %v5335, %v5327
    %v5896 = vpack.c.b16 %v5336, %v5328
    %v5897 = vpack.c.b16 %v5337, %v5329
    %v5898 = vpack.c.b16 %v5338, %v5330
    %v5899 = vpack.c.b16 %v5339, %v5331
    %v5900 = vpack.c.b16 %v5348, %v5340
    %v5901 = vpack.c.b16 %v5349, %v5341
    %v5902 = vpack.c.b16 %v5350, %v5342
    %v5903 = vpack.c.b16 %v5351, %v5343
    %v5904 = vpack.c.b16 %v5352, %v5344
    %v5905 = vpack.c.b16 %v5353, %v5345
    %v5906 = vpack.c.b16 %v5354, %v5346
    %v5907 = vpack.c.b16 %v5355, %v5347
    %v5908 = vpack.c.b16 %v5364, %v5356
    %v5909 = vpack.c.b16 %v5365, %v5357
    %v5910 = vpack.c.b16 %v5366, %v5358
    %v5911 = vpack.c.b16 %v5367, %v5359
    %v5912 = vpack.c.b16 %v5368, %v5360
    %v5913 = vpack.c.b16 %v5369, %v5361
    %v5914 = vpack.c.b16 %v5370, %v5362
    %v5915 = vpack.c.b16 %v5371, %v5363
    %v5916 = vpack.c.b16 %v5380, %v5372
    %v5917 = vpack.c.b16 %v5381, %v5373
    %v5918 = vpack.c.b16 %v5382, %v5374
    %v5919 = vpack.c.b16 %v5383, %v5375
    %v5920 = vpack.c.b16 %v5384, %v5376
    %v5921 = vpack.c.b16 %v5385, %v5377
    %v5922 = vpack.c.b16 %v5386, %v5378
    %v5923 = vpack.c.b16 %v5387, %v5379
    %v5924 = vpack.c.b16 %v5396, %v5388
    %v5925 = vpack.c.b16 %v5397, %v5389
    %v5926 = vpack.c.b16 %v5398, %v5390
    %v5927 = vpack.c.b16 %v5399, %v5391
    %v5928 = vpack.c.b16 %v5400, %v5392
    %v5929 = vpack.c.b16 %v5401, %v5393
    %v5930 = vpack.c.b16 %v5402, %v5394
    %v5931 = vpack.c.b16 %v5403, %v5395
    %v5932 = vpack.c.b16 %v5412, %v5404
    %v5933 = vpack.c.b16 %v5413, %v5405
    %v5934 = vpack.c.b16 %v5414, %v5406
    %v5935 = vpack.c.b16 %v5415, %v5407
    %v5936 = vpack.c.b16 %v5416, %v5408
    %v5937 = vpack.c.b16 %v5417, %v5409
    %v5938 = vpack.c.b16 %v5418, %v5410
    %v5939 = vpack.c.b16 %v5419, %v5411
    %v5940 = vpack.c.b16 %v5428, %v5420
    %v5941 = vpack.c.b16 %v5429, %v5421
    %v5942 = vpack.c.b16 %v5430, %v5422
    %v5943 = vpack.c.b16 %v5431, %v5423
    %v5944 = vpack.c.b16 %v5432, %v5424
    %v5945 = vpack.c.b16 %v5433, %v5425
    %v5946 = vpack.c.b16 %v5434, %v5426
    %v5947 = vpack.c.b16 %v5435, %v5427
    %6460 = vmatprep.subr.bf16.mxu0 %v5437
    %6461 = vmatpush1.bf16.msra.mxu0 %v5436
    %6462 = vmatprep.subr.bf16.mxu0 %v5445
    %6463 = vmatpush1.bf16.msra.mxu0 %v5444
    %6464 = vmatprep.subr.bf16.mxu0 %v5453
    %6465 = vmatpush1.bf16.msra.mxu0 %v5452
    %6466 = vmatprep.subr.bf16.mxu0 %v5461
    %6467 = vmatpush1.bf16.msra.mxu0 %v5460
    %6468 = vmatprep.subr.bf16.mxu0 %v5469
    %6469 = vmatpush1.bf16.msra.mxu0 %v5468
    %6470 = vmatprep.subr.bf16.mxu0 %v5477
    %6471 = vmatpush1.bf16.msra.mxu0 %v5476
    %6472 = vmatprep.subr.bf16.mxu0 %v5485
    %6473 = vmatpush1.bf16.msra.mxu0 %v5484
    %6474 = vmatprep.subr.bf16.mxu0 %v5493
    %6475 = vmatpush1.bf16.msra.mxu0 %v5492
    %6476 = vmatprep.subr.bf16.mxu0 %v5501
    %6477 = vmatpush1.bf16.msra.mxu0 %v5500
    %6478 = vmatprep.subr.bf16.mxu0 %v5509
    %6479 = vmatpush1.bf16.msra.mxu0 %v5508
    %6480 = vmatprep.subr.bf16.mxu0 %v5517
    %6481 = vmatpush1.bf16.msra.mxu0 %v5516
    %6482 = vmatprep.subr.bf16.mxu0 %v5525
    %6483 = vmatpush1.bf16.msra.mxu0 %v5524
    %6484 = vmatprep.subr.bf16.mxu0 %v5533
    %6485 = vmatpush1.bf16.msra.mxu0 %v5532
    %6486 = vmatprep.subr.bf16.mxu0 %v5541
    %6487 = vmatpush1.bf16.msra.mxu0 %v5540
    %6488 = vmatprep.subr.bf16.mxu0 %v5549
    %6489 = vmatpush1.bf16.msra.mxu0 %v5548
    %6490 = vmatprep.subr.bf16.mxu0 %v5557
    %6491 = vmatpush1.bf16.msra.mxu0 %v5556
    %6492 = vmatprep.mubr.bf16.mxu0 %v3381
    %6493 = vmatmul.mubr.bf16.gmra.mrb[0].mxu0 %v3380
    %v6494 = vpop.f32.mrb[0].mxu0
    %v6495 = vadd.f32 0.0, %v6494
    %v6496 = vpop.f32.mrb[0].mxu0
    %v6497 = vadd.f32 0.0, %v6496
    %v6498 = vpop.f32.mrb[0].mxu0
    %v6499 = vadd.f32 0.0, %v6498
    %v6500 = vpop.f32.mrb[0].mxu0
    %v6501 = vadd.f32 0.0, %v6500
    %6502 = vdwg.mxu0
    %6503 = vmatprep.subr.bf16.mxu0 %v5565
    %6504 = vmatpush1.bf16.msra.mxu0 %v5564
    %6505 = vmatprep.subr.bf16.mxu0 %v5573
    %6506 = vmatpush1.bf16.msra.mxu0 %v5572
    %6507 = vmatprep.subr.bf16.mxu0 %v5581
    %6508 = vmatpush1.bf16.msra.mxu0 %v5580
    %6509 = vmatprep.subr.bf16.mxu0 %v5589
    %6510 = vmatpush1.bf16.msra.mxu0 %v5588
    %6511 = vmatprep.subr.bf16.mxu0 %v5597
    %6512 = vmatpush1.bf16.msra.mxu0 %v5596
    %6513 = vmatprep.subr.bf16.mxu0 %v5605
    %6514 = vmatpush1.bf16.msra.mxu0 %v5604
    %6515 = vmatprep.subr.bf16.mxu0 %v5613
    %6516 = vmatpush1.bf16.msra.mxu0 %v5612
    %6517 = vmatprep.subr.bf16.mxu0 %v5621
    %6518 = vmatpush1.bf16.msra.mxu0 %v5620
    %6519 = vmatprep.subr.bf16.mxu0 %v5629
    %6520 = vmatpush1.bf16.msra.mxu0 %v5628
    %6521 = vmatprep.subr.bf16.mxu0 %v5637
    %6522 = vmatpush1.bf16.msra.mxu0 %v5636
    %6523 = vmatprep.subr.bf16.mxu0 %v5645
    %6524 = vmatpush1.bf16.msra.mxu0 %v5644
    %6525 = vmatprep.subr.bf16.mxu0 %v5653
    %6526 = vmatpush1.bf16.msra.mxu0 %v5652
    %6527 = vmatprep.subr.bf16.mxu0 %v5661
    %6528 = vmatpush1.bf16.msra.mxu0 %v5660
    %6529 = vmatprep.subr.bf16.mxu0 %v5669
    %6530 = vmatpush1.bf16.msra.mxu0 %v5668
    %6531 = vmatprep.subr.bf16.mxu0 %v5677
    %6532 = vmatpush1.bf16.msra.mxu0 %v5676
    %6533 = vmatprep.subr.bf16.mxu0 %v5685
    %6534 = vmatpush1.bf16.msra.mxu0 %v5684
    %6535 = vmatprep.mubr.bf16.mxu0 %v3383
    %6536 = vmatmul.mubr.bf16.gmra.mrb[0].mxu0 %v3382
    %v6537 = vpop.f32.mrb[0].mxu0
    %v6538 = vadd.f32 %v6495, %v6537
    %v6539 = vpop.f32.mrb[0].mxu0
    %v6540 = vadd.f32 %v6497, %v6539
    %v6541 = vpop.f32.mrb[0].mxu0
    %v6542 = vadd.f32 %v6499, %v6541
    %v6543 = vpop.f32.mrb[0].mxu0
    %v6544 = vadd.f32 %v6501, %v6543
    %6545 = vdwg.mxu0
    %6546 = vmatprep.subr.bf16.mxu0 %v5693
    %6547 = vmatpush1.bf16.msra.mxu0 %v5692
    %6548 = vmatprep.subr.bf16.mxu0 %v5701
    %6549 = vmatpush1.bf16.msra.mxu0 %v5700
    %6550 = vmatprep.subr.bf16.mxu0 %v5709
    %6551 = vmatpush1.bf16.msra.mxu0 %v5708
    %6552 = vmatprep.subr.bf16.mxu0 %v5717
    %6553 = vmatpush1.bf16.msra.mxu0 %v5716
    %6554 = vmatprep.subr.bf16.mxu0 %v5725
    %6555 = vmatpush1.bf16.msra.mxu0 %v5724
    %6556 = vmatprep.subr.bf16.mxu0 %v5733
    %6557 = vmatpush1.bf16.msra.mxu0 %v5732
    %6558 = vmatprep.subr.bf16.mxu0 %v5741
    %6559 = vmatpush1.bf16.msra.mxu0 %v5740
    %6560 = vmatprep.subr.bf16.mxu0 %v5749
    %6561 = vmatpush1.bf16.msra.mxu0 %v5748
    %6562 = vmatprep.subr.bf16.mxu0 %v5757
    %6563 = vmatpush1.bf16.msra.mxu0 %v5756
    %6564 = vmatprep.subr.bf16.mxu0 %v5765
    %6565 = vmatpush1.bf16.msra.mxu0 %v5764
    %6566 = vmatprep.subr.bf16.mxu0 %v5773
    %6567 = vmatpush1.bf16.msra.mxu0 %v5772
    %6568 = vmatprep.subr.bf16.mxu0 %v5781
    %6569 = vmatpush1.bf16.msra.mxu0 %v5780
    %6570 = vmatprep.subr.bf16.mxu0 %v5789
    %6571 = vmatpush1.bf16.msra.mxu0 %v5788
    %6572 = vmatprep.subr.bf16.mxu0 %v5797
    %6573 = vmatpush1.bf16.msra.mxu0 %v5796
    %6574 = vmatprep.subr.bf16.mxu0 %v5805
    %6575 = vmatpush1.bf16.msra.mxu0 %v5804
    %6576 = vmatprep.subr.bf16.mxu0 %v5813
    %6577 = vmatpush1.bf16.msra.mxu0 %v5812
    %6578 = vmatprep.mubr.bf16.mxu0 %v3385
    %6579 = vmatmul.mubr.bf16.gmra.mrb[0].mxu0 %v3384
    %v6580 = vpop.f32.mrb[0].mxu0
    %v6581 = vadd.f32 %v6538, %v6580
    %v6582 = vpop.f32.mrb[0].mxu0
    %v6583 = vadd.f32 %v6540, %v6582
    %v6584 = vpop.f32.mrb[0].mxu0
    %v6585 = vadd.f32 %v6542, %v6584
    %v6586 = vpop.f32.mrb[0].mxu0
    %v6587 = vadd.f32 %v6544, %v6586
    %6588 = vdwg.mxu0
    %6589 = vmatprep.subr.bf16.mxu0 %v5821
    %6590 = vmatpush1.bf16.msra.mxu0 %v5820
    %6591 = vmatprep.subr.bf16.mxu0 %v5829
    %6592 = vmatpush1.bf16.msra.mxu0 %v5828
    %6593 = vmatprep.subr.bf16.mxu0 %v5837
    %6594 = vmatpush1.bf16.msra.mxu0 %v5836
    %6595 = vmatprep.subr.bf16.mxu0 %v5845
    %6596 = vmatpush1.bf16.msra.mxu0 %v5844
    %6597 = vmatprep.subr.bf16.mxu0 %v5853
    %6598 = vmatpush1.bf16.msra.mxu0 %v5852
    %6599 = vmatprep.subr.bf16.mxu0 %v5861
    %6600 = vmatpush1.bf16.msra.mxu0 %v5860
    %6601 = vmatprep.subr.bf16.mxu0 %v5869
    %6602 = vmatpush1.bf16.msra.mxu0 %v5868
    %6603 = vmatprep.subr.bf16.mxu0 %v5877
    %6604 = vmatpush1.bf16.msra.mxu0 %v5876
    %6605 = vmatprep.subr.bf16.mxu0 %v5885
    %6606 = vmatpush1.bf16.msra.mxu0 %v5884
    %6607 = vmatprep.subr.bf16.mxu0 %v5893
    %6608 = vmatpush1.bf16.msra.mxu0 %v5892
    %6609 = vmatprep.subr.bf16.mxu0 %v5901
    %6610 = vmatpush1.bf16.msra.mxu0 %v5900
    %6611 = vmatprep.subr.bf16.mxu0 %v5909
    %6612 = vmatpush1.bf16.msra.mxu0 %v5908
    %6613 = vmatprep.subr.bf16.mxu0 %v5917
    %6614 = vmatpush1.bf16.msra.mxu0 %v5916
    %6615 = vmatprep.subr.bf16.mxu0 %v5925
    %6616 = vmatpush1.bf16.msra.mxu0 %v5924
    %6617 = vmatprep.subr.bf16.mxu0 %v5933
    %6618 = vmatpush1.bf16.msra.mxu0 %v5932
    %6619 = vmatprep.subr.bf16.mxu0 %v5941
    %6620 = vmatpush1.bf16.msra.mxu0 %v5940
    %6621 = vmatprep.mubr.bf16.mxu0 %v3387
    %6622 = vmatmul.mubr.bf16.gmra.mrb[0].mxu0 %v3386
    %v6623 = vpop.f32.mrb[0].mxu0
    %v6624 = vadd.f32 %v6581, %v6623
    %v6625 = vpop.f32.mrb[0].mxu0
    %v6626 = vadd.f32 %v6583, %v6625
    %v6627 = vpop.f32.mrb[0].mxu0
    %v6628 = vadd.f32 %v6585, %v6627
    %v6629 = vpop.f32.mrb[0].mxu0
    %v6630 = vadd.f32 %v6587, %v6629
    %6631 = vdwg.mxu0
    %6632 = vmatprep.subr.bf16.mxu0 %v5439
    %6633 = vmatpush1.bf16.msra.mxu0 %v5438
    %6634 = vmatprep.subr.bf16.mxu0 %v5447
    %6635 = vmatpush1.bf16.msra.mxu0 %v5446
    %6636 = vmatprep.subr.bf16.mxu0 %v5455
    %6637 = vmatpush1.bf16.msra.mxu0 %v5454
    %6638 = vmatprep.subr.bf16.mxu0 %v5463
    %6639 = vmatpush1.bf16.msra.mxu0 %v5462
    %6640 = vmatprep.subr.bf16.mxu0 %v5471
    %6641 = vmatpush1.bf16.msra.mxu0 %v5470
    %6642 = vmatprep.subr.bf16.mxu0 %v5479
    %6643 = vmatpush1.bf16.msra.mxu0 %v5478
    %6644 = vmatprep.subr.bf16.mxu0 %v5487
    %6645 = vmatpush1.bf16.msra.mxu0 %v5486
    %6646 = vmatprep.subr.bf16.mxu0 %v5495
    %6647 = vmatpush1.bf16.msra.mxu0 %v5494
    %6648 = vmatprep.subr.bf16.mxu0 %v5503
    %6649 = vmatpush1.bf16.msra.mxu0 %v5502
    %6650 = vmatprep.subr.bf16.mxu0 %v5511
    %6651 = vmatpush1.bf16.msra.mxu0 %v5510
    %6652 = vmatprep.subr.bf16.mxu0 %v5519
    %6653 = vmatpush1.bf16.msra.mxu0 %v5518
    %6654 = vmatprep.subr.bf16.mxu0 %v5527
    %6655 = vmatpush1.bf16.msra.mxu0 %v5526
    %6656 = vmatprep.subr.bf16.mxu0 %v5535
    %6657 = vmatpush1.bf16.msra.mxu0 %v5534
    %6658 = vmatprep.subr.bf16.mxu0 %v5543
    %6659 = vmatpush1.bf16.msra.mxu0 %v5542
    %6660 = vmatprep.subr.bf16.mxu0 %v5551
    %6661 = vmatpush1.bf16.msra.mxu0 %v5550
    %6662 = vmatprep.subr.bf16.mxu0 %v5559
    %6663 = vmatpush1.bf16.msra.mxu0 %v5558
    %6664 = vmatprep.mubr.bf16.mxu0 %v3381
    %6665 = vmatmul.mubr.bf16.gmra.mrb[0].mxu0 %v3380
    %v6666 = vpop.f32.mrb[0].mxu0
    %v6667 = vadd.f32 0.0, %v6666
    %v6668 = vpop.f32.mrb[0].mxu0
    %v6669 = vadd.f32 0.0, %v6668
    %v6670 = vpop.f32.mrb[0].mxu0
    %v6671 = vadd.f32 0.0, %v6670
    %v6672 = vpop.f32.mrb[0].mxu0
    %v6673 = vadd.f32 0.0, %v6672
    %6674 = vdwg.mxu0
    %6675 = vmatprep.subr.bf16.mxu0 %v5567
    %6676 = vmatpush1.bf16.msra.mxu0 %v5566
    %6677 = vmatprep.subr.bf16.mxu0 %v5575
    %6678 = vmatpush1.bf16.msra.mxu0 %v5574
    %6679 = vmatprep.subr.bf16.mxu0 %v5583
    %6680 = vmatpush1.bf16.msra.mxu0 %v5582
    %6681 = vmatprep.subr.bf16.mxu0 %v5591
    %6682 = vmatpush1.bf16.msra.mxu0 %v5590
    %6683 = vmatprep.subr.bf16.mxu0 %v5599
    %6684 = vmatpush1.bf16.msra.mxu0 %v5598
    %6685 = vmatprep.subr.bf16.mxu0 %v5607
    %6686 = vmatpush1.bf16.msra.mxu0 %v5606
    %6687 = vmatprep.subr.bf16.mxu0 %v5615
    %6688 = vmatpush1.bf16.msra.mxu0 %v5614
    %6689 = vmatprep.subr.bf16.mxu0 %v5623
    %6690 = vmatpush1.bf16.msra.mxu0 %v5622
    %6691 = vmatprep.subr.bf16.mxu0 %v5631
    %6692 = vmatpush1.bf16.msra.mxu0 %v5630
    %6693 = vmatprep.subr.bf16.mxu0 %v5639
    %6694 = vmatpush1.bf16.msra.mxu0 %v5638
    %6695 = vmatprep.subr.bf16.mxu0 %v5647
    %6696 = vmatpush1.bf16.msra.mxu0 %v5646
    %6697 = vmatprep.subr.bf16.mxu0 %v5655
    %6698 = vmatpush1.bf16.msra.mxu0 %v5654
    %6699 = vmatprep.subr.bf16.mxu0 %v5663
    %6700 = vmatpush1.bf16.msra.mxu0 %v5662
    %6701 = vmatprep.subr.bf16.mxu0 %v5671
    %6702 = vmatpush1.bf16.msra.mxu0 %v5670
    %6703 = vmatprep.subr.bf16.mxu0 %v5679
    %6704 = vmatpush1.bf16.msra.mxu0 %v5678
    %6705 = vmatprep.subr.bf16.mxu0 %v5687
    %6706 = vmatpush1.bf16.msra.mxu0 %v5686
    %6707 = vmatprep.mubr.bf16.mxu0 %v3383
    %6708 = vmatmul.mubr.bf16.gmra.mrb[0].mxu0 %v3382
    %v6709 = vpop.f32.mrb[0].mxu0
    %v6710 = vadd.f32 %v6667, %v6709
    %v6711 = vpop.f32.mrb[0].mxu0
    %v6712 = vadd.f32 %v6669, %v6711
    %v6713 = vpop.f32.mrb[0].mxu0
    %v6714 = vadd.f32 %v6671, %v6713
    %v6715 = vpop.f32.mrb[0].mxu0
    %v6716 = vadd.f32 %v6673, %v6715
    %6717 = vdwg.mxu0
    %6718 = vmatprep.subr.bf16.mxu0 %v5695
    %6719 = vmatpush1.bf16.msra.mxu0 %v5694
    %6720 = vmatprep.subr.bf16.mxu0 %v5703
    %6721 = vmatpush1.bf16.msra.mxu0 %v5702
    %6722 = vmatprep.subr.bf16.mxu0 %v5711
    %6723 = vmatpush1.bf16.msra.mxu0 %v5710
    %6724 = vmatprep.subr.bf16.mxu0 %v5719
    %6725 = vmatpush1.bf16.msra.mxu0 %v5718
    %6726 = vmatprep.subr.bf16.mxu0 %v5727
    %6727 = vmatpush1.bf16.msra.mxu0 %v5726
    %6728 = vmatprep.subr.bf16.mxu0 %v5735
    %6729 = vmatpush1.bf16.msra.mxu0 %v5734
    %6730 = vmatprep.subr.bf16.mxu0 %v5743
    %6731 = vmatpush1.bf16.msra.mxu0 %v5742
    %6732 = vmatprep.subr.bf16.mxu0 %v5751
    %6733 = vmatpush1.bf16.msra.mxu0 %v5750
    %6734 = vmatprep.subr.bf16.mxu0 %v5759
    %6735 = vmatpush1.bf16.msra.mxu0 %v5758
    %6736 = vmatprep.subr.bf16.mxu0 %v5767
    %6737 = vmatpush1.bf16.msra.mxu0 %v5766
    %6738 = vmatprep.subr.bf16.mxu0 %v5775
    %6739 = vmatpush1.bf16.msra.mxu0 %v5774
    %6740 = vmatprep.subr.bf16.mxu0 %v5783
    %6741 = vmatpush1.bf16.msra.mxu0 %v5782
    %6742 = vmatprep.subr.bf16.mxu0 %v5791
    %6743 = vmatpush1.bf16.msra.mxu0 %v5790
    %6744 = vmatprep.subr.bf16.mxu0 %v5799
    %6745 = vmatpush1.bf16.msra.mxu0 %v5798
    %6746 = vmatprep.subr.bf16.mxu0 %v5807
    %6747 = vmatpush1.bf16.msra.mxu0 %v5806
    %6748 = vmatprep.subr.bf16.mxu0 %v5815
    %6749 = vmatpush1.bf16.msra.mxu0 %v5814
    %6750 = vmatprep.mubr.bf16.mxu0 %v3385
    %6751 = vmatmul.mubr.bf16.gmra.mrb[0].mxu0 %v3384
    %v6752 = vpop.f32.mrb[0].mxu0
    %v6753 = vadd.f32 %v6710, %v6752
    %v6754 = vpop.f32.mrb[0].mxu0
    %v6755 = vadd.f32 %v6712, %v6754
    %v6756 = vpop.f32.mrb[0].mxu0
    %v6757 = vadd.f32 %v6714, %v6756
    %v6758 = vpop.f32.mrb[0].mxu0
    %v6759 = vadd.f32 %v6716, %v6758
    %6760 = vdwg.mxu0
    %6761 = vmatprep.subr.bf16.mxu0 %v5823
    %6762 = vmatpush1.bf16.msra.mxu0 %v5822
    %6763 = vmatprep.subr.bf16.mxu0 %v5831
    %6764 = vmatpush1.bf16.msra.mxu0 %v5830
    %6765 = vmatprep.subr.bf16.mxu0 %v5839
    %6766 = vmatpush1.bf16.msra.mxu0 %v5838
    %6767 = vmatprep.subr.bf16.mxu0 %v5847
    %6768 = vmatpush1.bf16.msra.mxu0 %v5846
    %6769 = vmatprep.subr.bf16.mxu0 %v5855
    %6770 = vmatpush1.bf16.msra.mxu0 %v5854
    %6771 = vmatprep.subr.bf16.mxu0 %v5863
    %6772 = vmatpush1.bf16.msra.mxu0 %v5862
    %6773 = vmatprep.subr.bf16.mxu0 %v5871
    %6774 = vmatpush1.bf16.msra.mxu0 %v5870
    %6775 = vmatprep.subr.bf16.mxu0 %v5879
    %6776 = vmatpush1.bf16.msra.mxu0 %v5878
    %6777 = vmatprep.subr.bf16.mxu0 %v5887
    %6778 = vmatpush1.bf16.msra.mxu0 %v5886
    %6779 = vmatprep.subr.bf16.mxu0 %v5895
    %6780 = vmatpush1.bf16.msra.mxu0 %v5894
    %6781 = vmatprep.subr.bf16.mxu0 %v5903
    %6782 = vmatpush1.bf16.msra.mxu0 %v5902
    %6783 = vmatprep.subr.bf16.mxu0 %v5911
    %6784 = vmatpush1.bf16.msra.mxu0 %v5910
    %6785 = vmatprep.subr.bf16.mxu0 %v5919
    %6786 = vmatpush1.bf16.msra.mxu0 %v5918
    %6787 = vmatprep.subr.bf16.mxu0 %v5927
    %6788 = vmatpush1.bf16.msra.mxu0 %v5926
    %6789 = vmatprep.subr.bf16.mxu0 %v5935
    %6790 = vmatpush1.bf16.msra.mxu0 %v5934
    %6791 = vmatprep.subr.bf16.mxu0 %v5943
    %6792 = vmatpush1.bf16.msra.mxu0 %v5942
    %6793 = vmatprep.mubr.bf16.mxu0 %v3387
    %6794 = vmatmul.mubr.bf16.gmra.mrb[0].mxu0 %v3386
    %v6795 = vpop.f32.mrb[0].mxu0
    %v6796 = vadd.f32 %v6753, %v6795
    %v6797 = vpop.f32.mrb[0].mxu0
    %v6798 = vadd.f32 %v6755, %v6797
    %v6799 = vpop.f32.mrb[0].mxu0
    %v6800 = vadd.f32 %v6757, %v6799
    %v6801 = vpop.f32.mrb[0].mxu0
    %v6802 = vadd.f32 %v6759, %v6801
    %6803 = vdwg.mxu0
    %6804 = vmatprep.subr.bf16.mxu0 %v5441
    %6805 = vmatpush1.bf16.msra.mxu0 %v5440
    %6806 = vmatprep.subr.bf16.mxu0 %v5449
    %6807 = vmatpush1.bf16.msra.mxu0 %v5448
    %6808 = vmatprep.subr.bf16.mxu0 %v5457
    %6809 = vmatpush1.bf16.msra.mxu0 %v5456
    %6810 = vmatprep.subr.bf16.mxu0 %v5465
    %6811 = vmatpush1.bf16.msra.mxu0 %v5464
    %6812 = vmatprep.subr.bf16.mxu0 %v5473
    %6813 = vmatpush1.bf16.msra.mxu0 %v5472
    %6814 = vmatprep.subr.bf16.mxu0 %v5481
    %6815 = vmatpush1.bf16.msra.mxu0 %v5480
    %6816 = vmatprep.subr.bf16.mxu0 %v5489
    %6817 = vmatpush1.bf16.msra.mxu0 %v5488
    %6818 = vmatprep.subr.bf16.mxu0 %v5497
    %6819 = vmatpush1.bf16.msra.mxu0 %v5496
    %6820 = vmatprep.subr.bf16.mxu0 %v5505
    %6821 = vmatpush1.bf16.msra.mxu0 %v5504
    %6822 = vmatprep.subr.bf16.mxu0 %v5513
    %6823 = vmatpush1.bf16.msra.mxu0 %v5512
    %6824 = vmatprep.subr.bf16.mxu0 %v5521
    %6825 = vmatpush1.bf16.msra.mxu0 %v5520
    %6826 = vmatprep.subr.bf16.mxu0 %v5529
    %6827 = vmatpush1.bf16.msra.mxu0 %v5528
    %6828 = vmatprep.subr.bf16.mxu0 %v5537
    %6829 = vmatpush1.bf16.msra.mxu0 %v5536
    %6830 = vmatprep.subr.bf16.mxu0 %v5545
    %6831 = vmatpush1.bf16.msra.mxu0 %v5544
    %6832 = vmatprep.subr.bf16.mxu0 %v5553
    %6833 = vmatpush1.bf16.msra.mxu0 %v5552
    %6834 = vmatprep.subr.bf16.mxu0 %v5561
    %6835 = vmatpush1.bf16.msra.mxu0 %v5560
    %6836 = vmatprep.mubr.bf16.mxu0 %v3381
    %6837 = vmatmul.mubr.bf16.gmra.mrb[0].mxu0 %v3380
    %v6838 = vpop.f32.mrb[0].mxu0
    %v6839 = vadd.f32 0.0, %v6838
    %v6840 = vpop.f32.mrb[0].mxu0
    %v6841 = vadd.f32 0.0, %v6840
    %v6842 = vpop.f32.mrb[0].mxu0
    %v6843 = vadd.f32 0.0, %v6842
    %v6844 = vpop.f32.mrb[0].mxu0
    %v6845 = vadd.f32 0.0, %v6844
    %6846 = vdwg.mxu0
    %6847 = vmatprep.subr.bf16.mxu0 %v5569
    %6848 = vmatpush1.bf16.msra.mxu0 %v5568
    %6849 = vmatprep.subr.bf16.mxu0 %v5577
    %6850 = vmatpush1.bf16.msra.mxu0 %v5576
    %6851 = vmatprep.subr.bf16.mxu0 %v5585
    %6852 = vmatpush1.bf16.msra.mxu0 %v5584
    %6853 = vmatprep.subr.bf16.mxu0 %v5593
    %6854 = vmatpush1.bf16.msra.mxu0 %v5592
    %6855 = vmatprep.subr.bf16.mxu0 %v5601
    %6856 = vmatpush1.bf16.msra.mxu0 %v5600
    %6857 = vmatprep.subr.bf16.mxu0 %v5609
    %6858 = vmatpush1.bf16.msra.mxu0 %v5608
    %6859 = vmatprep.subr.bf16.mxu0 %v5617
    %6860 = vmatpush1.bf16.msra.mxu0 %v5616
    %6861 = vmatprep.subr.bf16.mxu0 %v5625
    %6862 = vmatpush1.bf16.msra.mxu0 %v5624
    %6863 = vmatprep.subr.bf16.mxu0 %v5633
    %6864 = vmatpush1.bf16.msra.mxu0 %v5632
    %6865 = vmatprep.subr.bf16.mxu0 %v5641
    %6866 = vmatpush1.bf16.msra.mxu0 %v5640
    %6867 = vmatprep.subr.bf16.mxu0 %v5649
    %6868 = vmatpush1.bf16.msra.mxu0 %v5648
    %6869 = vmatprep.subr.bf16.mxu0 %v5657
    %6870 = vmatpush1.bf16.msra.mxu0 %v5656
    %6871 = vmatprep.subr.bf16.mxu0 %v5665
    %6872 = vmatpush1.bf16.msra.mxu0 %v5664
    %6873 = vmatprep.subr.bf16.mxu0 %v5673
    %6874 = vmatpush1.bf16.msra.mxu0 %v5672
    %6875 = vmatprep.subr.bf16.mxu0 %v5681
    %6876 = vmatpush1.bf16.msra.mxu0 %v5680
    %6877 = vmatprep.subr.bf16.mxu0 %v5689
    %6878 = vmatpush1.bf16.msra.mxu0 %v5688
    %6879 = vmatprep.mubr.bf16.mxu0 %v3383
    %6880 = vmatmul.mubr.bf16.gmra.mrb[0].mxu0 %v3382
    %v6881 = vpop.f32.mrb[0].mxu0
    %v6882 = vadd.f32 %v6839, %v6881
    %v6883 = vpop.f32.mrb[0].mxu0
    %v6884 = vadd.f32 %v6841, %v6883
    %v6885 = vpop.f32.mrb[0].mxu0
    %v6886 = vadd.f32 %v6843, %v6885
    %v6887 = vpop.f32.mrb[0].mxu0
    %v6888 = vadd.f32 %v6845, %v6887
    %6889 = vdwg.mxu0
    %6890 = vmatprep.subr.bf16.mxu0 %v5697
    %6891 = vmatpush1.bf16.msra.mxu0 %v5696
    %6892 = vmatprep.subr.bf16.mxu0 %v5705
    %6893 = vmatpush1.bf16.msra.mxu0 %v5704
    %6894 = vmatprep.subr.bf16.mxu0 %v5713
    %6895 = vmatpush1.bf16.msra.mxu0 %v5712
    %6896 = vmatprep.subr.bf16.mxu0 %v5721
    %6897 = vmatpush1.bf16.msra.mxu0 %v5720
    %6898 = vmatprep.subr.bf16.mxu0 %v5729
    %6899 = vmatpush1.bf16.msra.mxu0 %v5728
    %6900 = vmatprep.subr.bf16.mxu0 %v5737
    %6901 = vmatpush1.bf16.msra.mxu0 %v5736
    %6902 = vmatprep.subr.bf16.mxu0 %v5745
    %6903 = vmatpush1.bf16.msra.mxu0 %v5744
    %6904 = vmatprep.subr.bf16.mxu0 %v5753
    %6905 = vmatpush1.bf16.msra.mxu0 %v5752
    %6906 = vmatprep.subr.bf16.mxu0 %v5761
    %6907 = vmatpush1.bf16.msra.mxu0 %v5760
    %6908 = vmatprep.subr.bf16.mxu0 %v5769
    %6909 = vmatpush1.bf16.msra.mxu0 %v5768
    %6910 = vmatprep.subr.bf16.mxu0 %v5777
    %6911 = vmatpush1.bf16.msra.mxu0 %v5776
    %6912 = vmatprep.subr.bf16.mxu0 %v5785
    %6913 = vmatpush1.bf16.msra.mxu0 %v5784
    %6914 = vmatprep.subr.bf16.mxu0 %v5793
    %6915 = vmatpush1.bf16.msra.mxu0 %v5792
    %6916 = vmatprep.subr.bf16.mxu0 %v5801
    %6917 = vmatpush1.bf16.msra.mxu0 %v5800
    %6918 = vmatprep.subr.bf16.mxu0 %v5809
    %6919 = vmatpush1.bf16.msra.mxu0 %v5808
    %6920 = vmatprep.subr.bf16.mxu0 %v5817
    %6921 = vmatpush1.bf16.msra.mxu0 %v5816
    %6922 = vmatprep.mubr.bf16.mxu0 %v3385
    %6923 = vmatmul.mubr.bf16.gmra.mrb[0].mxu0 %v3384
    %v6924 = vpop.f32.mrb[0].mxu0
    %v6925 = vadd.f32 %v6882, %v6924
    %v6926 = vpop.f32.mrb[0].mxu0
    %v6927 = vadd.f32 %v6884, %v6926
    %v6928 = vpop.f32.mrb[0].mxu0
    %v6929 = vadd.f32 %v6886, %v6928
    %v6930 = vpop.f32.mrb[0].mxu0
    %v6931 = vadd.f32 %v6888, %v6930
    %6932 = vdwg.mxu0
    %6933 = vmatprep.subr.bf16.mxu0 %v5825
    %6934 = vmatpush1.bf16.msra.mxu0 %v5824
    %6935 = vmatprep.subr.bf16.mxu0 %v5833
    %6936 = vmatpush1.bf16.msra.mxu0 %v5832
    %6937 = vmatprep.subr.bf16.mxu0 %v5841
    %6938 = vmatpush1.bf16.msra.mxu0 %v5840
    %6939 = vmatprep.subr.bf16.mxu0 %v5849
    %6940 = vmatpush1.bf16.msra.mxu0 %v5848
    %6941 = vmatprep.subr.bf16.mxu0 %v5857
    %6942 = vmatpush1.bf16.msra.mxu0 %v5856
    %6943 = vmatprep.subr.bf16.mxu0 %v5865
    %6944 = vmatpush1.bf16.msra.mxu0 %v5864
    %6945 = vmatprep.subr.bf16.mxu0 %v5873
    %6946 = vmatpush1.bf16.msra.mxu0 %v5872
    %6947 = vmatprep.subr.bf16.mxu0 %v5881
    %6948 = vmatpush1.bf16.msra.mxu0 %v5880
    %6949 = vmatprep.subr.bf16.mxu0 %v5889
    %6950 = vmatpush1.bf16.msra.mxu0 %v5888
    %6951 = vmatprep.subr.bf16.mxu0 %v5897
    %6952 = vmatpush1.bf16.msra.mxu0 %v5896
    %6953 = vmatprep.subr.bf16.mxu0 %v5905
    %6954 = vmatpush1.bf16.msra.mxu0 %v5904
    %6955 = vmatprep.subr.bf16.mxu0 %v5913
    %6956 = vmatpush1.bf16.msra.mxu0 %v5912
    %6957 = vmatprep.subr.bf16.mxu0 %v5921
    %6958 = vmatpush1.bf16.msra.mxu0 %v5920
    %6959 = vmatprep.subr.bf16.mxu0 %v5929
    %6960 = vmatpush1.bf16.msra.mxu0 %v5928
    %6961 = vmatprep.subr.bf16.mxu0 %v5937
    %6962 = vmatpush1.bf16.msra.mxu0 %v5936
    %6963 = vmatprep.subr.bf16.mxu0 %v5945
    %6964 = vmatpush1.bf16.msra.mxu0 %v5944
    %6965 = vmatprep.mubr.bf16.mxu0 %v3387
    %6966 = vmatmul.mubr.bf16.gmra.mrb[0].mxu0 %v3386
    %v6967 = vpop.f32.mrb[0].mxu0
    %v6968 = vadd.f32 %v6925, %v6967
    %v6969 = vpop.f32.mrb[0].mxu0
    %v6970 = vadd.f32 %v6927, %v6969
    %v6971 = vpop.f32.mrb[0].mxu0
    %v6972 = vadd.f32 %v6929, %v6971
    %v6973 = vpop.f32.mrb[0].mxu0
    %v6974 = vadd.f32 %v6931, %v6973
    %6975 = vdwg.mxu0
    %6976 = vmatprep.subr.bf16.mxu0 %v5443
    %6977 = vmatpush1.bf16.msra.mxu0 %v5442
    %6978 = vmatprep.subr.bf16.mxu0 %v5451
    %6979 = vmatpush1.bf16.msra.mxu0 %v5450
    %6980 = vmatprep.subr.bf16.mxu0 %v5459
    %6981 = vmatpush1.bf16.msra.mxu0 %v5458
    %6982 = vmatprep.subr.bf16.mxu0 %v5467
    %6983 = vmatpush1.bf16.msra.mxu0 %v5466
    %6984 = vmatprep.subr.bf16.mxu0 %v5475
    %6985 = vmatpush1.bf16.msra.mxu0 %v5474
    %6986 = vmatprep.subr.bf16.mxu0 %v5483
    %6987 = vmatpush1.bf16.msra.mxu0 %v5482
    %6988 = vmatprep.subr.bf16.mxu0 %v5491
    %6989 = vmatpush1.bf16.msra.mxu0 %v5490
    %6990 = vmatprep.subr.bf16.mxu0 %v5499
    %6991 = vmatpush1.bf16.msra.mxu0 %v5498
    %6992 = vmatprep.subr.bf16.mxu0 %v5507
    %6993 = vmatpush1.bf16.msra.mxu0 %v5506
    %6994 = vmatprep.subr.bf16.mxu0 %v5515
    %6995 = vmatpush1.bf16.msra.mxu0 %v5514
    %6996 = vmatprep.subr.bf16.mxu0 %v5523
    %6997 = vmatpush1.bf16.msra.mxu0 %v5522
    %6998 = vmatprep.subr.bf16.mxu0 %v5531
    %6999 = vmatpush1.bf16.msra.mxu0 %v5530
    %7000 = vmatprep.subr.bf16.mxu0 %v5539
    %7001 = vmatpush1.bf16.msra.mxu0 %v5538
    %7002 = vmatprep.subr.bf16.mxu0 %v5547
    %7003 = vmatpush1.bf16.msra.mxu0 %v5546
    %7004 = vmatprep.subr.bf16.mxu0 %v5555
    %7005 = vmatpush1.bf16.msra.mxu0 %v5554
    %7006 = vmatprep.subr.bf16.mxu0 %v5563
    %7007 = vmatpush1.bf16.msra.mxu0 %v5562
    %7008 = vmatprep.mubr.bf16.mxu0 %v3381
    %7009 = vmatmul.mubr.bf16.gmra.mrb[0].mxu0 %v3380
    %v7010 = vpop.f32.mrb[0].mxu0
    %v7011 = vadd.f32 0.0, %v7010
    %v7012 = vpop.f32.mrb[0].mxu0
    %v7013 = vadd.f32 0.0, %v7012
    %v7014 = vpop.f32.mrb[0].mxu0
    %v7015 = vadd.f32 0.0, %v7014
    %v7016 = vpop.f32.mrb[0].mxu0
    %v7017 = vadd.f32 0.0, %v7016
    %7018 = vdwg.mxu0
    %7019 = vmatprep.subr.bf16.mxu0 %v5571
    %7020 = vmatpush1.bf16.msra.mxu0 %v5570
    %7021 = vmatprep.subr.bf16.mxu0 %v5579
    %7022 = vmatpush1.bf16.msra.mxu0 %v5578
    %7023 = vmatprep.subr.bf16.mxu0 %v5587
    %7024 = vmatpush1.bf16.msra.mxu0 %v5586
    %7025 = vmatprep.subr.bf16.mxu0 %v5595
    %7026 = vmatpush1.bf16.msra.mxu0 %v5594
    %7027 = vmatprep.subr.bf16.mxu0 %v5603
    %7028 = vmatpush1.bf16.msra.mxu0 %v5602
    %7029 = vmatprep.subr.bf16.mxu0 %v5611
    %7030 = vmatpush1.bf16.msra.mxu0 %v5610
    %7031 = vmatprep.subr.bf16.mxu0 %v5619
    %7032 = vmatpush1.bf16.msra.mxu0 %v5618
    %7033 = vmatprep.subr.bf16.mxu0 %v5627
    %7034 = vmatpush1.bf16.msra.mxu0 %v5626
    %7035 = vmatprep.subr.bf16.mxu0 %v5635
    %7036 = vmatpush1.bf16.msra.mxu0 %v5634
    %7037 = vmatprep.subr.bf16.mxu0 %v5643
    %7038 = vmatpush1.bf16.msra.mxu0 %v5642
    %7039 = vmatprep.subr.bf16.mxu0 %v5651
    %7040 = vmatpush1.bf16.msra.mxu0 %v5650
    %7041 = vmatprep.subr.bf16.mxu0 %v5659
    %7042 = vmatpush1.bf16.msra.mxu0 %v5658
    %7043 = vmatprep.subr.bf16.mxu0 %v5667
    %7044 = vmatpush1.bf16.msra.mxu0 %v5666
    %7045 = vmatprep.subr.bf16.mxu0 %v5675
    %7046 = vmatpush1.bf16.msra.mxu0 %v5674
    %7047 = vmatprep.subr.bf16.mxu0 %v5683
    %7048 = vmatpush1.bf16.msra.mxu0 %v5682
    %7049 = vmatprep.subr.bf16.mxu0 %v5691
    %7050 = vmatpush1.bf16.msra.mxu0 %v5690
    %7051 = vmatprep.mubr.bf16.mxu0 %v3383
    %7052 = vmatmul.mubr.bf16.gmra.mrb[0].mxu0 %v3382
    %v7053 = vpop.f32.mrb[0].mxu0
    %v7054 = vadd.f32 %v7011, %v7053
    %v7055 = vpop.f32.mrb[0].mxu0
    %v7056 = vadd.f32 %v7013, %v7055
    %v7057 = vpop.f32.mrb[0].mxu0
    %v7058 = vadd.f32 %v7015, %v7057
    %v7059 = vpop.f32.mrb[0].mxu0
    %v7060 = vadd.f32 %v7017, %v7059
    %7061 = vdwg.mxu0
    %7062 = vmatprep.subr.bf16.mxu0 %v5699
    %7063 = vmatpush1.bf16.msra.mxu0 %v5698
    %7064 = vmatprep.subr.bf16.mxu0 %v5707
    %7065 = vmatpush1.bf16.msra.mxu0 %v5706
    %7066 = vmatprep.subr.bf16.mxu0 %v5715
    %7067 = vmatpush1.bf16.msra.mxu0 %v5714
    %7068 = vmatprep.subr.bf16.mxu0 %v5723
    %7069 = vmatpush1.bf16.msra.mxu0 %v5722
    %7070 = vmatprep.subr.bf16.mxu0 %v5731
    %7071 = vmatpush1.bf16.msra.mxu0 %v5730
    %7072 = vmatprep.subr.bf16.mxu0 %v5739
    %7073 = vmatpush1.bf16.msra.mxu0 %v5738
    %7074 = vmatprep.subr.bf16.mxu0 %v5747
    %7075 = vmatpush1.bf16.msra.mxu0 %v5746
    %7076 = vmatprep.subr.bf16.mxu0 %v5755
    %7077 = vmatpush1.bf16.msra.mxu0 %v5754
    %7078 = vmatprep.subr.bf16.mxu0 %v5763
    %7079 = vmatpush1.bf16.msra.mxu0 %v5762
    %7080 = vmatprep.subr.bf16.mxu0 %v5771
    %7081 = vmatpush1.bf16.msra.mxu0 %v5770
    %7082 = vmatprep.subr.bf16.mxu0 %v5779
    %7083 = vmatpush1.bf16.msra.mxu0 %v5778
    %7084 = vmatprep.subr.bf16.mxu0 %v5787
    %7085 = vmatpush1.bf16.msra.mxu0 %v5786
    %7086 = vmatprep.subr.bf16.mxu0 %v5795
    %7087 = vmatpush1.bf16.msra.mxu0 %v5794
    %7088 = vmatprep.subr.bf16.mxu0 %v5803
    %7089 = vmatpush1.bf16.msra.mxu0 %v5802
    %7090 = vmatprep.subr.bf16.mxu0 %v5811
    %7091 = vmatpush1.bf16.msra.mxu0 %v5810
    %7092 = vmatprep.subr.bf16.mxu0 %v5819
    %7093 = vmatpush1.bf16.msra.mxu0 %v5818
    %7094 = vmatprep.mubr.bf16.mxu0 %v3385
    %7095 = vmatmul.mubr.bf16.gmra.mrb[0].mxu0 %v3384
    %v7096 = vpop.f32.mrb[0].mxu0
    %v7097 = vadd.f32 %v7054, %v7096
    %v7098 = vpop.f32.mrb[0].mxu0
    %v7099 = vadd.f32 %v7056, %v7098
    %v7100 = vpop.f32.mrb[0].mxu0
    %v7101 = vadd.f32 %v7058, %v7100
    %v7102 = vpop.f32.mrb[0].mxu0
    %v7103 = vadd.f32 %v7060, %v7102
    %7104 = vdwg.mxu0
    %7105 = vmatprep.subr.bf16.mxu0 %v5827
    %7106 = vmatpush1.bf16.msra.mxu0 %v5826
    %7107 = vmatprep.subr.bf16.mxu0 %v5835
    %7108 = vmatpush1.bf16.msra.mxu0 %v5834
    %7109 = vmatprep.subr.bf16.mxu0 %v5843
    %7110 = vmatpush1.bf16.msra.mxu0 %v5842
    %7111 = vmatprep.subr.bf16.mxu0 %v5851
    %7112 = vmatpush1.bf16.msra.mxu0 %v5850
    %7113 = vmatprep.subr.bf16.mxu0 %v5859
    %7114 = vmatpush1.bf16.msra.mxu0 %v5858
    %7115 = vmatprep.subr.bf16.mxu0 %v5867
    %7116 = vmatpush1.bf16.msra.mxu0 %v5866
    %7117 = vmatprep.subr.bf16.mxu0 %v5875
    %7118 = vmatpush1.bf16.msra.mxu0 %v5874
    %7119 = vmatprep.subr.bf16.mxu0 %v5883
    %7120 = vmatpush1.bf16.msra.mxu0 %v5882
    %7121 = vmatprep.subr.bf16.mxu0 %v5891
    %7122 = vmatpush1.bf16.msra.mxu0 %v5890
    %7123 = vmatprep.subr.bf16.mxu0 %v5899
    %7124 = vmatpush1.bf16.msra.mxu0 %v5898
    %7125 = vmatprep.subr.bf16.mxu0 %v5907
    %7126 = vmatpush1.bf16.msra.mxu0 %v5906
    %7127 = vmatprep.subr.bf16.mxu0 %v5915
    %7128 = vmatpush1.bf16.msra.mxu0 %v5914
    %7129 = vmatprep.subr.bf16.mxu0 %v5923
    %7130 = vmatpush1.bf16.msra.mxu0 %v5922
    %7131 = vmatprep.subr.bf16.mxu0 %v5931
    %7132 = vmatpush1.bf16.msra.mxu0 %v5930
    %7133 = vmatprep.subr.bf16.mxu0 %v5939
    %7134 = vmatpush1.bf16.msra.mxu0 %v5938
    %7135 = vmatprep.subr.bf16.mxu0 %v5947
    %7136 = vmatpush1.bf16.msra.mxu0 %v5946
    %7137 = vmatprep.mubr.bf16.mxu0 %v3387
    %7138 = vmatmul.mubr.bf16.gmra.mrb[0].mxu0 %v3386
    %v7139 = vpop.f32.mrb[0].mxu0
    %v7140 = vadd.f32 %v7097, %v7139
    %v7141 = vpop.f32.mrb[0].mxu0
    %v7142 = vadd.f32 %v7099, %v7141
    %v7143 = vpop.f32.mrb[0].mxu0
    %v7144 = vadd.f32 %v7101, %v7143
    %v7145 = vpop.f32.mrb[0].mxu0
    %v7146 = vadd.f32 %v7103, %v7145
    %7147 = vdwg.mxu0
    %v7148 = vld [vmem:[#allocation11] sm:$0xff]
    %v7150 = vlaneseq
    %v7151 = vshrl.u32 %v7150, 7
    %v7152 = vsub.s32 0, %v7151
    %v7153 = vrot.slane %v7148, %v7152
    %v7154 = vlaneseq
    %v7155 = vshrl.u32 %v7154, 7
    %v7156 = vsub.s32 1, %v7155
    %v7157 = vrot.slane %v7148, %v7156
    %v7158 = vlaneseq
    %v7159 = vshrl.u32 %v7158, 7
    %v7160 = vsub.s32 2, %v7159
    %v7161 = vrot.slane %v7148, %v7160
    %v7162 = vlaneseq
    %v7163 = vshrl.u32 %v7162, 7
    %v7164 = vsub.s32 3, %v7163
    %v7165 = vrot.slane %v7148, %v7164
    %v7166 = vlaneseq
    %v7167 = vshrl.u32 %v7166, 7
    %v7168 = vsub.s32 4, %v7167
    %v7169 = vrot.slane %v7148, %v7168
    %v7170 = vlaneseq
    %v7171 = vshrl.u32 %v7170, 7
    %v7172 = vsub.s32 5, %v7171
    %v7173 = vrot.slane %v7148, %v7172
    %v7174 = vlaneseq
    %v7175 = vshrl.u32 %v7174, 7
    %v7176 = vsub.s32 6, %v7175
    %v7177 = vrot.slane %v7148, %v7176
    %v7178 = vlaneseq
    %v7179 = vshrl.u32 %v7178, 7
    %v7180 = vsub.s32 7, %v7179
    %v7181 = vrot.slane %v7148, %v7180
    %v7190 = vmul.f32 %v6624, %v7153
    %v7191 = vmul.f32 %v6626, %v7157
    %v7192 = vmul.f32 %v6796, %v7161
    %v7193 = vmul.f32 %v6798, %v7165
    %v7194 = vmul.f32 %v6968, %v7169
    %v7195 = vmul.f32 %v6970, %v7173
    %v7196 = vmul.f32 %v7140, %v7177
    %v7197 = vmul.f32 %v7142, %v7181
    %v7198 = vmul.f32 %v6628, %v7153
    %v7199 = vmul.f32 %v6630, %v7157
    %v7200 = vmul.f32 %v6800, %v7161
    %v7201 = vmul.f32 %v6802, %v7165
    %v7202 = vmul.f32 %v6972, %v7169
    %v7203 = vmul.f32 %v6974, %v7173
    %v7204 = vmul.f32 %v7144, %v7177
    %v7205 = vmul.f32 %v7146, %v7181
    %v7206 = vld [vmem:[#allocation13] sm:$0xff]
    %v7208 = vlaneseq
    %v7209 = vshrl.u32 %v7208, 7
    %v7210 = vsub.s32 0, %v7209
    %v7211 = vrot.slane %v7206, %v7210
    %v7212 = vlaneseq
    %v7213 = vshrl.u32 %v7212, 7
    %v7214 = vsub.s32 1, %v7213
    %v7215 = vrot.slane %v7206, %v7214
    %v7216 = vlaneseq
    %v7217 = vshrl.u32 %v7216, 7
    %v7218 = vsub.s32 2, %v7217
    %v7219 = vrot.slane %v7206, %v7218
    %v7220 = vlaneseq
    %v7221 = vshrl.u32 %v7220, 7
    %v7222 = vsub.s32 3, %v7221
    %v7223 = vrot.slane %v7206, %v7222
    %v7224 = vlaneseq
    %v7225 = vshrl.u32 %v7224, 7
    %v7226 = vsub.s32 4, %v7225
    %v7227 = vrot.slane %v7206, %v7226
    %v7228 = vlaneseq
    %v7229 = vshrl.u32 %v7228, 7
    %v7230 = vsub.s32 5, %v7229
    %v7231 = vrot.slane %v7206, %v7230
    %v7232 = vlaneseq
    %v7233 = vshrl.u32 %v7232, 7
    %v7234 = vsub.s32 6, %v7233
    %v7235 = vrot.slane %v7206, %v7234
    %v7236 = vlaneseq
    %v7237 = vshrl.u32 %v7236, 7
    %v7238 = vsub.s32 7, %v7237
    %v7239 = vrot.slane %v7206, %v7238
    %v7248 = vadd.f32 %v7190, %v7211
    %v7249 = vadd.f32 %v7191, %v7215
    %v7250 = vadd.f32 %v7192, %v7219
    %v7251 = vadd.f32 %v7193, %v7223
    %v7252 = vadd.f32 %v7194, %v7227
    %v7253 = vadd.f32 %v7195, %v7231
    %v7254 = vadd.f32 %v7196, %v7235
    %v7255 = vadd.f32 %v7197, %v7239
    %v7256 = vadd.f32 %v7198, %v7211
    %v7257 = vadd.f32 %v7199, %v7215
    %v7258 = vadd.f32 %v7200, %v7219
    %v7259 = vadd.f32 %v7201, %v7223
    %v7260 = vadd.f32 %v7202, %v7227
    %v7261 = vadd.f32 %v7203, %v7231
    %v7262 = vadd.f32 %v7204, %v7235
    %v7263 = vadd.f32 %v7205, %v7239
    %v7264 = vmax.f32 %v7248, 0.0
    %v7265 = vmax.f32 %v7249, 0.0
    %v7266 = vmax.f32 %v7250, 0.0
    %v7267 = vmax.f32 %v7251, 0.0
    %v7268 = vmax.f32 %v7252, 0.0
    %v7269 = vmax.f32 %v7253, 0.0
    %v7270 = vmax.f32 %v7254, 0.0
    %v7271 = vmax.f32 %v7255, 0.0
    %v7272 = vmax.f32 %v7256, 0.0
    %v7273 = vmax.f32 %v7257, 0.0
    %v7274 = vmax.f32 %v7258, 0.0
    %v7275 = vmax.f32 %v7259, 0.0
    %v7276 = vmax.f32 %v7260, 0.0
    %v7277 = vmax.f32 %v7261, 0.0
    %v7278 = vmax.f32 %v7262, 0.0
    %v7279 = vmax.f32 %v7263, 0.0
    %v7280 = vpack.c.bf16 %v7272, %v7264
    %v7281 = vpack.c.bf16 %v7273, %v7265
    %v7282 = vpack.c.bf16 %v7274, %v7266
    %v7283 = vpack.c.bf16 %v7275, %v7267
    %v7284 = vpack.c.bf16 %v7276, %v7268
    %v7285 = vpack.c.bf16 %v7277, %v7269
    %v7286 = vpack.c.bf16 %v7278, %v7270
    %v7287 = vpack.c.bf16 %v7279, %v7271
    %v7288 = vld [vmem:[#allocation14] sm:$0xf]
    %v7289 = vld [vmem:[#allocation14 + $0x4] sm:$0xf]
    %v7290 = vld [vmem:[#allocation14 + $0x8] sm:$0xf]
    %v7291 = vld [vmem:[#allocation14 + $0xc] sm:$0xf]
    %v7292 = vld [vmem:[#allocation14 + $0x10] sm:$0xf]
    %v7293 = vld [vmem:[#allocation14 + $0x14] sm:$0xf]
    %v7294 = vld [vmem:[#allocation14 + $0x18] sm:$0xf]
    %v7295 = vld [vmem:[#allocation14 + $0x1c] sm:$0xf]
    %v7296 = vld [vmem:[#allocation14 + $0x20] sm:$0xf]
    %v7297 = vld [vmem:[#allocation14 + $0x24] sm:$0xf]
    %v7298 = vld [vmem:[#allocation14 + $0x28] sm:$0xf]
    %v7299 = vld [vmem:[#allocation14 + $0x2c] sm:$0xf]
    %v7300 = vld [vmem:[#allocation14 + $0x30] sm:$0xf]
    %v7301 = vld [vmem:[#allocation14 + $0x34] sm:$0xf]
    %v7302 = vld [vmem:[#allocation14 + $0x38] sm:$0xf]
    %v7303 = vld [vmem:[#allocation14 + $0x3c] sm:$0xf]
    %v7304 = vld [vmem:[#allocation14 + $0x40] sm:$0xf]
    %v7305 = vld [vmem:[#allocation14 + $0x44] sm:$0xf]
    %v7306 = vld [vmem:[#allocation14 + $0x48] sm:$0xf]
    %v7307 = vld [vmem:[#allocation14 + $0x4c] sm:$0xf]
    %v7308 = vld [vmem:[#allocation14 + $0x50] sm:$0xf]
    %v7309 = vld [vmem:[#allocation14 + $0x54] sm:$0xf]
    %v7310 = vld [vmem:[#allocation14 + $0x58] sm:$0xf]
    %v7311 = vld [vmem:[#allocation14 + $0x5c] sm:$0xf]
    %v7312 = vld [vmem:[#allocation14 + $0x60] sm:$0xf]
    %v7313 = vld [vmem:[#allocation14 + $0x64] sm:$0xf]
    %v7314 = vld [vmem:[#allocation14 + $0x68] sm:$0xf]
    %v7315 = vld [vmem:[#allocation14 + $0x6c] sm:$0xf]
    %v7316 = vld [vmem:[#allocation14 + $0x70] sm:$0xf]
    %v7317 = vld [vmem:[#allocation14 + $0x74] sm:$0xf]
    %v7318 = vld [vmem:[#allocation14 + $0x78] sm:$0xf]
    %v7319 = vld [vmem:[#allocation14 + $0x7c] sm:$0xf]
    %v7320 = vld [vmem:[#allocation14 + $0x80] sm:$0xf]
    %v7321 = vld [vmem:[#allocation14 + $0x84] sm:$0xf]
    %v7322 = vld [vmem:[#allocation14 + $0x88] sm:$0xf]
    %v7323 = vld [vmem:[#allocation14 + $0x8c] sm:$0xf]
    %v7324 = vld [vmem:[#allocation14 + $0x90] sm:$0xf]
    %v7325 = vld [vmem:[#allocation14 + $0x94] sm:$0xf]
    %v7326 = vld [vmem:[#allocation14 + $0x98] sm:$0xf]
    %v7327 = vld [vmem:[#allocation14 + $0x9c] sm:$0xf]
    %v7328 = vld [vmem:[#allocation14 + $0xa0] sm:$0xf]
    %v7329 = vld [vmem:[#allocation14 + $0xa4] sm:$0xf]
    %v7330 = vld [vmem:[#allocation14 + $0xa8] sm:$0xf]
    %v7331 = vld [vmem:[#allocation14 + $0xac] sm:$0xf]
    %v7332 = vld [vmem:[#allocation14 + $0xb0] sm:$0xf]
    %v7333 = vld [vmem:[#allocation14 + $0xb4] sm:$0xf]
    %v7334 = vld [vmem:[#allocation14 + $0xb8] sm:$0xf]
    %v7335 = vld [vmem:[#allocation14 + $0xbc] sm:$0xf]
    %v7336 = vld [vmem:[#allocation14 + $0xc0] sm:$0xf]
    %v7337 = vld [vmem:[#allocation14 + $0xc4] sm:$0xf]
    %v7338 = vld [vmem:[#allocation14 + $0xc8] sm:$0xf]
    %v7339 = vld [vmem:[#allocation14 + $0xcc] sm:$0xf]
    %v7340 = vld [vmem:[#allocation14 + $0xd0] sm:$0xf]
    %v7341 = vld [vmem:[#allocation14 + $0xd4] sm:$0xf]
    %v7342 = vld [vmem:[#allocation14 + $0xd8] sm:$0xf]
    %v7343 = vld [vmem:[#allocation14 + $0xdc] sm:$0xf]
    %v7344 = vld [vmem:[#allocation14 + $0xe0] sm:$0xf]
    %v7345 = vld [vmem:[#allocation14 + $0xe4] sm:$0xf]
    %v7346 = vld [vmem:[#allocation14 + $0xe8] sm:$0xf]
    %v7347 = vld [vmem:[#allocation14 + $0xec] sm:$0xf]
    %v7348 = vld [vmem:[#allocation14 + $0xf0] sm:$0xf]
    %v7349 = vld [vmem:[#allocation14 + $0xf4] sm:$0xf]
    %v7350 = vld [vmem:[#allocation14 + $0xf8] sm:$0xf]
    %v7351 = vld [vmem:[#allocation14 + $0xfc] sm:$0xf]
    %v7352 = vld [vmem:[#allocation14 + $0x100] sm:$0xf]
    %v7353 = vld [vmem:[#allocation14 + $0x104] sm:$0xf]
    %v7354 = vld [vmem:[#allocation14 + $0x108] sm:$0xf]
    %v7355 = vld [vmem:[#allocation14 + $0x10c] sm:$0xf]
    %v7356 = vld [vmem:[#allocation14 + $0x110] sm:$0xf]
    %v7357 = vld [vmem:[#allocation14 + $0x114] sm:$0xf]
    %v7358 = vld [vmem:[#allocation14 + $0x118] sm:$0xf]
    %v7359 = vld [vmem:[#allocation14 + $0x11c] sm:$0xf]
    %v7360 = vld [vmem:[#allocation14 + $0x120] sm:$0xf]
    %v7361 = vld [vmem:[#allocation14 + $0x124] sm:$0xf]
    %v7362 = vld [vmem:[#allocation14 + $0x128] sm:$0xf]
    %v7363 = vld [vmem:[#allocation14 + $0x12c] sm:$0xf]
    %v7364 = vld [vmem:[#allocation14 + $0x130] sm:$0xf]
    %v7365 = vld [vmem:[#allocation14 + $0x134] sm:$0xf]
    %v7366 = vld [vmem:[#allocation14 + $0x138] sm:$0xf]
    %v7367 = vld [vmem:[#allocation14 + $0x13c] sm:$0xf]
    %v7368 = vld [vmem:[#allocation14 + $0x140] sm:$0xf]
    %v7369 = vld [vmem:[#allocation14 + $0x144] sm:$0xf]
    %v7370 = vld [vmem:[#allocation14 + $0x148] sm:$0xf]
    %v7371 = vld [vmem:[#allocation14 + $0x14c] sm:$0xf]
    %v7372 = vld [vmem:[#allocation14 + $0x150] sm:$0xf]
    %v7373 = vld [vmem:[#allocation14 + $0x154] sm:$0xf]
    %v7374 = vld [vmem:[#allocation14 + $0x158] sm:$0xf]
    %v7375 = vld [vmem:[#allocation14 + $0x15c] sm:$0xf]
    %v7376 = vld [vmem:[#allocation14 + $0x160] sm:$0xf]
    %v7377 = vld [vmem:[#allocation14 + $0x164] sm:$0xf]
    %v7378 = vld [vmem:[#allocation14 + $0x168] sm:$0xf]
    %v7379 = vld [vmem:[#allocation14 + $0x16c] sm:$0xf]
    %v7380 = vld [vmem:[#allocation14 + $0x170] sm:$0xf]
    %v7381 = vld [vmem:[#allocation14 + $0x174] sm:$0xf]
    %v7382 = vld [vmem:[#allocation14 + $0x178] sm:$0xf]
    %v7383 = vld [vmem:[#allocation14 + $0x17c] sm:$0xf]
    %v7384 = vld [vmem:[#allocation14 + $0x180] sm:$0xf]
    %v7385 = vld [vmem:[#allocation14 + $0x184] sm:$0xf]
    %v7386 = vld [vmem:[#allocation14 + $0x188] sm:$0xf]
    %v7387 = vld [vmem:[#allocation14 + $0x18c] sm:$0xf]
    %v7388 = vld [vmem:[#allocation14 + $0x190] sm:$0xf]
    %v7389 = vld [vmem:[#allocation14 + $0x194] sm:$0xf]
    %v7390 = vld [vmem:[#allocation14 + $0x198] sm:$0xf]
    %v7391 = vld [vmem:[#allocation14 + $0x19c] sm:$0xf]
    %v7392 = vld [vmem:[#allocation14 + $0x1a0] sm:$0xf]
    %v7393 = vld [vmem:[#allocation14 + $0x1a4] sm:$0xf]
    %v7394 = vld [vmem:[#allocation14 + $0x1a8] sm:$0xf]
    %v7395 = vld [vmem:[#allocation14 + $0x1ac] sm:$0xf]
    %v7396 = vld [vmem:[#allocation14 + $0x1b0] sm:$0xf]
    %v7397 = vld [vmem:[#allocation14 + $0x1b4] sm:$0xf]
    %v7398 = vld [vmem:[#allocation14 + $0x1b8] sm:$0xf]
    %v7399 = vld [vmem:[#allocation14 + $0x1bc] sm:$0xf]
    %v7400 = vld [vmem:[#allocation14 + $0x1c0] sm:$0xf]
    %v7401 = vld [vmem:[#allocation14 + $0x1c4] sm:$0xf]
    %v7402 = vld [vmem:[#allocation14 + $0x1c8] sm:$0xf]
    %v7403 = vld [vmem:[#allocation14 + $0x1cc] sm:$0xf]
    %v7404 = vld [vmem:[#allocation14 + $0x1d0] sm:$0xf]
    %v7405 = vld [vmem:[#allocation14 + $0x1d4] sm:$0xf]
    %v7406 = vld [vmem:[#allocation14 + $0x1d8] sm:$0xf]
    %v7407 = vld [vmem:[#allocation14 + $0x1dc] sm:$0xf]
    %v7408 = vld [vmem:[#allocation14 + $0x1e0] sm:$0xf]
    %v7409 = vld [vmem:[#allocation14 + $0x1e4] sm:$0xf]
    %v7410 = vld [vmem:[#allocation14 + $0x1e8] sm:$0xf]
    %v7411 = vld [vmem:[#allocation14 + $0x1ec] sm:$0xf]
    %v7412 = vld [vmem:[#allocation14 + $0x1f0] sm:$0xf]
    %v7413 = vld [vmem:[#allocation14 + $0x1f4] sm:$0xf]
    %v7414 = vld [vmem:[#allocation14 + $0x1f8] sm:$0xf]
    %v7415 = vld [vmem:[#allocation14 + $0x1fc] sm:$0xf]
    %v7544 = vunpack.c.l.b16 %v7288
    %v7545 = vunpack.c.l.b16 %v7289
    %v7546 = vunpack.c.l.b16 %v7290
    %v7547 = vunpack.c.l.b16 %v7291
    %v7548 = vunpack.c.l.b16 %v7292
    %v7549 = vunpack.c.l.b16 %v7293
    %v7550 = vunpack.c.l.b16 %v7294
    %v7551 = vunpack.c.l.b16 %v7295
    %v7552 = vunpack.c.l.b16 %v7296
    %v7553 = vunpack.c.l.b16 %v7297
    %v7554 = vunpack.c.l.b16 %v7298
    %v7555 = vunpack.c.l.b16 %v7299
    %v7556 = vunpack.c.l.b16 %v7300
    %v7557 = vunpack.c.l.b16 %v7301
    %v7558 = vunpack.c.l.b16 %v7302
    %v7559 = vunpack.c.l.b16 %v7303
    %v7560 = vunpack.c.l.b16 %v7304
    %v7561 = vunpack.c.l.b16 %v7305
    %v7562 = vunpack.c.l.b16 %v7306
    %v7563 = vunpack.c.l.b16 %v7307
    %v7564 = vunpack.c.l.b16 %v7308
    %v7565 = vunpack.c.l.b16 %v7309
    %v7566 = vunpack.c.l.b16 %v7310
    %v7567 = vunpack.c.l.b16 %v7311
    %v7568 = vunpack.c.l.b16 %v7312
    %v7569 = vunpack.c.l.b16 %v7313
    %v7570 = vunpack.c.l.b16 %v7314
    %v7571 = vunpack.c.l.b16 %v7315
    %v7572 = vunpack.c.l.b16 %v7316
    %v7573 = vunpack.c.l.b16 %v7317
    %v7574 = vunpack.c.l.b16 %v7318
    %v7575 = vunpack.c.l.b16 %v7319
    %v7576 = vunpack.c.l.b16 %v7320
    %v7577 = vunpack.c.l.b16 %v7321
    %v7578 = vunpack.c.l.b16 %v7322
    %v7579 = vunpack.c.l.b16 %v7323
    %v7580 = vunpack.c.l.b16 %v7324
    %v7581 = vunpack.c.l.b16 %v7325
    %v7582 = vunpack.c.l.b16 %v7326
    %v7583 = vunpack.c.l.b16 %v7327
    %v7584 = vunpack.c.l.b16 %v7328
    %v7585 = vunpack.c.l.b16 %v7329
    %v7586 = vunpack.c.l.b16 %v7330
    %v7587 = vunpack.c.l.b16 %v7331
    %v7588 = vunpack.c.l.b16 %v7332
    %v7589 = vunpack.c.l.b16 %v7333
    %v7590 = vunpack.c.l.b16 %v7334
    %v7591 = vunpack.c.l.b16 %v7335
    %v7592 = vunpack.c.l.b16 %v7336
    %v7593 = vunpack.c.l.b16 %v7337
    %v7594 = vunpack.c.l.b16 %v7338
    %v7595 = vunpack.c.l.b16 %v7339
    %v7596 = vunpack.c.l.b16 %v7340
    %v7597 = vunpack.c.l.b16 %v7341
    %v7598 = vunpack.c.l.b16 %v7342
    %v7599 = vunpack.c.l.b16 %v7343
    %v7600 = vunpack.c.l.b16 %v7344
    %v7601 = vunpack.c.l.b16 %v7345
    %v7602 = vunpack.c.l.b16 %v7346
    %v7603 = vunpack.c.l.b16 %v7347
    %v7604 = vunpack.c.l.b16 %v7348
    %v7605 = vunpack.c.l.b16 %v7349
    %v7606 = vunpack.c.l.b16 %v7350
    %v7607 = vunpack.c.l.b16 %v7351
    %v7608 = vunpack.c.l.b16 %v7352
    %v7609 = vunpack.c.l.b16 %v7353
    %v7610 = vunpack.c.l.b16 %v7354
    %v7611 = vunpack.c.l.b16 %v7355
    %v7612 = vunpack.c.l.b16 %v7356
    %v7613 = vunpack.c.l.b16 %v7357
    %v7614 = vunpack.c.l.b16 %v7358
    %v7615 = vunpack.c.l.b16 %v7359
    %v7616 = vunpack.c.l.b16 %v7360
    %v7617 = vunpack.c.l.b16 %v7361
    %v7618 = vunpack.c.l.b16 %v7362
    %v7619 = vunpack.c.l.b16 %v7363
    %v7620 = vunpack.c.l.b16 %v7364
    %v7621 = vunpack.c.l.b16 %v7365
    %v7622 = vunpack.c.l.b16 %v7366
    %v7623 = vunpack.c.l.b16 %v7367
    %v7624 = vunpack.c.l.b16 %v7368
    %v7625 = vunpack.c.l.b16 %v7369
    %v7626 = vunpack.c.l.b16 %v7370
    %v7627 = vunpack.c.l.b16 %v7371
    %v7628 = vunpack.c.l.b16 %v7372
    %v7629 = vunpack.c.l.b16 %v7373
    %v7630 = vunpack.c.l.b16 %v7374
    %v7631 = vunpack.c.l.b16 %v7375
    %v7632 = vunpack.c.l.b16 %v7376
    %v7633 = vunpack.c.l.b16 %v7377
    %v7634 = vunpack.c.l.b16 %v7378
    %v7635 = vunpack.c.l.b16 %v7379
    %v7636 = vunpack.c.l.b16 %v7380
    %v7637 = vunpack.c.l.b16 %v7381
    %v7638 = vunpack.c.l.b16 %v7382
    %v7639 = vunpack.c.l.b16 %v7383
    %v7640 = vunpack.c.l.b16 %v7384
    %v7641 = vunpack.c.l.b16 %v7385
    %v7642 = vunpack.c.l.b16 %v7386
    %v7643 = vunpack.c.l.b16 %v7387
    %v7644 = vunpack.c.l.b16 %v7388
    %v7645 = vunpack.c.l.b16 %v7389
    %v7646 = vunpack.c.l.b16 %v7390
    %v7647 = vunpack.c.l.b16 %v7391
    %v7648 = vunpack.c.l.b16 %v7392
    %v7649 = vunpack.c.l.b16 %v7393
    %v7650 = vunpack.c.l.b16 %v7394
    %v7651 = vunpack.c.l.b16 %v7395
    %v7652 = vunpack.c.l.b16 %v7396
    %v7653 = vunpack.c.l.b16 %v7397
    %v7654 = vunpack.c.l.b16 %v7398
    %v7655 = vunpack.c.l.b16 %v7399
    %v7656 = vunpack.c.l.b16 %v7400
    %v7657 = vunpack.c.l.b16 %v7401
    %v7658 = vunpack.c.l.b16 %v7402
    %v7659 = vunpack.c.l.b16 %v7403
    %v7660 = vunpack.c.l.b16 %v7404
    %v7661 = vunpack.c.l.b16 %v7405
    %v7662 = vunpack.c.l.b16 %v7406
    %v7663 = vunpack.c.l.b16 %v7407
    %v7664 = vunpack.c.l.b16 %v7408
    %v7665 = vunpack.c.l.b16 %v7409
    %v7666 = vunpack.c.l.b16 %v7410
    %v7667 = vunpack.c.l.b16 %v7411
    %v7668 = vunpack.c.l.b16 %v7412
    %v7669 = vunpack.c.l.b16 %v7413
    %v7670 = vunpack.c.l.b16 %v7414
    %v7671 = vunpack.c.l.b16 %v7415
    %v7672 = vpack.c.b16 %v7545, %v7544
    %v7673 = vpack.c.b16 %v7547, %v7546
    %v7674 = vpack.c.b16 %v7549, %v7548
    %v7675 = vpack.c.b16 %v7551, %v7550
    %v7676 = vpack.c.b16 %v7553, %v7552
    %v7677 = vpack.c.b16 %v7555, %v7554
    %v7678 = vpack.c.b16 %v7557, %v7556
    %v7679 = vpack.c.b16 %v7559, %v7558
    %v7680 = vpack.c.b16 %v7561, %v7560
    %v7681 = vpack.c.b16 %v7563, %v7562
    %v7682 = vpack.c.b16 %v7565, %v7564
    %v7683 = vpack.c.b16 %v7567, %v7566
    %v7684 = vpack.c.b16 %v7569, %v7568
    %v7685 = vpack.c.b16 %v7571, %v7570
    %v7686 = vpack.c.b16 %v7573, %v7572
    %v7687 = vpack.c.b16 %v7575, %v7574
    %v7688 = vpack.c.b16 %v7577, %v7576
    %v7689 = vpack.c.b16 %v7579, %v7578
    %v7690 = vpack.c.b16 %v7581, %v7580
    %v7691 = vpack.c.b16 %v7583, %v7582
    %v7692 = vpack.c.b16 %v7585, %v7584
    %v7693 = vpack.c.b16 %v7587, %v7586
    %v7694 = vpack.c.b16 %v7589, %v7588
    %v7695 = vpack.c.b16 %v7591, %v7590
    %v7696 = vpack.c.b16 %v7593, %v7592
    %v7697 = vpack.c.b16 %v7595, %v7594
    %v7698 = vpack.c.b16 %v7597, %v7596
    %v7699 = vpack.c.b16 %v7599, %v7598
    %v7700 = vpack.c.b16 %v7601, %v7600
    %v7701 = vpack.c.b16 %v7603, %v7602
    %v7702 = vpack.c.b16 %v7605, %v7604
    %v7703 = vpack.c.b16 %v7607, %v7606
    %v7704 = vpack.c.b16 %v7609, %v7608
    %v7705 = vpack.c.b16 %v7611, %v7610
    %v7706 = vpack.c.b16 %v7613, %v7612
    %v7707 = vpack.c.b16 %v7615, %v7614
    %v7708 = vpack.c.b16 %v7617, %v7616
    %v7709 = vpack.c.b16 %v7619, %v7618
    %v7710 = vpack.c.b16 %v7621, %v7620
    %v7711 = vpack.c.b16 %v7623, %v7622
    %v7712 = vpack.c.b16 %v7625, %v7624
    %v7713 = vpack.c.b16 %v7627, %v7626
    %v7714 = vpack.c.b16 %v7629, %v7628
    %v7715 = vpack.c.b16 %v7631, %v7630
    %v7716 = vpack.c.b16 %v7633, %v7632
    %v7717 = vpack.c.b16 %v7635, %v7634
    %v7718 = vpack.c.b16 %v7637, %v7636
    %v7719 = vpack.c.b16 %v7639, %v7638
    %v7720 = vpack.c.b16 %v7641, %v7640
    %v7721 = vpack.c.b16 %v7643, %v7642
    %v7722 = vpack.c.b16 %v7645, %v7644
    %v7723 = vpack.c.b16 %v7647, %v7646
    %v7724 = vpack.c.b16 %v7649, %v7648
    %v7725 = vpack.c.b16 %v7651, %v7650
    %v7726 = vpack.c.b16 %v7653, %v7652
    %v7727 = vpack.c.b16 %v7655, %v7654
    %v7728 = vpack.c.b16 %v7657, %v7656
    %v7729 = vpack.c.b16 %v7659, %v7658
    %v7730 = vpack.c.b16 %v7661, %v7660
    %v7731 = vpack.c.b16 %v7663, %v7662
    %v7732 = vpack.c.b16 %v7665, %v7664
    %v7733 = vpack.c.b16 %v7667, %v7666
    %v7734 = vpack.c.b16 %v7669, %v7668
    %v7735 = vpack.c.b16 %v7671, %v7670
    %7800 = vmatprep.subr.bf16.mxu0 0
    %7801 = vmatpush1.bf16.msra.mxu0 %v7672
    %7802 = vmatprep.subr.bf16.mxu0 0
    %7803 = vmatpush1.bf16.msra.mxu0 %v7673
    %7804 = vmatprep.subr.bf16.mxu0 0
    %7805 = vmatpush1.bf16.msra.mxu0 %v7674
    %7806 = vmatprep.subr.bf16.mxu0 0
    %7807 = vmatpush1.bf16.msra.mxu0 %v7675
    %7808 = vmatprep.subr.bf16.mxu0 0
    %7809 = vmatpush1.bf16.msra.mxu0 %v7676
    %7810 = vmatprep.subr.bf16.mxu0 0
    %7811 = vmatpush1.bf16.msra.mxu0 %v7677
    %7812 = vmatprep.subr.bf16.mxu0 0
    %7813 = vmatpush1.bf16.msra.mxu0 %v7678
    %7814 = vmatprep.subr.bf16.mxu0 0
    %7815 = vmatpush1.bf16.msra.mxu0 %v7679
    %7816 = vmatprep.subr.bf16.mxu0 0
    %7817 = vmatpush1.bf16.msra.mxu0 %v7680
    %7818 = vmatprep.subr.bf16.mxu0 0
    %7819 = vmatpush1.bf16.msra.mxu0 %v7681
    %7820 = vmatprep.subr.bf16.mxu0 0
    %7821 = vmatpush1.bf16.msra.mxu0 %v7682
    %7822 = vmatprep.subr.bf16.mxu0 0
    %7823 = vmatpush1.bf16.msra.mxu0 %v7683
    %7824 = vmatprep.subr.bf16.mxu0 0
    %7825 = vmatpush1.bf16.msra.mxu0 %v7684
    %7826 = vmatprep.subr.bf16.mxu0 0
    %7827 = vmatpush1.bf16.msra.mxu0 %v7685
    %7828 = vmatprep.subr.bf16.mxu0 0
    %7829 = vmatpush1.bf16.msra.mxu0 %v7686
    %7830 = vmatprep.subr.bf16.mxu0 0
    %7831 = vmatpush1.bf16.msra.mxu0 %v7687
    %7832 = vmatprep.mubr.bf16.mxu0 %v7281
    %7833 = vmatmul.mubr.bf16.gmra.mrb[0].mxu0 %v7280
    %v7834 = vpop.f32.mrb[0].mxu0
    %v7835 = vadd.f32 0.0, %v7834
    %v7836 = vpop.f32.mrb[0].mxu0
    %v7837 = vpop.f32.mrb[0].mxu0
    %v7838 = vadd.f32 0.0, %v7837
    %v7839 = vpop.f32.mrb[0].mxu0
    %7840 = vdwg.mxu0
    %7841 = vmatprep.subr.bf16.mxu0 0
    %7842 = vmatpush1.bf16.msra.mxu0 %v7688
    %7843 = vmatprep.subr.bf16.mxu0 0
    %7844 = vmatpush1.bf16.msra.mxu0 %v7689
    %7845 = vmatprep.subr.bf16.mxu0 0
    %7846 = vmatpush1.bf16.msra.mxu0 %v7690
    %7847 = vmatprep.subr.bf16.mxu0 0
    %7848 = vmatpush1.bf16.msra.mxu0 %v7691
    %7849 = vmatprep.subr.bf16.mxu0 0
    %7850 = vmatpush1.bf16.msra.mxu0 %v7692
    %7851 = vmatprep.subr.bf16.mxu0 0
    %7852 = vmatpush1.bf16.msra.mxu0 %v7693
    %7853 = vmatprep.subr.bf16.mxu0 0
    %7854 = vmatpush1.bf16.msra.mxu0 %v7694
    %7855 = vmatprep.subr.bf16.mxu0 0
    %7856 = vmatpush1.bf16.msra.mxu0 %v7695
    %7857 = vmatprep.subr.bf16.mxu0 0
    %7858 = vmatpush1.bf16.msra.mxu0 %v7696
    %7859 = vmatprep.subr.bf16.mxu0 0
    %7860 = vmatpush1.bf16.msra.mxu0 %v7697
    %7861 = vmatprep.subr.bf16.mxu0 0
    %7862 = vmatpush1.bf16.msra.mxu0 %v7698
    %7863 = vmatprep.subr.bf16.mxu0 0
    %7864 = vmatpush1.bf16.msra.mxu0 %v7699
    %7865 = vmatprep.subr.bf16.mxu0 0
    %7866 = vmatpush1.bf16.msra.mxu0 %v7700
    %7867 = vmatprep.subr.bf16.mxu0 0
    %7868 = vmatpush1.bf16.msra.mxu0 %v7701
    %7869 = vmatprep.subr.bf16.mxu0 0
    %7870 = vmatpush1.bf16.msra.mxu0 %v7702
    %7871 = vmatprep.subr.bf16.mxu0 0
    %7872 = vmatpush1.bf16.msra.mxu0 %v7703
    %7873 = vmatprep.mubr.bf16.mxu0 %v7283
    %7874 = vmatmul.mubr.bf16.gmra.mrb[0].mxu0 %v7282
    %v7875 = vpop.f32.mrb[0].mxu0
    %v7876 = vadd.f32 %v7835, %v7875
    %v7877 = vpop.f32.mrb[0].mxu0
    %v7878 = vpop.f32.mrb[0].mxu0
    %v7879 = vadd.f32 %v7838, %v7878
    %v7880 = vpop.f32.mrb[0].mxu0
    %7881 = vdwg.mxu0
    %7882 = vmatprep.subr.bf16.mxu0 0
    %7883 = vmatpush1.bf16.msra.mxu0 %v7704
    %7884 = vmatprep.subr.bf16.mxu0 0
    %7885 = vmatpush1.bf16.msra.mxu0 %v7705
    %7886 = vmatprep.subr.bf16.mxu0 0
    %7887 = vmatpush1.bf16.msra.mxu0 %v7706
    %7888 = vmatprep.subr.bf16.mxu0 0
    %7889 = vmatpush1.bf16.msra.mxu0 %v7707
    %7890 = vmatprep.subr.bf16.mxu0 0
    %7891 = vmatpush1.bf16.msra.mxu0 %v7708
    %7892 = vmatprep.subr.bf16.mxu0 0
    %7893 = vmatpush1.bf16.msra.mxu0 %v7709
    %7894 = vmatprep.subr.bf16.mxu0 0
    %7895 = vmatpush1.bf16.msra.mxu0 %v7710
    %7896 = vmatprep.subr.bf16.mxu0 0
    %7897 = vmatpush1.bf16.msra.mxu0 %v7711
    %7898 = vmatprep.subr.bf16.mxu0 0
    %7899 = vmatpush1.bf16.msra.mxu0 %v7712
    %7900 = vmatprep.subr.bf16.mxu0 0
    %7901 = vmatpush1.bf16.msra.mxu0 %v7713
    %7902 = vmatprep.subr.bf16.mxu0 0
    %7903 = vmatpush1.bf16.msra.mxu0 %v7714
    %7904 = vmatprep.subr.bf16.mxu0 0
    %7905 = vmatpush1.bf16.msra.mxu0 %v7715
    %7906 = vmatprep.subr.bf16.mxu0 0
    %7907 = vmatpush1.bf16.msra.mxu0 %v7716
    %7908 = vmatprep.subr.bf16.mxu0 0
    %7909 = vmatpush1.bf16.msra.mxu0 %v7717
    %7910 = vmatprep.subr.bf16.mxu0 0
    %7911 = vmatpush1.bf16.msra.mxu0 %v7718
    %7912 = vmatprep.subr.bf16.mxu0 0
    %7913 = vmatpush1.bf16.msra.mxu0 %v7719
    %7914 = vmatprep.mubr.bf16.mxu0 %v7285
    %7915 = vmatmul.mubr.bf16.gmra.mrb[0].mxu0 %v7284
    %v7916 = vpop.f32.mrb[0].mxu0
    %v7917 = vadd.f32 %v7876, %v7916
    %v7918 = vpop.f32.mrb[0].mxu0
    %v7919 = vpop.f32.mrb[0].mxu0
    %v7920 = vadd.f32 %v7879, %v7919
    %v7921 = vpop.f32.mrb[0].mxu0
    %7922 = vdwg.mxu0
    %7923 = vmatprep.subr.bf16.mxu0 0
    %7924 = vmatpush1.bf16.msra.mxu0 %v7720
    %7925 = vmatprep.subr.bf16.mxu0 0
    %7926 = vmatpush1.bf16.msra.mxu0 %v7721
    %7927 = vmatprep.subr.bf16.mxu0 0
    %7928 = vmatpush1.bf16.msra.mxu0 %v7722
    %7929 = vmatprep.subr.bf16.mxu0 0
    %7930 = vmatpush1.bf16.msra.mxu0 %v7723
    %7931 = vmatprep.subr.bf16.mxu0 0
    %7932 = vmatpush1.bf16.msra.mxu0 %v7724
    %7933 = vmatprep.subr.bf16.mxu0 0
    %7934 = vmatpush1.bf16.msra.mxu0 %v7725
    %7935 = vmatprep.subr.bf16.mxu0 0
    %7936 = vmatpush1.bf16.msra.mxu0 %v7726
    %7937 = vmatprep.subr.bf16.mxu0 0
    %7938 = vmatpush1.bf16.msra.mxu0 %v7727
    %7939 = vmatprep.subr.bf16.mxu0 0
    %7940 = vmatpush1.bf16.msra.mxu0 %v7728
    %7941 = vmatprep.subr.bf16.mxu0 0
    %7942 = vmatpush1.bf16.msra.mxu0 %v7729
    %7943 = vmatprep.subr.bf16.mxu0 0
    %7944 = vmatpush1.bf16.msra.mxu0 %v7730
    %7945 = vmatprep.subr.bf16.mxu0 0
    %7946 = vmatpush1.bf16.msra.mxu0 %v7731
    %7947 = vmatprep.subr.bf16.mxu0 0
    %7948 = vmatpush1.bf16.msra.mxu0 %v7732
    %7949 = vmatprep.subr.bf16.mxu0 0
    %7950 = vmatpush1.bf16.msra.mxu0 %v7733
    %7951 = vmatprep.subr.bf16.mxu0 0
    %7952 = vmatpush1.bf16.msra.mxu0 %v7734
    %7953 = vmatprep.subr.bf16.mxu0 0
    %7954 = vmatpush1.bf16.msra.mxu0 %v7735
    %7955 = vmatprep.mubr.bf16.mxu0 %v7287
    %7956 = vmatmul.mubr.bf16.gmra.mrb[0].mxu0 %v7286
    %v7957 = vpop.f32.mrb[0].mxu0
    %v7958 = vadd.f32 %v7917, %v7957
    %v7959 = vpop.f32.mrb[0].mxu0
    %v7960 = vpop.f32.mrb[0].mxu0
    %v7961 = vadd.f32 %v7920, %v7960
    %v7962 = vpop.f32.mrb[0].mxu0
    %7963 = vdwg.mxu0
    %v7964 = vld [vmem:[#allocation16] sm:$0x1]
    %v7966 = vlaneseq
    %v7967 = vshrl.u32 %v7966, 7
    %v7968 = vsub.s32 0, %v7967
    %v7969 = vrot.slane %v7964, %v7968
    %v7971 = vmul.f32 %v7958, %v7969
    %v7972 = vmul.f32 %v7961, %v7969
    %v7973 = vld [vmem:[#allocation17] sm:$0x1]
    %v7975 = vlaneseq
    %v7976 = vshrl.u32 %v7975, 7
    %v7977 = vsub.s32 0, %v7976
    %v7978 = vrot.slane %v7973, %v7977
    %v7980 = vadd.f32 %v7971, %v7978
    %v7981 = vadd.f32 %v7972, %v7978
    %7982 = vmax.xlane.f32.xlu0 %v7980
    %v7983 = vpop.xlane.xlu0 %7982
    %7984 = vmax.xlane.f32.xlu0 %v7981
    %v7985 = vpop.xlane.xlu0 %7984
    %v7986 = vsub.f32 %v7980, %v7983
    %v7987 = vsub.f32 %v7981, %v7985
    %v7988 = vmul.f32 %v7986, 1.442695
    %v7989 = vpow.pop %v7988
    %v7990 = vmul.f32 %v7987, 1.442695
    %v7991 = vpow.pop %v7990
    %7992 = vadd.xlane.f32.xlu0 %v7989
    %v7993 = vpop.xlane.xlu0 %7992
    %7994 = vadd.xlane.f32.xlu0 %v7991
    %v7995 = vpop.xlane.xlu0 %7994
    %v7996 = vlog2.pop %v7993
    %v7997 = vmul.f32 %v7996, 0.6931472
    %v7998 = vlog2.pop %v7995
    %v7999 = vmul.f32 %v7998, 0.6931472
    %v8000 = vsub.f32 %v7986, %v7997
    %v8001 = vsub.f32 %v7987, %v7999
    %8002 = vst [vmem:[#allocation19] sm:$0xff] %v8000
    %8003 = vst [vmem:[#allocation19 + $0x8] sm:$0xff] %v8001
    // Predicated region
    $region82: #{tpu_custom_call.1} parent=1 // pred_check
      _
    $region83: #{tpu_custom_call.1} parent=1 // pred_check_branch
      %8005 = sbr.rel (0) target = $region85
    $region84: #{tpu_custom_call.1} parent=1 // pred_region
      %s8007 = ssub.s32 256, 256
      %8008 = vsyncadd [#allocation4], %s8007
      %s8009 = sshll.u32 [#allocation19], 4
      %s8010 = int_to_ptr.vmem [resolvable:$true] %s8009
      %8015 = dma.vmem_to_hbm [thread:$0]  %s8010, 256, %s10, [#allocation4], 128, 128, 8
    $region85: #{tpu_custom_call.1} parent=1 // pred_fallthru
      _
    // Predicated region
    $region86: #{tpu_custom_call.1} parent=1 // pred_check
      _
    $region87: #{tpu_custom_call.1} parent=1 // pred_check_branch
      %8017 = sbr.rel (0) target = $region89
    $region88: #{tpu_custom_call.1} parent=1 // pred_region
      %8018 = dma.done [#allocation4], 256
    $region89: #{tpu_custom_call.1} parent=1 // pred_fallthru
      _
    %8019 = vsyncpa [#allocation3], 1
    %8020 = vsyncpa [#allocation6], 1
    %8021 = vsyncpa [#allocation9], 1
    %8022 = vsyncpa [#allocation12], 1
    %8023 = vsyncpa [#allocation15], 1
    %8024 = vsyncpa [#allocation18], 1
    %8025 = vsyncpa [#allocation4], 1

</llo_original>
